<compile_context>
chip_gen: v7x
topology: tpu7x:2x2x1
jax: 0.10.0
libtpu: 0.0.40
codegen_flags: <defaults>
</compile_context>

<pallas_src>
import functools
import numpy as np
import jax
import jax.numpy as jnp
from jax import lax
from jax.experimental import pallas as pl
from jax.experimental.pallas import tpu as pltpu


# ----------------------------- Pallas kernel ------------------------------ #
def _window_attn_kernel(x_ref, wqkv_ref, bias_ref, wp_ref, bp_ref, o_ref, *,
                        heads, chunk):
    # x_ref:    (R, C)               bf16, R = block_windows * N rows
    # wqkv_ref: (C, 3C)              bf16 fused qkv weight (scale folded into q)
    # bias_ref: (H, chunk, chunk)    f32 pre-tiled rel-pos bias + block-diag mask
    # wp_ref:   (C, C)               bf16 output projection
    # bp_ref:   (1, C)               f32 output projection bias
    # o_ref:    (R, C)               f32 output
    r, c = x_ref.shape
    d = c // heads
    n_chunks = r // chunk

    # fused QKV projection: one full-width lane-dense MXU matmul, f32 accumulate
    qkv = jnp.dot(x_ref[...], wqkv_ref[...],
                  preferred_element_type=jnp.float32)          # (R, 3C) f32
    qkv = qkv.astype(jnp.bfloat16)                             # MXU operands bf16

    ctx_chunks = []
    for ci in range(n_chunks):                                 # 128-row attention chunks
        r0 = ci * chunk
        head_ctx = []
        for h in range(heads):                                 # static unroll
            q = qkv[r0:r0 + chunk, h * d:(h + 1) * d]                  # (chunk, d)
            k = qkv[r0:r0 + chunk, c + h * d:c + (h + 1) * d]          # (chunk, d)
            v = qkv[r0:r0 + chunk, 2 * c + h * d:2 * c + (h + 1) * d]  # (chunk, d)

            # block-diagonal scores: full (chunk, chunk) MXU tile, q @ k^T
            s = lax.dot_general(q, k, (((1,), (1,)), ((), ())),
                                preferred_element_type=jnp.float32)
            # bias already carries -1e30 on cross-window entries
            s = s + bias_ref[h]

            # softmax over the 128 lanes (f32), denominator via EUP reciprocal
            s = s - jnp.max(s, axis=-1, keepdims=True)
            p = jnp.exp(s)
            p = p * pl.reciprocal(jnp.sum(p, axis=-1, keepdims=True), approx=True)

            head_ctx.append(jnp.dot(p.astype(jnp.bfloat16), v,
                                    preferred_element_type=jnp.float32))  # (chunk, d)
        ctx_chunks.append(jnp.concatenate(head_ctx, axis=-1))  # (chunk, C)

    ctx = jnp.concatenate(ctx_chunks, axis=0)                  # (R, C) f32

    # fused output projection: single full-depth (R,C)x(C,C) matmul + bias
    out = jnp.dot(ctx.astype(jnp.bfloat16), wp_ref[...],
                  preferred_element_type=jnp.float32) + bp_ref[...]
    o_ref[...] = out.astype(o_ref.dtype)


def window_attention_3d(x, w_qkv_t, rel_bias, w_proj_t, b_proj, *,
                        heads, scale, block_windows=64, attn_chunk=128):
    """x: (B, N, C); w_qkv_t: (C, 3C); rel_bias: (H, N, N);
       w_proj_t: (C, C); b_proj: (1, C)."""
    b, n, c = x.shape
    d = c // heads
    assert c % heads == 0
    assert attn_chunk % n == 0
    wins_per_chunk = attn_chunk // n
    assert block_windows % wins_per_chunk == 0, "block must hold whole attention chunks"
    assert b % block_windows == 0, "B must be divisible by the window tile"

    # --- one-time parameter prep (outside the hot loop) ---------------------
    # fused qkv weight with `scale` folded into the q columns; bf16 MXU operand
    wqkv = jnp.concatenate([w_qkv_t[:, :c] * scale, w_qkv_t[:, c:]], axis=1)
    wqkv = wqkv.astype(jnp.bfloat16)                                  # (C, 3C)
    wp = w_proj_t.astype(jnp.bfloat16)                                # (C, C)
    bp = b_proj.astype(jnp.float32)                                   # (1, C)

    # pre-tiled relative-position bias for a 128-row chunk, with the
    # block-diagonal (same-window) mask folded in as -1e30 off the diagonal.
    bias_tiled = jnp.tile(rel_bias.astype(jnp.float32),
                          (1, wins_per_chunk, wins_per_chunk))        # (H, chunk, chunk)
    win_id = np.arange(attn_chunk) // n
    same_window = jnp.asarray(win_id[:, None] == win_id[None, :])
    bias_tiled = jnp.where(same_window[None], bias_tiled, jnp.float32(-1e30))

    # flatten windows x tokens into lane-dense (rows, C) slabs; cast x to bf16
    xr = x.astype(jnp.bfloat16).reshape(b * n, c)
    rows = block_windows * n

    # advisory cost estimate for the XLA scheduler
    flops = (2 * b * n * c * (3 * c)                       # fused qkv projection
             + heads * 2 * (2 * b * n * attn_chunk * d)    # scores + p@v (block-diag)
             + 2 * b * n * c * c)                          # output projection
    transcendentals = heads * b * n * attn_chunk + heads * b * n
    bytes_accessed = (xr.size * 2 + b * n * c * 4 + wqkv.size * 2 + wp.size * 2
                      + bias_tiled.size * 4 + bp.size * 4)

    kernel = functools.partial(_window_attn_kernel, heads=heads, chunk=attn_chunk)
    out2 = pl.pallas_call(
        kernel,
        out_shape=jax.ShapeDtypeStruct((b * n, c), x.dtype),
        grid_spec=pltpu.PrefetchScalarGridSpec(
            num_scalar_prefetch=0,
            grid=(b // block_windows,),
            in_specs=[
                pl.BlockSpec((rows, c), lambda i: (i, 0)),
                pl.BlockSpec((c, 3 * c), lambda i: (0, 0)),
                pl.BlockSpec((heads, attn_chunk, attn_chunk), lambda i: (0, 0, 0)),
                pl.BlockSpec((c, c), lambda i: (0, 0)),
                pl.BlockSpec((1, c), lambda i: (0, 0)),
            ],
            out_specs=pl.BlockSpec((rows, c), lambda i: (i, 0)),
        ),
        compiler_params=pltpu.CompilerParams(dimension_semantics=("parallel",)),
        cost_estimate=pl.CostEstimate(flops=int(flops),
                                      transcendentals=int(transcendentals),
                                      bytes_accessed=int(bytes_accessed)),
    )(xr, wqkv, bias_tiled, wp, bp)
    return out2.reshape(b, n, c)


# --------------------- relative position index (glue) --------------------- #
def relative_position_index(window_size):
    wd, wh, ww = window_size
    coords = np.stack(np.meshgrid(np.arange(wd), np.arange(wh), np.arange(ww),
                                  indexing="ij")).reshape(3, -1)            # (3, N)
    rel = coords[:, :, None] - coords[:, None, :]                           # (3, N, N)
    rel = rel.transpose(1, 2, 0).astype(np.int64)                           # (N, N, 3)
    rel[:, :, 0] += wd - 1
    rel[:, :, 1] += wh - 1
    rel[:, :, 2] += ww - 1
    rel[:, :, 0] *= (2 * wh - 1) * (2 * ww - 1)
    rel[:, :, 1] *= (2 * ww - 1)
    return rel.sum(-1)                                                      # (N, N)


# ----------------------------- pure-JAX reference -------------------------- #
def reference_forward(x, w_qkv_t, rel_bias, w_proj_t, b_proj, heads, scale):
    b, n, c = x.shape
    d = c // heads
    qkv = x @ w_qkv_t                                       # (B, N, 3C)
    q, k, v = jnp.split(qkv, 3, axis=-1)

    def to_heads(t):
        return t.reshape(b, n, heads, d).transpose(0, 2, 1, 3)  # (B, H, N, d)

    q, k, v = map(to_heads, (q, k, v))
    attn = scale * jnp.einsum("bhnd,bhmd->bhnm", q, k) + rel_bias[None]
    attn = jax.nn.softmax(attn, axis=-1)
    out = jnp.einsum("bhnm,bhmd->bhnd", attn, v)
    out = out.transpose(0, 2, 1, 3).reshape(b, n, c)
    return out @ w_proj_t + b_proj


# ---------------------------------- main ----------------------------------- #
if __name__ == "__main__":
    dim = 128                   # channels per window token (head_dim = 32, lane-dense)
    heads = 4
    window_size = (2, 2, 2)
    wd, wh, ww = window_size
    n = wd * wh * ww            # 8 tokens per 3D window
    b = 128                     # num_windows * batch
    tb = 64                     # windows per grid step -> 512 rows per projection, grid=2
    scale = (dim // heads) ** (-0.5)

    key = jax.random.PRNGKey(0)
    kx, kqkv, kpbt, kpw, kpb = jax.random.split(key, 5)

    # input windows
    x = jax.random.normal(kx, (b, n, dim), dtype=jnp.float32)

    # parameters (deterministic synthetic init)
    # qkv: nn.Linear(dim, 3*dim, bias=False) -> pass weight transposed (C, 3C)
    w_qkv_t = 0.05 * jax.random.normal(kqkv, (dim, 3 * dim), dtype=jnp.float32)
    # pbt: ((2wd-1)(2wh-1)(2ww-1), heads), trunc_normal(std=0.02) ~ normal*0.02
    pbt = 0.02 * jax.random.normal(
        kpbt, ((2 * wd - 1) * (2 * wh - 1) * (2 * ww - 1), heads), dtype=jnp.float32)
    # proj: nn.Linear(dim, dim)
    w_proj_t = 0.05 * jax.random.normal(kpw, (dim, dim), dtype=jnp.float32)
    b_proj = 0.01 * jax.random.normal(kpb, (1, dim), dtype=jnp.float32)

    # gather relative position bias -> (heads, N, N)   (pure indexing, plain JAX)
    rpi = jnp.asarray(relative_position_index(window_size))          # (N, N)
    rel_bias = pbt[rpi.reshape(-1)].reshape(n, n, heads).transpose(2, 0, 1)
    rel_bias = rel_bias.astype(jnp.float32)

    # TODO(synk): attn_dropout / proj_dropout are identity (p=0.0 / eval mode);
    # the optional `mask` argument (mask=None path) is what is implemented.

    out = window_attention_3d(x, w_qkv_t, rel_bias, w_proj_t, b_proj,
                              heads=heads, scale=scale, block_windows=tb)
    out = jax.block_until_ready(out)

    ref = reference_forward(x, w_qkv_t, rel_bias, w_proj_t, b_proj, heads, scale)
    # bf16 MXU operands + approx reciprocal => small drift vs the f32 reference
    np.testing.assert_allclose(np.asarray(out), np.asarray(ref),
                               rtol=3e-2, atol=3e-2)

    print("KERNEL_OK")
</pallas_src>

<mosaic_0001>
module attributes {stable_mosaic.version = 11 : i64} {
  func.func @_window_attn_kernel(%arg0: i32, %arg1: memref<512x128xbf16, #tpu.memory_space<vmem>>, %arg2: memref<128x384xbf16, #tpu.memory_space<vmem>>, %arg3: memref<4x128x128xf32, #tpu.memory_space<vmem>>, %arg4: memref<128x128xbf16, #tpu.memory_space<vmem>>, %arg5: memref<1x128xf32, #tpu.memory_space<vmem>>, %arg6: memref<512x128xf32, #tpu.memory_space<vmem>>) attributes {dimension_semantics = [#tpu.dimension_semantics<parallel>], iteration_bounds = array<i64: 2>, scalar_prefetch = 0 : i64, scratch_operands = 0 : i64, tpu.core_type = #tpu.core_type<tc>, window_params = [{transform_indices = @transform_0, window_bounds = array<i64: 512, 128>}, {pipeline_mode = #tpu.pipeline_mode<synchronous>, transform_indices = @transform_1, window_bounds = array<i64: 128, 384>}, {pipeline_mode = #tpu.pipeline_mode<synchronous>, transform_indices = @transform_2, window_bounds = array<i64: 4, 128, 128>}, {pipeline_mode = #tpu.pipeline_mode<synchronous>, transform_indices = @transform_3, window_bounds = array<i64: 128, 128>}, {pipeline_mode = #tpu.pipeline_mode<synchronous>, transform_indices = @transform_4, window_bounds = array<i64: 1, 128>}, {transform_indices = @transform_5, window_bounds = array<i64: 512, 128>}]} {
    %c0 = arith.constant 0 : index
    %c0_0 = arith.constant 0 : index
    %0 = vector.load %arg1[%c0, %c0_0] : memref<512x128xbf16, #tpu.memory_space<vmem>>, vector<512x128xbf16>
    %c0_1 = arith.constant 0 : index
    %c0_2 = arith.constant 0 : index
    %1 = vector.load %arg2[%c0_1, %c0_2] : memref<128x384xbf16, #tpu.memory_space<vmem>>, vector<128x384xbf16>
    %cst = arith.constant dense<0.000000e+00> : vector<512x384xf32>
    %2 = tpu.matmul %0, %1, %cst {dimension_numbers = #tpu.dot_dimension_numbers<[1], [0], [0], [1], [0, 0, 1, 1], [], []>} : vector<512x128xbf16>, vector<128x384xbf16>, vector<512x384xf32> -> vector<512x384xf32>
    %3 = arith.truncf %2 : vector<512x384xf32> to vector<512x384xbf16>
    %4 = vector.extract_strided_slice %3 {offsets = [0, 0], sizes = [128, 32], strides = [1, 1]} : vector<512x384xbf16> to vector<128x32xbf16>
    %5 = vector.extract_strided_slice %3 {offsets = [0, 128], sizes = [128, 32], strides = [1, 1]} : vector<512x384xbf16> to vector<128x32xbf16>
    %6 = vector.extract_strided_slice %3 {offsets = [0, 256], sizes = [128, 32], strides = [1, 1]} : vector<512x384xbf16> to vector<128x32xbf16>
    %cst_3 = arith.constant dense<0.000000e+00> : vector<128x128xf32>
    %7 = tpu.matmul %4, %5, %cst_3 {dimension_numbers = #tpu.dot_dimension_numbers<[1], [1], [0], [0], [0, 0, 1, 0], [], []>} : vector<128x32xbf16>, vector<128x32xbf16>, vector<128x128xf32> -> vector<128x128xf32>
    %c0_4 = arith.constant 0 : index
    %c0_5 = arith.constant 0 : index
    %c0_6 = arith.constant 0 : index
    %8 = vector.load %arg3[%c0_4, %c0_5, %c0_6] : memref<4x128x128xf32, #tpu.memory_space<vmem>>, vector<1x128x128xf32>
    %9 = vector.shape_cast %8 : vector<1x128x128xf32> to vector<128x128xf32>
    %10 = arith.addf %7, %9 : vector<128x128xf32>
    %cst_7 = arith.constant dense<0xFF800000> : vector<128xf32>
    %11 = vector.multi_reduction <maximumf>, %10, %cst_7 [1] : vector<128x128xf32> to vector<128xf32>
    %12 = vector.shape_cast %11 : vector<128xf32> to vector<128x1xf32>
    %13 = vector.broadcast %12 : vector<128x1xf32> to vector<128x128xf32>
    %14 = arith.subf %10, %13 : vector<128x128xf32>
    %15 = math.exp %14 : vector<128x128xf32>
    %cst_8 = arith.constant dense<0.000000e+00> : vector<128xf32>
    %16 = vector.multi_reduction <add>, %15, %cst_8 [1] : vector<128x128xf32> to vector<128xf32>
    %17 = vector.shape_cast %16 : vector<128xf32> to vector<128x1xf32>
    %18 = tpu.reciprocal %17 {approx = true} : vector<128x1xf32> -> vector<128x1xf32>
    %19 = vector.broadcast %18 : vector<128x1xf32> to vector<128x128xf32>
    %20 = arith.mulf %15, %19 : vector<128x128xf32>
    %21 = arith.truncf %20 : vector<128x128xf32> to vector<128x128xbf16>
    %cst_9 = arith.constant dense<0.000000e+00> : vector<128x32xf32>
    %22 = tpu.matmul %21, %6, %cst_9 {dimension_numbers = #tpu.dot_dimension_numbers<[1], [0], [0], [1], [0, 0, 1, 1], [], []>} : vector<128x128xbf16>, vector<128x32xbf16>, vector<128x32xf32> -> vector<128x32xf32>
    %23 = vector.extract_strided_slice %3 {offsets = [0, 32], sizes = [128, 32], strides = [1, 1]} : vector<512x384xbf16> to vector<128x32xbf16>
    %24 = vector.extract_strided_slice %3 {offsets = [0, 160], sizes = [128, 32], strides = [1, 1]} : vector<512x384xbf16> to vector<128x32xbf16>
    %25 = vector.extract_strided_slice %3 {offsets = [0, 288], sizes = [128, 32], strides = [1, 1]} : vector<512x384xbf16> to vector<128x32xbf16>
    %cst_10 = arith.constant dense<0.000000e+00> : vector<128x128xf32>
    %26 = tpu.matmul %23, %24, %cst_10 {dimension_numbers = #tpu.dot_dimension_numbers<[1], [1], [0], [0], [0, 0, 1, 0], [], []>} : vector<128x32xbf16>, vector<128x32xbf16>, vector<128x128xf32> -> vector<128x128xf32>
    %c1 = arith.constant 1 : index
    %c0_11 = arith.constant 0 : index
    %c0_12 = arith.constant 0 : index
    %27 = vector.load %arg3[%c1, %c0_11, %c0_12] : memref<4x128x128xf32, #tpu.memory_space<vmem>>, vector<1x128x128xf32>
    %28 = vector.shape_cast %27 : vector<1x128x128xf32> to vector<128x128xf32>
    %29 = arith.addf %26, %28 : vector<128x128xf32>
    %cst_13 = arith.constant dense<0xFF800000> : vector<128xf32>
    %30 = vector.multi_reduction <maximumf>, %29, %cst_13 [1] : vector<128x128xf32> to vector<128xf32>
    %31 = vector.shape_cast %30 : vector<128xf32> to vector<128x1xf32>
    %32 = vector.broadcast %31 : vector<128x1xf32> to vector<128x128xf32>
    %33 = arith.subf %29, %32 : vector<128x128xf32>
    %34 = math.exp %33 : vector<128x128xf32>
    %cst_14 = arith.constant dense<0.000000e+00> : vector<128xf32>
    %35 = vector.multi_reduction <add>, %34, %cst_14 [1] : vector<128x128xf32> to vector<128xf32>
    %36 = vector.shape_cast %35 : vector<128xf32> to vector<128x1xf32>
    %37 = tpu.reciprocal %36 {approx = true} : vector<128x1xf32> -> vector<128x1xf32>
    %38 = vector.broadcast %37 : vector<128x1xf32> to vector<128x128xf32>
    %39 = arith.mulf %34, %38 : vector<128x128xf32>
    %40 = arith.truncf %39 : vector<128x128xf32> to vector<128x128xbf16>
    %cst_15 = arith.constant dense<0.000000e+00> : vector<128x32xf32>
    %41 = tpu.matmul %40, %25, %cst_15 {dimension_numbers = #tpu.dot_dimension_numbers<[1], [0], [0], [1], [0, 0, 1, 1], [], []>} : vector<128x128xbf16>, vector<128x32xbf16>, vector<128x32xf32> -> vector<128x32xf32>
    %42 = vector.extract_strided_slice %3 {offsets = [0, 64], sizes = [128, 32], strides = [1, 1]} : vector<512x384xbf16> to vector<128x32xbf16>
    %43 = vector.extract_strided_slice %3 {offsets = [0, 192], sizes = [128, 32], strides = [1, 1]} : vector<512x384xbf16> to vector<128x32xbf16>
    %44 = vector.extract_strided_slice %3 {offsets = [0, 320], sizes = [128, 32], strides = [1, 1]} : vector<512x384xbf16> to vector<128x32xbf16>
    %cst_16 = arith.constant dense<0.000000e+00> : vector<128x128xf32>
    %45 = tpu.matmul %42, %43, %cst_16 {dimension_numbers = #tpu.dot_dimension_numbers<[1], [1], [0], [0], [0, 0, 1, 0], [], []>} : vector<128x32xbf16>, vector<128x32xbf16>, vector<128x128xf32> -> vector<128x128xf32>
    %c2 = arith.constant 2 : index
    %c0_17 = arith.constant 0 : index
    %c0_18 = arith.constant 0 : index
    %46 = vector.load %arg3[%c2, %c0_17, %c0_18] : memref<4x128x128xf32, #tpu.memory_space<vmem>>, vector<1x128x128xf32>
    %47 = vector.shape_cast %46 : vector<1x128x128xf32> to vector<128x128xf32>
    %48 = arith.addf %45, %47 : vector<128x128xf32>
    %cst_19 = arith.constant dense<0xFF800000> : vector<128xf32>
    %49 = vector.multi_reduction <maximumf>, %48, %cst_19 [1] : vector<128x128xf32> to vector<128xf32>
    %50 = vector.shape_cast %49 : vector<128xf32> to vector<128x1xf32>
    %51 = vector.broadcast %50 : vector<128x1xf32> to vector<128x128xf32>
    %52 = arith.subf %48, %51 : vector<128x128xf32>
    %53 = math.exp %52 : vector<128x128xf32>
    %cst_20 = arith.constant dense<0.000000e+00> : vector<128xf32>
    %54 = vector.multi_reduction <add>, %53, %cst_20 [1] : vector<128x128xf32> to vector<128xf32>
    %55 = vector.shape_cast %54 : vector<128xf32> to vector<128x1xf32>
    %56 = tpu.reciprocal %55 {approx = true} : vector<128x1xf32> -> vector<128x1xf32>
    %57 = vector.broadcast %56 : vector<128x1xf32> to vector<128x128xf32>
    %58 = arith.mulf %53, %57 : vector<128x128xf32>
    %59 = arith.truncf %58 : vector<128x128xf32> to vector<128x128xbf16>
    %cst_21 = arith.constant dense<0.000000e+00> : vector<128x32xf32>
    %60 = tpu.matmul %59, %44, %cst_21 {dimension_numbers = #tpu.dot_dimension_numbers<[1], [0], [0], [1], [0, 0, 1, 1], [], []>} : vector<128x128xbf16>, vector<128x32xbf16>, vector<128x32xf32> -> vector<128x32xf32>
    %61 = vector.extract_strided_slice %3 {offsets = [0, 96], sizes = [128, 32], strides = [1, 1]} : vector<512x384xbf16> to vector<128x32xbf16>
    %62 = vector.extract_strided_slice %3 {offsets = [0, 224], sizes = [128, 32], strides = [1, 1]} : vector<512x384xbf16> to vector<128x32xbf16>
    %63 = vector.extract_strided_slice %3 {offsets = [0, 352], sizes = [128, 32], strides = [1, 1]} : vector<512x384xbf16> to vector<128x32xbf16>
    %cst_22 = arith.constant dense<0.000000e+00> : vector<128x128xf32>
    %64 = tpu.matmul %61, %62, %cst_22 {dimension_numbers = #tpu.dot_dimension_numbers<[1], [1], [0], [0], [0, 0, 1, 0], [], []>} : vector<128x32xbf16>, vector<128x32xbf16>, vector<128x128xf32> -> vector<128x128xf32>
    %c3 = arith.constant 3 : index
    %c0_23 = arith.constant 0 : index
    %c0_24 = arith.constant 0 : index
    %65 = vector.load %arg3[%c3, %c0_23, %c0_24] : memref<4x128x128xf32, #tpu.memory_space<vmem>>, vector<1x128x128xf32>
    %66 = vector.shape_cast %65 : vector<1x128x128xf32> to vector<128x128xf32>
    %67 = arith.addf %64, %66 : vector<128x128xf32>
    %cst_25 = arith.constant dense<0xFF800000> : vector<128xf32>
    %68 = vector.multi_reduction <maximumf>, %67, %cst_25 [1] : vector<128x128xf32> to vector<128xf32>
    %69 = vector.shape_cast %68 : vector<128xf32> to vector<128x1xf32>
    %70 = vector.broadcast %69 : vector<128x1xf32> to vector<128x128xf32>
    %71 = arith.subf %67, %70 : vector<128x128xf32>
    %72 = math.exp %71 : vector<128x128xf32>
    %cst_26 = arith.constant dense<0.000000e+00> : vector<128xf32>
    %73 = vector.multi_reduction <add>, %72, %cst_26 [1] : vector<128x128xf32> to vector<128xf32>
    %74 = vector.shape_cast %73 : vector<128xf32> to vector<128x1xf32>
    %75 = tpu.reciprocal %74 {approx = true} : vector<128x1xf32> -> vector<128x1xf32>
    %76 = vector.broadcast %75 : vector<128x1xf32> to vector<128x128xf32>
    %77 = arith.mulf %72, %76 : vector<128x128xf32>
    %78 = arith.truncf %77 : vector<128x128xf32> to vector<128x128xbf16>
    %cst_27 = arith.constant dense<0.000000e+00> : vector<128x32xf32>
    %79 = tpu.matmul %78, %63, %cst_27 {dimension_numbers = #tpu.dot_dimension_numbers<[1], [0], [0], [1], [0, 0, 1, 1], [], []>} : vector<128x128xbf16>, vector<128x32xbf16>, vector<128x32xf32> -> vector<128x32xf32>
    %80 = tpu.concatenate %22, %41, %60, %79 in 1 : vector<128x32xf32>, vector<128x32xf32>, vector<128x32xf32>, vector<128x32xf32> -> vector<128x128xf32>
    %81 = vector.extract_strided_slice %3 {offsets = [128, 0], sizes = [128, 32], strides = [1, 1]} : vector<512x384xbf16> to vector<128x32xbf16>
    %82 = vector.extract_strided_slice %3 {offsets = [128, 128], sizes = [128, 32], strides = [1, 1]} : vector<512x384xbf16> to vector<128x32xbf16>
    %83 = vector.extract_strided_slice %3 {offsets = [128, 256], sizes = [128, 32], strides = [1, 1]} : vector<512x384xbf16> to vector<128x32xbf16>
    %cst_28 = arith.constant dense<0.000000e+00> : vector<128x128xf32>
    %84 = tpu.matmul %81, %82, %cst_28 {dimension_numbers = #tpu.dot_dimension_numbers<[1], [1], [0], [0], [0, 0, 1, 0], [], []>} : vector<128x32xbf16>, vector<128x32xbf16>, vector<128x128xf32> -> vector<128x128xf32>
    %c0_29 = arith.constant 0 : index
    %c0_30 = arith.constant 0 : index
    %c0_31 = arith.constant 0 : index
    %85 = vector.load %arg3[%c0_29, %c0_30, %c0_31] : memref<4x128x128xf32, #tpu.memory_space<vmem>>, vector<1x128x128xf32>
    %86 = vector.shape_cast %85 : vector<1x128x128xf32> to vector<128x128xf32>
    %87 = arith.addf %84, %86 : vector<128x128xf32>
    %cst_32 = arith.constant dense<0xFF800000> : vector<128xf32>
    %88 = vector.multi_reduction <maximumf>, %87, %cst_32 [1] : vector<128x128xf32> to vector<128xf32>
    %89 = vector.shape_cast %88 : vector<128xf32> to vector<128x1xf32>
    %90 = vector.broadcast %89 : vector<128x1xf32> to vector<128x128xf32>
    %91 = arith.subf %87, %90 : vector<128x128xf32>
    %92 = math.exp %91 : vector<128x128xf32>
    %cst_33 = arith.constant dense<0.000000e+00> : vector<128xf32>
    %93 = vector.multi_reduction <add>, %92, %cst_33 [1] : vector<128x128xf32> to vector<128xf32>
    %94 = vector.shape_cast %93 : vector<128xf32> to vector<128x1xf32>
    %95 = tpu.reciprocal %94 {approx = true} : vector<128x1xf32> -> vector<128x1xf32>
    %96 = vector.broadcast %95 : vector<128x1xf32> to vector<128x128xf32>
    %97 = arith.mulf %92, %96 : vector<128x128xf32>
    %98 = arith.truncf %97 : vector<128x128xf32> to vector<128x128xbf16>
    %cst_34 = arith.constant dense<0.000000e+00> : vector<128x32xf32>
    %99 = tpu.matmul %98, %83, %cst_34 {dimension_numbers = #tpu.dot_dimension_numbers<[1], [0], [0], [1], [0, 0, 1, 1], [], []>} : vector<128x128xbf16>, vector<128x32xbf16>, vector<128x32xf32> -> vector<128x32xf32>
    %100 = vector.extract_strided_slice %3 {offsets = [128, 32], sizes = [128, 32], strides = [1, 1]} : vector<512x384xbf16> to vector<128x32xbf16>
    %101 = vector.extract_strided_slice %3 {offsets = [128, 160], sizes = [128, 32], strides = [1, 1]} : vector<512x384xbf16> to vector<128x32xbf16>
    %102 = vector.extract_strided_slice %3 {offsets = [128, 288], sizes = [128, 32], strides = [1, 1]} : vector<512x384xbf16> to vector<128x32xbf16>
    %cst_35 = arith.constant dense<0.000000e+00> : vector<128x128xf32>
    %103 = tpu.matmul %100, %101, %cst_35 {dimension_numbers = #tpu.dot_dimension_numbers<[1], [1], [0], [0], [0, 0, 1, 0], [], []>} : vector<128x32xbf16>, vector<128x32xbf16>, vector<128x128xf32> -> vector<128x128xf32>
    %c1_36 = arith.constant 1 : index
    %c0_37 = arith.constant 0 : index
    %c0_38 = arith.constant 0 : index
    %104 = vector.load %arg3[%c1_36, %c0_37, %c0_38] : memref<4x128x128xf32, #tpu.memory_space<vmem>>, vector<1x128x128xf32>
    %105 = vector.shape_cast %104 : vector<1x128x128xf32> to vector<128x128xf32>
    %106 = arith.addf %103, %105 : vector<128x128xf32>
    %cst_39 = arith.constant dense<0xFF800000> : vector<128xf32>
    %107 = vector.multi_reduction <maximumf>, %106, %cst_39 [1] : vector<128x128xf32> to vector<128xf32>
    %108 = vector.shape_cast %107 : vector<128xf32> to vector<128x1xf32>
    %109 = vector.broadcast %108 : vector<128x1xf32> to vector<128x128xf32>
    %110 = arith.subf %106, %109 : vector<128x128xf32>
    %111 = math.exp %110 : vector<128x128xf32>
    %cst_40 = arith.constant dense<0.000000e+00> : vector<128xf32>
    %112 = vector.multi_reduction <add>, %111, %cst_40 [1] : vector<128x128xf32> to vector<128xf32>
    %113 = vector.shape_cast %112 : vector<128xf32> to vector<128x1xf32>
    %114 = tpu.reciprocal %113 {approx = true} : vector<128x1xf32> -> vector<128x1xf32>
    %115 = vector.broadcast %114 : vector<128x1xf32> to vector<128x128xf32>
    %116 = arith.mulf %111, %115 : vector<128x128xf32>
    %117 = arith.truncf %116 : vector<128x128xf32> to vector<128x128xbf16>
    %cst_41 = arith.constant dense<0.000000e+00> : vector<128x32xf32>
    %118 = tpu.matmul %117, %102, %cst_41 {dimension_numbers = #tpu.dot_dimension_numbers<[1], [0], [0], [1], [0, 0, 1, 1], [], []>} : vector<128x128xbf16>, vector<128x32xbf16>, vector<128x32xf32> -> vector<128x32xf32>
    %119 = vector.extract_strided_slice %3 {offsets = [128, 64], sizes = [128, 32], strides = [1, 1]} : vector<512x384xbf16> to vector<128x32xbf16>
    %120 = vector.extract_strided_slice %3 {offsets = [128, 192], sizes = [128, 32], strides = [1, 1]} : vector<512x384xbf16> to vector<128x32xbf16>
    %121 = vector.extract_strided_slice %3 {offsets = [128, 320], sizes = [128, 32], strides = [1, 1]} : vector<512x384xbf16> to vector<128x32xbf16>
    %cst_42 = arith.constant dense<0.000000e+00> : vector<128x128xf32>
    %122 = tpu.matmul %119, %120, %cst_42 {dimension_numbers = #tpu.dot_dimension_numbers<[1], [1], [0], [0], [0, 0, 1, 0], [], []>} : vector<128x32xbf16>, vector<128x32xbf16>, vector<128x128xf32> -> vector<128x128xf32>
    %c2_43 = arith.constant 2 : index
    %c0_44 = arith.constant 0 : index
    %c0_45 = arith.constant 0 : index
    %123 = vector.load %arg3[%c2_43, %c0_44, %c0_45] : memref<4x128x128xf32, #tpu.memory_space<vmem>>, vector<1x128x128xf32>
    %124 = vector.shape_cast %123 : vector<1x128x128xf32> to vector<128x128xf32>
    %125 = arith.addf %122, %124 : vector<128x128xf32>
    %cst_46 = arith.constant dense<0xFF800000> : vector<128xf32>
    %126 = vector.multi_reduction <maximumf>, %125, %cst_46 [1] : vector<128x128xf32> to vector<128xf32>
    %127 = vector.shape_cast %126 : vector<128xf32> to vector<128x1xf32>
    %128 = vector.broadcast %127 : vector<128x1xf32> to vector<128x128xf32>
    %129 = arith.subf %125, %128 : vector<128x128xf32>
    %130 = math.exp %129 : vector<128x128xf32>
    %cst_47 = arith.constant dense<0.000000e+00> : vector<128xf32>
    %131 = vector.multi_reduction <add>, %130, %cst_47 [1] : vector<128x128xf32> to vector<128xf32>
    %132 = vector.shape_cast %131 : vector<128xf32> to vector<128x1xf32>
    %133 = tpu.reciprocal %132 {approx = true} : vector<128x1xf32> -> vector<128x1xf32>
    %134 = vector.broadcast %133 : vector<128x1xf32> to vector<128x128xf32>
    %135 = arith.mulf %130, %134 : vector<128x128xf32>
    %136 = arith.truncf %135 : vector<128x128xf32> to vector<128x128xbf16>
    %cst_48 = arith.constant dense<0.000000e+00> : vector<128x32xf32>
    %137 = tpu.matmul %136, %121, %cst_48 {dimension_numbers = #tpu.dot_dimension_numbers<[1], [0], [0], [1], [0, 0, 1, 1], [], []>} : vector<128x128xbf16>, vector<128x32xbf16>, vector<128x32xf32> -> vector<128x32xf32>
    %138 = vector.extract_strided_slice %3 {offsets = [128, 96], sizes = [128, 32], strides = [1, 1]} : vector<512x384xbf16> to vector<128x32xbf16>
    %139 = vector.extract_strided_slice %3 {offsets = [128, 224], sizes = [128, 32], strides = [1, 1]} : vector<512x384xbf16> to vector<128x32xbf16>
    %140 = vector.extract_strided_slice %3 {offsets = [128, 352], sizes = [128, 32], strides = [1, 1]} : vector<512x384xbf16> to vector<128x32xbf16>
    %cst_49 = arith.constant dense<0.000000e+00> : vector<128x128xf32>
    %141 = tpu.matmul %138, %139, %cst_49 {dimension_numbers = #tpu.dot_dimension_numbers<[1], [1], [0], [0], [0, 0, 1, 0], [], []>} : vector<128x32xbf16>, vector<128x32xbf16>, vector<128x128xf32> -> vector<128x128xf32>
    %c3_50 = arith.constant 3 : index
    %c0_51 = arith.constant 0 : index
    %c0_52 = arith.constant 0 : index
    %142 = vector.load %arg3[%c3_50, %c0_51, %c0_52] : memref<4x128x128xf32, #tpu.memory_space<vmem>>, vector<1x128x128xf32>
    %143 = vector.shape_cast %142 : vector<1x128x128xf32> to vector<128x128xf32>
    %144 = arith.addf %141, %143 : vector<128x128xf32>
    %cst_53 = arith.constant dense<0xFF800000> : vector<128xf32>
    %145 = vector.multi_reduction <maximumf>, %144, %cst_53 [1] : vector<128x128xf32> to vector<128xf32>
    %146 = vector.shape_cast %145 : vector<128xf32> to vector<128x1xf32>
    %147 = vector.broadcast %146 : vector<128x1xf32> to vector<128x128xf32>
    %148 = arith.subf %144, %147 : vector<128x128xf32>
    %149 = math.exp %148 : vector<128x128xf32>
    %cst_54 = arith.constant dense<0.000000e+00> : vector<128xf32>
    %150 = vector.multi_reduction <add>, %149, %cst_54 [1] : vector<128x128xf32> to vector<128xf32>
    %151 = vector.shape_cast %150 : vector<128xf32> to vector<128x1xf32>
    %152 = tpu.reciprocal %151 {approx = true} : vector<128x1xf32> -> vector<128x1xf32>
    %153 = vector.broadcast %152 : vector<128x1xf32> to vector<128x128xf32>
    %154 = arith.mulf %149, %153 : vector<128x128xf32>
    %155 = arith.truncf %154 : vector<128x128xf32> to vector<128x128xbf16>
    %cst_55 = arith.constant dense<0.000000e+00> : vector<128x32xf32>
    %156 = tpu.matmul %155, %140, %cst_55 {dimension_numbers = #tpu.dot_dimension_numbers<[1], [0], [0], [1], [0, 0, 1, 1], [], []>} : vector<128x128xbf16>, vector<128x32xbf16>, vector<128x32xf32> -> vector<128x32xf32>
    %157 = tpu.concatenate %99, %118, %137, %156 in 1 : vector<128x32xf32>, vector<128x32xf32>, vector<128x32xf32>, vector<128x32xf32> -> vector<128x128xf32>
    %158 = vector.extract_strided_slice %3 {offsets = [256, 0], sizes = [128, 32], strides = [1, 1]} : vector<512x384xbf16> to vector<128x32xbf16>
    %159 = vector.extract_strided_slice %3 {offsets = [256, 128], sizes = [128, 32], strides = [1, 1]} : vector<512x384xbf16> to vector<128x32xbf16>
    %160 = vector.extract_strided_slice %3 {offsets = [256, 256], sizes = [128, 32], strides = [1, 1]} : vector<512x384xbf16> to vector<128x32xbf16>
    %cst_56 = arith.constant dense<0.000000e+00> : vector<128x128xf32>
    %161 = tpu.matmul %158, %159, %cst_56 {dimension_numbers = #tpu.dot_dimension_numbers<[1], [1], [0], [0], [0, 0, 1, 0], [], []>} : vector<128x32xbf16>, vector<128x32xbf16>, vector<128x128xf32> -> vector<128x128xf32>
    %c0_57 = arith.constant 0 : index
    %c0_58 = arith.constant 0 : index
    %c0_59 = arith.constant 0 : index
    %162 = vector.load %arg3[%c0_57, %c0_58, %c0_59] : memref<4x128x128xf32, #tpu.memory_space<vmem>>, vector<1x128x128xf32>
    %163 = vector.shape_cast %162 : vector<1x128x128xf32> to vector<128x128xf32>
    %164 = arith.addf %161, %163 : vector<128x128xf32>
    %cst_60 = arith.constant dense<0xFF800000> : vector<128xf32>
    %165 = vector.multi_reduction <maximumf>, %164, %cst_60 [1] : vector<128x128xf32> to vector<128xf32>
    %166 = vector.shape_cast %165 : vector<128xf32> to vector<128x1xf32>
    %167 = vector.broadcast %166 : vector<128x1xf32> to vector<128x128xf32>
    %168 = arith.subf %164, %167 : vector<128x128xf32>
    %169 = math.exp %168 : vector<128x128xf32>
    %cst_61 = arith.constant dense<0.000000e+00> : vector<128xf32>
    %170 = vector.multi_reduction <add>, %169, %cst_61 [1] : vector<128x128xf32> to vector<128xf32>
    %171 = vector.shape_cast %170 : vector<128xf32> to vector<128x1xf32>
    %172 = tpu.reciprocal %171 {approx = true} : vector<128x1xf32> -> vector<128x1xf32>
    %173 = vector.broadcast %172 : vector<128x1xf32> to vector<128x128xf32>
    %174 = arith.mulf %169, %173 : vector<128x128xf32>
    %175 = arith.truncf %174 : vector<128x128xf32> to vector<128x128xbf16>
    %cst_62 = arith.constant dense<0.000000e+00> : vector<128x32xf32>
    %176 = tpu.matmul %175, %160, %cst_62 {dimension_numbers = #tpu.dot_dimension_numbers<[1], [0], [0], [1], [0, 0, 1, 1], [], []>} : vector<128x128xbf16>, vector<128x32xbf16>, vector<128x32xf32> -> vector<128x32xf32>
    %177 = vector.extract_strided_slice %3 {offsets = [256, 32], sizes = [128, 32], strides = [1, 1]} : vector<512x384xbf16> to vector<128x32xbf16>
    %178 = vector.extract_strided_slice %3 {offsets = [256, 160], sizes = [128, 32], strides = [1, 1]} : vector<512x384xbf16> to vector<128x32xbf16>
    %179 = vector.extract_strided_slice %3 {offsets = [256, 288], sizes = [128, 32], strides = [1, 1]} : vector<512x384xbf16> to vector<128x32xbf16>
    %cst_63 = arith.constant dense<0.000000e+00> : vector<128x128xf32>
    %180 = tpu.matmul %177, %178, %cst_63 {dimension_numbers = #tpu.dot_dimension_numbers<[1], [1], [0], [0], [0, 0, 1, 0], [], []>} : vector<128x32xbf16>, vector<128x32xbf16>, vector<128x128xf32> -> vector<128x128xf32>
    %c1_64 = arith.constant 1 : index
    %c0_65 = arith.constant 0 : index
    %c0_66 = arith.constant 0 : index
    %181 = vector.load %arg3[%c1_64, %c0_65, %c0_66] : memref<4x128x128xf32, #tpu.memory_space<vmem>>, vector<1x128x128xf32>
    %182 = vector.shape_cast %181 : vector<1x128x128xf32> to vector<128x128xf32>
    %183 = arith.addf %180, %182 : vector<128x128xf32>
    %cst_67 = arith.constant dense<0xFF800000> : vector<128xf32>
    %184 = vector.multi_reduction <maximumf>, %183, %cst_67 [1] : vector<128x128xf32> to vector<128xf32>
    %185 = vector.shape_cast %184 : vector<128xf32> to vector<128x1xf32>
    %186 = vector.broadcast %185 : vector<128x1xf32> to vector<128x128xf32>
    %187 = arith.subf %183, %186 : vector<128x128xf32>
    %188 = math.exp %187 : vector<128x128xf32>
    %cst_68 = arith.constant dense<0.000000e+00> : vector<128xf32>
    %189 = vector.multi_reduction <add>, %188, %cst_68 [1] : vector<128x128xf32> to vector<128xf32>
    %190 = vector.shape_cast %189 : vector<128xf32> to vector<128x1xf32>
    %191 = tpu.reciprocal %190 {approx = true} : vector<128x1xf32> -> vector<128x1xf32>
    %192 = vector.broadcast %191 : vector<128x1xf32> to vector<128x128xf32>
    %193 = arith.mulf %188, %192 : vector<128x128xf32>
    %194 = arith.truncf %193 : vector<128x128xf32> to vector<128x128xbf16>
    %cst_69 = arith.constant dense<0.000000e+00> : vector<128x32xf32>
    %195 = tpu.matmul %194, %179, %cst_69 {dimension_numbers = #tpu.dot_dimension_numbers<[1], [0], [0], [1], [0, 0, 1, 1], [], []>} : vector<128x128xbf16>, vector<128x32xbf16>, vector<128x32xf32> -> vector<128x32xf32>
    %196 = vector.extract_strided_slice %3 {offsets = [256, 64], sizes = [128, 32], strides = [1, 1]} : vector<512x384xbf16> to vector<128x32xbf16>
    %197 = vector.extract_strided_slice %3 {offsets = [256, 192], sizes = [128, 32], strides = [1, 1]} : vector<512x384xbf16> to vector<128x32xbf16>
    %198 = vector.extract_strided_slice %3 {offsets = [256, 320], sizes = [128, 32], strides = [1, 1]} : vector<512x384xbf16> to vector<128x32xbf16>
    %cst_70 = arith.constant dense<0.000000e+00> : vector<128x128xf32>
    %199 = tpu.matmul %196, %197, %cst_70 {dimension_numbers = #tpu.dot_dimension_numbers<[1], [1], [0], [0], [0, 0, 1, 0], [], []>} : vector<128x32xbf16>, vector<128x32xbf16>, vector<128x128xf32> -> vector<128x128xf32>
    %c2_71 = arith.constant 2 : index
    %c0_72 = arith.constant 0 : index
    %c0_73 = arith.constant 0 : index
    %200 = vector.load %arg3[%c2_71, %c0_72, %c0_73] : memref<4x128x128xf32, #tpu.memory_space<vmem>>, vector<1x128x128xf32>
    %201 = vector.shape_cast %200 : vector<1x128x128xf32> to vector<128x128xf32>
    %202 = arith.addf %199, %201 : vector<128x128xf32>
    %cst_74 = arith.constant dense<0xFF800000> : vector<128xf32>
    %203 = vector.multi_reduction <maximumf>, %202, %cst_74 [1] : vector<128x128xf32> to vector<128xf32>
    %204 = vector.shape_cast %203 : vector<128xf32> to vector<128x1xf32>
    %205 = vector.broadcast %204 : vector<128x1xf32> to vector<128x128xf32>
    %206 = arith.subf %202, %205 : vector<128x128xf32>
    %207 = math.exp %206 : vector<128x128xf32>
    %cst_75 = arith.constant dense<0.000000e+00> : vector<128xf32>
    %208 = vector.multi_reduction <add>, %207, %cst_75 [1] : vector<128x128xf32> to vector<128xf32>
    %209 = vector.shape_cast %208 : vector<128xf32> to vector<128x1xf32>
    %210 = tpu.reciprocal %209 {approx = true} : vector<128x1xf32> -> vector<128x1xf32>
    %211 = vector.broadcast %210 : vector<128x1xf32> to vector<128x128xf32>
    %212 = arith.mulf %207, %211 : vector<128x128xf32>
    %213 = arith.truncf %212 : vector<128x128xf32> to vector<128x128xbf16>
    %cst_76 = arith.constant dense<0.000000e+00> : vector<128x32xf32>
    %214 = tpu.matmul %213, %198, %cst_76 {dimension_numbers = #tpu.dot_dimension_numbers<[1], [0], [0], [1], [0, 0, 1, 1], [], []>} : vector<128x128xbf16>, vector<128x32xbf16>, vector<128x32xf32> -> vector<128x32xf32>
    %215 = vector.extract_strided_slice %3 {offsets = [256, 96], sizes = [128, 32], strides = [1, 1]} : vector<512x384xbf16> to vector<128x32xbf16>
    %216 = vector.extract_strided_slice %3 {offsets = [256, 224], sizes = [128, 32], strides = [1, 1]} : vector<512x384xbf16> to vector<128x32xbf16>
    %217 = vector.extract_strided_slice %3 {offsets = [256, 352], sizes = [128, 32], strides = [1, 1]} : vector<512x384xbf16> to vector<128x32xbf16>
    %cst_77 = arith.constant dense<0.000000e+00> : vector<128x128xf32>
    %218 = tpu.matmul %215, %216, %cst_77 {dimension_numbers = #tpu.dot_dimension_numbers<[1], [1], [0], [0], [0, 0, 1, 0], [], []>} : vector<128x32xbf16>, vector<128x32xbf16>, vector<128x128xf32> -> vector<128x128xf32>
    %c3_78 = arith.constant 3 : index
    %c0_79 = arith.constant 0 : index
    %c0_80 = arith.constant 0 : index
    %219 = vector.load %arg3[%c3_78, %c0_79, %c0_80] : memref<4x128x128xf32, #tpu.memory_space<vmem>>, vector<1x128x128xf32>
    %220 = vector.shape_cast %219 : vector<1x128x128xf32> to vector<128x128xf32>
    %221 = arith.addf %218, %220 : vector<128x128xf32>
    %cst_81 = arith.constant dense<0xFF800000> : vector<128xf32>
    %222 = vector.multi_reduction <maximumf>, %221, %cst_81 [1] : vector<128x128xf32> to vector<128xf32>
    %223 = vector.shape_cast %222 : vector<128xf32> to vector<128x1xf32>
    %224 = vector.broadcast %223 : vector<128x1xf32> to vector<128x128xf32>
    %225 = arith.subf %221, %224 : vector<128x128xf32>
    %226 = math.exp %225 : vector<128x128xf32>
    %cst_82 = arith.constant dense<0.000000e+00> : vector<128xf32>
    %227 = vector.multi_reduction <add>, %226, %cst_82 [1] : vector<128x128xf32> to vector<128xf32>
    %228 = vector.shape_cast %227 : vector<128xf32> to vector<128x1xf32>
    %229 = tpu.reciprocal %228 {approx = true} : vector<128x1xf32> -> vector<128x1xf32>
    %230 = vector.broadcast %229 : vector<128x1xf32> to vector<128x128xf32>
    %231 = arith.mulf %226, %230 : vector<128x128xf32>
    %232 = arith.truncf %231 : vector<128x128xf32> to vector<128x128xbf16>
    %cst_83 = arith.constant dense<0.000000e+00> : vector<128x32xf32>
    %233 = tpu.matmul %232, %217, %cst_83 {dimension_numbers = #tpu.dot_dimension_numbers<[1], [0], [0], [1], [0, 0, 1, 1], [], []>} : vector<128x128xbf16>, vector<128x32xbf16>, vector<128x32xf32> -> vector<128x32xf32>
    %234 = tpu.concatenate %176, %195, %214, %233 in 1 : vector<128x32xf32>, vector<128x32xf32>, vector<128x32xf32>, vector<128x32xf32> -> vector<128x128xf32>
    %235 = vector.extract_strided_slice %3 {offsets = [384, 0], sizes = [128, 32], strides = [1, 1]} : vector<512x384xbf16> to vector<128x32xbf16>
    %236 = vector.extract_strided_slice %3 {offsets = [384, 128], sizes = [128, 32], strides = [1, 1]} : vector<512x384xbf16> to vector<128x32xbf16>
    %237 = vector.extract_strided_slice %3 {offsets = [384, 256], sizes = [128, 32], strides = [1, 1]} : vector<512x384xbf16> to vector<128x32xbf16>
    %cst_84 = arith.constant dense<0.000000e+00> : vector<128x128xf32>
    %238 = tpu.matmul %235, %236, %cst_84 {dimension_numbers = #tpu.dot_dimension_numbers<[1], [1], [0], [0], [0, 0, 1, 0], [], []>} : vector<128x32xbf16>, vector<128x32xbf16>, vector<128x128xf32> -> vector<128x128xf32>
    %c0_85 = arith.constant 0 : index
    %c0_86 = arith.constant 0 : index
    %c0_87 = arith.constant 0 : index
    %239 = vector.load %arg3[%c0_85, %c0_86, %c0_87] : memref<4x128x128xf32, #tpu.memory_space<vmem>>, vector<1x128x128xf32>
    %240 = vector.shape_cast %239 : vector<1x128x128xf32> to vector<128x128xf32>
    %241 = arith.addf %238, %240 : vector<128x128xf32>
    %cst_88 = arith.constant dense<0xFF800000> : vector<128xf32>
    %242 = vector.multi_reduction <maximumf>, %241, %cst_88 [1] : vector<128x128xf32> to vector<128xf32>
    %243 = vector.shape_cast %242 : vector<128xf32> to vector<128x1xf32>
    %244 = vector.broadcast %243 : vector<128x1xf32> to vector<128x128xf32>
    %245 = arith.subf %241, %244 : vector<128x128xf32>
    %246 = math.exp %245 : vector<128x128xf32>
    %cst_89 = arith.constant dense<0.000000e+00> : vector<128xf32>
    %247 = vector.multi_reduction <add>, %246, %cst_89 [1] : vector<128x128xf32> to vector<128xf32>
    %248 = vector.shape_cast %247 : vector<128xf32> to vector<128x1xf32>
    %249 = tpu.reciprocal %248 {approx = true} : vector<128x1xf32> -> vector<128x1xf32>
    %250 = vector.broadcast %249 : vector<128x1xf32> to vector<128x128xf32>
    %251 = arith.mulf %246, %250 : vector<128x128xf32>
    %252 = arith.truncf %251 : vector<128x128xf32> to vector<128x128xbf16>
    %cst_90 = arith.constant dense<0.000000e+00> : vector<128x32xf32>
    %253 = tpu.matmul %252, %237, %cst_90 {dimension_numbers = #tpu.dot_dimension_numbers<[1], [0], [0], [1], [0, 0, 1, 1], [], []>} : vector<128x128xbf16>, vector<128x32xbf16>, vector<128x32xf32> -> vector<128x32xf32>
    %254 = vector.extract_strided_slice %3 {offsets = [384, 32], sizes = [128, 32], strides = [1, 1]} : vector<512x384xbf16> to vector<128x32xbf16>
    %255 = vector.extract_strided_slice %3 {offsets = [384, 160], sizes = [128, 32], strides = [1, 1]} : vector<512x384xbf16> to vector<128x32xbf16>
    %256 = vector.extract_strided_slice %3 {offsets = [384, 288], sizes = [128, 32], strides = [1, 1]} : vector<512x384xbf16> to vector<128x32xbf16>
    %cst_91 = arith.constant dense<0.000000e+00> : vector<128x128xf32>
    %257 = tpu.matmul %254, %255, %cst_91 {dimension_numbers = #tpu.dot_dimension_numbers<[1], [1], [0], [0], [0, 0, 1, 0], [], []>} : vector<128x32xbf16>, vector<128x32xbf16>, vector<128x128xf32> -> vector<128x128xf32>
    %c1_92 = arith.constant 1 : index
    %c0_93 = arith.constant 0 : index
    %c0_94 = arith.constant 0 : index
    %258 = vector.load %arg3[%c1_92, %c0_93, %c0_94] : memref<4x128x128xf32, #tpu.memory_space<vmem>>, vector<1x128x128xf32>
    %259 = vector.shape_cast %258 : vector<1x128x128xf32> to vector<128x128xf32>
    %260 = arith.addf %257, %259 : vector<128x128xf32>
    %cst_95 = arith.constant dense<0xFF800000> : vector<128xf32>
    %261 = vector.multi_reduction <maximumf>, %260, %cst_95 [1] : vector<128x128xf32> to vector<128xf32>
    %262 = vector.shape_cast %261 : vector<128xf32> to vector<128x1xf32>
    %263 = vector.broadcast %262 : vector<128x1xf32> to vector<128x128xf32>
    %264 = arith.subf %260, %263 : vector<128x128xf32>
    %265 = math.exp %264 : vector<128x128xf32>
    %cst_96 = arith.constant dense<0.000000e+00> : vector<128xf32>
    %266 = vector.multi_reduction <add>, %265, %cst_96 [1] : vector<128x128xf32> to vector<128xf32>
    %267 = vector.shape_cast %266 : vector<128xf32> to vector<128x1xf32>
    %268 = tpu.reciprocal %267 {approx = true} : vector<128x1xf32> -> vector<128x1xf32>
    %269 = vector.broadcast %268 : vector<128x1xf32> to vector<128x128xf32>
    %270 = arith.mulf %265, %269 : vector<128x128xf32>
    %271 = arith.truncf %270 : vector<128x128xf32> to vector<128x128xbf16>
    %cst_97 = arith.constant dense<0.000000e+00> : vector<128x32xf32>
    %272 = tpu.matmul %271, %256, %cst_97 {dimension_numbers = #tpu.dot_dimension_numbers<[1], [0], [0], [1], [0, 0, 1, 1], [], []>} : vector<128x128xbf16>, vector<128x32xbf16>, vector<128x32xf32> -> vector<128x32xf32>
    %273 = vector.extract_strided_slice %3 {offsets = [384, 64], sizes = [128, 32], strides = [1, 1]} : vector<512x384xbf16> to vector<128x32xbf16>
    %274 = vector.extract_strided_slice %3 {offsets = [384, 192], sizes = [128, 32], strides = [1, 1]} : vector<512x384xbf16> to vector<128x32xbf16>
    %275 = vector.extract_strided_slice %3 {offsets = [384, 320], sizes = [128, 32], strides = [1, 1]} : vector<512x384xbf16> to vector<128x32xbf16>
    %cst_98 = arith.constant dense<0.000000e+00> : vector<128x128xf32>
    %276 = tpu.matmul %273, %274, %cst_98 {dimension_numbers = #tpu.dot_dimension_numbers<[1], [1], [0], [0], [0, 0, 1, 0], [], []>} : vector<128x32xbf16>, vector<128x32xbf16>, vector<128x128xf32> -> vector<128x128xf32>
    %c2_99 = arith.constant 2 : index
    %c0_100 = arith.constant 0 : index
    %c0_101 = arith.constant 0 : index
    %277 = vector.load %arg3[%c2_99, %c0_100, %c0_101] : memref<4x128x128xf32, #tpu.memory_space<vmem>>, vector<1x128x128xf32>
    %278 = vector.shape_cast %277 : vector<1x128x128xf32> to vector<128x128xf32>
    %279 = arith.addf %276, %278 : vector<128x128xf32>
    %cst_102 = arith.constant dense<0xFF800000> : vector<128xf32>
    %280 = vector.multi_reduction <maximumf>, %279, %cst_102 [1] : vector<128x128xf32> to vector<128xf32>
    %281 = vector.shape_cast %280 : vector<128xf32> to vector<128x1xf32>
    %282 = vector.broadcast %281 : vector<128x1xf32> to vector<128x128xf32>
    %283 = arith.subf %279, %282 : vector<128x128xf32>
    %284 = math.exp %283 : vector<128x128xf32>
    %cst_103 = arith.constant dense<0.000000e+00> : vector<128xf32>
    %285 = vector.multi_reduction <add>, %284, %cst_103 [1] : vector<128x128xf32> to vector<128xf32>
    %286 = vector.shape_cast %285 : vector<128xf32> to vector<128x1xf32>
    %287 = tpu.reciprocal %286 {approx = true} : vector<128x1xf32> -> vector<128x1xf32>
    %288 = vector.broadcast %287 : vector<128x1xf32> to vector<128x128xf32>
    %289 = arith.mulf %284, %288 : vector<128x128xf32>
    %290 = arith.truncf %289 : vector<128x128xf32> to vector<128x128xbf16>
    %cst_104 = arith.constant dense<0.000000e+00> : vector<128x32xf32>
    %291 = tpu.matmul %290, %275, %cst_104 {dimension_numbers = #tpu.dot_dimension_numbers<[1], [0], [0], [1], [0, 0, 1, 1], [], []>} : vector<128x128xbf16>, vector<128x32xbf16>, vector<128x32xf32> -> vector<128x32xf32>
    %292 = vector.extract_strided_slice %3 {offsets = [384, 96], sizes = [128, 32], strides = [1, 1]} : vector<512x384xbf16> to vector<128x32xbf16>
    %293 = vector.extract_strided_slice %3 {offsets = [384, 224], sizes = [128, 32], strides = [1, 1]} : vector<512x384xbf16> to vector<128x32xbf16>
    %294 = vector.extract_strided_slice %3 {offsets = [384, 352], sizes = [128, 32], strides = [1, 1]} : vector<512x384xbf16> to vector<128x32xbf16>
    %cst_105 = arith.constant dense<0.000000e+00> : vector<128x128xf32>
    %295 = tpu.matmul %292, %293, %cst_105 {dimension_numbers = #tpu.dot_dimension_numbers<[1], [1], [0], [0], [0, 0, 1, 0], [], []>} : vector<128x32xbf16>, vector<128x32xbf16>, vector<128x128xf32> -> vector<128x128xf32>
    %c3_106 = arith.constant 3 : index
    %c0_107 = arith.constant 0 : index
    %c0_108 = arith.constant 0 : index
    %296 = vector.load %arg3[%c3_106, %c0_107, %c0_108] : memref<4x128x128xf32, #tpu.memory_space<vmem>>, vector<1x128x128xf32>
    %297 = vector.shape_cast %296 : vector<1x128x128xf32> to vector<128x128xf32>
    %298 = arith.addf %295, %297 : vector<128x128xf32>
    %cst_109 = arith.constant dense<0xFF800000> : vector<128xf32>
    %299 = vector.multi_reduction <maximumf>, %298, %cst_109 [1] : vector<128x128xf32> to vector<128xf32>
    %300 = vector.shape_cast %299 : vector<128xf32> to vector<128x1xf32>
    %301 = vector.broadcast %300 : vector<128x1xf32> to vector<128x128xf32>
    %302 = arith.subf %298, %301 : vector<128x128xf32>
    %303 = math.exp %302 : vector<128x128xf32>
    %cst_110 = arith.constant dense<0.000000e+00> : vector<128xf32>
    %304 = vector.multi_reduction <add>, %303, %cst_110 [1] : vector<128x128xf32> to vector<128xf32>
    %305 = vector.shape_cast %304 : vector<128xf32> to vector<128x1xf32>
    %306 = tpu.reciprocal %305 {approx = true} : vector<128x1xf32> -> vector<128x1xf32>
    %307 = vector.broadcast %306 : vector<128x1xf32> to vector<128x128xf32>
    %308 = arith.mulf %303, %307 : vector<128x128xf32>
    %309 = arith.truncf %308 : vector<128x128xf32> to vector<128x128xbf16>
    %cst_111 = arith.constant dense<0.000000e+00> : vector<128x32xf32>
    %310 = tpu.matmul %309, %294, %cst_111 {dimension_numbers = #tpu.dot_dimension_numbers<[1], [0], [0], [1], [0, 0, 1, 1], [], []>} : vector<128x128xbf16>, vector<128x32xbf16>, vector<128x32xf32> -> vector<128x32xf32>
    %311 = tpu.concatenate %253, %272, %291, %310 in 1 : vector<128x32xf32>, vector<128x32xf32>, vector<128x32xf32>, vector<128x32xf32> -> vector<128x128xf32>
    %312 = tpu.concatenate %80, %157, %234, %311 in 0 : vector<128x128xf32>, vector<128x128xf32>, vector<128x128xf32>, vector<128x128xf32> -> vector<512x128xf32>
    %313 = arith.truncf %312 : vector<512x128xf32> to vector<512x128xbf16>
    %c0_112 = arith.constant 0 : index
    %c0_113 = arith.constant 0 : index
    %314 = vector.load %arg4[%c0_112, %c0_113] : memref<128x128xbf16, #tpu.memory_space<vmem>>, vector<128x128xbf16>
    %cst_114 = arith.constant dense<0.000000e+00> : vector<512x128xf32>
    %315 = tpu.matmul %313, %314, %cst_114 {dimension_numbers = #tpu.dot_dimension_numbers<[1], [0], [0], [1], [0, 0, 1, 1], [], []>} : vector<512x128xbf16>, vector<128x128xbf16>, vector<512x128xf32> -> vector<512x128xf32>
    %c0_115 = arith.constant 0 : index
    %c0_116 = arith.constant 0 : index
    %316 = vector.load %arg5[%c0_115, %c0_116] : memref<1x128xf32, #tpu.memory_space<vmem>>, vector<1x128xf32>
    %317 = vector.broadcast %316 : vector<1x128xf32> to vector<512x128xf32>
    %318 = arith.addf %315, %317 : vector<512x128xf32>
    %c0_117 = arith.constant 0 : index
    %c0_118 = arith.constant 0 : index
    %319 = vector.load %arg6[%c0_117, %c0_118] : memref<512x128xf32, #tpu.memory_space<vmem>>, vector<512x128xf32>
    tpu.vector_store %arg6[%c0_117, %c0_118], %318 {strides = array<i32>} : memref<512x128xf32, #tpu.memory_space<vmem>>, vector<512x128xf32>,
    return
  }
  func.func @transform_0(%arg0: i32) -> (i32, i32) {
    %c0_i32 = arith.constant 0 : i32
    %c0_i32_0 = arith.constant 0 : i32
    return %arg0, %c0_i32 : i32, i32
  }
  func.func @transform_1(%arg0: i32) -> (i32, i32) {
    %c0_i32 = arith.constant 0 : i32
    %c0_i32_0 = arith.constant 0 : i32
    %c0_i32_1 = arith.constant 0 : i32
    return %c0_i32, %c0_i32_0 : i32, i32
  }
  func.func @transform_2(%arg0: i32) -> (i32, i32, i32) {
    %c0_i32 = arith.constant 0 : i32
    %c0_i32_0 = arith.constant 0 : i32
    %c0_i32_1 = arith.constant 0 : i32
    %c0_i32_2 = arith.constant 0 : i32
    return %c0_i32, %c0_i32_0, %c0_i32_1 : i32, i32, i32
  }
  func.func @transform_3(%arg0: i32) -> (i32, i32) {
    %c0_i32 = arith.constant 0 : i32
    %c0_i32_0 = arith.constant 0 : i32
    %c0_i32_1 = arith.constant 0 : i32
    return %c0_i32, %c0_i32_0 : i32, i32
  }
  func.func @transform_4(%arg0: i32) -> (i32, i32) {
    %c0_i32 = arith.constant 0 : i32
    %c0_i32_0 = arith.constant 0 : i32
    %c0_i32_1 = arith.constant 0 : i32
    return %c0_i32, %c0_i32_0 : i32, i32
  }
  func.func @transform_5(%arg0: i32) -> (i32, i32) {
    %c0_i32 = arith.constant 0 : i32
    %c0_i32_0 = arith.constant 0 : i32
    return %arg0, %c0_i32 : i32, i32
  }
}

</mosaic_0001>

<llo_original>
// kernel: tpu_custom_call.1
$region0: #{tpu_custom_call.1}
  #allocation0 [shape = 'u32[]', space=smem, size = 0x4, offset = 0x4, fixed_abs, tag = 'smem constant byte address 0x4 - core index']
  #allocation1 [shape = 'u32[144,128]{1,0:T(1,128)}', space=vmem, size = 0x12000, scoped, tag = 'internal scratch']
  %s0 = inlined_call_operand.hbm [shape: bf16[1024,128], index: 0, kind: input, shape index: {}]
  %s1 = inlined_call_operand.hbm [shape: bf16[128,384], index: 1, kind: input, shape index: {}]
  %s2 = inlined_call_operand.hbm [shape: f32[4,128,128], index: 2, kind: input, shape index: {}]
  %s3 = inlined_call_operand.hbm [shape: bf16[128,128], index: 3, kind: input, shape index: {}]
  %s4 = inlined_call_operand.vmem [shape: f32[1,128], index: 4, kind: input, shape index: {}]
  %s5 = inlined_call_operand.hbm [shape: f32[1024,128], index: 5, kind: output, shape index: {}]
  %s6 = sld [smem:[#allocation0]]
  $region69: #{tpu_custom_call.1} parent=0
    _
  %s8 = ssub.s32 1, %s6
  %s9 = scalar_select 0, %s8, %s6
  $region1: #{tpu_custom_call.1} parent=0
    #allocation2 [shape = 'u8[262144]{0}', space=vmem, size = 0x40000, scoped, tag = 'input window, operand 0']
    #allocation3 [shape = 's32[2]{0}', space=sflag, size = 0x8, scoped, tag = 'scoped memory for tpu_custom_call.1']
    #allocation4 [shape = 's32[2]{0}', space=sflag, size = 0x8, scoped, tag = 'scoped memory for tpu_custom_call.1']
    #allocation5 [shape = 'u8[98304]{0}', space=vmem, size = 0x18000, scoped, tag = 'input window, operand 1, single buffered']
    #allocation6 [shape = 's32[1]{0}', space=sflag, size = 0x4, scoped, tag = 'scoped memory for tpu_custom_call.1']
    #allocation7 [shape = 'u8[262144]{0}', space=vmem, size = 0x40000, scoped, tag = 'input window, operand 2, single buffered']
    #allocation8 [shape = 'u8[32768]{0}', space=vmem, size = 0x8000, scoped, tag = 'input window, operand 3, single buffered']
    #allocation9 [shape = 's32[1]{0}', space=sflag, size = 0x4, scoped, tag = 'scoped memory for tpu_custom_call.1']
    #allocation10 [shape = 'u8[524288]{0}', space=vmem, size = 0x80000, scoped, tag = 'output window, operand 0']
    %10 = vsyncpa [#allocation3], 0
    %s11 = scalar_lea.sflag [#allocation3], 1
    %12 = vsyncpa %s11, 0
    %13 = vsyncpa [#allocation6], 0
    %14 = vsyncpa [#allocation9], 0
    %15 = vsyncpa [#allocation4], 0
    %s16 = scalar_lea.sflag [#allocation4], 1
    %17 = vsyncpa %s16, 0
    loop: start=0, step=1, limit=4
    $region2: #{tpu_custom_call.1} parent=1 // loop_pre_header
      _
    $region3: #{tpu_custom_call.1} parent=1 // loop_header
      %s19 = sphi 0, %s23
      %p20 = scmp.ge.s32.totalorder %s19, 4
      %s29 = sphi 0, %s31
      %s32 = sphi 0, %s29
      %s33 = sphi 0, %s32
      %s49 = sphi 0, %s33
      %s53 = sphi 0, %s53
      %s55 = sphi 0, %s53
      %s56 = sphi 0, %s55
      %s70 = sphi 0, %s56
      %s74 = sphi 0, %s74
      %s76 = sphi 0, %s74
      %s77 = sphi 0, %s76
      %s91 = sphi 0, %s77
      %s95 = sphi 0, %s95
      %s97 = sphi 0, %s95
      %s98 = sphi 0, %s97
      %s112 = sphi 0, %s98
      %s116 = sphi 0, %s116
      %s118 = sphi 0, %s116
      %s119 = sphi 0, %s118
      %s133 = sphi 0, %s119
      %s139 = sphi 0, %s141
      %s142 = sphi 0, %s139
      %s143 = sphi 0, %s142
      %s159 = sphi 0, %s143
    $region4: #{tpu_custom_call.1} parent=1 // loop_header_branch
      %22 = sbr.rel (%p20) target = $region8
    $region5: #{tpu_custom_call.1} parent=1 // loop_body
      %s24 = ssub.s32 %s19, 1
      %s25 = ssub.s32 %s19, 2
      %s26 = sadd.s32 %s19, 1
      %s27 = ssub.s32 %s19, %s26
      %p28 = scmp.eq.s32.totalorder %s27, 0
      %s30 = sadd.s32 %s29, 1
      %s31 = scalar_select %p28, %s29, %s30
      %p34 = pneg %p28
      %p35 = scmp.eq.s32.totalorder %s19, 1
      %p36 = por %p34, %p35
      %p37 = scmp.ne.s32.totalorder %s29, %s32
      %p38 = scmp.eq.s32.totalorder %s19, 0
      %p39 = por %p37, %p38
      %p40 = scmp.ne.s32.totalorder %s29, %s32
      %p41 = scmp.eq.s32.totalorder %s24, 1
      %p42 = por %p40, %p41
      %p43 = scmp.ne.s32.totalorder %s32, %s33
      %p44 = scmp.eq.s32.totalorder %s24, 0
      %p45 = por %p43, %p44
      %p46 = scmp.ne.s32.totalorder %s32, %s33
      %p47 = scmp.eq.s32.totalorder %s25, 1
      %p48 = por %p46, %p47
      %p50 = scmp.ne.s32.totalorder %s33, %s49
      %p51 = scmp.eq.s32.totalorder %s25, 0
      %p52 = por %p50, %p51
      %s54 = sadd.s32 %s53, 1
      %p57 = scmp.eq.s32.totalorder %s19, 1
      %p58 = scmp.ne.s32.totalorder %s53, %s55
      %p59 = scmp.eq.s32.totalorder %s19, 0
      %p60 = por %p58, %p59
      %p61 = scmp.ne.s32.totalorder %s53, %s55
      %p62 = scmp.eq.s32.totalorder %s24, 1
      %p63 = por %p61, %p62
      %p64 = scmp.ne.s32.totalorder %s55, %s56
      %p65 = scmp.eq.s32.totalorder %s24, 0
      %p66 = por %p64, %p65
      %p67 = scmp.ne.s32.totalorder %s55, %s56
      %p68 = scmp.eq.s32.totalorder %s25, 1
      %p69 = por %p67, %p68
      %p71 = scmp.ne.s32.totalorder %s56, %s70
      %p72 = scmp.eq.s32.totalorder %s25, 0
      %p73 = por %p71, %p72
      %s75 = sadd.s32 %s74, 1
      %p78 = scmp.eq.s32.totalorder %s19, 1
      %p79 = scmp.ne.s32.totalorder %s74, %s76
      %p80 = scmp.eq.s32.totalorder %s19, 0
      %p81 = por %p79, %p80
      %p82 = scmp.ne.s32.totalorder %s74, %s76
      %p83 = scmp.eq.s32.totalorder %s24, 1
      %p84 = por %p82, %p83
      %p85 = scmp.ne.s32.totalorder %s76, %s77
      %p86 = scmp.eq.s32.totalorder %s24, 0
      %p87 = por %p85, %p86
      %p88 = scmp.ne.s32.totalorder %s76, %s77
      %p89 = scmp.eq.s32.totalorder %s25, 1
      %p90 = por %p88, %p89
      %p92 = scmp.ne.s32.totalorder %s77, %s91
      %p93 = scmp.eq.s32.totalorder %s25, 0
      %p94 = por %p92, %p93
      %s96 = sadd.s32 %s95, 1
      %p99 = scmp.eq.s32.totalorder %s19, 1
      %p100 = scmp.ne.s32.totalorder %s95, %s97
      %p101 = scmp.eq.s32.totalorder %s19, 0
      %p102 = por %p100, %p101
      %p103 = scmp.ne.s32.totalorder %s95, %s97
      %p104 = scmp.eq.s32.totalorder %s24, 1
      %p105 = por %p103, %p104
      %p106 = scmp.ne.s32.totalorder %s97, %s98
      %p107 = scmp.eq.s32.totalorder %s24, 0
      %p108 = por %p106, %p107
      %p109 = scmp.ne.s32.totalorder %s97, %s98
      %p110 = scmp.eq.s32.totalorder %s25, 1
      %p111 = por %p109, %p110
      %p113 = scmp.ne.s32.totalorder %s98, %s112
      %p114 = scmp.eq.s32.totalorder %s25, 0
      %p115 = por %p113, %p114
      %s117 = sadd.s32 %s116, 1
      %p120 = scmp.eq.s32.totalorder %s19, 1
      %p121 = scmp.ne.s32.totalorder %s116, %s118
      %p122 = scmp.eq.s32.totalorder %s19, 0
      %p123 = por %p121, %p122
      %p124 = scmp.ne.s32.totalorder %s116, %s118
      %p125 = scmp.eq.s32.totalorder %s24, 1
      %p126 = por %p124, %p125
      %p127 = scmp.ne.s32.totalorder %s118, %s119
      %p128 = scmp.eq.s32.totalorder %s24, 0
      %p129 = por %p127, %p128
      %p130 = scmp.ne.s32.totalorder %s118, %s119
      %p131 = scmp.eq.s32.totalorder %s25, 1
      %p132 = por %p130, %p131
      %p134 = scmp.ne.s32.totalorder %s119, %s133
      %p135 = scmp.eq.s32.totalorder %s25, 0
      %p136 = por %p134, %p135
      %s137 = ssub.s32 %s19, %s26
      %p138 = scmp.eq.s32.totalorder %s137, 0
      %s140 = sadd.s32 %s139, 1
      %s141 = scalar_select %p138, %s139, %s140
      %p144 = pneg %p138
      %p145 = scmp.eq.s32.totalorder %s19, 1
      %p146 = por %p144, %p145
      %p147 = scmp.ne.s32.totalorder %s139, %s142
      %p148 = scmp.eq.s32.totalorder %s19, 0
      %p149 = por %p147, %p148
      %p150 = scmp.ne.s32.totalorder %s139, %s142
      %p151 = scmp.eq.s32.totalorder %s24, 1
      %p152 = por %p150, %p151
      %p153 = scmp.ne.s32.totalorder %s142, %s143
      %p154 = scmp.eq.s32.totalorder %s24, 0
      %p155 = por %p153, %p154
      %p156 = scmp.ne.s32.totalorder %s142, %s143
      %p157 = scmp.eq.s32.totalorder %s25, 1
      %p158 = por %p156, %p157
      %p160 = scmp.ne.s32.totalorder %s143, %s159
      %p161 = scmp.eq.s32.totalorder %s25, 0
      %p162 = por %p160, %p161
      %p163 = scmp.le.s32.totalorder 1, %s19
      %p164 = scmp.lt.s32.totalorder %s19, 3
      %p165 = pnand %p163, %p164
      %p166 = pneg %p165
      // Predicated region
      $region9: #{tpu_custom_call.1} parent=5 // pred_check
        _
      $region10: #{tpu_custom_call.1} parent=5 // pred_check_branch
        %168 = sbr.rel (%p165) target = $region12
      $region11: #{tpu_custom_call.1} parent=5 // pred_region
        %s169 = ssub.s32 %s19, 1
        // Predicated region
        $region13: #{tpu_custom_call.1} parent=11 // pred_check
          %p170 = pneg %p66
        $region14: #{tpu_custom_call.1} parent=11 // pred_check_branch
          %172 = sbr.rel (%p170) target = $region16
        $region15: #{tpu_custom_call.1} parent=11 // pred_region
          %s174 = ssub.s32 3072, 3072
          %175 = vsyncadd [#allocation6], %s174
          %s176 = sshll.u32 [#allocation5], 4
          %s177 = int_to_ptr.vmem [resolvable:$true] %s176
          %182 = dma.hbm_to_vmem [thread:$0]  %s1, 3072, %s177, [#allocation6], 192, 192, 12
        $region16: #{tpu_custom_call.1} parent=11 // pred_fallthru
          _
        // Predicated region
        $region17: #{tpu_custom_call.1} parent=11 // pred_check
          %p183 = pneg %p87
        $region18: #{tpu_custom_call.1} parent=11 // pred_check_branch
          %185 = sbr.rel (%p183) target = $region20
        $region19: #{tpu_custom_call.1} parent=11 // pred_region
          %s187 = ssub.s32 8192, 8192
          %188 = vsyncadd [#allocation6], %s187
          %s189 = sshll.u32 [#allocation7], 4
          %s190 = int_to_ptr.vmem [resolvable:$true] %s189
          %195 = dma.hbm_to_vmem [thread:$0]  %s2, 8192, %s190, [#allocation6], 128, 128, 8
        $region20: #{tpu_custom_call.1} parent=11 // pred_fallthru
          _
        // Predicated region
        $region21: #{tpu_custom_call.1} parent=11 // pred_check
          %p196 = pneg %p108
        $region22: #{tpu_custom_call.1} parent=11 // pred_check_branch
          %198 = sbr.rel (%p196) target = $region24
        $region23: #{tpu_custom_call.1} parent=11 // pred_region
          %s200 = ssub.s32 1024, 1024
          %201 = vsyncadd [#allocation9], %s200
          %s202 = sshll.u32 [#allocation8], 4
          %s203 = int_to_ptr.vmem [resolvable:$true] %s202
          %208 = dma.hbm_to_vmem [thread:$0]  %s3, 1024, %s203, [#allocation9], 64, 64, 4
        $region24: #{tpu_custom_call.1} parent=11 // pred_fallthru
          _
        // Predicated region
        $region25: #{tpu_custom_call.1} parent=11 // pred_check
          %p209 = pneg %p129
        $region26: #{tpu_custom_call.1} parent=11 // pred_check_branch
          %211 = sbr.rel (%p209) target = $region28
        $region27: #{tpu_custom_call.1} parent=11 // pred_region
          _
        $region28: #{tpu_custom_call.1} parent=11 // pred_fallthru
          _
      $region12: #{tpu_custom_call.1} parent=5 // pred_fallthru
        _
      %p212 = scmp.lt.s32.totalorder %s19, 2
      // Predicated region
      $region29: #{tpu_custom_call.1} parent=5 // pred_check
        %p213 = pneg %p212
      $region30: #{tpu_custom_call.1} parent=5 // pred_check_branch
        %215 = sbr.rel (%p213) target = $region32
      $region31: #{tpu_custom_call.1} parent=5 // pred_region
        // Predicated region
        $region33: #{tpu_custom_call.1} parent=31 // pred_check
          %p216 = pneg %p39
        $region34: #{tpu_custom_call.1} parent=31 // pred_check_branch
          %218 = sbr.rel (%p216) target = $region36
        $region35: #{tpu_custom_call.1} parent=31 // pred_region
          %s219 = sand.u32 %s29, 1
          %s220 = scalar_lea.sflag [#allocation3], %s219
          %s221 = sand.u32 %s29, 1
          %s222 = smul.addr %s221, 256
          %s223 = scalar_lea.vmem [#allocation2], %s222
          %s224 = smul.u32 64, %s19
          %s226 = ssub.s32 4096, 4096
          %227 = vsyncadd %s220, %s226
          %s228 = smul.addr %s224, 64
          %s229 = scalar_lea.hbm %s0, %s228
          %s230 = sshll.u32 %s223, 4
          %s231 = int_to_ptr.vmem [resolvable:$true] %s230
          %236 = dma.hbm_to_vmem [thread:$0]  %s229, 4096, %s231, %s220, 64, 64, 4
        $region36: #{tpu_custom_call.1} parent=31 // pred_fallthru
          _
      $region32: #{tpu_custom_call.1} parent=5 // pred_fallthru
        _
      %p237 = scmp.le.s32.totalorder 1, %s19
      %p238 = scmp.lt.s32.totalorder %s19, 3
      %p239 = pnand %p237, %p238
      %p240 = pneg %p239
      // Predicated region
      $region37: #{tpu_custom_call.1} parent=5 // pred_check
        _
      $region38: #{tpu_custom_call.1} parent=5 // pred_check_branch
        %242 = sbr.rel (%p239) target = $region40
      $region39: #{tpu_custom_call.1} parent=5 // pred_region
        %s243 = ssub.s32 %s19, 1
        %s244 = sand.u32 %s32, 1
        %s245 = scalar_lea.sflag [#allocation3], %s244
        %s246 = sand.u32 %s32, 1
        %s247 = smul.addr %s246, 256
        %s248 = scalar_lea.vmem [#allocation2], %s247
        // Predicated region
        $region41: #{tpu_custom_call.1} parent=39 // pred_check
          %p249 = pneg %p45
        $region42: #{tpu_custom_call.1} parent=39 // pred_check_branch
          %251 = sbr.rel (%p249) target = $region44
        $region43: #{tpu_custom_call.1} parent=39 // pred_region
          %252 = dma.done %s245, 4096
        $region44: #{tpu_custom_call.1} parent=39 // pred_fallthru
          _
        // Predicated region
        $region45: #{tpu_custom_call.1} parent=39 // pred_check
          %p253 = pneg %p66
        $region46: #{tpu_custom_call.1} parent=39 // pred_check_branch
          %255 = sbr.rel (%p253) target = $region48
        $region47: #{tpu_custom_call.1} parent=39 // pred_region
          %256 = dma.done [#allocation6], 3072
        $region48: #{tpu_custom_call.1} parent=39 // pred_fallthru
          _
        // Predicated region
        $region49: #{tpu_custom_call.1} parent=39 // pred_check
          %p257 = pneg %p87
        $region50: #{tpu_custom_call.1} parent=39 // pred_check_branch
          %259 = sbr.rel (%p257) target = $region52
        $region51: #{tpu_custom_call.1} parent=39 // pred_region
          %260 = dma.done [#allocation6], 8192
        $region52: #{tpu_custom_call.1} parent=39 // pred_fallthru
          _
        // Predicated region
        $region53: #{tpu_custom_call.1} parent=39 // pred_check
          %p261 = pneg %p108
        $region54: #{tpu_custom_call.1} parent=39 // pred_check_branch
          %263 = sbr.rel (%p261) target = $region56
        $region55: #{tpu_custom_call.1} parent=39 // pred_region
          %264 = dma.done [#allocation9], 1024
        $region56: #{tpu_custom_call.1} parent=39 // pred_fallthru
          _
        %s265 = sand.u32 %s32, 1
        %s266 = scalar_lea.sflag [#allocation3], %s265
        %s267 = sand.u32 %s32, 1
        %s268 = smul.addr %s267, 256
        %s269 = scalar_lea.vmem [#allocation2], %s268
        %p270 = pneg %p45
        %p271 = pneg %p42
        %p272 = pneg %p66
        %p273 = pneg %p63
        %p274 = pneg %p87
        %p275 = pneg %p84
        %p276 = pneg %p108
        %p277 = pneg %p105
        %p278 = pneg %p129
        %p279 = pneg %p126
        %p280 = pneg %p155
        %p281 = pneg %p152
        %s282 = sand.u32 %s142, 1
        %s283 = scalar_lea.sflag [#allocation4], %s282
        %s284 = sand.u32 %s142, 1
        %s285 = smul.addr %s284, 512
        %s286 = scalar_lea.vmem [#allocation10], %s285
        %s287 = smul.u32 64, %s24
        %s288 = smul.u32 64, %s24
        %v290 = vld [vmem:[%s248] sm:$0xf]
        %v291 = vld [vmem:[%s248 + $0x4] sm:$0xf]
        %v292 = vld [vmem:[%s248 + $0x8] sm:$0xf]
        %v293 = vld [vmem:[%s248 + $0xc] sm:$0xf]
        %v294 = vld [vmem:[%s248 + $0x10] sm:$0xf]
        %v295 = vld [vmem:[%s248 + $0x14] sm:$0xf]
        %v296 = vld [vmem:[%s248 + $0x18] sm:$0xf]
        %v297 = vld [vmem:[%s248 + $0x1c] sm:$0xf]
        %v298 = vld [vmem:[%s248 + $0x20] sm:$0xf]
        %v299 = vld [vmem:[%s248 + $0x24] sm:$0xf]
        %v300 = vld [vmem:[%s248 + $0x28] sm:$0xf]
        %v301 = vld [vmem:[%s248 + $0x2c] sm:$0xf]
        %v302 = vld [vmem:[%s248 + $0x30] sm:$0xf]
        %v303 = vld [vmem:[%s248 + $0x34] sm:$0xf]
        %v304 = vld [vmem:[%s248 + $0x38] sm:$0xf]
        %v305 = vld [vmem:[%s248 + $0x3c] sm:$0xf]
        %v306 = vld [vmem:[%s248 + $0x40] sm:$0xf]
        %v307 = vld [vmem:[%s248 + $0x44] sm:$0xf]
        %v308 = vld [vmem:[%s248 + $0x48] sm:$0xf]
        %v309 = vld [vmem:[%s248 + $0x4c] sm:$0xf]
        %v310 = vld [vmem:[%s248 + $0x50] sm:$0xf]
        %v311 = vld [vmem:[%s248 + $0x54] sm:$0xf]
        %v312 = vld [vmem:[%s248 + $0x58] sm:$0xf]
        %v313 = vld [vmem:[%s248 + $0x5c] sm:$0xf]
        %v314 = vld [vmem:[%s248 + $0x60] sm:$0xf]
        %v315 = vld [vmem:[%s248 + $0x64] sm:$0xf]
        %v316 = vld [vmem:[%s248 + $0x68] sm:$0xf]
        %v317 = vld [vmem:[%s248 + $0x6c] sm:$0xf]
        %v318 = vld [vmem:[%s248 + $0x70] sm:$0xf]
        %v319 = vld [vmem:[%s248 + $0x74] sm:$0xf]
        %v320 = vld [vmem:[%s248 + $0x78] sm:$0xf]
        %v321 = vld [vmem:[%s248 + $0x7c] sm:$0xf]
        %v322 = vld [vmem:[%s248 + $0x80] sm:$0xf]
        %v323 = vld [vmem:[%s248 + $0x84] sm:$0xf]
        %v324 = vld [vmem:[%s248 + $0x88] sm:$0xf]
        %v325 = vld [vmem:[%s248 + $0x8c] sm:$0xf]
        %v326 = vld [vmem:[%s248 + $0x90] sm:$0xf]
        %v327 = vld [vmem:[%s248 + $0x94] sm:$0xf]
        %v328 = vld [vmem:[%s248 + $0x98] sm:$0xf]
        %v329 = vld [vmem:[%s248 + $0x9c] sm:$0xf]
        %v330 = vld [vmem:[%s248 + $0xa0] sm:$0xf]
        %v331 = vld [vmem:[%s248 + $0xa4] sm:$0xf]
        %v332 = vld [vmem:[%s248 + $0xa8] sm:$0xf]
        %v333 = vld [vmem:[%s248 + $0xac] sm:$0xf]
        %v334 = vld [vmem:[%s248 + $0xb0] sm:$0xf]
        %v335 = vld [vmem:[%s248 + $0xb4] sm:$0xf]
        %v336 = vld [vmem:[%s248 + $0xb8] sm:$0xf]
        %v337 = vld [vmem:[%s248 + $0xbc] sm:$0xf]
        %v338 = vld [vmem:[%s248 + $0xc0] sm:$0xf]
        %v339 = vld [vmem:[%s248 + $0xc4] sm:$0xf]
        %v340 = vld [vmem:[%s248 + $0xc8] sm:$0xf]
        %v341 = vld [vmem:[%s248 + $0xcc] sm:$0xf]
        %v342 = vld [vmem:[%s248 + $0xd0] sm:$0xf]
        %v343 = vld [vmem:[%s248 + $0xd4] sm:$0xf]
        %v344 = vld [vmem:[%s248 + $0xd8] sm:$0xf]
        %v345 = vld [vmem:[%s248 + $0xdc] sm:$0xf]
        %v346 = vld [vmem:[%s248 + $0xe0] sm:$0xf]
        %v347 = vld [vmem:[%s248 + $0xe4] sm:$0xf]
        %v348 = vld [vmem:[%s248 + $0xe8] sm:$0xf]
        %v349 = vld [vmem:[%s248 + $0xec] sm:$0xf]
        %v350 = vld [vmem:[%s248 + $0xf0] sm:$0xf]
        %v351 = vld [vmem:[%s248 + $0xf4] sm:$0xf]
        %v352 = vld [vmem:[%s248 + $0xf8] sm:$0xf]
        %v353 = vld [vmem:[%s248 + $0xfc] sm:$0xf]
        %v354 = vld [vmem:[#allocation5] sm:$0xff]
        %v355 = vld [vmem:[#allocation5 + $0x8] sm:$0xf]
        %v356 = vld [vmem:[#allocation5 + $0xc] sm:$0xff]
        %v357 = vld [vmem:[#allocation5 + $0x14] sm:$0xf]
        %v358 = vld [vmem:[#allocation5 + $0x18] sm:$0xff]
        %v359 = vld [vmem:[#allocation5 + $0x20] sm:$0xf]
        %v360 = vld [vmem:[#allocation5 + $0x24] sm:$0xff]
        %v361 = vld [vmem:[#allocation5 + $0x2c] sm:$0xf]
        %v362 = vld [vmem:[#allocation5 + $0x30] sm:$0xff]
        %v363 = vld [vmem:[#allocation5 + $0x38] sm:$0xf]
        %v364 = vld [vmem:[#allocation5 + $0x3c] sm:$0xff]
        %v365 = vld [vmem:[#allocation5 + $0x44] sm:$0xf]
        %v366 = vld [vmem:[#allocation5 + $0x48] sm:$0xff]
        %v367 = vld [vmem:[#allocation5 + $0x50] sm:$0xf]
        %v368 = vld [vmem:[#allocation5 + $0x54] sm:$0xff]
        %v369 = vld [vmem:[#allocation5 + $0x5c] sm:$0xf]
        %v370 = vld [vmem:[#allocation5 + $0x60] sm:$0xff]
        %v371 = vld [vmem:[#allocation5 + $0x68] sm:$0xf]
        %v372 = vld [vmem:[#allocation5 + $0x6c] sm:$0xff]
        %v373 = vld [vmem:[#allocation5 + $0x74] sm:$0xf]
        %v374 = vld [vmem:[#allocation5 + $0x78] sm:$0xff]
        %v375 = vld [vmem:[#allocation5 + $0x80] sm:$0xf]
        %v376 = vld [vmem:[#allocation5 + $0x84] sm:$0xff]
        %v377 = vld [vmem:[#allocation5 + $0x8c] sm:$0xf]
        %v378 = vld [vmem:[#allocation5 + $0x90] sm:$0xff]
        %v379 = vld [vmem:[#allocation5 + $0x98] sm:$0xf]
        %v380 = vld [vmem:[#allocation5 + $0x9c] sm:$0xff]
        %v381 = vld [vmem:[#allocation5 + $0xa4] sm:$0xf]
        %v382 = vld [vmem:[#allocation5 + $0xa8] sm:$0xff]
        %v383 = vld [vmem:[#allocation5 + $0xb0] sm:$0xf]
        %v384 = vld [vmem:[#allocation5 + $0xb4] sm:$0xff]
        %v385 = vld [vmem:[#allocation5 + $0xbc] sm:$0xf]
        %v450 = vunpack.c.l.b16 %v290
        %v451 = vunpack.c.l.b16 %v291
        %v452 = vunpack.c.l.b16 %v292
        %v453 = vunpack.c.l.b16 %v293
        %v454 = vunpack.c.l.b16 %v294
        %v455 = vunpack.c.l.b16 %v295
        %v456 = vunpack.c.l.b16 %v296
        %v457 = vunpack.c.l.b16 %v297
        %v458 = vunpack.c.l.b16 %v298
        %v459 = vunpack.c.l.b16 %v299
        %v460 = vunpack.c.l.b16 %v300
        %v461 = vunpack.c.l.b16 %v301
        %v462 = vunpack.c.l.b16 %v302
        %v463 = vunpack.c.l.b16 %v303
        %v464 = vunpack.c.l.b16 %v304
        %v465 = vunpack.c.l.b16 %v305
        %v466 = vunpack.c.l.b16 %v306
        %v467 = vunpack.c.l.b16 %v307
        %v468 = vunpack.c.l.b16 %v308
        %v469 = vunpack.c.l.b16 %v309
        %v470 = vunpack.c.l.b16 %v310
        %v471 = vunpack.c.l.b16 %v311
        %v472 = vunpack.c.l.b16 %v312
        %v473 = vunpack.c.l.b16 %v313
        %v474 = vunpack.c.l.b16 %v314
        %v475 = vunpack.c.l.b16 %v315
        %v476 = vunpack.c.l.b16 %v316
        %v477 = vunpack.c.l.b16 %v317
        %v478 = vunpack.c.l.b16 %v318
        %v479 = vunpack.c.l.b16 %v319
        %v480 = vunpack.c.l.b16 %v320
        %v481 = vunpack.c.l.b16 %v321
        %v482 = vunpack.c.l.b16 %v322
        %v483 = vunpack.c.l.b16 %v323
        %v484 = vunpack.c.l.b16 %v324
        %v485 = vunpack.c.l.b16 %v325
        %v486 = vunpack.c.l.b16 %v326
        %v487 = vunpack.c.l.b16 %v327
        %v488 = vunpack.c.l.b16 %v328
        %v489 = vunpack.c.l.b16 %v329
        %v490 = vunpack.c.l.b16 %v330
        %v491 = vunpack.c.l.b16 %v331
        %v492 = vunpack.c.l.b16 %v332
        %v493 = vunpack.c.l.b16 %v333
        %v494 = vunpack.c.l.b16 %v334
        %v495 = vunpack.c.l.b16 %v335
        %v496 = vunpack.c.l.b16 %v336
        %v497 = vunpack.c.l.b16 %v337
        %v498 = vunpack.c.l.b16 %v338
        %v499 = vunpack.c.l.b16 %v339
        %v500 = vunpack.c.l.b16 %v340
        %v501 = vunpack.c.l.b16 %v341
        %v502 = vunpack.c.l.b16 %v342
        %v503 = vunpack.c.l.b16 %v343
        %v504 = vunpack.c.l.b16 %v344
        %v505 = vunpack.c.l.b16 %v345
        %v506 = vunpack.c.l.b16 %v346
        %v507 = vunpack.c.l.b16 %v347
        %v508 = vunpack.c.l.b16 %v348
        %v509 = vunpack.c.l.b16 %v349
        %v510 = vunpack.c.l.b16 %v350
        %v511 = vunpack.c.l.b16 %v351
        %v512 = vunpack.c.l.b16 %v352
        %v513 = vunpack.c.l.b16 %v353
        %v514 = vpack.c.b16 %v451, %v450
        %v515 = vpack.c.b16 %v453, %v452
        %v516 = vpack.c.b16 %v455, %v454
        %v517 = vpack.c.b16 %v457, %v456
        %v518 = vpack.c.b16 %v459, %v458
        %v519 = vpack.c.b16 %v461, %v460
        %v520 = vpack.c.b16 %v463, %v462
        %v521 = vpack.c.b16 %v465, %v464
        %v522 = vpack.c.b16 %v467, %v466
        %v523 = vpack.c.b16 %v469, %v468
        %v524 = vpack.c.b16 %v471, %v470
        %v525 = vpack.c.b16 %v473, %v472
        %v526 = vpack.c.b16 %v475, %v474
        %v527 = vpack.c.b16 %v477, %v476
        %v528 = vpack.c.b16 %v479, %v478
        %v529 = vpack.c.b16 %v481, %v480
        %v530 = vpack.c.b16 %v483, %v482
        %v531 = vpack.c.b16 %v485, %v484
        %v532 = vpack.c.b16 %v487, %v486
        %v533 = vpack.c.b16 %v489, %v488
        %v534 = vpack.c.b16 %v491, %v490
        %v535 = vpack.c.b16 %v493, %v492
        %v536 = vpack.c.b16 %v495, %v494
        %v537 = vpack.c.b16 %v497, %v496
        %v538 = vpack.c.b16 %v499, %v498
        %v539 = vpack.c.b16 %v501, %v500
        %v540 = vpack.c.b16 %v503, %v502
        %v541 = vpack.c.b16 %v505, %v504
        %v542 = vpack.c.b16 %v507, %v506
        %v543 = vpack.c.b16 %v509, %v508
        %v544 = vpack.c.b16 %v511, %v510
        %v545 = vpack.c.b16 %v513, %v512
        %v610 = vunpack.c.l.b16 %v354
        %v611 = vunpack.c.h.b16 %v354
        %v612 = vunpack.c.l.b16 %v355
        %v613 = vunpack.c.l.b16 %v356
        %v614 = vunpack.c.h.b16 %v356
        %v615 = vunpack.c.l.b16 %v357
        %v616 = vunpack.c.l.b16 %v358
        %v617 = vunpack.c.h.b16 %v358
        %v618 = vunpack.c.l.b16 %v359
        %v619 = vunpack.c.l.b16 %v360
        %v620 = vunpack.c.h.b16 %v360
        %v621 = vunpack.c.l.b16 %v361
        %v622 = vunpack.c.l.b16 %v362
        %v623 = vunpack.c.h.b16 %v362
        %v624 = vunpack.c.l.b16 %v363
        %v625 = vunpack.c.l.b16 %v364
        %v626 = vunpack.c.h.b16 %v364
        %v627 = vunpack.c.l.b16 %v365
        %v628 = vunpack.c.l.b16 %v366
        %v629 = vunpack.c.h.b16 %v366
        %v630 = vunpack.c.l.b16 %v367
        %v631 = vunpack.c.l.b16 %v368
        %v632 = vunpack.c.h.b16 %v368
        %v633 = vunpack.c.l.b16 %v369
        %v634 = vunpack.c.l.b16 %v370
        %v635 = vunpack.c.h.b16 %v370
        %v636 = vunpack.c.l.b16 %v371
        %v637 = vunpack.c.l.b16 %v372
        %v638 = vunpack.c.h.b16 %v372
        %v639 = vunpack.c.l.b16 %v373
        %v640 = vunpack.c.l.b16 %v374
        %v641 = vunpack.c.h.b16 %v374
        %v642 = vunpack.c.l.b16 %v375
        %v643 = vunpack.c.l.b16 %v376
        %v644 = vunpack.c.h.b16 %v376
        %v645 = vunpack.c.l.b16 %v377
        %v646 = vunpack.c.l.b16 %v378
        %v647 = vunpack.c.h.b16 %v378
        %v648 = vunpack.c.l.b16 %v379
        %v649 = vunpack.c.l.b16 %v380
        %v650 = vunpack.c.h.b16 %v380
        %v651 = vunpack.c.l.b16 %v381
        %v652 = vunpack.c.l.b16 %v382
        %v653 = vunpack.c.h.b16 %v382
        %v654 = vunpack.c.l.b16 %v383
        %v655 = vunpack.c.l.b16 %v384
        %v656 = vunpack.c.h.b16 %v384
        %v657 = vunpack.c.l.b16 %v385
        %v658 = vpack.c.b16 %v613, %v610
        %v659 = vpack.c.b16 %v614, %v611
        %v660 = vpack.c.b16 %v615, %v612
        %v661 = vpack.c.b16 %v619, %v616
        %v662 = vpack.c.b16 %v620, %v617
        %v663 = vpack.c.b16 %v621, %v618
        %v664 = vpack.c.b16 %v625, %v622
        %v665 = vpack.c.b16 %v626, %v623
        %v666 = vpack.c.b16 %v627, %v624
        %v667 = vpack.c.b16 %v631, %v628
        %v668 = vpack.c.b16 %v632, %v629
        %v669 = vpack.c.b16 %v633, %v630
        %v670 = vpack.c.b16 %v637, %v634
        %v671 = vpack.c.b16 %v638, %v635
        %v672 = vpack.c.b16 %v639, %v636
        %v673 = vpack.c.b16 %v643, %v640
        %v674 = vpack.c.b16 %v644, %v641
        %v675 = vpack.c.b16 %v645, %v642
        %v676 = vpack.c.b16 %v649, %v646
        %v677 = vpack.c.b16 %v650, %v647
        %v678 = vpack.c.b16 %v651, %v648
        %v679 = vpack.c.b16 %v655, %v652
        %v680 = vpack.c.b16 %v656, %v653
        %v681 = vpack.c.b16 %v657, %v654
        %706 = vmatprep.subr.bf16.mxu0 %v659
        %707 = vmatpush1.bf16.msra.mxu0 %v658
        %708 = vmatprep.subr.bf16.mxu0 %v662
        %709 = vmatpush1.bf16.msra.mxu0 %v661
        %710 = vmatprep.subr.bf16.mxu0 %v665
        %711 = vmatpush1.bf16.msra.mxu0 %v664
        %712 = vmatprep.subr.bf16.mxu0 %v668
        %713 = vmatpush1.bf16.msra.mxu0 %v667
        %714 = vmatprep.subr.bf16.mxu0 %v671
        %715 = vmatpush1.bf16.msra.mxu0 %v670
        %716 = vmatprep.subr.bf16.mxu0 %v674
        %717 = vmatpush1.bf16.msra.mxu0 %v673
        %718 = vmatprep.subr.bf16.mxu0 %v677
        %719 = vmatpush1.bf16.msra.mxu0 %v676
        %720 = vmatprep.subr.bf16.mxu0 %v680
        %721 = vmatpush1.bf16.msra.mxu0 %v679
        %722 = vmatprep.subr.bf16.mxu0 0
        %723 = vmatpush1.bf16.msra.mxu0 0
        %724 = vmatprep.subr.bf16.mxu0 0
        %725 = vmatpush1.bf16.msra.mxu0 0
        %726 = vmatprep.subr.bf16.mxu0 0
        %727 = vmatpush1.bf16.msra.mxu0 0
        %728 = vmatprep.subr.bf16.mxu0 0
        %729 = vmatpush1.bf16.msra.mxu0 0
        %730 = vmatprep.subr.bf16.mxu0 0
        %731 = vmatpush1.bf16.msra.mxu0 0
        %732 = vmatprep.subr.bf16.mxu0 0
        %733 = vmatpush1.bf16.msra.mxu0 0
        %734 = vmatprep.subr.bf16.mxu0 0
        %735 = vmatpush1.bf16.msra.mxu0 0
        %736 = vmatprep.subr.bf16.mxu0 0
        %737 = vmatpush1.bf16.msra.mxu0 0
        %738 = vmatprep.mubr.bf16.mxu0 0
        %739 = vmatmul.mubr.bf16.gmra.mrb[0].mxu0 %v514
        %v740 = vpop.f32.mrb[0].mxu0
        %v741 = vadd.f32 0.0, %v740
        %v742 = vpop.f32.mrb[0].mxu0
        %v743 = vadd.f32 0.0, %v742
        %v744 = vpop.f32.mrb[0].mxu0
        %v745 = vadd.f32 0.0, %v744
        %v746 = vpop.f32.mrb[0].mxu0
        %v747 = vadd.f32 0.0, %v746
        %748 = vmatprep.mubr.bf16.mxu0 0
        %749 = vmatmul.mubr.bf16.gmra.mrb[0].mxu0 %v515
        %v750 = vpop.f32.mrb[0].mxu0
        %v751 = vadd.f32 0.0, %v750
        %v752 = vpop.f32.mrb[0].mxu0
        %v753 = vadd.f32 0.0, %v752
        %v754 = vpop.f32.mrb[0].mxu0
        %v755 = vadd.f32 0.0, %v754
        %v756 = vpop.f32.mrb[0].mxu0
        %v757 = vadd.f32 0.0, %v756
        %758 = vmatprep.mubr.bf16.mxu0 0
        %759 = vmatmul.mubr.bf16.gmra.mrb[0].mxu0 %v516
        %v760 = vpop.f32.mrb[0].mxu0
        %v761 = vadd.f32 0.0, %v760
        %v762 = vpop.f32.mrb[0].mxu0
        %v763 = vadd.f32 0.0, %v762
        %v764 = vpop.f32.mrb[0].mxu0
        %v765 = vadd.f32 0.0, %v764
        %v766 = vpop.f32.mrb[0].mxu0
        %v767 = vadd.f32 0.0, %v766
        %768 = vmatprep.mubr.bf16.mxu0 0
        %769 = vmatmul.mubr.bf16.gmra.mrb[0].mxu0 %v517
        %v770 = vpop.f32.mrb[0].mxu0
        %v771 = vadd.f32 0.0, %v770
        %v772 = vpop.f32.mrb[0].mxu0
        %v773 = vadd.f32 0.0, %v772
        %v774 = vpop.f32.mrb[0].mxu0
        %v775 = vadd.f32 0.0, %v774
        %v776 = vpop.f32.mrb[0].mxu0
        %v777 = vadd.f32 0.0, %v776
        %778 = vmatprep.mubr.bf16.mxu0 0
        %779 = vmatmul.mubr.bf16.gmra.mrb[0].mxu0 %v518
        %v780 = vpop.f32.mrb[0].mxu0
        %v781 = vadd.f32 0.0, %v780
        %v782 = vpop.f32.mrb[0].mxu0
        %v783 = vadd.f32 0.0, %v782
        %v784 = vpop.f32.mrb[0].mxu0
        %v785 = vadd.f32 0.0, %v784
        %v786 = vpop.f32.mrb[0].mxu0
        %v787 = vadd.f32 0.0, %v786
        %788 = vmatprep.mubr.bf16.mxu0 0
        %789 = vmatmul.mubr.bf16.gmra.mrb[0].mxu0 %v519
        %v790 = vpop.f32.mrb[0].mxu0
        %v791 = vadd.f32 0.0, %v790
        %v792 = vpop.f32.mrb[0].mxu0
        %v793 = vadd.f32 0.0, %v792
        %v794 = vpop.f32.mrb[0].mxu0
        %v795 = vadd.f32 0.0, %v794
        %v796 = vpop.f32.mrb[0].mxu0
        %v797 = vadd.f32 0.0, %v796
        %798 = vmatprep.mubr.bf16.mxu0 0
        %799 = vmatmul.mubr.bf16.gmra.mrb[0].mxu0 %v520
        %v800 = vpop.f32.mrb[0].mxu0
        %v801 = vadd.f32 0.0, %v800
        %v802 = vpop.f32.mrb[0].mxu0
        %v803 = vadd.f32 0.0, %v802
        %v804 = vpop.f32.mrb[0].mxu0
        %v805 = vadd.f32 0.0, %v804
        %v806 = vpop.f32.mrb[0].mxu0
        %v807 = vadd.f32 0.0, %v806
        %808 = vmatprep.mubr.bf16.mxu0 0
        %809 = vmatmul.mubr.bf16.gmra.mrb[0].mxu0 %v521
        %v810 = vpop.f32.mrb[0].mxu0
        %v811 = vadd.f32 0.0, %v810
        %v812 = vpop.f32.mrb[0].mxu0
        %v813 = vadd.f32 0.0, %v812
        %v814 = vpop.f32.mrb[0].mxu0
        %v815 = vadd.f32 0.0, %v814
        %v816 = vpop.f32.mrb[0].mxu0
        %v817 = vadd.f32 0.0, %v816
        %818 = vmatprep.mubr.bf16.mxu0 0
        %819 = vmatmul.mubr.bf16.gmra.mrb[0].mxu0 %v522
        %v820 = vpop.f32.mrb[0].mxu0
        %v821 = vadd.f32 0.0, %v820
        %v822 = vpop.f32.mrb[0].mxu0
        %v823 = vadd.f32 0.0, %v822
        %v824 = vpop.f32.mrb[0].mxu0
        %v825 = vadd.f32 0.0, %v824
        %v826 = vpop.f32.mrb[0].mxu0
        %v827 = vadd.f32 0.0, %v826
        %828 = vmatprep.mubr.bf16.mxu0 0
        %829 = vmatmul.mubr.bf16.gmra.mrb[0].mxu0 %v523
        %v830 = vpop.f32.mrb[0].mxu0
        %v831 = vadd.f32 0.0, %v830
        %v832 = vpop.f32.mrb[0].mxu0
        %v833 = vadd.f32 0.0, %v832
        %v834 = vpop.f32.mrb[0].mxu0
        %v835 = vadd.f32 0.0, %v834
        %v836 = vpop.f32.mrb[0].mxu0
        %v837 = vadd.f32 0.0, %v836
        %838 = vmatprep.mubr.bf16.mxu0 0
        %839 = vmatmul.mubr.bf16.gmra.mrb[0].mxu0 %v524
        %v840 = vpop.f32.mrb[0].mxu0
        %v841 = vadd.f32 0.0, %v840
        %v842 = vpop.f32.mrb[0].mxu0
        %v843 = vadd.f32 0.0, %v842
        %v844 = vpop.f32.mrb[0].mxu0
        %v845 = vadd.f32 0.0, %v844
        %v846 = vpop.f32.mrb[0].mxu0
        %v847 = vadd.f32 0.0, %v846
        %848 = vmatprep.mubr.bf16.mxu0 0
        %849 = vmatmul.mubr.bf16.gmra.mrb[0].mxu0 %v525
        %v850 = vpop.f32.mrb[0].mxu0
        %v851 = vadd.f32 0.0, %v850
        %v852 = vpop.f32.mrb[0].mxu0
        %v853 = vadd.f32 0.0, %v852
        %v854 = vpop.f32.mrb[0].mxu0
        %v855 = vadd.f32 0.0, %v854
        %v856 = vpop.f32.mrb[0].mxu0
        %v857 = vadd.f32 0.0, %v856
        %858 = vmatprep.mubr.bf16.mxu0 0
        %859 = vmatmul.mubr.bf16.gmra.mrb[0].mxu0 %v526
        %v860 = vpop.f32.mrb[0].mxu0
        %v861 = vadd.f32 0.0, %v860
        %v862 = vpop.f32.mrb[0].mxu0
        %v863 = vadd.f32 0.0, %v862
        %v864 = vpop.f32.mrb[0].mxu0
        %v865 = vadd.f32 0.0, %v864
        %v866 = vpop.f32.mrb[0].mxu0
        %v867 = vadd.f32 0.0, %v866
        %868 = vmatprep.mubr.bf16.mxu0 0
        %869 = vmatmul.mubr.bf16.gmra.mrb[0].mxu0 %v527
        %v870 = vpop.f32.mrb[0].mxu0
        %v871 = vadd.f32 0.0, %v870
        %v872 = vpop.f32.mrb[0].mxu0
        %v873 = vadd.f32 0.0, %v872
        %v874 = vpop.f32.mrb[0].mxu0
        %v875 = vadd.f32 0.0, %v874
        %v876 = vpop.f32.mrb[0].mxu0
        %v877 = vadd.f32 0.0, %v876
        %878 = vmatprep.mubr.bf16.mxu0 0
        %879 = vmatmul.mubr.bf16.gmra.mrb[0].mxu0 %v528
        %v880 = vpop.f32.mrb[0].mxu0
        %v881 = vadd.f32 0.0, %v880
        %v882 = vpop.f32.mrb[0].mxu0
        %v883 = vadd.f32 0.0, %v882
        %v884 = vpop.f32.mrb[0].mxu0
        %v885 = vadd.f32 0.0, %v884
        %v886 = vpop.f32.mrb[0].mxu0
        %v887 = vadd.f32 0.0, %v886
        %888 = vmatprep.mubr.bf16.mxu0 0
        %889 = vmatmul.mubr.bf16.gmra.mrb[0].mxu0 %v529
        %v890 = vpop.f32.mrb[0].mxu0
        %v891 = vadd.f32 0.0, %v890
        %v892 = vpop.f32.mrb[0].mxu0
        %v893 = vadd.f32 0.0, %v892
        %v894 = vpop.f32.mrb[0].mxu0
        %v895 = vadd.f32 0.0, %v894
        %v896 = vpop.f32.mrb[0].mxu0
        %v897 = vadd.f32 0.0, %v896
        %898 = vmatprep.mubr.bf16.mxu0 0
        %899 = vmatmul.mubr.bf16.gmra.mrb[0].mxu0 %v530
        %v900 = vpop.f32.mrb[0].mxu0
        %v901 = vadd.f32 0.0, %v900
        %v902 = vpop.f32.mrb[0].mxu0
        %v903 = vadd.f32 0.0, %v902
        %v904 = vpop.f32.mrb[0].mxu0
        %v905 = vadd.f32 0.0, %v904
        %v906 = vpop.f32.mrb[0].mxu0
        %v907 = vadd.f32 0.0, %v906
        %908 = vmatprep.mubr.bf16.mxu0 0
        %909 = vmatmul.mubr.bf16.gmra.mrb[0].mxu0 %v531
        %v910 = vpop.f32.mrb[0].mxu0
        %v911 = vadd.f32 0.0, %v910
        %v912 = vpop.f32.mrb[0].mxu0
        %v913 = vadd.f32 0.0, %v912
        %v914 = vpop.f32.mrb[0].mxu0
        %v915 = vadd.f32 0.0, %v914
        %v916 = vpop.f32.mrb[0].mxu0
        %v917 = vadd.f32 0.0, %v916
        %918 = vmatprep.mubr.bf16.mxu0 0
        %919 = vmatmul.mubr.bf16.gmra.mrb[0].mxu0 %v532
        %v920 = vpop.f32.mrb[0].mxu0
        %v921 = vadd.f32 0.0, %v920
        %v922 = vpop.f32.mrb[0].mxu0
        %v923 = vadd.f32 0.0, %v922
        %v924 = vpop.f32.mrb[0].mxu0
        %v925 = vadd.f32 0.0, %v924
        %v926 = vpop.f32.mrb[0].mxu0
        %v927 = vadd.f32 0.0, %v926
        %928 = vmatprep.mubr.bf16.mxu0 0
        %929 = vmatmul.mubr.bf16.gmra.mrb[0].mxu0 %v533
        %v930 = vpop.f32.mrb[0].mxu0
        %v931 = vadd.f32 0.0, %v930
        %v932 = vpop.f32.mrb[0].mxu0
        %v933 = vadd.f32 0.0, %v932
        %v934 = vpop.f32.mrb[0].mxu0
        %v935 = vadd.f32 0.0, %v934
        %v936 = vpop.f32.mrb[0].mxu0
        %v937 = vadd.f32 0.0, %v936
        %938 = vmatprep.mubr.bf16.mxu0 0
        %939 = vmatmul.mubr.bf16.gmra.mrb[0].mxu0 %v534
        %v940 = vpop.f32.mrb[0].mxu0
        %v941 = vadd.f32 0.0, %v940
        %v942 = vpop.f32.mrb[0].mxu0
        %v943 = vadd.f32 0.0, %v942
        %v944 = vpop.f32.mrb[0].mxu0
        %v945 = vadd.f32 0.0, %v944
        %v946 = vpop.f32.mrb[0].mxu0
        %v947 = vadd.f32 0.0, %v946
        %948 = vmatprep.mubr.bf16.mxu0 0
        %949 = vmatmul.mubr.bf16.gmra.mrb[0].mxu0 %v535
        %v950 = vpop.f32.mrb[0].mxu0
        %v951 = vadd.f32 0.0, %v950
        %v952 = vpop.f32.mrb[0].mxu0
        %v953 = vadd.f32 0.0, %v952
        %v954 = vpop.f32.mrb[0].mxu0
        %v955 = vadd.f32 0.0, %v954
        %v956 = vpop.f32.mrb[0].mxu0
        %v957 = vadd.f32 0.0, %v956
        %958 = vmatprep.mubr.bf16.mxu0 0
        %959 = vmatmul.mubr.bf16.gmra.mrb[0].mxu0 %v536
        %v960 = vpop.f32.mrb[0].mxu0
        %v961 = vadd.f32 0.0, %v960
        %v962 = vpop.f32.mrb[0].mxu0
        %v963 = vadd.f32 0.0, %v962
        %v964 = vpop.f32.mrb[0].mxu0
        %v965 = vadd.f32 0.0, %v964
        %v966 = vpop.f32.mrb[0].mxu0
        %v967 = vadd.f32 0.0, %v966
        %968 = vmatprep.mubr.bf16.mxu0 0
        %969 = vmatmul.mubr.bf16.gmra.mrb[0].mxu0 %v537
        %v970 = vpop.f32.mrb[0].mxu0
        %v971 = vadd.f32 0.0, %v970
        %v972 = vpop.f32.mrb[0].mxu0
        %v973 = vadd.f32 0.0, %v972
        %v974 = vpop.f32.mrb[0].mxu0
        %v975 = vadd.f32 0.0, %v974
        %v976 = vpop.f32.mrb[0].mxu0
        %v977 = vadd.f32 0.0, %v976
        %978 = vmatprep.mubr.bf16.mxu0 0
        %979 = vmatmul.mubr.bf16.gmra.mrb[0].mxu0 %v538
        %v980 = vpop.f32.mrb[0].mxu0
        %v981 = vadd.f32 0.0, %v980
        %v982 = vpop.f32.mrb[0].mxu0
        %v983 = vadd.f32 0.0, %v982
        %v984 = vpop.f32.mrb[0].mxu0
        %v985 = vadd.f32 0.0, %v984
        %v986 = vpop.f32.mrb[0].mxu0
        %v987 = vadd.f32 0.0, %v986
        %988 = vmatprep.mubr.bf16.mxu0 0
        %989 = vmatmul.mubr.bf16.gmra.mrb[0].mxu0 %v539
        %v990 = vpop.f32.mrb[0].mxu0
        %v991 = vadd.f32 0.0, %v990
        %v992 = vpop.f32.mrb[0].mxu0
        %v993 = vadd.f32 0.0, %v992
        %v994 = vpop.f32.mrb[0].mxu0
        %v995 = vadd.f32 0.0, %v994
        %v996 = vpop.f32.mrb[0].mxu0
        %v997 = vadd.f32 0.0, %v996
        %998 = vmatprep.mubr.bf16.mxu0 0
        %999 = vmatmul.mubr.bf16.gmra.mrb[0].mxu0 %v540
        %v1000 = vpop.f32.mrb[0].mxu0
        %v1001 = vadd.f32 0.0, %v1000
        %v1002 = vpop.f32.mrb[0].mxu0
        %v1003 = vadd.f32 0.0, %v1002
        %v1004 = vpop.f32.mrb[0].mxu0
        %v1005 = vadd.f32 0.0, %v1004
        %v1006 = vpop.f32.mrb[0].mxu0
        %v1007 = vadd.f32 0.0, %v1006
        %1008 = vmatprep.mubr.bf16.mxu0 0
        %1009 = vmatmul.mubr.bf16.gmra.mrb[0].mxu0 %v541
        %v1010 = vpop.f32.mrb[0].mxu0
        %v1011 = vadd.f32 0.0, %v1010
        %v1012 = vpop.f32.mrb[0].mxu0
        %v1013 = vadd.f32 0.0, %v1012
        %v1014 = vpop.f32.mrb[0].mxu0
        %v1015 = vadd.f32 0.0, %v1014
        %v1016 = vpop.f32.mrb[0].mxu0
        %v1017 = vadd.f32 0.0, %v1016
        %1018 = vmatprep.mubr.bf16.mxu0 0
        %1019 = vmatmul.mubr.bf16.gmra.mrb[0].mxu0 %v542
        %v1020 = vpop.f32.mrb[0].mxu0
        %v1021 = vadd.f32 0.0, %v1020
        %v1022 = vpop.f32.mrb[0].mxu0
        %v1023 = vadd.f32 0.0, %v1022
        %v1024 = vpop.f32.mrb[0].mxu0
        %v1025 = vadd.f32 0.0, %v1024
        %v1026 = vpop.f32.mrb[0].mxu0
        %v1027 = vadd.f32 0.0, %v1026
        %1028 = vmatprep.mubr.bf16.mxu0 0
        %1029 = vmatmul.mubr.bf16.gmra.mrb[0].mxu0 %v543
        %v1030 = vpop.f32.mrb[0].mxu0
        %v1031 = vadd.f32 0.0, %v1030
        %v1032 = vpop.f32.mrb[0].mxu0
        %v1033 = vadd.f32 0.0, %v1032
        %v1034 = vpop.f32.mrb[0].mxu0
        %v1035 = vadd.f32 0.0, %v1034
        %v1036 = vpop.f32.mrb[0].mxu0
        %v1037 = vadd.f32 0.0, %v1036
        %1038 = vmatprep.mubr.bf16.mxu0 0
        %1039 = vmatmul.mubr.bf16.gmra.mrb[0].mxu0 %v544
        %v1040 = vpop.f32.mrb[0].mxu0
        %v1041 = vadd.f32 0.0, %v1040
        %v1042 = vpop.f32.mrb[0].mxu0
        %v1043 = vadd.f32 0.0, %v1042
        %v1044 = vpop.f32.mrb[0].mxu0
        %v1045 = vadd.f32 0.0, %v1044
        %v1046 = vpop.f32.mrb[0].mxu0
        %v1047 = vadd.f32 0.0, %v1046
        %1048 = vmatprep.mubr.bf16.mxu0 0
        %1049 = vmatmul.mubr.bf16.gmra.mrb[0].mxu0 %v545
        %v1050 = vpop.f32.mrb[0].mxu0
        %v1051 = vadd.f32 0.0, %v1050
        %v1052 = vpop.f32.mrb[0].mxu0
        %v1053 = vadd.f32 0.0, %v1052
        %v1054 = vpop.f32.mrb[0].mxu0
        %v1055 = vadd.f32 0.0, %v1054
        %v1056 = vpop.f32.mrb[0].mxu0
        %v1057 = vadd.f32 0.0, %v1056
        %1058 = vdwg.mxu0
        %1059 = vmatprep.subr.bf16.mxu0 0
        %1060 = vmatpush1.bf16.msra.mxu0 %v660
        %1061 = vmatprep.subr.bf16.mxu0 0
        %1062 = vmatpush1.bf16.msra.mxu0 %v663
        %1063 = vmatprep.subr.bf16.mxu0 0
        %1064 = vmatpush1.bf16.msra.mxu0 %v666
        %1065 = vmatprep.subr.bf16.mxu0 0
        %1066 = vmatpush1.bf16.msra.mxu0 %v669
        %1067 = vmatprep.subr.bf16.mxu0 0
        %1068 = vmatpush1.bf16.msra.mxu0 %v672
        %1069 = vmatprep.subr.bf16.mxu0 0
        %1070 = vmatpush1.bf16.msra.mxu0 %v675
        %1071 = vmatprep.subr.bf16.mxu0 0
        %1072 = vmatpush1.bf16.msra.mxu0 %v678
        %1073 = vmatprep.subr.bf16.mxu0 0
        %1074 = vmatpush1.bf16.msra.mxu0 %v681
        %1075 = vmatprep.subr.bf16.mxu0 0
        %1076 = vmatpush1.bf16.msra.mxu0 0
        %1077 = vmatprep.subr.bf16.mxu0 0
        %1078 = vmatpush1.bf16.msra.mxu0 0
        %1079 = vmatprep.subr.bf16.mxu0 0
        %1080 = vmatpush1.bf16.msra.mxu0 0
        %1081 = vmatprep.subr.bf16.mxu0 0
        %1082 = vmatpush1.bf16.msra.mxu0 0
        %1083 = vmatprep.subr.bf16.mxu0 0
        %1084 = vmatpush1.bf16.msra.mxu0 0
        %1085 = vmatprep.subr.bf16.mxu0 0
        %1086 = vmatpush1.bf16.msra.mxu0 0
        %1087 = vmatprep.subr.bf16.mxu0 0
        %1088 = vmatpush1.bf16.msra.mxu0 0
        %1089 = vmatprep.subr.bf16.mxu0 0
        %1090 = vmatpush1.bf16.msra.mxu0 0
        %1091 = vmatprep.mubr.bf16.mxu0 0
        %1092 = vmatmul.mubr.bf16.gmra.mrb[0].mxu0 %v514
        %v1093 = vpop.f32.mrb[0].mxu0
        %v1094 = vadd.f32 0.0, %v1093
        %v1095 = vpop.f32.mrb[0].mxu0
        %v1096 = vpop.f32.mrb[0].mxu0
        %v1097 = vadd.f32 0.0, %v1096
        %v1098 = vpop.f32.mrb[0].mxu0
        %1099 = vmatprep.mubr.bf16.mxu0 0
        %1100 = vmatmul.mubr.bf16.gmra.mrb[0].mxu0 %v515
        %v1101 = vpop.f32.mrb[0].mxu0
        %v1102 = vadd.f32 0.0, %v1101
        %v1103 = vpop.f32.mrb[0].mxu0
        %v1104 = vpop.f32.mrb[0].mxu0
        %v1105 = vadd.f32 0.0, %v1104
        %v1106 = vpop.f32.mrb[0].mxu0
        %1107 = vmatprep.mubr.bf16.mxu0 0
        %1108 = vmatmul.mubr.bf16.gmra.mrb[0].mxu0 %v516
        %v1109 = vpop.f32.mrb[0].mxu0
        %v1110 = vadd.f32 0.0, %v1109
        %v1111 = vpop.f32.mrb[0].mxu0
        %v1112 = vpop.f32.mrb[0].mxu0
        %v1113 = vadd.f32 0.0, %v1112
        %v1114 = vpop.f32.mrb[0].mxu0
        %1115 = vmatprep.mubr.bf16.mxu0 0
        %1116 = vmatmul.mubr.bf16.gmra.mrb[0].mxu0 %v517
        %v1117 = vpop.f32.mrb[0].mxu0
        %v1118 = vadd.f32 0.0, %v1117
        %v1119 = vpop.f32.mrb[0].mxu0
        %v1120 = vpop.f32.mrb[0].mxu0
        %v1121 = vadd.f32 0.0, %v1120
        %v1122 = vpop.f32.mrb[0].mxu0
        %1123 = vmatprep.mubr.bf16.mxu0 0
        %1124 = vmatmul.mubr.bf16.gmra.mrb[0].mxu0 %v518
        %v1125 = vpop.f32.mrb[0].mxu0
        %v1126 = vadd.f32 0.0, %v1125
        %v1127 = vpop.f32.mrb[0].mxu0
        %v1128 = vpop.f32.mrb[0].mxu0
        %v1129 = vadd.f32 0.0, %v1128
        %v1130 = vpop.f32.mrb[0].mxu0
        %1131 = vmatprep.mubr.bf16.mxu0 0
        %1132 = vmatmul.mubr.bf16.gmra.mrb[0].mxu0 %v519
        %v1133 = vpop.f32.mrb[0].mxu0
        %v1134 = vadd.f32 0.0, %v1133
        %v1135 = vpop.f32.mrb[0].mxu0
        %v1136 = vpop.f32.mrb[0].mxu0
        %v1137 = vadd.f32 0.0, %v1136
        %v1138 = vpop.f32.mrb[0].mxu0
        %1139 = vmatprep.mubr.bf16.mxu0 0
        %1140 = vmatmul.mubr.bf16.gmra.mrb[0].mxu0 %v520
        %v1141 = vpop.f32.mrb[0].mxu0
        %v1142 = vadd.f32 0.0, %v1141
        %v1143 = vpop.f32.mrb[0].mxu0
        %v1144 = vpop.f32.mrb[0].mxu0
        %v1145 = vadd.f32 0.0, %v1144
        %v1146 = vpop.f32.mrb[0].mxu0
        %1147 = vmatprep.mubr.bf16.mxu0 0
        %1148 = vmatmul.mubr.bf16.gmra.mrb[0].mxu0 %v521
        %v1149 = vpop.f32.mrb[0].mxu0
        %v1150 = vadd.f32 0.0, %v1149
        %v1151 = vpop.f32.mrb[0].mxu0
        %v1152 = vpop.f32.mrb[0].mxu0
        %v1153 = vadd.f32 0.0, %v1152
        %v1154 = vpop.f32.mrb[0].mxu0
        %1155 = vmatprep.mubr.bf16.mxu0 0
        %1156 = vmatmul.mubr.bf16.gmra.mrb[0].mxu0 %v522
        %v1157 = vpop.f32.mrb[0].mxu0
        %v1158 = vadd.f32 0.0, %v1157
        %v1159 = vpop.f32.mrb[0].mxu0
        %v1160 = vpop.f32.mrb[0].mxu0
        %v1161 = vadd.f32 0.0, %v1160
        %v1162 = vpop.f32.mrb[0].mxu0
        %1163 = vmatprep.mubr.bf16.mxu0 0
        %1164 = vmatmul.mubr.bf16.gmra.mrb[0].mxu0 %v523
        %v1165 = vpop.f32.mrb[0].mxu0
        %v1166 = vadd.f32 0.0, %v1165
        %v1167 = vpop.f32.mrb[0].mxu0
        %v1168 = vpop.f32.mrb[0].mxu0
        %v1169 = vadd.f32 0.0, %v1168
        %v1170 = vpop.f32.mrb[0].mxu0
        %1171 = vmatprep.mubr.bf16.mxu0 0
        %1172 = vmatmul.mubr.bf16.gmra.mrb[0].mxu0 %v524
        %v1173 = vpop.f32.mrb[0].mxu0
        %v1174 = vadd.f32 0.0, %v1173
        %v1175 = vpop.f32.mrb[0].mxu0
        %v1176 = vpop.f32.mrb[0].mxu0
        %v1177 = vadd.f32 0.0, %v1176
        %v1178 = vpop.f32.mrb[0].mxu0
        %1179 = vmatprep.mubr.bf16.mxu0 0
        %1180 = vmatmul.mubr.bf16.gmra.mrb[0].mxu0 %v525
        %v1181 = vpop.f32.mrb[0].mxu0
        %v1182 = vadd.f32 0.0, %v1181
        %v1183 = vpop.f32.mrb[0].mxu0
        %v1184 = vpop.f32.mrb[0].mxu0
        %v1185 = vadd.f32 0.0, %v1184
        %v1186 = vpop.f32.mrb[0].mxu0
        %1187 = vmatprep.mubr.bf16.mxu0 0
        %1188 = vmatmul.mubr.bf16.gmra.mrb[0].mxu0 %v526
        %v1189 = vpop.f32.mrb[0].mxu0
        %v1190 = vadd.f32 0.0, %v1189
        %v1191 = vpop.f32.mrb[0].mxu0
        %v1192 = vpop.f32.mrb[0].mxu0
        %v1193 = vadd.f32 0.0, %v1192
        %v1194 = vpop.f32.mrb[0].mxu0
        %1195 = vmatprep.mubr.bf16.mxu0 0
        %1196 = vmatmul.mubr.bf16.gmra.mrb[0].mxu0 %v527
        %v1197 = vpop.f32.mrb[0].mxu0
        %v1198 = vadd.f32 0.0, %v1197
        %v1199 = vpop.f32.mrb[0].mxu0
        %v1200 = vpop.f32.mrb[0].mxu0
        %v1201 = vadd.f32 0.0, %v1200
        %v1202 = vpop.f32.mrb[0].mxu0
        %1203 = vmatprep.mubr.bf16.mxu0 0
        %1204 = vmatmul.mubr.bf16.gmra.mrb[0].mxu0 %v528
        %v1205 = vpop.f32.mrb[0].mxu0
        %v1206 = vadd.f32 0.0, %v1205
        %v1207 = vpop.f32.mrb[0].mxu0
        %v1208 = vpop.f32.mrb[0].mxu0
        %v1209 = vadd.f32 0.0, %v1208
        %v1210 = vpop.f32.mrb[0].mxu0
        %1211 = vmatprep.mubr.bf16.mxu0 0
        %1212 = vmatmul.mubr.bf16.gmra.mrb[0].mxu0 %v529
        %v1213 = vpop.f32.mrb[0].mxu0
        %v1214 = vadd.f32 0.0, %v1213
        %v1215 = vpop.f32.mrb[0].mxu0
        %v1216 = vpop.f32.mrb[0].mxu0
        %v1217 = vadd.f32 0.0, %v1216
        %v1218 = vpop.f32.mrb[0].mxu0
        %1219 = vmatprep.mubr.bf16.mxu0 0
        %1220 = vmatmul.mubr.bf16.gmra.mrb[0].mxu0 %v530
        %v1221 = vpop.f32.mrb[0].mxu0
        %v1222 = vadd.f32 0.0, %v1221
        %v1223 = vpop.f32.mrb[0].mxu0
        %v1224 = vpop.f32.mrb[0].mxu0
        %v1225 = vadd.f32 0.0, %v1224
        %v1226 = vpop.f32.mrb[0].mxu0
        %1227 = vmatprep.mubr.bf16.mxu0 0
        %1228 = vmatmul.mubr.bf16.gmra.mrb[0].mxu0 %v531
        %v1229 = vpop.f32.mrb[0].mxu0
        %v1230 = vadd.f32 0.0, %v1229
        %v1231 = vpop.f32.mrb[0].mxu0
        %v1232 = vpop.f32.mrb[0].mxu0
        %v1233 = vadd.f32 0.0, %v1232
        %v1234 = vpop.f32.mrb[0].mxu0
        %1235 = vmatprep.mubr.bf16.mxu0 0
        %1236 = vmatmul.mubr.bf16.gmra.mrb[0].mxu0 %v532
        %v1237 = vpop.f32.mrb[0].mxu0
        %v1238 = vadd.f32 0.0, %v1237
        %v1239 = vpop.f32.mrb[0].mxu0
        %v1240 = vpop.f32.mrb[0].mxu0
        %v1241 = vadd.f32 0.0, %v1240
        %v1242 = vpop.f32.mrb[0].mxu0
        %1243 = vmatprep.mubr.bf16.mxu0 0
        %1244 = vmatmul.mubr.bf16.gmra.mrb[0].mxu0 %v533
        %v1245 = vpop.f32.mrb[0].mxu0
        %v1246 = vadd.f32 0.0, %v1245
        %v1247 = vpop.f32.mrb[0].mxu0
        %v1248 = vpop.f32.mrb[0].mxu0
        %v1249 = vadd.f32 0.0, %v1248
        %v1250 = vpop.f32.mrb[0].mxu0
        %1251 = vmatprep.mubr.bf16.mxu0 0
        %1252 = vmatmul.mubr.bf16.gmra.mrb[0].mxu0 %v534
        %v1253 = vpop.f32.mrb[0].mxu0
        %v1254 = vadd.f32 0.0, %v1253
        %v1255 = vpop.f32.mrb[0].mxu0
        %v1256 = vpop.f32.mrb[0].mxu0
        %v1257 = vadd.f32 0.0, %v1256
        %v1258 = vpop.f32.mrb[0].mxu0
        %1259 = vmatprep.mubr.bf16.mxu0 0
        %1260 = vmatmul.mubr.bf16.gmra.mrb[0].mxu0 %v535
        %v1261 = vpop.f32.mrb[0].mxu0
        %v1262 = vadd.f32 0.0, %v1261
        %v1263 = vpop.f32.mrb[0].mxu0
        %v1264 = vpop.f32.mrb[0].mxu0
        %v1265 = vadd.f32 0.0, %v1264
        %v1266 = vpop.f32.mrb[0].mxu0
        %1267 = vmatprep.mubr.bf16.mxu0 0
        %1268 = vmatmul.mubr.bf16.gmra.mrb[0].mxu0 %v536
        %v1269 = vpop.f32.mrb[0].mxu0
        %v1270 = vadd.f32 0.0, %v1269
        %v1271 = vpop.f32.mrb[0].mxu0
        %v1272 = vpop.f32.mrb[0].mxu0
        %v1273 = vadd.f32 0.0, %v1272
        %v1274 = vpop.f32.mrb[0].mxu0
        %1275 = vmatprep.mubr.bf16.mxu0 0
        %1276 = vmatmul.mubr.bf16.gmra.mrb[0].mxu0 %v537
        %v1277 = vpop.f32.mrb[0].mxu0
        %v1278 = vadd.f32 0.0, %v1277
        %v1279 = vpop.f32.mrb[0].mxu0
        %v1280 = vpop.f32.mrb[0].mxu0
        %v1281 = vadd.f32 0.0, %v1280
        %v1282 = vpop.f32.mrb[0].mxu0
        %1283 = vmatprep.mubr.bf16.mxu0 0
        %1284 = vmatmul.mubr.bf16.gmra.mrb[0].mxu0 %v538
        %v1285 = vpop.f32.mrb[0].mxu0
        %v1286 = vadd.f32 0.0, %v1285
        %v1287 = vpop.f32.mrb[0].mxu0
        %v1288 = vpop.f32.mrb[0].mxu0
        %v1289 = vadd.f32 0.0, %v1288
        %v1290 = vpop.f32.mrb[0].mxu0
        %1291 = vmatprep.mubr.bf16.mxu0 0
        %1292 = vmatmul.mubr.bf16.gmra.mrb[0].mxu0 %v539
        %v1293 = vpop.f32.mrb[0].mxu0
        %v1294 = vadd.f32 0.0, %v1293
        %v1295 = vpop.f32.mrb[0].mxu0
        %v1296 = vpop.f32.mrb[0].mxu0
        %v1297 = vadd.f32 0.0, %v1296
        %v1298 = vpop.f32.mrb[0].mxu0
        %1299 = vmatprep.mubr.bf16.mxu0 0
        %1300 = vmatmul.mubr.bf16.gmra.mrb[0].mxu0 %v540
        %v1301 = vpop.f32.mrb[0].mxu0
        %v1302 = vadd.f32 0.0, %v1301
        %v1303 = vpop.f32.mrb[0].mxu0
        %v1304 = vpop.f32.mrb[0].mxu0
        %v1305 = vadd.f32 0.0, %v1304
        %v1306 = vpop.f32.mrb[0].mxu0
        %1307 = vmatprep.mubr.bf16.mxu0 0
        %1308 = vmatmul.mubr.bf16.gmra.mrb[0].mxu0 %v541
        %v1309 = vpop.f32.mrb[0].mxu0
        %v1310 = vadd.f32 0.0, %v1309
        %v1311 = vpop.f32.mrb[0].mxu0
        %v1312 = vpop.f32.mrb[0].mxu0
        %v1313 = vadd.f32 0.0, %v1312
        %v1314 = vpop.f32.mrb[0].mxu0
        %1315 = vmatprep.mubr.bf16.mxu0 0
        %1316 = vmatmul.mubr.bf16.gmra.mrb[0].mxu0 %v542
        %v1317 = vpop.f32.mrb[0].mxu0
        %v1318 = vadd.f32 0.0, %v1317
        %v1319 = vpop.f32.mrb[0].mxu0
        %v1320 = vpop.f32.mrb[0].mxu0
        %v1321 = vadd.f32 0.0, %v1320
        %v1322 = vpop.f32.mrb[0].mxu0
        %1323 = vmatprep.mubr.bf16.mxu0 0
        %1324 = vmatmul.mubr.bf16.gmra.mrb[0].mxu0 %v543
        %v1325 = vpop.f32.mrb[0].mxu0
        %v1326 = vadd.f32 0.0, %v1325
        %v1327 = vpop.f32.mrb[0].mxu0
        %v1328 = vpop.f32.mrb[0].mxu0
        %v1329 = vadd.f32 0.0, %v1328
        %v1330 = vpop.f32.mrb[0].mxu0
        %1331 = vmatprep.mubr.bf16.mxu0 0
        %1332 = vmatmul.mubr.bf16.gmra.mrb[0].mxu0 %v544
        %v1333 = vpop.f32.mrb[0].mxu0
        %v1334 = vadd.f32 0.0, %v1333
        %v1335 = vpop.f32.mrb[0].mxu0
        %v1336 = vpop.f32.mrb[0].mxu0
        %v1337 = vadd.f32 0.0, %v1336
        %v1338 = vpop.f32.mrb[0].mxu0
        %1339 = vmatprep.mubr.bf16.mxu0 0
        %1340 = vmatmul.mubr.bf16.gmra.mrb[0].mxu0 %v545
        %v1341 = vpop.f32.mrb[0].mxu0
        %v1342 = vadd.f32 0.0, %v1341
        %v1343 = vpop.f32.mrb[0].mxu0
        %v1344 = vpop.f32.mrb[0].mxu0
        %v1345 = vadd.f32 0.0, %v1344
        %v1346 = vpop.f32.mrb[0].mxu0
        %1347 = vdwg.mxu0
        %v1348 = vpack.c.bf16 %v745, %v741
        %v1349 = vpack.c.bf16 %v747, %v743
        %v1350 = vpack.c.bf16 %v1097, %v1094
        %v1351 = vpack.c.bf16 %v755, %v751
        %v1352 = vpack.c.bf16 %v757, %v753
        %v1353 = vpack.c.bf16 %v1105, %v1102
        %v1354 = vpack.c.bf16 %v765, %v761
        %v1355 = vpack.c.bf16 %v767, %v763
        %v1356 = vpack.c.bf16 %v1113, %v1110
        %v1357 = vpack.c.bf16 %v775, %v771
        %v1358 = vpack.c.bf16 %v777, %v773
        %v1359 = vpack.c.bf16 %v1121, %v1118
        %v1360 = vpack.c.bf16 %v785, %v781
        %v1361 = vpack.c.bf16 %v787, %v783
        %v1362 = vpack.c.bf16 %v1129, %v1126
        %v1363 = vpack.c.bf16 %v795, %v791
        %v1364 = vpack.c.bf16 %v797, %v793
        %v1365 = vpack.c.bf16 %v1137, %v1134
        %v1366 = vpack.c.bf16 %v805, %v801
        %v1367 = vpack.c.bf16 %v807, %v803
        %v1368 = vpack.c.bf16 %v1145, %v1142
        %v1369 = vpack.c.bf16 %v815, %v811
        %v1370 = vpack.c.bf16 %v817, %v813
        %v1371 = vpack.c.bf16 %v1153, %v1150
        %v1372 = vpack.c.bf16 %v825, %v821
        %v1373 = vpack.c.bf16 %v827, %v823
        %v1374 = vpack.c.bf16 %v1161, %v1158
        %v1375 = vpack.c.bf16 %v835, %v831
        %v1376 = vpack.c.bf16 %v837, %v833
        %v1377 = vpack.c.bf16 %v1169, %v1166
        %v1378 = vpack.c.bf16 %v845, %v841
        %v1379 = vpack.c.bf16 %v847, %v843
        %v1380 = vpack.c.bf16 %v1177, %v1174
        %v1381 = vpack.c.bf16 %v855, %v851
        %v1382 = vpack.c.bf16 %v857, %v853
        %v1383 = vpack.c.bf16 %v1185, %v1182
        %v1384 = vpack.c.bf16 %v865, %v861
        %v1385 = vpack.c.bf16 %v867, %v863
        %v1386 = vpack.c.bf16 %v1193, %v1190
        %v1387 = vpack.c.bf16 %v875, %v871
        %v1388 = vpack.c.bf16 %v877, %v873
        %v1389 = vpack.c.bf16 %v1201, %v1198
        %v1390 = vpack.c.bf16 %v885, %v881
        %v1391 = vpack.c.bf16 %v887, %v883
        %v1392 = vpack.c.bf16 %v1209, %v1206
        %v1393 = vpack.c.bf16 %v895, %v891
        %v1394 = vpack.c.bf16 %v897, %v893
        %v1395 = vpack.c.bf16 %v1217, %v1214
        %v1396 = vpack.c.bf16 %v905, %v901
        %v1397 = vpack.c.bf16 %v907, %v903
        %v1398 = vpack.c.bf16 %v1225, %v1222
        %v1399 = vpack.c.bf16 %v915, %v911
        %v1400 = vpack.c.bf16 %v917, %v913
        %v1401 = vpack.c.bf16 %v1233, %v1230
        %v1402 = vpack.c.bf16 %v925, %v921
        %v1403 = vpack.c.bf16 %v927, %v923
        %v1404 = vpack.c.bf16 %v1241, %v1238
        %v1405 = vpack.c.bf16 %v935, %v931
        %v1406 = vpack.c.bf16 %v937, %v933
        %v1407 = vpack.c.bf16 %v1249, %v1246
        %v1408 = vpack.c.bf16 %v945, %v941
        %v1409 = vpack.c.bf16 %v947, %v943
        %v1410 = vpack.c.bf16 %v1257, %v1254
        %v1411 = vpack.c.bf16 %v955, %v951
        %v1412 = vpack.c.bf16 %v957, %v953
        %v1413 = vpack.c.bf16 %v1265, %v1262
        %v1414 = vpack.c.bf16 %v965, %v961
        %v1415 = vpack.c.bf16 %v967, %v963
        %v1416 = vpack.c.bf16 %v1273, %v1270
        %v1417 = vpack.c.bf16 %v975, %v971
        %v1418 = vpack.c.bf16 %v977, %v973
        %v1419 = vpack.c.bf16 %v1281, %v1278
        %v1420 = vpack.c.bf16 %v985, %v981
        %v1421 = vpack.c.bf16 %v987, %v983
        %v1422 = vpack.c.bf16 %v1289, %v1286
        %v1423 = vpack.c.bf16 %v995, %v991
        %v1424 = vpack.c.bf16 %v997, %v993
        %v1425 = vpack.c.bf16 %v1297, %v1294
        %v1426 = vpack.c.bf16 %v1005, %v1001
        %v1427 = vpack.c.bf16 %v1007, %v1003
        %v1428 = vpack.c.bf16 %v1305, %v1302
        %v1429 = vpack.c.bf16 %v1015, %v1011
        %v1430 = vpack.c.bf16 %v1017, %v1013
        %v1431 = vpack.c.bf16 %v1313, %v1310
        %v1432 = vpack.c.bf16 %v1025, %v1021
        %v1433 = vpack.c.bf16 %v1027, %v1023
        %v1434 = vpack.c.bf16 %v1321, %v1318
        %v1435 = vpack.c.bf16 %v1035, %v1031
        %v1436 = vpack.c.bf16 %v1037, %v1033
        %v1437 = vpack.c.bf16 %v1329, %v1326
        %v1438 = vpack.c.bf16 %v1045, %v1041
        %v1439 = vpack.c.bf16 %v1047, %v1043
        %v1440 = vpack.c.bf16 %v1337, %v1334
        %v1441 = vpack.c.bf16 %v1055, %v1051
        %v1442 = vpack.c.bf16 %v1057, %v1053
        %v1443 = vpack.c.bf16 %v1345, %v1342
        %v1444 = vld [vmem:[#allocation7] sm:$0xff]
        %v1445 = vld [vmem:[#allocation7 + $0x8] sm:$0xff]
        %v1446 = vld [vmem:[#allocation7 + $0x10] sm:$0xff]
        %v1447 = vld [vmem:[#allocation7 + $0x18] sm:$0xff]
        %v1448 = vld [vmem:[#allocation7 + $0x20] sm:$0xff]
        %v1449 = vld [vmem:[#allocation7 + $0x28] sm:$0xff]
        %v1450 = vld [vmem:[#allocation7 + $0x30] sm:$0xff]
        %v1451 = vld [vmem:[#allocation7 + $0x38] sm:$0xff]
        %v1452 = vld [vmem:[#allocation7 + $0x40] sm:$0xff]
        %v1453 = vld [vmem:[#allocation7 + $0x48] sm:$0xff]
        %v1454 = vld [vmem:[#allocation7 + $0x50] sm:$0xff]
        %v1455 = vld [vmem:[#allocation7 + $0x58] sm:$0xff]
        %v1456 = vld [vmem:[#allocation7 + $0x60] sm:$0xff]
        %v1457 = vld [vmem:[#allocation7 + $0x68] sm:$0xff]
        %v1458 = vld [vmem:[#allocation7 + $0x70] sm:$0xff]
        %v1459 = vld [vmem:[#allocation7 + $0x78] sm:$0xff]
        %vm1460 = vcmask 261120
        %v1462 = vsel %vm1460, %v1348, 0
        %v1465 = vsel %vm1460, %v1351, 0
        %v1468 = vsel %vm1460, %v1354, 0
        %v1471 = vsel %vm1460, %v1357, 0
        %v1474 = vsel %vm1460, %v1360, 0
        %v1477 = vsel %vm1460, %v1363, 0
        %v1480 = vsel %vm1460, %v1366, 0
        %v1483 = vsel %vm1460, %v1369, 0
        %v1486 = vsel %vm1460, %v1349, 0
        %v1489 = vsel %vm1460, %v1352, 0
        %v1492 = vsel %vm1460, %v1355, 0
        %v1495 = vsel %vm1460, %v1358, 0
        %v1498 = vsel %vm1460, %v1361, 0
        %v1501 = vsel %vm1460, %v1364, 0
        %v1504 = vsel %vm1460, %v1367, 0
        %v1507 = vsel %vm1460, %v1370, 0
        %1509 = vmatprep.subr.bf16.mxu0 0
        %1510 = vmatpush1.bf16.xpose.msra.mxu0 %v1486
        %1511 = vmatprep.subr.bf16.mxu0 0
        %1512 = vmatpush1.bf16.xpose.msra.mxu0 %v1489
        %1513 = vmatprep.subr.bf16.mxu0 0
        %1514 = vmatpush1.bf16.xpose.msra.mxu0 %v1492
        %1515 = vmatprep.subr.bf16.mxu0 0
        %1516 = vmatpush1.bf16.xpose.msra.mxu0 %v1495
        %1517 = vmatprep.subr.bf16.mxu0 0
        %1518 = vmatpush1.bf16.xpose.msra.mxu0 %v1498
        %1519 = vmatprep.subr.bf16.mxu0 0
        %1520 = vmatpush1.bf16.xpose.msra.mxu0 %v1501
        %1521 = vmatprep.subr.bf16.mxu0 0
        %1522 = vmatpush1.bf16.xpose.msra.mxu0 %v1504
        %1523 = vmatprep.subr.bf16.mxu0 0
        %1524 = vmatpush1.bf16.xpose.msra.mxu0 %v1507
        %1525 = vmatprep.subr.bf16.mxu0 0
        %1526 = vmatpush1.bf16.xpose.msra.mxu0 0
        %1527 = vmatprep.subr.bf16.mxu0 0
        %1528 = vmatpush1.bf16.xpose.msra.mxu0 0
        %1529 = vmatprep.subr.bf16.mxu0 0
        %1530 = vmatpush1.bf16.xpose.msra.mxu0 0
        %1531 = vmatprep.subr.bf16.mxu0 0
        %1532 = vmatpush1.bf16.xpose.msra.mxu0 0
        %1533 = vmatprep.subr.bf16.mxu0 0
        %1534 = vmatpush1.bf16.xpose.msra.mxu0 0
        %1535 = vmatprep.subr.bf16.mxu0 0
        %1536 = vmatpush1.bf16.xpose.msra.mxu0 0
        %1537 = vmatprep.subr.bf16.mxu0 0
        %1538 = vmatpush1.bf16.xpose.msra.mxu0 0
        %1539 = vmatprep.subr.bf16.mxu0 0
        %1540 = vmatpush1.bf16.xpose.msra.mxu0 0
        %1541 = vmatprep.mubr.bf16.mxu0 0
        %1542 = vmatmul.mubr.bf16.gmra.mrb[0].mxu0 %v1462
        %v1543 = vpop.f32.mrb[0].mxu0
        %v1544 = vadd.f32 %v1444, %v1543
        %v1545 = vpop.f32.mrb[0].mxu0
        %v1546 = vpop.f32.mrb[0].mxu0
        %v1547 = vadd.f32 %v1445, %v1546
        %v1548 = vpop.f32.mrb[0].mxu0
        %1549 = vmatprep.mubr.bf16.mxu0 0
        %1550 = vmatmul.mubr.bf16.gmra.mrb[0].mxu0 %v1465
        %v1551 = vpop.f32.mrb[0].mxu0
        %v1552 = vadd.f32 %v1446, %v1551
        %v1553 = vpop.f32.mrb[0].mxu0
        %v1554 = vpop.f32.mrb[0].mxu0
        %v1555 = vadd.f32 %v1447, %v1554
        %v1556 = vpop.f32.mrb[0].mxu0
        %1557 = vmatprep.mubr.bf16.mxu0 0
        %1558 = vmatmul.mubr.bf16.gmra.mrb[0].mxu0 %v1468
        %v1559 = vpop.f32.mrb[0].mxu0
        %v1560 = vadd.f32 %v1448, %v1559
        %v1561 = vpop.f32.mrb[0].mxu0
        %v1562 = vpop.f32.mrb[0].mxu0
        %v1563 = vadd.f32 %v1449, %v1562
        %v1564 = vpop.f32.mrb[0].mxu0
        %1565 = vmatprep.mubr.bf16.mxu0 0
        %1566 = vmatmul.mubr.bf16.gmra.mrb[0].mxu0 %v1471
        %v1567 = vpop.f32.mrb[0].mxu0
        %v1568 = vadd.f32 %v1450, %v1567
        %v1569 = vpop.f32.mrb[0].mxu0
        %v1570 = vpop.f32.mrb[0].mxu0
        %v1571 = vadd.f32 %v1451, %v1570
        %v1572 = vpop.f32.mrb[0].mxu0
        %1573 = vmatprep.mubr.bf16.mxu0 0
        %1574 = vmatmul.mubr.bf16.gmra.mrb[0].mxu0 %v1474
        %v1575 = vpop.f32.mrb[0].mxu0
        %v1576 = vadd.f32 %v1452, %v1575
        %v1577 = vpop.f32.mrb[0].mxu0
        %v1578 = vpop.f32.mrb[0].mxu0
        %v1579 = vadd.f32 %v1453, %v1578
        %v1580 = vpop.f32.mrb[0].mxu0
        %1581 = vmatprep.mubr.bf16.mxu0 0
        %1582 = vmatmul.mubr.bf16.gmra.mrb[0].mxu0 %v1477
        %v1583 = vpop.f32.mrb[0].mxu0
        %v1584 = vadd.f32 %v1454, %v1583
        %v1585 = vpop.f32.mrb[0].mxu0
        %v1586 = vpop.f32.mrb[0].mxu0
        %v1587 = vadd.f32 %v1455, %v1586
        %v1588 = vpop.f32.mrb[0].mxu0
        %1589 = vmatprep.mubr.bf16.mxu0 0
        %1590 = vmatmul.mubr.bf16.gmra.mrb[0].mxu0 %v1480
        %v1591 = vpop.f32.mrb[0].mxu0
        %v1592 = vadd.f32 %v1456, %v1591
        %v1593 = vpop.f32.mrb[0].mxu0
        %v1594 = vpop.f32.mrb[0].mxu0
        %v1595 = vadd.f32 %v1457, %v1594
        %v1596 = vpop.f32.mrb[0].mxu0
        %1597 = vmatprep.mubr.bf16.mxu0 0
        %1598 = vmatmul.mubr.bf16.gmra.mrb[0].mxu0 %v1483
        %v1599 = vpop.f32.mrb[0].mxu0
        %v1600 = vadd.f32 %v1458, %v1599
        %v1601 = vpop.f32.mrb[0].mxu0
        %v1602 = vpop.f32.mrb[0].mxu0
        %v1603 = vadd.f32 %v1459, %v1602
        %v1604 = vpop.f32.mrb[0].mxu0
        %1605 = vdwg.mxu0
        %1606 = vmax.xlane.f32.xlu0 %v1544
        %v1607 = vpop.xlane.xlu0 %1606
        %1608 = vmax.xlane.f32.xlu0 %v1547
        %v1609 = vpop.xlane.xlu0 %1608
        %1610 = vmax.xlane.f32.xlu0 %v1552
        %v1611 = vpop.xlane.xlu0 %1610
        %1612 = vmax.xlane.f32.xlu0 %v1555
        %v1613 = vpop.xlane.xlu0 %1612
        %1614 = vmax.xlane.f32.xlu0 %v1560
        %v1615 = vpop.xlane.xlu0 %1614
        %1616 = vmax.xlane.f32.xlu0 %v1563
        %v1617 = vpop.xlane.xlu0 %1616
        %1618 = vmax.xlane.f32.xlu0 %v1568
        %v1619 = vpop.xlane.xlu0 %1618
        %1620 = vmax.xlane.f32.xlu0 %v1571
        %v1621 = vpop.xlane.xlu0 %1620
        %1622 = vmax.xlane.f32.xlu0 %v1576
        %v1623 = vpop.xlane.xlu0 %1622
        %1624 = vmax.xlane.f32.xlu0 %v1579
        %v1625 = vpop.xlane.xlu0 %1624
        %1626 = vmax.xlane.f32.xlu0 %v1584
        %v1627 = vpop.xlane.xlu0 %1626
        %1628 = vmax.xlane.f32.xlu0 %v1587
        %v1629 = vpop.xlane.xlu0 %1628
        %1630 = vmax.xlane.f32.xlu0 %v1592
        %v1631 = vpop.xlane.xlu0 %1630
        %1632 = vmax.xlane.f32.xlu0 %v1595
        %v1633 = vpop.xlane.xlu0 %1632
        %1634 = vmax.xlane.f32.xlu0 %v1600
        %v1635 = vpop.xlane.xlu0 %1634
        %1636 = vmax.xlane.f32.xlu0 %v1603
        %v1637 = vpop.xlane.xlu0 %1636
        %v1638 = vsub.f32 %v1544, %v1607
        %v1639 = vsub.f32 %v1547, %v1609
        %v1640 = vsub.f32 %v1552, %v1611
        %v1641 = vsub.f32 %v1555, %v1613
        %v1642 = vsub.f32 %v1560, %v1615
        %v1643 = vsub.f32 %v1563, %v1617
        %v1644 = vsub.f32 %v1568, %v1619
        %v1645 = vsub.f32 %v1571, %v1621
        %v1646 = vsub.f32 %v1576, %v1623
        %v1647 = vsub.f32 %v1579, %v1625
        %v1648 = vsub.f32 %v1584, %v1627
        %v1649 = vsub.f32 %v1587, %v1629
        %v1650 = vsub.f32 %v1592, %v1631
        %v1651 = vsub.f32 %v1595, %v1633
        %v1652 = vsub.f32 %v1600, %v1635
        %v1653 = vsub.f32 %v1603, %v1637
        %v1654 = vmul.f32 %v1638, 1.442695
        %v1655 = vpow.pop %v1654
        %v1656 = vmul.f32 %v1639, 1.442695
        %v1657 = vpow.pop %v1656
        %v1658 = vmul.f32 %v1640, 1.442695
        %v1659 = vpow.pop %v1658
        %v1660 = vmul.f32 %v1641, 1.442695
        %v1661 = vpow.pop %v1660
        %v1662 = vmul.f32 %v1642, 1.442695
        %v1663 = vpow.pop %v1662
        %v1664 = vmul.f32 %v1643, 1.442695
        %v1665 = vpow.pop %v1664
        %v1666 = vmul.f32 %v1644, 1.442695
        %v1667 = vpow.pop %v1666
        %v1668 = vmul.f32 %v1645, 1.442695
        %v1669 = vpow.pop %v1668
        %v1670 = vmul.f32 %v1646, 1.442695
        %v1671 = vpow.pop %v1670
        %v1672 = vmul.f32 %v1647, 1.442695
        %v1673 = vpow.pop %v1672
        %v1674 = vmul.f32 %v1648, 1.442695
        %v1675 = vpow.pop %v1674
        %v1676 = vmul.f32 %v1649, 1.442695
        %v1677 = vpow.pop %v1676
        %v1678 = vmul.f32 %v1650, 1.442695
        %v1679 = vpow.pop %v1678
        %v1680 = vmul.f32 %v1651, 1.442695
        %v1681 = vpow.pop %v1680
        %v1682 = vmul.f32 %v1652, 1.442695
        %v1683 = vpow.pop %v1682
        %v1684 = vmul.f32 %v1653, 1.442695
        %v1685 = vpow.pop %v1684
        %1686 = vadd.xlane.f32.xlu0 %v1655
        %v1687 = vpop.xlane.xlu0 %1686
        %1688 = vadd.xlane.f32.xlu0 %v1657
        %v1689 = vpop.xlane.xlu0 %1688
        %1690 = vadd.xlane.f32.xlu0 %v1659
        %v1691 = vpop.xlane.xlu0 %1690
        %1692 = vadd.xlane.f32.xlu0 %v1661
        %v1693 = vpop.xlane.xlu0 %1692
        %1694 = vadd.xlane.f32.xlu0 %v1663
        %v1695 = vpop.xlane.xlu0 %1694
        %1696 = vadd.xlane.f32.xlu0 %v1665
        %v1697 = vpop.xlane.xlu0 %1696
        %1698 = vadd.xlane.f32.xlu0 %v1667
        %v1699 = vpop.xlane.xlu0 %1698
        %1700 = vadd.xlane.f32.xlu0 %v1669
        %v1701 = vpop.xlane.xlu0 %1700
        %1702 = vadd.xlane.f32.xlu0 %v1671
        %v1703 = vpop.xlane.xlu0 %1702
        %1704 = vadd.xlane.f32.xlu0 %v1673
        %v1705 = vpop.xlane.xlu0 %1704
        %1706 = vadd.xlane.f32.xlu0 %v1675
        %v1707 = vpop.xlane.xlu0 %1706
        %1708 = vadd.xlane.f32.xlu0 %v1677
        %v1709 = vpop.xlane.xlu0 %1708
        %1710 = vadd.xlane.f32.xlu0 %v1679
        %v1711 = vpop.xlane.xlu0 %1710
        %1712 = vadd.xlane.f32.xlu0 %v1681
        %v1713 = vpop.xlane.xlu0 %1712
        %1714 = vadd.xlane.f32.xlu0 %v1683
        %v1715 = vpop.xlane.xlu0 %1714
        %1716 = vadd.xlane.f32.xlu0 %v1685
        %v1717 = vpop.xlane.xlu0 %1716
        %v1718 = vrcp.pop %v1687
        %v1719 = vrcp.pop %v1689
        %v1720 = vrcp.pop %v1691
        %v1721 = vrcp.pop %v1693
        %v1722 = vrcp.pop %v1695
        %v1723 = vrcp.pop %v1697
        %v1724 = vrcp.pop %v1699
        %v1725 = vrcp.pop %v1701
        %v1726 = vrcp.pop %v1703
        %v1727 = vrcp.pop %v1705
        %v1728 = vrcp.pop %v1707
        %v1729 = vrcp.pop %v1709
        %v1730 = vrcp.pop %v1711
        %v1731 = vrcp.pop %v1713
        %v1732 = vrcp.pop %v1715
        %v1733 = vrcp.pop %v1717
        %v1734 = vmul.f32 %v1655, %v1718
        %v1735 = vmul.f32 %v1657, %v1719
        %v1736 = vmul.f32 %v1659, %v1720
        %v1737 = vmul.f32 %v1661, %v1721
        %v1738 = vmul.f32 %v1663, %v1722
        %v1739 = vmul.f32 %v1665, %v1723
        %v1740 = vmul.f32 %v1667, %v1724
        %v1741 = vmul.f32 %v1669, %v1725
        %v1742 = vmul.f32 %v1671, %v1726
        %v1743 = vmul.f32 %v1673, %v1727
        %v1744 = vmul.f32 %v1675, %v1728
        %v1745 = vmul.f32 %v1677, %v1729
        %v1746 = vmul.f32 %v1679, %v1730
        %v1747 = vmul.f32 %v1681, %v1731
        %v1748 = vmul.f32 %v1683, %v1732
        %v1749 = vmul.f32 %v1685, %v1733
        %v1750 = vpack.c.bf16 %v1735, %v1734
        %v1751 = vpack.c.bf16 %v1737, %v1736
        %v1752 = vpack.c.bf16 %v1739, %v1738
        %v1753 = vpack.c.bf16 %v1741, %v1740
        %v1754 = vpack.c.bf16 %v1743, %v1742
        %v1755 = vpack.c.bf16 %v1745, %v1744
        %v1756 = vpack.c.bf16 %v1747, %v1746
        %v1757 = vpack.c.bf16 %v1749, %v1748
        %1758 = vmatprep.subr.bf16.mxu0 0
        %1759 = vmatpush1.bf16.msra.mxu0 %v1350
        %1760 = vmatprep.subr.bf16.mxu0 0
        %1761 = vmatpush1.bf16.msra.mxu0 %v1353
        %1762 = vmatprep.subr.bf16.mxu0 0
        %1763 = vmatpush1.bf16.msra.mxu0 %v1356
        %1764 = vmatprep.subr.bf16.mxu0 0
        %1765 = vmatpush1.bf16.msra.mxu0 %v1359
        %1766 = vmatprep.subr.bf16.mxu0 0
        %1767 = vmatpush1.bf16.msra.mxu0 %v1362
        %1768 = vmatprep.subr.bf16.mxu0 0
        %1769 = vmatpush1.bf16.msra.mxu0 %v1365
        %1770 = vmatprep.subr.bf16.mxu0 0
        %1771 = vmatpush1.bf16.msra.mxu0 %v1368
        %1772 = vmatprep.subr.bf16.mxu0 0
        %1773 = vmatpush1.bf16.msra.mxu0 %v1371
        %1774 = vmatprep.subr.bf16.mxu0 0
        %1775 = vmatpush1.bf16.msra.mxu0 0
        %1776 = vmatprep.subr.bf16.mxu0 0
        %1777 = vmatpush1.bf16.msra.mxu0 0
        %1778 = vmatprep.subr.bf16.mxu0 0
        %1779 = vmatpush1.bf16.msra.mxu0 0
        %1780 = vmatprep.subr.bf16.mxu0 0
        %1781 = vmatpush1.bf16.msra.mxu0 0
        %1782 = vmatprep.subr.bf16.mxu0 0
        %1783 = vmatpush1.bf16.msra.mxu0 0
        %1784 = vmatprep.subr.bf16.mxu0 0
        %1785 = vmatpush1.bf16.msra.mxu0 0
        %1786 = vmatprep.subr.bf16.mxu0 0
        %1787 = vmatpush1.bf16.msra.mxu0 0
        %1788 = vmatprep.subr.bf16.mxu0 0
        %1789 = vmatpush1.bf16.msra.mxu0 0
        %1790 = vmatprep.mubr.bf16.mxu0 0
        %1791 = vmatmul.mubr.bf16.gmra.mrb[0].mxu0 %v1750
        %v1792 = vpop.f32.mrb[0].mxu0
        %v1793 = vadd.f32 0.0, %v1792
        %v1794 = vpop.f32.mrb[0].mxu0
        %v1795 = vpop.f32.mrb[0].mxu0
        %v1796 = vadd.f32 0.0, %v1795
        %v1797 = vpop.f32.mrb[0].mxu0
        %1798 = vmatprep.mubr.bf16.mxu0 0
        %1799 = vmatmul.mubr.bf16.gmra.mrb[0].mxu0 %v1751
        %v1800 = vpop.f32.mrb[0].mxu0
        %v1801 = vadd.f32 0.0, %v1800
        %v1802 = vpop.f32.mrb[0].mxu0
        %v1803 = vpop.f32.mrb[0].mxu0
        %v1804 = vadd.f32 0.0, %v1803
        %v1805 = vpop.f32.mrb[0].mxu0
        %1806 = vmatprep.mubr.bf16.mxu0 0
        %1807 = vmatmul.mubr.bf16.gmra.mrb[0].mxu0 %v1752
        %v1808 = vpop.f32.mrb[0].mxu0
        %v1809 = vadd.f32 0.0, %v1808
        %v1810 = vpop.f32.mrb[0].mxu0
        %v1811 = vpop.f32.mrb[0].mxu0
        %v1812 = vadd.f32 0.0, %v1811
        %v1813 = vpop.f32.mrb[0].mxu0
        %1814 = vmatprep.mubr.bf16.mxu0 0
        %1815 = vmatmul.mubr.bf16.gmra.mrb[0].mxu0 %v1753
        %v1816 = vpop.f32.mrb[0].mxu0
        %v1817 = vadd.f32 0.0, %v1816
        %v1818 = vpop.f32.mrb[0].mxu0
        %v1819 = vpop.f32.mrb[0].mxu0
        %v1820 = vadd.f32 0.0, %v1819
        %v1821 = vpop.f32.mrb[0].mxu0
        %1822 = vmatprep.mubr.bf16.mxu0 0
        %1823 = vmatmul.mubr.bf16.gmra.mrb[0].mxu0 %v1754
        %v1824 = vpop.f32.mrb[0].mxu0
        %v1825 = vadd.f32 0.0, %v1824
        %v1826 = vpop.f32.mrb[0].mxu0
        %v1827 = vpop.f32.mrb[0].mxu0
        %v1828 = vadd.f32 0.0, %v1827
        %v1829 = vpop.f32.mrb[0].mxu0
        %1830 = vmatprep.mubr.bf16.mxu0 0
        %1831 = vmatmul.mubr.bf16.gmra.mrb[0].mxu0 %v1755
        %v1832 = vpop.f32.mrb[0].mxu0
        %v1833 = vadd.f32 0.0, %v1832
        %v1834 = vpop.f32.mrb[0].mxu0
        %v1835 = vpop.f32.mrb[0].mxu0
        %v1836 = vadd.f32 0.0, %v1835
        %v1837 = vpop.f32.mrb[0].mxu0
        %1838 = vmatprep.mubr.bf16.mxu0 0
        %1839 = vmatmul.mubr.bf16.gmra.mrb[0].mxu0 %v1756
        %v1840 = vpop.f32.mrb[0].mxu0
        %v1841 = vadd.f32 0.0, %v1840
        %v1842 = vpop.f32.mrb[0].mxu0
        %v1843 = vpop.f32.mrb[0].mxu0
        %v1844 = vadd.f32 0.0, %v1843
        %v1845 = vpop.f32.mrb[0].mxu0
        %1846 = vmatprep.mubr.bf16.mxu0 0
        %1847 = vmatmul.mubr.bf16.gmra.mrb[0].mxu0 %v1757
        %v1848 = vpop.f32.mrb[0].mxu0
        %v1849 = vadd.f32 0.0, %v1848
        %v1850 = vpop.f32.mrb[0].mxu0
        %v1851 = vpop.f32.mrb[0].mxu0
        %v1852 = vadd.f32 0.0, %v1851
        %v1853 = vpop.f32.mrb[0].mxu0
        %1854 = vdwg.mxu0
        %s1855 = scalar_lea.vmem [#allocation7], 128
        %v1856 = vld [vmem:[%s1855] sm:$0xff]
        %v1857 = vld [vmem:[%s1855 + $0x8] sm:$0xff]
        %v1858 = vld [vmem:[%s1855 + $0x10] sm:$0xff]
        %v1859 = vld [vmem:[%s1855 + $0x18] sm:$0xff]
        %v1860 = vld [vmem:[%s1855 + $0x20] sm:$0xff]
        %v1861 = vld [vmem:[%s1855 + $0x28] sm:$0xff]
        %v1862 = vld [vmem:[%s1855 + $0x30] sm:$0xff]
        %v1863 = vld [vmem:[%s1855 + $0x38] sm:$0xff]
        %v1864 = vld [vmem:[%s1855 + $0x40] sm:$0xff]
        %v1865 = vld [vmem:[%s1855 + $0x48] sm:$0xff]
        %v1866 = vld [vmem:[%s1855 + $0x50] sm:$0xff]
        %v1867 = vld [vmem:[%s1855 + $0x58] sm:$0xff]
        %v1868 = vld [vmem:[%s1855 + $0x60] sm:$0xff]
        %v1869 = vld [vmem:[%s1855 + $0x68] sm:$0xff]
        %v1870 = vld [vmem:[%s1855 + $0x70] sm:$0xff]
        %v1871 = vld [vmem:[%s1855 + $0x78] sm:$0xff]
        %1880 = vrot.lane.b32.xlu0 %v1348, 96
        %v1881 = vpop.permute.xlu0 %1880
        %1882 = vrot.lane.b32.xlu0 %v1351, 96
        %v1883 = vpop.permute.xlu0 %1882
        %1884 = vrot.lane.b32.xlu0 %v1354, 96
        %v1885 = vpop.permute.xlu0 %1884
        %1886 = vrot.lane.b32.xlu0 %v1357, 96
        %v1887 = vpop.permute.xlu0 %1886
        %1888 = vrot.lane.b32.xlu0 %v1360, 96
        %v1889 = vpop.permute.xlu0 %1888
        %1890 = vrot.lane.b32.xlu0 %v1363, 96
        %v1891 = vpop.permute.xlu0 %1890
        %1892 = vrot.lane.b32.xlu0 %v1366, 96
        %v1893 = vpop.permute.xlu0 %1892
        %1894 = vrot.lane.b32.xlu0 %v1369, 96
        %v1895 = vpop.permute.xlu0 %1894
        %1904 = vrot.lane.b32.xlu0 %v1349, 96
        %v1905 = vpop.permute.xlu0 %1904
        %1906 = vrot.lane.b32.xlu0 %v1352, 96
        %v1907 = vpop.permute.xlu0 %1906
        %1908 = vrot.lane.b32.xlu0 %v1355, 96
        %v1909 = vpop.permute.xlu0 %1908
        %1910 = vrot.lane.b32.xlu0 %v1358, 96
        %v1911 = vpop.permute.xlu0 %1910
        %1912 = vrot.lane.b32.xlu0 %v1361, 96
        %v1913 = vpop.permute.xlu0 %1912
        %1914 = vrot.lane.b32.xlu0 %v1364, 96
        %v1915 = vpop.permute.xlu0 %1914
        %1916 = vrot.lane.b32.xlu0 %v1367, 96
        %v1917 = vpop.permute.xlu0 %1916
        %1918 = vrot.lane.b32.xlu0 %v1370, 96
        %v1919 = vpop.permute.xlu0 %1918
        %v1921 = vsel %vm1460, %v1881, 0
        %v1924 = vsel %vm1460, %v1883, 0
        %v1927 = vsel %vm1460, %v1885, 0
        %v1930 = vsel %vm1460, %v1887, 0
        %v1933 = vsel %vm1460, %v1889, 0
        %v1936 = vsel %vm1460, %v1891, 0
        %v1939 = vsel %vm1460, %v1893, 0
        %v1942 = vsel %vm1460, %v1895, 0
        %v1945 = vsel %vm1460, %v1905, 0
        %v1948 = vsel %vm1460, %v1907, 0
        %v1951 = vsel %vm1460, %v1909, 0
        %v1954 = vsel %vm1460, %v1911, 0
        %v1957 = vsel %vm1460, %v1913, 0
        %v1960 = vsel %vm1460, %v1915, 0
        %v1963 = vsel %vm1460, %v1917, 0
        %v1966 = vsel %vm1460, %v1919, 0
        %1968 = vmatprep.subr.bf16.mxu0 0
        %1969 = vmatpush1.bf16.xpose.msra.mxu0 %v1945
        %1970 = vmatprep.subr.bf16.mxu0 0
        %1971 = vmatpush1.bf16.xpose.msra.mxu0 %v1948
        %1972 = vmatprep.subr.bf16.mxu0 0
        %1973 = vmatpush1.bf16.xpose.msra.mxu0 %v1951
        %1974 = vmatprep.subr.bf16.mxu0 0
        %1975 = vmatpush1.bf16.xpose.msra.mxu0 %v1954
        %1976 = vmatprep.subr.bf16.mxu0 0
        %1977 = vmatpush1.bf16.xpose.msra.mxu0 %v1957
        %1978 = vmatprep.subr.bf16.mxu0 0
        %1979 = vmatpush1.bf16.xpose.msra.mxu0 %v1960
        %1980 = vmatprep.subr.bf16.mxu0 0
        %1981 = vmatpush1.bf16.xpose.msra.mxu0 %v1963
        %1982 = vmatprep.subr.bf16.mxu0 0
        %1983 = vmatpush1.bf16.xpose.msra.mxu0 %v1966
        %1984 = vmatprep.subr.bf16.mxu0 0
        %1985 = vmatpush1.bf16.xpose.msra.mxu0 0
        %1986 = vmatprep.subr.bf16.mxu0 0
        %1987 = vmatpush1.bf16.xpose.msra.mxu0 0
        %1988 = vmatprep.subr.bf16.mxu0 0
        %1989 = vmatpush1.bf16.xpose.msra.mxu0 0
        %1990 = vmatprep.subr.bf16.mxu0 0
        %1991 = vmatpush1.bf16.xpose.msra.mxu0 0
        %1992 = vmatprep.subr.bf16.mxu0 0
        %1993 = vmatpush1.bf16.xpose.msra.mxu0 0
        %1994 = vmatprep.subr.bf16.mxu0 0
        %1995 = vmatpush1.bf16.xpose.msra.mxu0 0
        %1996 = vmatprep.subr.bf16.mxu0 0
        %1997 = vmatpush1.bf16.xpose.msra.mxu0 0
        %1998 = vmatprep.subr.bf16.mxu0 0
        %1999 = vmatpush1.bf16.xpose.msra.mxu0 0
        %2000 = vmatprep.mubr.bf16.mxu0 0
        %2001 = vmatmul.mubr.bf16.gmra.mrb[0].mxu0 %v1921
        %v2002 = vpop.f32.mrb[0].mxu0
        %v2003 = vadd.f32 %v1856, %v2002
        %v2004 = vpop.f32.mrb[0].mxu0
        %v2005 = vpop.f32.mrb[0].mxu0
        %v2006 = vadd.f32 %v1857, %v2005
        %v2007 = vpop.f32.mrb[0].mxu0
        %2008 = vmatprep.mubr.bf16.mxu0 0
        %2009 = vmatmul.mubr.bf16.gmra.mrb[0].mxu0 %v1924
        %v2010 = vpop.f32.mrb[0].mxu0
        %v2011 = vadd.f32 %v1858, %v2010
        %v2012 = vpop.f32.mrb[0].mxu0
        %v2013 = vpop.f32.mrb[0].mxu0
        %v2014 = vadd.f32 %v1859, %v2013
        %v2015 = vpop.f32.mrb[0].mxu0
        %2016 = vmatprep.mubr.bf16.mxu0 0
        %2017 = vmatmul.mubr.bf16.gmra.mrb[0].mxu0 %v1927
        %v2018 = vpop.f32.mrb[0].mxu0
        %v2019 = vadd.f32 %v1860, %v2018
        %v2020 = vpop.f32.mrb[0].mxu0
        %v2021 = vpop.f32.mrb[0].mxu0
        %v2022 = vadd.f32 %v1861, %v2021
        %v2023 = vpop.f32.mrb[0].mxu0
        %2024 = vmatprep.mubr.bf16.mxu0 0
        %2025 = vmatmul.mubr.bf16.gmra.mrb[0].mxu0 %v1930
        %v2026 = vpop.f32.mrb[0].mxu0
        %v2027 = vadd.f32 %v1862, %v2026
        %v2028 = vpop.f32.mrb[0].mxu0
        %v2029 = vpop.f32.mrb[0].mxu0
        %v2030 = vadd.f32 %v1863, %v2029
        %v2031 = vpop.f32.mrb[0].mxu0
        %2032 = vmatprep.mubr.bf16.mxu0 0
        %2033 = vmatmul.mubr.bf16.gmra.mrb[0].mxu0 %v1933
        %v2034 = vpop.f32.mrb[0].mxu0
        %v2035 = vadd.f32 %v1864, %v2034
        %v2036 = vpop.f32.mrb[0].mxu0
        %v2037 = vpop.f32.mrb[0].mxu0
        %v2038 = vadd.f32 %v1865, %v2037
        %v2039 = vpop.f32.mrb[0].mxu0
        %2040 = vmatprep.mubr.bf16.mxu0 0
        %2041 = vmatmul.mubr.bf16.gmra.mrb[0].mxu0 %v1936
        %v2042 = vpop.f32.mrb[0].mxu0
        %v2043 = vadd.f32 %v1866, %v2042
        %v2044 = vpop.f32.mrb[0].mxu0
        %v2045 = vpop.f32.mrb[0].mxu0
        %v2046 = vadd.f32 %v1867, %v2045
        %v2047 = vpop.f32.mrb[0].mxu0
        %2048 = vmatprep.mubr.bf16.mxu0 0
        %2049 = vmatmul.mubr.bf16.gmra.mrb[0].mxu0 %v1939
        %v2050 = vpop.f32.mrb[0].mxu0
        %v2051 = vadd.f32 %v1868, %v2050
        %v2052 = vpop.f32.mrb[0].mxu0
        %v2053 = vpop.f32.mrb[0].mxu0
        %v2054 = vadd.f32 %v1869, %v2053
        %v2055 = vpop.f32.mrb[0].mxu0
        %2056 = vmatprep.mubr.bf16.mxu0 0
        %2057 = vmatmul.mubr.bf16.gmra.mrb[0].mxu0 %v1942
        %v2058 = vpop.f32.mrb[0].mxu0
        %v2059 = vadd.f32 %v1870, %v2058
        %v2060 = vpop.f32.mrb[0].mxu0
        %v2061 = vpop.f32.mrb[0].mxu0
        %v2062 = vadd.f32 %v1871, %v2061
        %v2063 = vpop.f32.mrb[0].mxu0
        %2064 = vdwg.mxu0
        %2065 = vmax.xlane.f32.xlu0 %v2003
        %v2066 = vpop.xlane.xlu0 %2065
        %2067 = vmax.xlane.f32.xlu0 %v2006
        %v2068 = vpop.xlane.xlu0 %2067
        %2069 = vmax.xlane.f32.xlu0 %v2011
        %v2070 = vpop.xlane.xlu0 %2069
        %2071 = vmax.xlane.f32.xlu0 %v2014
        %v2072 = vpop.xlane.xlu0 %2071
        %2073 = vmax.xlane.f32.xlu0 %v2019
        %v2074 = vpop.xlane.xlu0 %2073
        %2075 = vmax.xlane.f32.xlu0 %v2022
        %v2076 = vpop.xlane.xlu0 %2075
        %2077 = vmax.xlane.f32.xlu0 %v2027
        %v2078 = vpop.xlane.xlu0 %2077
        %2079 = vmax.xlane.f32.xlu0 %v2030
        %v2080 = vpop.xlane.xlu0 %2079
        %2081 = vmax.xlane.f32.xlu0 %v2035
        %v2082 = vpop.xlane.xlu0 %2081
        %2083 = vmax.xlane.f32.xlu0 %v2038
        %v2084 = vpop.xlane.xlu0 %2083
        %2085 = vmax.xlane.f32.xlu0 %v2043
        %v2086 = vpop.xlane.xlu0 %2085
        %2087 = vmax.xlane.f32.xlu0 %v2046
        %v2088 = vpop.xlane.xlu0 %2087
        %2089 = vmax.xlane.f32.xlu0 %v2051
        %v2090 = vpop.xlane.xlu0 %2089
        %2091 = vmax.xlane.f32.xlu0 %v2054
        %v2092 = vpop.xlane.xlu0 %2091
        %2093 = vmax.xlane.f32.xlu0 %v2059
        %v2094 = vpop.xlane.xlu0 %2093
        %2095 = vmax.xlane.f32.xlu0 %v2062
        %v2096 = vpop.xlane.xlu0 %2095
        %v2097 = vsub.f32 %v2003, %v2066
        %v2098 = vsub.f32 %v2006, %v2068
        %v2099 = vsub.f32 %v2011, %v2070
        %v2100 = vsub.f32 %v2014, %v2072
        %v2101 = vsub.f32 %v2019, %v2074
        %v2102 = vsub.f32 %v2022, %v2076
        %v2103 = vsub.f32 %v2027, %v2078
        %v2104 = vsub.f32 %v2030, %v2080
        %v2105 = vsub.f32 %v2035, %v2082
        %v2106 = vsub.f32 %v2038, %v2084
        %v2107 = vsub.f32 %v2043, %v2086
        %v2108 = vsub.f32 %v2046, %v2088
        %v2109 = vsub.f32 %v2051, %v2090
        %v2110 = vsub.f32 %v2054, %v2092
        %v2111 = vsub.f32 %v2059, %v2094
        %v2112 = vsub.f32 %v2062, %v2096
        %v2113 = vmul.f32 %v2097, 1.442695
        %v2114 = vpow.pop %v2113
        %v2115 = vmul.f32 %v2098, 1.442695
        %v2116 = vpow.pop %v2115
        %v2117 = vmul.f32 %v2099, 1.442695
        %v2118 = vpow.pop %v2117
        %v2119 = vmul.f32 %v2100, 1.442695
        %v2120 = vpow.pop %v2119
        %v2121 = vmul.f32 %v2101, 1.442695
        %v2122 = vpow.pop %v2121
        %v2123 = vmul.f32 %v2102, 1.442695
        %v2124 = vpow.pop %v2123
        %v2125 = vmul.f32 %v2103, 1.442695
        %v2126 = vpow.pop %v2125
        %v2127 = vmul.f32 %v2104, 1.442695
        %v2128 = vpow.pop %v2127
        %v2129 = vmul.f32 %v2105, 1.442695
        %v2130 = vpow.pop %v2129
        %v2131 = vmul.f32 %v2106, 1.442695
        %v2132 = vpow.pop %v2131
        %v2133 = vmul.f32 %v2107, 1.442695
        %v2134 = vpow.pop %v2133
        %v2135 = vmul.f32 %v2108, 1.442695
        %v2136 = vpow.pop %v2135
        %v2137 = vmul.f32 %v2109, 1.442695
        %v2138 = vpow.pop %v2137
        %v2139 = vmul.f32 %v2110, 1.442695
        %v2140 = vpow.pop %v2139
        %v2141 = vmul.f32 %v2111, 1.442695
        %v2142 = vpow.pop %v2141
        %v2143 = vmul.f32 %v2112, 1.442695
        %v2144 = vpow.pop %v2143
        %2145 = vadd.xlane.f32.xlu0 %v2114
        %v2146 = vpop.xlane.xlu0 %2145
        %2147 = vadd.xlane.f32.xlu0 %v2116
        %v2148 = vpop.xlane.xlu0 %2147
        %2149 = vadd.xlane.f32.xlu0 %v2118
        %v2150 = vpop.xlane.xlu0 %2149
        %2151 = vadd.xlane.f32.xlu0 %v2120
        %v2152 = vpop.xlane.xlu0 %2151
        %2153 = vadd.xlane.f32.xlu0 %v2122
        %v2154 = vpop.xlane.xlu0 %2153
        %2155 = vadd.xlane.f32.xlu0 %v2124
        %v2156 = vpop.xlane.xlu0 %2155
        %2157 = vadd.xlane.f32.xlu0 %v2126
        %v2158 = vpop.xlane.xlu0 %2157
        %2159 = vadd.xlane.f32.xlu0 %v2128
        %v2160 = vpop.xlane.xlu0 %2159
        %2161 = vadd.xlane.f32.xlu0 %v2130
        %v2162 = vpop.xlane.xlu0 %2161
        %2163 = vadd.xlane.f32.xlu0 %v2132
        %v2164 = vpop.xlane.xlu0 %2163
        %2165 = vadd.xlane.f32.xlu0 %v2134
        %v2166 = vpop.xlane.xlu0 %2165
        %2167 = vadd.xlane.f32.xlu0 %v2136
        %v2168 = vpop.xlane.xlu0 %2167
        %2169 = vadd.xlane.f32.xlu0 %v2138
        %v2170 = vpop.xlane.xlu0 %2169
        %2171 = vadd.xlane.f32.xlu0 %v2140
        %v2172 = vpop.xlane.xlu0 %2171
        %2173 = vadd.xlane.f32.xlu0 %v2142
        %v2174 = vpop.xlane.xlu0 %2173
        %2175 = vadd.xlane.f32.xlu0 %v2144
        %v2176 = vpop.xlane.xlu0 %2175
        %v2177 = vrcp.pop %v2146
        %v2178 = vrcp.pop %v2148
        %v2179 = vrcp.pop %v2150
        %v2180 = vrcp.pop %v2152
        %v2181 = vrcp.pop %v2154
        %v2182 = vrcp.pop %v2156
        %v2183 = vrcp.pop %v2158
        %v2184 = vrcp.pop %v2160
        %v2185 = vrcp.pop %v2162
        %v2186 = vrcp.pop %v2164
        %v2187 = vrcp.pop %v2166
        %v2188 = vrcp.pop %v2168
        %v2189 = vrcp.pop %v2170
        %v2190 = vrcp.pop %v2172
        %v2191 = vrcp.pop %v2174
        %v2192 = vrcp.pop %v2176
        %v2193 = vmul.f32 %v2114, %v2177
        %v2194 = vmul.f32 %v2116, %v2178
        %v2195 = vmul.f32 %v2118, %v2179
        %v2196 = vmul.f32 %v2120, %v2180
        %v2197 = vmul.f32 %v2122, %v2181
        %v2198 = vmul.f32 %v2124, %v2182
        %v2199 = vmul.f32 %v2126, %v2183
        %v2200 = vmul.f32 %v2128, %v2184
        %v2201 = vmul.f32 %v2130, %v2185
        %v2202 = vmul.f32 %v2132, %v2186
        %v2203 = vmul.f32 %v2134, %v2187
        %v2204 = vmul.f32 %v2136, %v2188
        %v2205 = vmul.f32 %v2138, %v2189
        %v2206 = vmul.f32 %v2140, %v2190
        %v2207 = vmul.f32 %v2142, %v2191
        %v2208 = vmul.f32 %v2144, %v2192
        %v2209 = vpack.c.bf16 %v2194, %v2193
        %v2210 = vpack.c.bf16 %v2196, %v2195
        %v2211 = vpack.c.bf16 %v2198, %v2197
        %v2212 = vpack.c.bf16 %v2200, %v2199
        %v2213 = vpack.c.bf16 %v2202, %v2201
        %v2214 = vpack.c.bf16 %v2204, %v2203
        %v2215 = vpack.c.bf16 %v2206, %v2205
        %v2216 = vpack.c.bf16 %v2208, %v2207
        %2225 = vrot.lane.b32.xlu0 %v1350, 96
        %v2226 = vpop.permute.xlu0 %2225
        %2227 = vrot.lane.b32.xlu0 %v1353, 96
        %v2228 = vpop.permute.xlu0 %2227
        %2229 = vrot.lane.b32.xlu0 %v1356, 96
        %v2230 = vpop.permute.xlu0 %2229
        %2231 = vrot.lane.b32.xlu0 %v1359, 96
        %v2232 = vpop.permute.xlu0 %2231
        %2233 = vrot.lane.b32.xlu0 %v1362, 96
        %v2234 = vpop.permute.xlu0 %2233
        %2235 = vrot.lane.b32.xlu0 %v1365, 96
        %v2236 = vpop.permute.xlu0 %2235
        %2237 = vrot.lane.b32.xlu0 %v1368, 96
        %v2238 = vpop.permute.xlu0 %2237
        %2239 = vrot.lane.b32.xlu0 %v1371, 96
        %v2240 = vpop.permute.xlu0 %2239
        %2249 = vmatprep.subr.bf16.mxu0 0
        %2250 = vmatpush1.bf16.msra.mxu0 %v2226
        %2251 = vmatprep.subr.bf16.mxu0 0
        %2252 = vmatpush1.bf16.msra.mxu0 %v2228
        %2253 = vmatprep.subr.bf16.mxu0 0
        %2254 = vmatpush1.bf16.msra.mxu0 %v2230
        %2255 = vmatprep.subr.bf16.mxu0 0
        %2256 = vmatpush1.bf16.msra.mxu0 %v2232
        %2257 = vmatprep.subr.bf16.mxu0 0
        %2258 = vmatpush1.bf16.msra.mxu0 %v2234
        %2259 = vmatprep.subr.bf16.mxu0 0
        %2260 = vmatpush1.bf16.msra.mxu0 %v2236
        %2261 = vmatprep.subr.bf16.mxu0 0
        %2262 = vmatpush1.bf16.msra.mxu0 %v2238
        %2263 = vmatprep.subr.bf16.mxu0 0
        %2264 = vmatpush1.bf16.msra.mxu0 %v2240
        %2265 = vmatprep.subr.bf16.mxu0 0
        %2266 = vmatpush1.bf16.msra.mxu0 0
        %2267 = vmatprep.subr.bf16.mxu0 0
        %2268 = vmatpush1.bf16.msra.mxu0 0
        %2269 = vmatprep.subr.bf16.mxu0 0
        %2270 = vmatpush1.bf16.msra.mxu0 0
        %2271 = vmatprep.subr.bf16.mxu0 0
        %2272 = vmatpush1.bf16.msra.mxu0 0
        %2273 = vmatprep.subr.bf16.mxu0 0
        %2274 = vmatpush1.bf16.msra.mxu0 0
        %2275 = vmatprep.subr.bf16.mxu0 0
        %2276 = vmatpush1.bf16.msra.mxu0 0
        %2277 = vmatprep.subr.bf16.mxu0 0
        %2278 = vmatpush1.bf16.msra.mxu0 0
        %2279 = vmatprep.subr.bf16.mxu0 0
        %2280 = vmatpush1.bf16.msra.mxu0 0
        %2281 = vmatprep.mubr.bf16.mxu0 0
        %2282 = vmatmul.mubr.bf16.gmra.mrb[0].mxu0 %v2209
        %v2283 = vpop.f32.mrb[0].mxu0
        %v2284 = vadd.f32 0.0, %v2283
        %v2285 = vpop.f32.mrb[0].mxu0
        %v2286 = vpop.f32.mrb[0].mxu0
        %v2287 = vadd.f32 0.0, %v2286
        %v2288 = vpop.f32.mrb[0].mxu0
        %2289 = vmatprep.mubr.bf16.mxu0 0
        %2290 = vmatmul.mubr.bf16.gmra.mrb[0].mxu0 %v2210
        %v2291 = vpop.f32.mrb[0].mxu0
        %v2292 = vadd.f32 0.0, %v2291
        %v2293 = vpop.f32.mrb[0].mxu0
        %v2294 = vpop.f32.mrb[0].mxu0
        %v2295 = vadd.f32 0.0, %v2294
        %v2296 = vpop.f32.mrb[0].mxu0
        %2297 = vmatprep.mubr.bf16.mxu0 0
        %2298 = vmatmul.mubr.bf16.gmra.mrb[0].mxu0 %v2211
        %v2299 = vpop.f32.mrb[0].mxu0
        %v2300 = vadd.f32 0.0, %v2299
        %v2301 = vpop.f32.mrb[0].mxu0
        %v2302 = vpop.f32.mrb[0].mxu0
        %v2303 = vadd.f32 0.0, %v2302
        %v2304 = vpop.f32.mrb[0].mxu0
        %2305 = vmatprep.mubr.bf16.mxu0 0
        %2306 = vmatmul.mubr.bf16.gmra.mrb[0].mxu0 %v2212
        %v2307 = vpop.f32.mrb[0].mxu0
        %v2308 = vadd.f32 0.0, %v2307
        %v2309 = vpop.f32.mrb[0].mxu0
        %v2310 = vpop.f32.mrb[0].mxu0
        %v2311 = vadd.f32 0.0, %v2310
        %v2312 = vpop.f32.mrb[0].mxu0
        %2313 = vmatprep.mubr.bf16.mxu0 0
        %2314 = vmatmul.mubr.bf16.gmra.mrb[0].mxu0 %v2213
        %v2315 = vpop.f32.mrb[0].mxu0
        %v2316 = vadd.f32 0.0, %v2315
        %v2317 = vpop.f32.mrb[0].mxu0
        %v2318 = vpop.f32.mrb[0].mxu0
        %v2319 = vadd.f32 0.0, %v2318
        %v2320 = vpop.f32.mrb[0].mxu0
        %2321 = vmatprep.mubr.bf16.mxu0 0
        %2322 = vmatmul.mubr.bf16.gmra.mrb[0].mxu0 %v2214
        %v2323 = vpop.f32.mrb[0].mxu0
        %v2324 = vadd.f32 0.0, %v2323
        %v2325 = vpop.f32.mrb[0].mxu0
        %v2326 = vpop.f32.mrb[0].mxu0
        %v2327 = vadd.f32 0.0, %v2326
        %v2328 = vpop.f32.mrb[0].mxu0
        %2329 = vmatprep.mubr.bf16.mxu0 0
        %2330 = vmatmul.mubr.bf16.gmra.mrb[0].mxu0 %v2215
        %v2331 = vpop.f32.mrb[0].mxu0
        %v2332 = vadd.f32 0.0, %v2331
        %v2333 = vpop.f32.mrb[0].mxu0
        %v2334 = vpop.f32.mrb[0].mxu0
        %v2335 = vadd.f32 0.0, %v2334
        %v2336 = vpop.f32.mrb[0].mxu0
        %2337 = vmatprep.mubr.bf16.mxu0 0
        %2338 = vmatmul.mubr.bf16.gmra.mrb[0].mxu0 %v2216
        %v2339 = vpop.f32.mrb[0].mxu0
        %v2340 = vadd.f32 0.0, %v2339
        %v2341 = vpop.f32.mrb[0].mxu0
        %v2342 = vpop.f32.mrb[0].mxu0
        %v2343 = vadd.f32 0.0, %v2342
        %v2344 = vpop.f32.mrb[0].mxu0
        %2345 = vdwg.mxu0
        %s2346 = scalar_lea.vmem [#allocation7], 256
        %v2347 = vld [vmem:[%s2346] sm:$0xff]
        %v2348 = vld [vmem:[%s2346 + $0x8] sm:$0xff]
        %v2349 = vld [vmem:[%s2346 + $0x10] sm:$0xff]
        %v2350 = vld [vmem:[%s2346 + $0x18] sm:$0xff]
        %v2351 = vld [vmem:[%s2346 + $0x20] sm:$0xff]
        %v2352 = vld [vmem:[%s2346 + $0x28] sm:$0xff]
        %v2353 = vld [vmem:[%s2346 + $0x30] sm:$0xff]
        %v2354 = vld [vmem:[%s2346 + $0x38] sm:$0xff]
        %v2355 = vld [vmem:[%s2346 + $0x40] sm:$0xff]
        %v2356 = vld [vmem:[%s2346 + $0x48] sm:$0xff]
        %v2357 = vld [vmem:[%s2346 + $0x50] sm:$0xff]
        %v2358 = vld [vmem:[%s2346 + $0x58] sm:$0xff]
        %v2359 = vld [vmem:[%s2346 + $0x60] sm:$0xff]
        %v2360 = vld [vmem:[%s2346 + $0x68] sm:$0xff]
        %v2361 = vld [vmem:[%s2346 + $0x70] sm:$0xff]
        %v2362 = vld [vmem:[%s2346 + $0x78] sm:$0xff]
        %2363 = vrot.lane.b32.xlu0 %v1348, 64
        %v2364 = vpop.permute.xlu0 %2363
        %2365 = vrot.lane.b32.xlu0 %v1351, 64
        %v2366 = vpop.permute.xlu0 %2365
        %2367 = vrot.lane.b32.xlu0 %v1354, 64
        %v2368 = vpop.permute.xlu0 %2367
        %2369 = vrot.lane.b32.xlu0 %v1357, 64
        %v2370 = vpop.permute.xlu0 %2369
        %2371 = vrot.lane.b32.xlu0 %v1360, 64
        %v2372 = vpop.permute.xlu0 %2371
        %2373 = vrot.lane.b32.xlu0 %v1363, 64
        %v2374 = vpop.permute.xlu0 %2373
        %2375 = vrot.lane.b32.xlu0 %v1366, 64
        %v2376 = vpop.permute.xlu0 %2375
        %2377 = vrot.lane.b32.xlu0 %v1369, 64
        %v2378 = vpop.permute.xlu0 %2377
        %2379 = vrot.lane.b32.xlu0 %v1349, 64
        %v2380 = vpop.permute.xlu0 %2379
        %2381 = vrot.lane.b32.xlu0 %v1352, 64
        %v2382 = vpop.permute.xlu0 %2381
        %2383 = vrot.lane.b32.xlu0 %v1355, 64
        %v2384 = vpop.permute.xlu0 %2383
        %2385 = vrot.lane.b32.xlu0 %v1358, 64
        %v2386 = vpop.permute.xlu0 %2385
        %2387 = vrot.lane.b32.xlu0 %v1361, 64
        %v2388 = vpop.permute.xlu0 %2387
        %2389 = vrot.lane.b32.xlu0 %v1364, 64
        %v2390 = vpop.permute.xlu0 %2389
        %2391 = vrot.lane.b32.xlu0 %v1367, 64
        %v2392 = vpop.permute.xlu0 %2391
        %2393 = vrot.lane.b32.xlu0 %v1370, 64
        %v2394 = vpop.permute.xlu0 %2393
        %v2396 = vsel %vm1460, %v2364, 0
        %v2399 = vsel %vm1460, %v2366, 0
        %v2402 = vsel %vm1460, %v2368, 0
        %v2405 = vsel %vm1460, %v2370, 0
        %v2408 = vsel %vm1460, %v2372, 0
        %v2411 = vsel %vm1460, %v2374, 0
        %v2414 = vsel %vm1460, %v2376, 0
        %v2417 = vsel %vm1460, %v2378, 0
        %v2420 = vsel %vm1460, %v2380, 0
        %v2423 = vsel %vm1460, %v2382, 0
        %v2426 = vsel %vm1460, %v2384, 0
        %v2429 = vsel %vm1460, %v2386, 0
        %v2432 = vsel %vm1460, %v2388, 0
        %v2435 = vsel %vm1460, %v2390, 0
        %v2438 = vsel %vm1460, %v2392, 0
        %v2441 = vsel %vm1460, %v2394, 0
        %2443 = vmatprep.subr.bf16.mxu0 0
        %2444 = vmatpush1.bf16.xpose.msra.mxu0 %v2420
        %2445 = vmatprep.subr.bf16.mxu0 0
        %2446 = vmatpush1.bf16.xpose.msra.mxu0 %v2423
        %2447 = vmatprep.subr.bf16.mxu0 0
        %2448 = vmatpush1.bf16.xpose.msra.mxu0 %v2426
        %2449 = vmatprep.subr.bf16.mxu0 0
        %2450 = vmatpush1.bf16.xpose.msra.mxu0 %v2429
        %2451 = vmatprep.subr.bf16.mxu0 0
        %2452 = vmatpush1.bf16.xpose.msra.mxu0 %v2432
        %2453 = vmatprep.subr.bf16.mxu0 0
        %2454 = vmatpush1.bf16.xpose.msra.mxu0 %v2435
        %2455 = vmatprep.subr.bf16.mxu0 0
        %2456 = vmatpush1.bf16.xpose.msra.mxu0 %v2438
        %2457 = vmatprep.subr.bf16.mxu0 0
        %2458 = vmatpush1.bf16.xpose.msra.mxu0 %v2441
        %2459 = vmatprep.subr.bf16.mxu0 0
        %2460 = vmatpush1.bf16.xpose.msra.mxu0 0
        %2461 = vmatprep.subr.bf16.mxu0 0
        %2462 = vmatpush1.bf16.xpose.msra.mxu0 0
        %2463 = vmatprep.subr.bf16.mxu0 0
        %2464 = vmatpush1.bf16.xpose.msra.mxu0 0
        %2465 = vmatprep.subr.bf16.mxu0 0
        %2466 = vmatpush1.bf16.xpose.msra.mxu0 0
        %2467 = vmatprep.subr.bf16.mxu0 0
        %2468 = vmatpush1.bf16.xpose.msra.mxu0 0
        %2469 = vmatprep.subr.bf16.mxu0 0
        %2470 = vmatpush1.bf16.xpose.msra.mxu0 0
        %2471 = vmatprep.subr.bf16.mxu0 0
        %2472 = vmatpush1.bf16.xpose.msra.mxu0 0
        %2473 = vmatprep.subr.bf16.mxu0 0
        %2474 = vmatpush1.bf16.xpose.msra.mxu0 0
        %2475 = vmatprep.mubr.bf16.mxu0 0
        %2476 = vmatmul.mubr.bf16.gmra.mrb[0].mxu0 %v2396
        %v2477 = vpop.f32.mrb[0].mxu0
        %v2478 = vadd.f32 %v2347, %v2477
        %v2479 = vpop.f32.mrb[0].mxu0
        %v2480 = vpop.f32.mrb[0].mxu0
        %v2481 = vadd.f32 %v2348, %v2480
        %v2482 = vpop.f32.mrb[0].mxu0
        %2483 = vmatprep.mubr.bf16.mxu0 0
        %2484 = vmatmul.mubr.bf16.gmra.mrb[0].mxu0 %v2399
        %v2485 = vpop.f32.mrb[0].mxu0
        %v2486 = vadd.f32 %v2349, %v2485
        %v2487 = vpop.f32.mrb[0].mxu0
        %v2488 = vpop.f32.mrb[0].mxu0
        %v2489 = vadd.f32 %v2350, %v2488
        %v2490 = vpop.f32.mrb[0].mxu0
        %2491 = vmatprep.mubr.bf16.mxu0 0
        %2492 = vmatmul.mubr.bf16.gmra.mrb[0].mxu0 %v2402
        %v2493 = vpop.f32.mrb[0].mxu0
        %v2494 = vadd.f32 %v2351, %v2493
        %v2495 = vpop.f32.mrb[0].mxu0
        %v2496 = vpop.f32.mrb[0].mxu0
        %v2497 = vadd.f32 %v2352, %v2496
        %v2498 = vpop.f32.mrb[0].mxu0
        %2499 = vmatprep.mubr.bf16.mxu0 0
        %2500 = vmatmul.mubr.bf16.gmra.mrb[0].mxu0 %v2405
        %v2501 = vpop.f32.mrb[0].mxu0
        %v2502 = vadd.f32 %v2353, %v2501
        %v2503 = vpop.f32.mrb[0].mxu0
        %v2504 = vpop.f32.mrb[0].mxu0
        %v2505 = vadd.f32 %v2354, %v2504
        %v2506 = vpop.f32.mrb[0].mxu0
        %2507 = vmatprep.mubr.bf16.mxu0 0
        %2508 = vmatmul.mubr.bf16.gmra.mrb[0].mxu0 %v2408
        %v2509 = vpop.f32.mrb[0].mxu0
        %v2510 = vadd.f32 %v2355, %v2509
        %v2511 = vpop.f32.mrb[0].mxu0
        %v2512 = vpop.f32.mrb[0].mxu0
        %v2513 = vadd.f32 %v2356, %v2512
        %v2514 = vpop.f32.mrb[0].mxu0
        %2515 = vmatprep.mubr.bf16.mxu0 0
        %2516 = vmatmul.mubr.bf16.gmra.mrb[0].mxu0 %v2411
        %v2517 = vpop.f32.mrb[0].mxu0
        %v2518 = vadd.f32 %v2357, %v2517
        %v2519 = vpop.f32.mrb[0].mxu0
        %v2520 = vpop.f32.mrb[0].mxu0
        %v2521 = vadd.f32 %v2358, %v2520
        %v2522 = vpop.f32.mrb[0].mxu0
        %2523 = vmatprep.mubr.bf16.mxu0 0
        %2524 = vmatmul.mubr.bf16.gmra.mrb[0].mxu0 %v2414
        %v2525 = vpop.f32.mrb[0].mxu0
        %v2526 = vadd.f32 %v2359, %v2525
        %v2527 = vpop.f32.mrb[0].mxu0
        %v2528 = vpop.f32.mrb[0].mxu0
        %v2529 = vadd.f32 %v2360, %v2528
        %v2530 = vpop.f32.mrb[0].mxu0
        %2531 = vmatprep.mubr.bf16.mxu0 0
        %2532 = vmatmul.mubr.bf16.gmra.mrb[0].mxu0 %v2417
        %v2533 = vpop.f32.mrb[0].mxu0
        %v2534 = vadd.f32 %v2361, %v2533
        %v2535 = vpop.f32.mrb[0].mxu0
        %v2536 = vpop.f32.mrb[0].mxu0
        %v2537 = vadd.f32 %v2362, %v2536
        %v2538 = vpop.f32.mrb[0].mxu0
        %2539 = vdwg.mxu0
        %2540 = vmax.xlane.f32.xlu0 %v2478
        %v2541 = vpop.xlane.xlu0 %2540
        %2542 = vmax.xlane.f32.xlu0 %v2481
        %v2543 = vpop.xlane.xlu0 %2542
        %2544 = vmax.xlane.f32.xlu0 %v2486
        %v2545 = vpop.xlane.xlu0 %2544
        %2546 = vmax.xlane.f32.xlu0 %v2489
        %v2547 = vpop.xlane.xlu0 %2546
        %2548 = vmax.xlane.f32.xlu0 %v2494
        %v2549 = vpop.xlane.xlu0 %2548
        %2550 = vmax.xlane.f32.xlu0 %v2497
        %v2551 = vpop.xlane.xlu0 %2550
        %2552 = vmax.xlane.f32.xlu0 %v2502
        %v2553 = vpop.xlane.xlu0 %2552
        %2554 = vmax.xlane.f32.xlu0 %v2505
        %v2555 = vpop.xlane.xlu0 %2554
        %2556 = vmax.xlane.f32.xlu0 %v2510
        %v2557 = vpop.xlane.xlu0 %2556
        %2558 = vmax.xlane.f32.xlu0 %v2513
        %v2559 = vpop.xlane.xlu0 %2558
        %2560 = vmax.xlane.f32.xlu0 %v2518
        %v2561 = vpop.xlane.xlu0 %2560
        %2562 = vmax.xlane.f32.xlu0 %v2521
        %v2563 = vpop.xlane.xlu0 %2562
        %2564 = vmax.xlane.f32.xlu0 %v2526
        %v2565 = vpop.xlane.xlu0 %2564
        %2566 = vmax.xlane.f32.xlu0 %v2529
        %v2567 = vpop.xlane.xlu0 %2566
        %2568 = vmax.xlane.f32.xlu0 %v2534
        %v2569 = vpop.xlane.xlu0 %2568
        %2570 = vmax.xlane.f32.xlu0 %v2537
        %v2571 = vpop.xlane.xlu0 %2570
        %v2572 = vsub.f32 %v2478, %v2541
        %v2573 = vsub.f32 %v2481, %v2543
        %v2574 = vsub.f32 %v2486, %v2545
        %v2575 = vsub.f32 %v2489, %v2547
        %v2576 = vsub.f32 %v2494, %v2549
        %v2577 = vsub.f32 %v2497, %v2551
        %v2578 = vsub.f32 %v2502, %v2553
        %v2579 = vsub.f32 %v2505, %v2555
        %v2580 = vsub.f32 %v2510, %v2557
        %v2581 = vsub.f32 %v2513, %v2559
        %v2582 = vsub.f32 %v2518, %v2561
        %v2583 = vsub.f32 %v2521, %v2563
        %v2584 = vsub.f32 %v2526, %v2565
        %v2585 = vsub.f32 %v2529, %v2567
        %v2586 = vsub.f32 %v2534, %v2569
        %v2587 = vsub.f32 %v2537, %v2571
        %v2588 = vmul.f32 %v2572, 1.442695
        %v2589 = vpow.pop %v2588
        %v2590 = vmul.f32 %v2573, 1.442695
        %v2591 = vpow.pop %v2590
        %v2592 = vmul.f32 %v2574, 1.442695
        %v2593 = vpow.pop %v2592
        %v2594 = vmul.f32 %v2575, 1.442695
        %v2595 = vpow.pop %v2594
        %v2596 = vmul.f32 %v2576, 1.442695
        %v2597 = vpow.pop %v2596
        %v2598 = vmul.f32 %v2577, 1.442695
        %v2599 = vpow.pop %v2598
        %v2600 = vmul.f32 %v2578, 1.442695
        %v2601 = vpow.pop %v2600
        %v2602 = vmul.f32 %v2579, 1.442695
        %v2603 = vpow.pop %v2602
        %v2604 = vmul.f32 %v2580, 1.442695
        %v2605 = vpow.pop %v2604
        %v2606 = vmul.f32 %v2581, 1.442695
        %v2607 = vpow.pop %v2606
        %v2608 = vmul.f32 %v2582, 1.442695
        %v2609 = vpow.pop %v2608
        %v2610 = vmul.f32 %v2583, 1.442695
        %v2611 = vpow.pop %v2610
        %v2612 = vmul.f32 %v2584, 1.442695
        %v2613 = vpow.pop %v2612
        %v2614 = vmul.f32 %v2585, 1.442695
        %v2615 = vpow.pop %v2614
        %v2616 = vmul.f32 %v2586, 1.442695
        %v2617 = vpow.pop %v2616
        %v2618 = vmul.f32 %v2587, 1.442695
        %v2619 = vpow.pop %v2618
        %2620 = vadd.xlane.f32.xlu0 %v2589
        %v2621 = vpop.xlane.xlu0 %2620
        %2622 = vadd.xlane.f32.xlu0 %v2591
        %v2623 = vpop.xlane.xlu0 %2622
        %2624 = vadd.xlane.f32.xlu0 %v2593
        %v2625 = vpop.xlane.xlu0 %2624
        %2626 = vadd.xlane.f32.xlu0 %v2595
        %v2627 = vpop.xlane.xlu0 %2626
        %2628 = vadd.xlane.f32.xlu0 %v2597
        %v2629 = vpop.xlane.xlu0 %2628
        %2630 = vadd.xlane.f32.xlu0 %v2599
        %v2631 = vpop.xlane.xlu0 %2630
        %2632 = vadd.xlane.f32.xlu0 %v2601
        %v2633 = vpop.xlane.xlu0 %2632
        %2634 = vadd.xlane.f32.xlu0 %v2603
        %v2635 = vpop.xlane.xlu0 %2634
        %2636 = vadd.xlane.f32.xlu0 %v2605
        %v2637 = vpop.xlane.xlu0 %2636
        %2638 = vadd.xlane.f32.xlu0 %v2607
        %v2639 = vpop.xlane.xlu0 %2638
        %2640 = vadd.xlane.f32.xlu0 %v2609
        %v2641 = vpop.xlane.xlu0 %2640
        %2642 = vadd.xlane.f32.xlu0 %v2611
        %v2643 = vpop.xlane.xlu0 %2642
        %2644 = vadd.xlane.f32.xlu0 %v2613
        %v2645 = vpop.xlane.xlu0 %2644
        %2646 = vadd.xlane.f32.xlu0 %v2615
        %v2647 = vpop.xlane.xlu0 %2646
        %2648 = vadd.xlane.f32.xlu0 %v2617
        %v2649 = vpop.xlane.xlu0 %2648
        %2650 = vadd.xlane.f32.xlu0 %v2619
        %v2651 = vpop.xlane.xlu0 %2650
        %v2652 = vrcp.pop %v2621
        %v2653 = vrcp.pop %v2623
        %v2654 = vrcp.pop %v2625
        %v2655 = vrcp.pop %v2627
        %v2656 = vrcp.pop %v2629
        %v2657 = vrcp.pop %v2631
        %v2658 = vrcp.pop %v2633
        %v2659 = vrcp.pop %v2635
        %v2660 = vrcp.pop %v2637
        %v2661 = vrcp.pop %v2639
        %v2662 = vrcp.pop %v2641
        %v2663 = vrcp.pop %v2643
        %v2664 = vrcp.pop %v2645
        %v2665 = vrcp.pop %v2647
        %v2666 = vrcp.pop %v2649
        %v2667 = vrcp.pop %v2651
        %v2668 = vmul.f32 %v2589, %v2652
        %v2669 = vmul.f32 %v2591, %v2653
        %v2670 = vmul.f32 %v2593, %v2654
        %v2671 = vmul.f32 %v2595, %v2655
        %v2672 = vmul.f32 %v2597, %v2656
        %v2673 = vmul.f32 %v2599, %v2657
        %v2674 = vmul.f32 %v2601, %v2658
        %v2675 = vmul.f32 %v2603, %v2659
        %v2676 = vmul.f32 %v2605, %v2660
        %v2677 = vmul.f32 %v2607, %v2661
        %v2678 = vmul.f32 %v2609, %v2662
        %v2679 = vmul.f32 %v2611, %v2663
        %v2680 = vmul.f32 %v2613, %v2664
        %v2681 = vmul.f32 %v2615, %v2665
        %v2682 = vmul.f32 %v2617, %v2666
        %v2683 = vmul.f32 %v2619, %v2667
        %v2684 = vpack.c.bf16 %v2669, %v2668
        %v2685 = vpack.c.bf16 %v2671, %v2670
        %v2686 = vpack.c.bf16 %v2673, %v2672
        %v2687 = vpack.c.bf16 %v2675, %v2674
        %v2688 = vpack.c.bf16 %v2677, %v2676
        %v2689 = vpack.c.bf16 %v2679, %v2678
        %v2690 = vpack.c.bf16 %v2681, %v2680
        %v2691 = vpack.c.bf16 %v2683, %v2682
        %2692 = vrot.lane.b32.xlu0 %v1350, 64
        %v2693 = vpop.permute.xlu0 %2692
        %2694 = vrot.lane.b32.xlu0 %v1353, 64
        %v2695 = vpop.permute.xlu0 %2694
        %2696 = vrot.lane.b32.xlu0 %v1356, 64
        %v2697 = vpop.permute.xlu0 %2696
        %2698 = vrot.lane.b32.xlu0 %v1359, 64
        %v2699 = vpop.permute.xlu0 %2698
        %2700 = vrot.lane.b32.xlu0 %v1362, 64
        %v2701 = vpop.permute.xlu0 %2700
        %2702 = vrot.lane.b32.xlu0 %v1365, 64
        %v2703 = vpop.permute.xlu0 %2702
        %2704 = vrot.lane.b32.xlu0 %v1368, 64
        %v2705 = vpop.permute.xlu0 %2704
        %2706 = vrot.lane.b32.xlu0 %v1371, 64
        %v2707 = vpop.permute.xlu0 %2706
        %2716 = vmatprep.subr.bf16.mxu0 0
        %2717 = vmatpush1.bf16.msra.mxu0 %v2693
        %2718 = vmatprep.subr.bf16.mxu0 0
        %2719 = vmatpush1.bf16.msra.mxu0 %v2695
        %2720 = vmatprep.subr.bf16.mxu0 0
        %2721 = vmatpush1.bf16.msra.mxu0 %v2697
        %2722 = vmatprep.subr.bf16.mxu0 0
        %2723 = vmatpush1.bf16.msra.mxu0 %v2699
        %2724 = vmatprep.subr.bf16.mxu0 0
        %2725 = vmatpush1.bf16.msra.mxu0 %v2701
        %2726 = vmatprep.subr.bf16.mxu0 0
        %2727 = vmatpush1.bf16.msra.mxu0 %v2703
        %2728 = vmatprep.subr.bf16.mxu0 0
        %2729 = vmatpush1.bf16.msra.mxu0 %v2705
        %2730 = vmatprep.subr.bf16.mxu0 0
        %2731 = vmatpush1.bf16.msra.mxu0 %v2707
        %2732 = vmatprep.subr.bf16.mxu0 0
        %2733 = vmatpush1.bf16.msra.mxu0 0
        %2734 = vmatprep.subr.bf16.mxu0 0
        %2735 = vmatpush1.bf16.msra.mxu0 0
        %2736 = vmatprep.subr.bf16.mxu0 0
        %2737 = vmatpush1.bf16.msra.mxu0 0
        %2738 = vmatprep.subr.bf16.mxu0 0
        %2739 = vmatpush1.bf16.msra.mxu0 0
        %2740 = vmatprep.subr.bf16.mxu0 0
        %2741 = vmatpush1.bf16.msra.mxu0 0
        %2742 = vmatprep.subr.bf16.mxu0 0
        %2743 = vmatpush1.bf16.msra.mxu0 0
        %2744 = vmatprep.subr.bf16.mxu0 0
        %2745 = vmatpush1.bf16.msra.mxu0 0
        %2746 = vmatprep.subr.bf16.mxu0 0
        %2747 = vmatpush1.bf16.msra.mxu0 0
        %2748 = vmatprep.mubr.bf16.mxu0 0
        %2749 = vmatmul.mubr.bf16.gmra.mrb[0].mxu0 %v2684
        %v2750 = vpop.f32.mrb[0].mxu0
        %v2751 = vadd.f32 0.0, %v2750
        %v2752 = vpop.f32.mrb[0].mxu0
        %v2753 = vpop.f32.mrb[0].mxu0
        %v2754 = vadd.f32 0.0, %v2753
        %v2755 = vpop.f32.mrb[0].mxu0
        %2756 = vmatprep.mubr.bf16.mxu0 0
        %2757 = vmatmul.mubr.bf16.gmra.mrb[0].mxu0 %v2685
        %v2758 = vpop.f32.mrb[0].mxu0
        %v2759 = vadd.f32 0.0, %v2758
        %v2760 = vpop.f32.mrb[0].mxu0
        %v2761 = vpop.f32.mrb[0].mxu0
        %v2762 = vadd.f32 0.0, %v2761
        %v2763 = vpop.f32.mrb[0].mxu0
        %2764 = vmatprep.mubr.bf16.mxu0 0
        %2765 = vmatmul.mubr.bf16.gmra.mrb[0].mxu0 %v2686
        %v2766 = vpop.f32.mrb[0].mxu0
        %v2767 = vadd.f32 0.0, %v2766
        %v2768 = vpop.f32.mrb[0].mxu0
        %v2769 = vpop.f32.mrb[0].mxu0
        %v2770 = vadd.f32 0.0, %v2769
        %v2771 = vpop.f32.mrb[0].mxu0
        %2772 = vmatprep.mubr.bf16.mxu0 0
        %2773 = vmatmul.mubr.bf16.gmra.mrb[0].mxu0 %v2687
        %v2774 = vpop.f32.mrb[0].mxu0
        %v2775 = vadd.f32 0.0, %v2774
        %v2776 = vpop.f32.mrb[0].mxu0
        %v2777 = vpop.f32.mrb[0].mxu0
        %v2778 = vadd.f32 0.0, %v2777
        %v2779 = vpop.f32.mrb[0].mxu0
        %2780 = vmatprep.mubr.bf16.mxu0 0
        %2781 = vmatmul.mubr.bf16.gmra.mrb[0].mxu0 %v2688
        %v2782 = vpop.f32.mrb[0].mxu0
        %v2783 = vadd.f32 0.0, %v2782
        %v2784 = vpop.f32.mrb[0].mxu0
        %v2785 = vpop.f32.mrb[0].mxu0
        %v2786 = vadd.f32 0.0, %v2785
        %v2787 = vpop.f32.mrb[0].mxu0
        %2788 = vmatprep.mubr.bf16.mxu0 0
        %2789 = vmatmul.mubr.bf16.gmra.mrb[0].mxu0 %v2689
        %v2790 = vpop.f32.mrb[0].mxu0
        %v2791 = vadd.f32 0.0, %v2790
        %v2792 = vpop.f32.mrb[0].mxu0
        %v2793 = vpop.f32.mrb[0].mxu0
        %v2794 = vadd.f32 0.0, %v2793
        %v2795 = vpop.f32.mrb[0].mxu0
        %2796 = vmatprep.mubr.bf16.mxu0 0
        %2797 = vmatmul.mubr.bf16.gmra.mrb[0].mxu0 %v2690
        %v2798 = vpop.f32.mrb[0].mxu0
        %v2799 = vadd.f32 0.0, %v2798
        %v2800 = vpop.f32.mrb[0].mxu0
        %v2801 = vpop.f32.mrb[0].mxu0
        %v2802 = vadd.f32 0.0, %v2801
        %v2803 = vpop.f32.mrb[0].mxu0
        %2804 = vmatprep.mubr.bf16.mxu0 0
        %2805 = vmatmul.mubr.bf16.gmra.mrb[0].mxu0 %v2691
        %v2806 = vpop.f32.mrb[0].mxu0
        %v2807 = vadd.f32 0.0, %v2806
        %v2808 = vpop.f32.mrb[0].mxu0
        %v2809 = vpop.f32.mrb[0].mxu0
        %v2810 = vadd.f32 0.0, %v2809
        %v2811 = vpop.f32.mrb[0].mxu0
        %2812 = vdwg.mxu0
        %s2813 = scalar_lea.vmem [#allocation7], 384
        %v2814 = vld [vmem:[%s2813] sm:$0xff]
        %v2815 = vld [vmem:[%s2813 + $0x8] sm:$0xff]
        %v2816 = vld [vmem:[%s2813 + $0x10] sm:$0xff]
        %v2817 = vld [vmem:[%s2813 + $0x18] sm:$0xff]
        %v2818 = vld [vmem:[%s2813 + $0x20] sm:$0xff]
        %v2819 = vld [vmem:[%s2813 + $0x28] sm:$0xff]
        %v2820 = vld [vmem:[%s2813 + $0x30] sm:$0xff]
        %v2821 = vld [vmem:[%s2813 + $0x38] sm:$0xff]
        %v2822 = vld [vmem:[%s2813 + $0x40] sm:$0xff]
        %v2823 = vld [vmem:[%s2813 + $0x48] sm:$0xff]
        %v2824 = vld [vmem:[%s2813 + $0x50] sm:$0xff]
        %v2825 = vld [vmem:[%s2813 + $0x58] sm:$0xff]
        %v2826 = vld [vmem:[%s2813 + $0x60] sm:$0xff]
        %v2827 = vld [vmem:[%s2813 + $0x68] sm:$0xff]
        %v2828 = vld [vmem:[%s2813 + $0x70] sm:$0xff]
        %v2829 = vld [vmem:[%s2813 + $0x78] sm:$0xff]
        %2830 = vrot.lane.b32.xlu0 %v1348, 32
        %v2831 = vpop.permute.xlu0 %2830
        %2832 = vrot.lane.b32.xlu0 %v1351, 32
        %v2833 = vpop.permute.xlu0 %2832
        %2834 = vrot.lane.b32.xlu0 %v1354, 32
        %v2835 = vpop.permute.xlu0 %2834
        %2836 = vrot.lane.b32.xlu0 %v1357, 32
        %v2837 = vpop.permute.xlu0 %2836
        %2838 = vrot.lane.b32.xlu0 %v1360, 32
        %v2839 = vpop.permute.xlu0 %2838
        %2840 = vrot.lane.b32.xlu0 %v1363, 32
        %v2841 = vpop.permute.xlu0 %2840
        %2842 = vrot.lane.b32.xlu0 %v1366, 32
        %v2843 = vpop.permute.xlu0 %2842
        %2844 = vrot.lane.b32.xlu0 %v1369, 32
        %v2845 = vpop.permute.xlu0 %2844
        %2846 = vrot.lane.b32.xlu0 %v1349, 32
        %v2847 = vpop.permute.xlu0 %2846
        %2848 = vrot.lane.b32.xlu0 %v1352, 32
        %v2849 = vpop.permute.xlu0 %2848
        %2850 = vrot.lane.b32.xlu0 %v1355, 32
        %v2851 = vpop.permute.xlu0 %2850
        %2852 = vrot.lane.b32.xlu0 %v1358, 32
        %v2853 = vpop.permute.xlu0 %2852
        %2854 = vrot.lane.b32.xlu0 %v1361, 32
        %v2855 = vpop.permute.xlu0 %2854
        %2856 = vrot.lane.b32.xlu0 %v1364, 32
        %v2857 = vpop.permute.xlu0 %2856
        %2858 = vrot.lane.b32.xlu0 %v1367, 32
        %v2859 = vpop.permute.xlu0 %2858
        %2860 = vrot.lane.b32.xlu0 %v1370, 32
        %v2861 = vpop.permute.xlu0 %2860
        %v2863 = vsel %vm1460, %v2831, 0
        %v2866 = vsel %vm1460, %v2833, 0
        %v2869 = vsel %vm1460, %v2835, 0
        %v2872 = vsel %vm1460, %v2837, 0
        %v2875 = vsel %vm1460, %v2839, 0
        %v2878 = vsel %vm1460, %v2841, 0
        %v2881 = vsel %vm1460, %v2843, 0
        %v2884 = vsel %vm1460, %v2845, 0
        %v2887 = vsel %vm1460, %v2847, 0
        %v2890 = vsel %vm1460, %v2849, 0
        %v2893 = vsel %vm1460, %v2851, 0
        %v2896 = vsel %vm1460, %v2853, 0
        %v2899 = vsel %vm1460, %v2855, 0
        %v2902 = vsel %vm1460, %v2857, 0
        %v2905 = vsel %vm1460, %v2859, 0
        %v2908 = vsel %vm1460, %v2861, 0
        %2910 = vmatprep.subr.bf16.mxu0 0
        %2911 = vmatpush1.bf16.xpose.msra.mxu0 %v2887
        %2912 = vmatprep.subr.bf16.mxu0 0
        %2913 = vmatpush1.bf16.xpose.msra.mxu0 %v2890
        %2914 = vmatprep.subr.bf16.mxu0 0
        %2915 = vmatpush1.bf16.xpose.msra.mxu0 %v2893
        %2916 = vmatprep.subr.bf16.mxu0 0
        %2917 = vmatpush1.bf16.xpose.msra.mxu0 %v2896
        %2918 = vmatprep.subr.bf16.mxu0 0
        %2919 = vmatpush1.bf16.xpose.msra.mxu0 %v2899
        %2920 = vmatprep.subr.bf16.mxu0 0
        %2921 = vmatpush1.bf16.xpose.msra.mxu0 %v2902
        %2922 = vmatprep.subr.bf16.mxu0 0
        %2923 = vmatpush1.bf16.xpose.msra.mxu0 %v2905
        %2924 = vmatprep.subr.bf16.mxu0 0
        %2925 = vmatpush1.bf16.xpose.msra.mxu0 %v2908
        %2926 = vmatprep.subr.bf16.mxu0 0
        %2927 = vmatpush1.bf16.xpose.msra.mxu0 0
        %2928 = vmatprep.subr.bf16.mxu0 0
        %2929 = vmatpush1.bf16.xpose.msra.mxu0 0
        %2930 = vmatprep.subr.bf16.mxu0 0
        %2931 = vmatpush1.bf16.xpose.msra.mxu0 0
        %2932 = vmatprep.subr.bf16.mxu0 0
        %2933 = vmatpush1.bf16.xpose.msra.mxu0 0
        %2934 = vmatprep.subr.bf16.mxu0 0
        %2935 = vmatpush1.bf16.xpose.msra.mxu0 0
        %2936 = vmatprep.subr.bf16.mxu0 0
        %2937 = vmatpush1.bf16.xpose.msra.mxu0 0
        %2938 = vmatprep.subr.bf16.mxu0 0
        %2939 = vmatpush1.bf16.xpose.msra.mxu0 0
        %2940 = vmatprep.subr.bf16.mxu0 0
        %2941 = vmatpush1.bf16.xpose.msra.mxu0 0
        %2942 = vmatprep.mubr.bf16.mxu0 0
        %2943 = vmatmul.mubr.bf16.gmra.mrb[0].mxu0 %v2863
        %v2944 = vpop.f32.mrb[0].mxu0
        %v2945 = vadd.f32 %v2814, %v2944
        %v2946 = vpop.f32.mrb[0].mxu0
        %v2947 = vpop.f32.mrb[0].mxu0
        %v2948 = vadd.f32 %v2815, %v2947
        %v2949 = vpop.f32.mrb[0].mxu0
        %2950 = vmatprep.mubr.bf16.mxu0 0
        %2951 = vmatmul.mubr.bf16.gmra.mrb[0].mxu0 %v2866
        %v2952 = vpop.f32.mrb[0].mxu0
        %v2953 = vadd.f32 %v2816, %v2952
        %v2954 = vpop.f32.mrb[0].mxu0
        %v2955 = vpop.f32.mrb[0].mxu0
        %v2956 = vadd.f32 %v2817, %v2955
        %v2957 = vpop.f32.mrb[0].mxu0
        %2958 = vmatprep.mubr.bf16.mxu0 0
        %2959 = vmatmul.mubr.bf16.gmra.mrb[0].mxu0 %v2869
        %v2960 = vpop.f32.mrb[0].mxu0
        %v2961 = vadd.f32 %v2818, %v2960
        %v2962 = vpop.f32.mrb[0].mxu0
        %v2963 = vpop.f32.mrb[0].mxu0
        %v2964 = vadd.f32 %v2819, %v2963
        %v2965 = vpop.f32.mrb[0].mxu0
        %2966 = vmatprep.mubr.bf16.mxu0 0
        %2967 = vmatmul.mubr.bf16.gmra.mrb[0].mxu0 %v2872
        %v2968 = vpop.f32.mrb[0].mxu0
        %v2969 = vadd.f32 %v2820, %v2968
        %v2970 = vpop.f32.mrb[0].mxu0
        %v2971 = vpop.f32.mrb[0].mxu0
        %v2972 = vadd.f32 %v2821, %v2971
        %v2973 = vpop.f32.mrb[0].mxu0
        %2974 = vmatprep.mubr.bf16.mxu0 0
        %2975 = vmatmul.mubr.bf16.gmra.mrb[0].mxu0 %v2875
        %v2976 = vpop.f32.mrb[0].mxu0
        %v2977 = vadd.f32 %v2822, %v2976
        %v2978 = vpop.f32.mrb[0].mxu0
        %v2979 = vpop.f32.mrb[0].mxu0
        %v2980 = vadd.f32 %v2823, %v2979
        %v2981 = vpop.f32.mrb[0].mxu0
        %2982 = vmatprep.mubr.bf16.mxu0 0
        %2983 = vmatmul.mubr.bf16.gmra.mrb[0].mxu0 %v2878
        %v2984 = vpop.f32.mrb[0].mxu0
        %v2985 = vadd.f32 %v2824, %v2984
        %v2986 = vpop.f32.mrb[0].mxu0
        %v2987 = vpop.f32.mrb[0].mxu0
        %v2988 = vadd.f32 %v2825, %v2987
        %v2989 = vpop.f32.mrb[0].mxu0
        %2990 = vmatprep.mubr.bf16.mxu0 0
        %2991 = vmatmul.mubr.bf16.gmra.mrb[0].mxu0 %v2881
        %v2992 = vpop.f32.mrb[0].mxu0
        %v2993 = vadd.f32 %v2826, %v2992
        %v2994 = vpop.f32.mrb[0].mxu0
        %v2995 = vpop.f32.mrb[0].mxu0
        %v2996 = vadd.f32 %v2827, %v2995
        %v2997 = vpop.f32.mrb[0].mxu0
        %2998 = vmatprep.mubr.bf16.mxu0 0
        %2999 = vmatmul.mubr.bf16.gmra.mrb[0].mxu0 %v2884
        %v3000 = vpop.f32.mrb[0].mxu0
        %v3001 = vadd.f32 %v2828, %v3000
        %v3002 = vpop.f32.mrb[0].mxu0
        %v3003 = vpop.f32.mrb[0].mxu0
        %v3004 = vadd.f32 %v2829, %v3003
        %v3005 = vpop.f32.mrb[0].mxu0
        %3006 = vdwg.mxu0
        %3007 = vmax.xlane.f32.xlu0 %v2945
        %v3008 = vpop.xlane.xlu0 %3007
        %3009 = vmax.xlane.f32.xlu0 %v2948
        %v3010 = vpop.xlane.xlu0 %3009
        %3011 = vmax.xlane.f32.xlu0 %v2953
        %v3012 = vpop.xlane.xlu0 %3011
        %3013 = vmax.xlane.f32.xlu0 %v2956
        %v3014 = vpop.xlane.xlu0 %3013
        %3015 = vmax.xlane.f32.xlu0 %v2961
        %v3016 = vpop.xlane.xlu0 %3015
        %3017 = vmax.xlane.f32.xlu0 %v2964
        %v3018 = vpop.xlane.xlu0 %3017
        %3019 = vmax.xlane.f32.xlu0 %v2969
        %v3020 = vpop.xlane.xlu0 %3019
        %3021 = vmax.xlane.f32.xlu0 %v2972
        %v3022 = vpop.xlane.xlu0 %3021
        %3023 = vmax.xlane.f32.xlu0 %v2977
        %v3024 = vpop.xlane.xlu0 %3023
        %3025 = vmax.xlane.f32.xlu0 %v2980
        %v3026 = vpop.xlane.xlu0 %3025
        %3027 = vmax.xlane.f32.xlu0 %v2985
        %v3028 = vpop.xlane.xlu0 %3027
        %3029 = vmax.xlane.f32.xlu0 %v2988
        %v3030 = vpop.xlane.xlu0 %3029
        %3031 = vmax.xlane.f32.xlu0 %v2993
        %v3032 = vpop.xlane.xlu0 %3031
        %3033 = vmax.xlane.f32.xlu0 %v2996
        %v3034 = vpop.xlane.xlu0 %3033
        %3035 = vmax.xlane.f32.xlu0 %v3001
        %v3036 = vpop.xlane.xlu0 %3035
        %3037 = vmax.xlane.f32.xlu0 %v3004
        %v3038 = vpop.xlane.xlu0 %3037
        %v3039 = vsub.f32 %v2945, %v3008
        %v3040 = vsub.f32 %v2948, %v3010
        %v3041 = vsub.f32 %v2953, %v3012
        %v3042 = vsub.f32 %v2956, %v3014
        %v3043 = vsub.f32 %v2961, %v3016
        %v3044 = vsub.f32 %v2964, %v3018
        %v3045 = vsub.f32 %v2969, %v3020
        %v3046 = vsub.f32 %v2972, %v3022
        %v3047 = vsub.f32 %v2977, %v3024
        %v3048 = vsub.f32 %v2980, %v3026
        %v3049 = vsub.f32 %v2985, %v3028
        %v3050 = vsub.f32 %v2988, %v3030
        %v3051 = vsub.f32 %v2993, %v3032
        %v3052 = vsub.f32 %v2996, %v3034
        %v3053 = vsub.f32 %v3001, %v3036
        %v3054 = vsub.f32 %v3004, %v3038
        %v3055 = vmul.f32 %v3039, 1.442695
        %v3056 = vpow.pop %v3055
        %v3057 = vmul.f32 %v3040, 1.442695
        %v3058 = vpow.pop %v3057
        %v3059 = vmul.f32 %v3041, 1.442695
        %v3060 = vpow.pop %v3059
        %v3061 = vmul.f32 %v3042, 1.442695
        %v3062 = vpow.pop %v3061
        %v3063 = vmul.f32 %v3043, 1.442695
        %v3064 = vpow.pop %v3063
        %v3065 = vmul.f32 %v3044, 1.442695
        %v3066 = vpow.pop %v3065
        %v3067 = vmul.f32 %v3045, 1.442695
        %v3068 = vpow.pop %v3067
        %v3069 = vmul.f32 %v3046, 1.442695
        %v3070 = vpow.pop %v3069
        %v3071 = vmul.f32 %v3047, 1.442695
        %v3072 = vpow.pop %v3071
        %v3073 = vmul.f32 %v3048, 1.442695
        %v3074 = vpow.pop %v3073
        %v3075 = vmul.f32 %v3049, 1.442695
        %v3076 = vpow.pop %v3075
        %v3077 = vmul.f32 %v3050, 1.442695
        %v3078 = vpow.pop %v3077
        %v3079 = vmul.f32 %v3051, 1.442695
        %v3080 = vpow.pop %v3079
        %v3081 = vmul.f32 %v3052, 1.442695
        %v3082 = vpow.pop %v3081
        %v3083 = vmul.f32 %v3053, 1.442695
        %v3084 = vpow.pop %v3083
        %v3085 = vmul.f32 %v3054, 1.442695
        %v3086 = vpow.pop %v3085
        %3087 = vadd.xlane.f32.xlu0 %v3056
        %v3088 = vpop.xlane.xlu0 %3087
        %3089 = vadd.xlane.f32.xlu0 %v3058
        %v3090 = vpop.xlane.xlu0 %3089
        %3091 = vadd.xlane.f32.xlu0 %v3060
        %v3092 = vpop.xlane.xlu0 %3091
        %3093 = vadd.xlane.f32.xlu0 %v3062
        %v3094 = vpop.xlane.xlu0 %3093
        %3095 = vadd.xlane.f32.xlu0 %v3064
        %v3096 = vpop.xlane.xlu0 %3095
        %3097 = vadd.xlane.f32.xlu0 %v3066
        %v3098 = vpop.xlane.xlu0 %3097
        %3099 = vadd.xlane.f32.xlu0 %v3068
        %v3100 = vpop.xlane.xlu0 %3099
        %3101 = vadd.xlane.f32.xlu0 %v3070
        %v3102 = vpop.xlane.xlu0 %3101
        %3103 = vadd.xlane.f32.xlu0 %v3072
        %v3104 = vpop.xlane.xlu0 %3103
        %3105 = vadd.xlane.f32.xlu0 %v3074
        %v3106 = vpop.xlane.xlu0 %3105
        %3107 = vadd.xlane.f32.xlu0 %v3076
        %v3108 = vpop.xlane.xlu0 %3107
        %3109 = vadd.xlane.f32.xlu0 %v3078
        %v3110 = vpop.xlane.xlu0 %3109
        %3111 = vadd.xlane.f32.xlu0 %v3080
        %v3112 = vpop.xlane.xlu0 %3111
        %3113 = vadd.xlane.f32.xlu0 %v3082
        %v3114 = vpop.xlane.xlu0 %3113
        %3115 = vadd.xlane.f32.xlu0 %v3084
        %v3116 = vpop.xlane.xlu0 %3115
        %3117 = vadd.xlane.f32.xlu0 %v3086
        %v3118 = vpop.xlane.xlu0 %3117
        %v3119 = vrcp.pop %v3088
        %v3120 = vrcp.pop %v3090
        %v3121 = vrcp.pop %v3092
        %v3122 = vrcp.pop %v3094
        %v3123 = vrcp.pop %v3096
        %v3124 = vrcp.pop %v3098
        %v3125 = vrcp.pop %v3100
        %v3126 = vrcp.pop %v3102
        %v3127 = vrcp.pop %v3104
        %v3128 = vrcp.pop %v3106
        %v3129 = vrcp.pop %v3108
        %v3130 = vrcp.pop %v3110
        %v3131 = vrcp.pop %v3112
        %v3132 = vrcp.pop %v3114
        %v3133 = vrcp.pop %v3116
        %v3134 = vrcp.pop %v3118
        %v3135 = vmul.f32 %v3056, %v3119
        %v3136 = vmul.f32 %v3058, %v3120
        %v3137 = vmul.f32 %v3060, %v3121
        %v3138 = vmul.f32 %v3062, %v3122
        %v3139 = vmul.f32 %v3064, %v3123
        %v3140 = vmul.f32 %v3066, %v3124
        %v3141 = vmul.f32 %v3068, %v3125
        %v3142 = vmul.f32 %v3070, %v3126
        %v3143 = vmul.f32 %v3072, %v3127
        %v3144 = vmul.f32 %v3074, %v3128
        %v3145 = vmul.f32 %v3076, %v3129
        %v3146 = vmul.f32 %v3078, %v3130
        %v3147 = vmul.f32 %v3080, %v3131
        %v3148 = vmul.f32 %v3082, %v3132
        %v3149 = vmul.f32 %v3084, %v3133
        %v3150 = vmul.f32 %v3086, %v3134
        %v3151 = vpack.c.bf16 %v3136, %v3135
        %v3152 = vpack.c.bf16 %v3138, %v3137
        %v3153 = vpack.c.bf16 %v3140, %v3139
        %v3154 = vpack.c.bf16 %v3142, %v3141
        %v3155 = vpack.c.bf16 %v3144, %v3143
        %v3156 = vpack.c.bf16 %v3146, %v3145
        %v3157 = vpack.c.bf16 %v3148, %v3147
        %v3158 = vpack.c.bf16 %v3150, %v3149
        %3159 = vrot.lane.b32.xlu0 %v1350, 32
        %v3160 = vpop.permute.xlu0 %3159
        %3161 = vrot.lane.b32.xlu0 %v1353, 32
        %v3162 = vpop.permute.xlu0 %3161
        %3163 = vrot.lane.b32.xlu0 %v1356, 32
        %v3164 = vpop.permute.xlu0 %3163
        %3165 = vrot.lane.b32.xlu0 %v1359, 32
        %v3166 = vpop.permute.xlu0 %3165
        %3167 = vrot.lane.b32.xlu0 %v1362, 32
        %v3168 = vpop.permute.xlu0 %3167
        %3169 = vrot.lane.b32.xlu0 %v1365, 32
        %v3170 = vpop.permute.xlu0 %3169
        %3171 = vrot.lane.b32.xlu0 %v1368, 32
        %v3172 = vpop.permute.xlu0 %3171
        %3173 = vrot.lane.b32.xlu0 %v1371, 32
        %v3174 = vpop.permute.xlu0 %3173
        %3183 = vmatprep.subr.bf16.mxu0 0
        %3184 = vmatpush1.bf16.msra.mxu0 %v3160
        %3185 = vmatprep.subr.bf16.mxu0 0
        %3186 = vmatpush1.bf16.msra.mxu0 %v3162
        %3187 = vmatprep.subr.bf16.mxu0 0
        %3188 = vmatpush1.bf16.msra.mxu0 %v3164
        %3189 = vmatprep.subr.bf16.mxu0 0
        %3190 = vmatpush1.bf16.msra.mxu0 %v3166
        %3191 = vmatprep.subr.bf16.mxu0 0
        %3192 = vmatpush1.bf16.msra.mxu0 %v3168
        %3193 = vmatprep.subr.bf16.mxu0 0
        %3194 = vmatpush1.bf16.msra.mxu0 %v3170
        %3195 = vmatprep.subr.bf16.mxu0 0
        %3196 = vmatpush1.bf16.msra.mxu0 %v3172
        %3197 = vmatprep.subr.bf16.mxu0 0
        %3198 = vmatpush1.bf16.msra.mxu0 %v3174
        %3199 = vmatprep.subr.bf16.mxu0 0
        %3200 = vmatpush1.bf16.msra.mxu0 0
        %3201 = vmatprep.subr.bf16.mxu0 0
        %3202 = vmatpush1.bf16.msra.mxu0 0
        %3203 = vmatprep.subr.bf16.mxu0 0
        %3204 = vmatpush1.bf16.msra.mxu0 0
        %3205 = vmatprep.subr.bf16.mxu0 0
        %3206 = vmatpush1.bf16.msra.mxu0 0
        %3207 = vmatprep.subr.bf16.mxu0 0
        %3208 = vmatpush1.bf16.msra.mxu0 0
        %3209 = vmatprep.subr.bf16.mxu0 0
        %3210 = vmatpush1.bf16.msra.mxu0 0
        %3211 = vmatprep.subr.bf16.mxu0 0
        %3212 = vmatpush1.bf16.msra.mxu0 0
        %3213 = vmatprep.subr.bf16.mxu0 0
        %3214 = vmatpush1.bf16.msra.mxu0 0
        %3215 = vmatprep.mubr.bf16.mxu0 0
        %3216 = vmatmul.mubr.bf16.gmra.mrb[0].mxu0 %v3151
        %v3217 = vpop.f32.mrb[0].mxu0
        %v3218 = vadd.f32 0.0, %v3217
        %v3219 = vpop.f32.mrb[0].mxu0
        %v3220 = vpop.f32.mrb[0].mxu0
        %v3221 = vadd.f32 0.0, %v3220
        %v3222 = vpop.f32.mrb[0].mxu0
        %3223 = vmatprep.mubr.bf16.mxu0 0
        %3224 = vmatmul.mubr.bf16.gmra.mrb[0].mxu0 %v3152
        %v3225 = vpop.f32.mrb[0].mxu0
        %v3226 = vadd.f32 0.0, %v3225
        %v3227 = vpop.f32.mrb[0].mxu0
        %v3228 = vpop.f32.mrb[0].mxu0
        %v3229 = vadd.f32 0.0, %v3228
        %v3230 = vpop.f32.mrb[0].mxu0
        %3231 = vmatprep.mubr.bf16.mxu0 0
        %3232 = vmatmul.mubr.bf16.gmra.mrb[0].mxu0 %v3153
        %v3233 = vpop.f32.mrb[0].mxu0
        %v3234 = vadd.f32 0.0, %v3233
        %v3235 = vpop.f32.mrb[0].mxu0
        %v3236 = vpop.f32.mrb[0].mxu0
        %v3237 = vadd.f32 0.0, %v3236
        %v3238 = vpop.f32.mrb[0].mxu0
        %3239 = vmatprep.mubr.bf16.mxu0 0
        %3240 = vmatmul.mubr.bf16.gmra.mrb[0].mxu0 %v3154
        %v3241 = vpop.f32.mrb[0].mxu0
        %v3242 = vadd.f32 0.0, %v3241
        %v3243 = vpop.f32.mrb[0].mxu0
        %v3244 = vpop.f32.mrb[0].mxu0
        %v3245 = vadd.f32 0.0, %v3244
        %v3246 = vpop.f32.mrb[0].mxu0
        %3247 = vmatprep.mubr.bf16.mxu0 0
        %3248 = vmatmul.mubr.bf16.gmra.mrb[0].mxu0 %v3155
        %v3249 = vpop.f32.mrb[0].mxu0
        %v3250 = vadd.f32 0.0, %v3249
        %v3251 = vpop.f32.mrb[0].mxu0
        %v3252 = vpop.f32.mrb[0].mxu0
        %v3253 = vadd.f32 0.0, %v3252
        %v3254 = vpop.f32.mrb[0].mxu0
        %3255 = vmatprep.mubr.bf16.mxu0 0
        %3256 = vmatmul.mubr.bf16.gmra.mrb[0].mxu0 %v3156
        %v3257 = vpop.f32.mrb[0].mxu0
        %v3258 = vadd.f32 0.0, %v3257
        %v3259 = vpop.f32.mrb[0].mxu0
        %v3260 = vpop.f32.mrb[0].mxu0
        %v3261 = vadd.f32 0.0, %v3260
        %v3262 = vpop.f32.mrb[0].mxu0
        %3263 = vmatprep.mubr.bf16.mxu0 0
        %3264 = vmatmul.mubr.bf16.gmra.mrb[0].mxu0 %v3157
        %v3265 = vpop.f32.mrb[0].mxu0
        %v3266 = vadd.f32 0.0, %v3265
        %v3267 = vpop.f32.mrb[0].mxu0
        %v3268 = vpop.f32.mrb[0].mxu0
        %v3269 = vadd.f32 0.0, %v3268
        %v3270 = vpop.f32.mrb[0].mxu0
        %3271 = vmatprep.mubr.bf16.mxu0 0
        %3272 = vmatmul.mubr.bf16.gmra.mrb[0].mxu0 %v3158
        %v3273 = vpop.f32.mrb[0].mxu0
        %v3274 = vadd.f32 0.0, %v3273
        %v3275 = vpop.f32.mrb[0].mxu0
        %v3276 = vpop.f32.mrb[0].mxu0
        %v3277 = vadd.f32 0.0, %v3276
        %v3278 = vpop.f32.mrb[0].mxu0
        %3279 = vdwg.mxu0
        %3296 = vrot.lane.b32.xlu0 %v2284, 32
        %v3297 = vpop.permute.xlu0 %3296
        %3298 = vrot.lane.b32.xlu0 %v2287, 32
        %v3299 = vpop.permute.xlu0 %3298
        %3300 = vrot.lane.b32.xlu0 %v2292, 32
        %v3301 = vpop.permute.xlu0 %3300
        %3302 = vrot.lane.b32.xlu0 %v2295, 32
        %v3303 = vpop.permute.xlu0 %3302
        %3304 = vrot.lane.b32.xlu0 %v2300, 32
        %v3305 = vpop.permute.xlu0 %3304
        %3306 = vrot.lane.b32.xlu0 %v2303, 32
        %v3307 = vpop.permute.xlu0 %3306
        %3308 = vrot.lane.b32.xlu0 %v2308, 32
        %v3309 = vpop.permute.xlu0 %3308
        %3310 = vrot.lane.b32.xlu0 %v2311, 32
        %v3311 = vpop.permute.xlu0 %3310
        %3312 = vrot.lane.b32.xlu0 %v2316, 32
        %v3313 = vpop.permute.xlu0 %3312
        %3314 = vrot.lane.b32.xlu0 %v2319, 32
        %v3315 = vpop.permute.xlu0 %3314
        %3316 = vrot.lane.b32.xlu0 %v2324, 32
        %v3317 = vpop.permute.xlu0 %3316
        %3318 = vrot.lane.b32.xlu0 %v2327, 32
        %v3319 = vpop.permute.xlu0 %3318
        %3320 = vrot.lane.b32.xlu0 %v2332, 32
        %v3321 = vpop.permute.xlu0 %3320
        %3322 = vrot.lane.b32.xlu0 %v2335, 32
        %v3323 = vpop.permute.xlu0 %3322
        %3324 = vrot.lane.b32.xlu0 %v2340, 32
        %v3325 = vpop.permute.xlu0 %3324
        %3326 = vrot.lane.b32.xlu0 %v2343, 32
        %v3327 = vpop.permute.xlu0 %3326
        %3360 = vrot.lane.b32.xlu0 %v2751, 64
        %v3361 = vpop.permute.xlu0 %3360
        %3362 = vrot.lane.b32.xlu0 %v2754, 64
        %v3363 = vpop.permute.xlu0 %3362
        %3364 = vrot.lane.b32.xlu0 %v2759, 64
        %v3365 = vpop.permute.xlu0 %3364
        %3366 = vrot.lane.b32.xlu0 %v2762, 64
        %v3367 = vpop.permute.xlu0 %3366
        %3368 = vrot.lane.b32.xlu0 %v2767, 64
        %v3369 = vpop.permute.xlu0 %3368
        %3370 = vrot.lane.b32.xlu0 %v2770, 64
        %v3371 = vpop.permute.xlu0 %3370
        %3372 = vrot.lane.b32.xlu0 %v2775, 64
        %v3373 = vpop.permute.xlu0 %3372
        %3374 = vrot.lane.b32.xlu0 %v2778, 64
        %v3375 = vpop.permute.xlu0 %3374
        %3376 = vrot.lane.b32.xlu0 %v2783, 64
        %v3377 = vpop.permute.xlu0 %3376
        %3378 = vrot.lane.b32.xlu0 %v2786, 64
        %v3379 = vpop.permute.xlu0 %3378
        %3380 = vrot.lane.b32.xlu0 %v2791, 64
        %v3381 = vpop.permute.xlu0 %3380
        %3382 = vrot.lane.b32.xlu0 %v2794, 64
        %v3383 = vpop.permute.xlu0 %3382
        %3384 = vrot.lane.b32.xlu0 %v2799, 64
        %v3385 = vpop.permute.xlu0 %3384
        %3386 = vrot.lane.b32.xlu0 %v2802, 64
        %v3387 = vpop.permute.xlu0 %3386
        %3388 = vrot.lane.b32.xlu0 %v2807, 64
        %v3389 = vpop.permute.xlu0 %3388
        %3390 = vrot.lane.b32.xlu0 %v2810, 64
        %v3391 = vpop.permute.xlu0 %3390
        %3424 = vrot.lane.b32.xlu0 %v3218, 96
        %v3425 = vpop.permute.xlu0 %3424
        %3426 = vrot.lane.b32.xlu0 %v3221, 96
        %v3427 = vpop.permute.xlu0 %3426
        %3428 = vrot.lane.b32.xlu0 %v3226, 96
        %v3429 = vpop.permute.xlu0 %3428
        %3430 = vrot.lane.b32.xlu0 %v3229, 96
        %v3431 = vpop.permute.xlu0 %3430
        %3432 = vrot.lane.b32.xlu0 %v3234, 96
        %v3433 = vpop.permute.xlu0 %3432
        %3434 = vrot.lane.b32.xlu0 %v3237, 96
        %v3435 = vpop.permute.xlu0 %3434
        %3436 = vrot.lane.b32.xlu0 %v3242, 96
        %v3437 = vpop.permute.xlu0 %3436
        %3438 = vrot.lane.b32.xlu0 %v3245, 96
        %v3439 = vpop.permute.xlu0 %3438
        %3440 = vrot.lane.b32.xlu0 %v3250, 96
        %v3441 = vpop.permute.xlu0 %3440
        %3442 = vrot.lane.b32.xlu0 %v3253, 96
        %v3443 = vpop.permute.xlu0 %3442
        %3444 = vrot.lane.b32.xlu0 %v3258, 96
        %v3445 = vpop.permute.xlu0 %3444
        %3446 = vrot.lane.b32.xlu0 %v3261, 96
        %v3447 = vpop.permute.xlu0 %3446
        %3448 = vrot.lane.b32.xlu0 %v3266, 96
        %v3449 = vpop.permute.xlu0 %3448
        %3450 = vrot.lane.b32.xlu0 %v3269, 96
        %v3451 = vpop.permute.xlu0 %3450
        %3452 = vrot.lane.b32.xlu0 %v3274, 96
        %v3453 = vpop.permute.xlu0 %3452
        %3454 = vrot.lane.b32.xlu0 %v3277, 96
        %v3455 = vpop.permute.xlu0 %3454
        %v3472 = vsel %vm1460, %v1793, %v3297
        %v3473 = vsel %vm1460, %v1796, %v3299
        %v3474 = vsel %vm1460, %v1801, %v3301
        %v3475 = vsel %vm1460, %v1804, %v3303
        %v3476 = vsel %vm1460, %v1809, %v3305
        %v3477 = vsel %vm1460, %v1812, %v3307
        %v3478 = vsel %vm1460, %v1817, %v3309
        %v3479 = vsel %vm1460, %v1820, %v3311
        %v3480 = vsel %vm1460, %v1825, %v3313
        %v3481 = vsel %vm1460, %v1828, %v3315
        %v3482 = vsel %vm1460, %v1833, %v3317
        %v3483 = vsel %vm1460, %v1836, %v3319
        %v3484 = vsel %vm1460, %v1841, %v3321
        %v3485 = vsel %vm1460, %v1844, %v3323
        %v3486 = vsel %vm1460, %v1849, %v3325
        %v3487 = vsel %vm1460, %v1852, %v3327
        %vm3488 = vcmask 523264
        %v3489 = vsel %vm3488, %v3472, %v3361
        %v3490 = vsel %vm3488, %v3473, %v3363
        %v3491 = vsel %vm3488, %v3474, %v3365
        %v3492 = vsel %vm3488, %v3475, %v3367
        %v3493 = vsel %vm3488, %v3476, %v3369
        %v3494 = vsel %vm3488, %v3477, %v3371
        %v3495 = vsel %vm3488, %v3478, %v3373
        %v3496 = vsel %vm3488, %v3479, %v3375
        %v3497 = vsel %vm3488, %v3480, %v3377
        %v3498 = vsel %vm3488, %v3481, %v3379
        %v3499 = vsel %vm3488, %v3482, %v3381
        %v3500 = vsel %vm3488, %v3483, %v3383
        %v3501 = vsel %vm3488, %v3484, %v3385
        %v3502 = vsel %vm3488, %v3485, %v3387
        %v3503 = vsel %vm3488, %v3486, %v3389
        %v3504 = vsel %vm3488, %v3487, %v3391
        %vm3505 = vcmask 785408
        %v3506 = vsel %vm3505, %v3489, %v3425
        %v3507 = vsel %vm3505, %v3490, %v3427
        %v3508 = vsel %vm3505, %v3491, %v3429
        %v3509 = vsel %vm3505, %v3492, %v3431
        %v3510 = vsel %vm3505, %v3493, %v3433
        %v3511 = vsel %vm3505, %v3494, %v3435
        %v3512 = vsel %vm3505, %v3495, %v3437
        %v3513 = vsel %vm3505, %v3496, %v3439
        %v3514 = vsel %vm3505, %v3497, %v3441
        %v3515 = vsel %vm3505, %v3498, %v3443
        %v3516 = vsel %vm3505, %v3499, %v3445
        %v3517 = vsel %vm3505, %v3500, %v3447
        %v3518 = vsel %vm3505, %v3501, %v3449
        %v3519 = vsel %vm3505, %v3502, %v3451
        %v3520 = vsel %vm3505, %v3503, %v3453
        %v3521 = vsel %vm3505, %v3504, %v3455
        %v3523 = vsel %vm1460, %v1372, 0
        %v3526 = vsel %vm1460, %v1375, 0
        %v3529 = vsel %vm1460, %v1378, 0
        %v3532 = vsel %vm1460, %v1381, 0
        %v3535 = vsel %vm1460, %v1384, 0
        %v3538 = vsel %vm1460, %v1387, 0
        %v3541 = vsel %vm1460, %v1390, 0
        %v3544 = vsel %vm1460, %v1393, 0
        %v3547 = vsel %vm1460, %v1373, 0
        %v3550 = vsel %vm1460, %v1376, 0
        %v3553 = vsel %vm1460, %v1379, 0
        %v3556 = vsel %vm1460, %v1382, 0
        %v3559 = vsel %vm1460, %v1385, 0
        %v3562 = vsel %vm1460, %v1388, 0
        %v3565 = vsel %vm1460, %v1391, 0
        %v3568 = vsel %vm1460, %v1394, 0
        %3570 = vmatprep.subr.bf16.mxu0 0
        %3571 = vmatpush1.bf16.xpose.msra.mxu0 %v3547
        %3572 = vmatprep.subr.bf16.mxu0 0
        %3573 = vmatpush1.bf16.xpose.msra.mxu0 %v3550
        %3574 = vmatprep.subr.bf16.mxu0 0
        %3575 = vmatpush1.bf16.xpose.msra.mxu0 %v3553
        %3576 = vmatprep.subr.bf16.mxu0 0
        %3577 = vmatpush1.bf16.xpose.msra.mxu0 %v3556
        %3578 = vmatprep.subr.bf16.mxu0 0
        %3579 = vmatpush1.bf16.xpose.msra.mxu0 %v3559
        %3580 = vmatprep.subr.bf16.mxu0 0
        %3581 = vmatpush1.bf16.xpose.msra.mxu0 %v3562
        %3582 = vmatprep.subr.bf16.mxu0 0
        %3583 = vmatpush1.bf16.xpose.msra.mxu0 %v3565
        %3584 = vmatprep.subr.bf16.mxu0 0
        %3585 = vmatpush1.bf16.xpose.msra.mxu0 %v3568
        %3586 = vmatprep.subr.bf16.mxu0 0
        %3587 = vmatpush1.bf16.xpose.msra.mxu0 0
        %3588 = vmatprep.subr.bf16.mxu0 0
        %3589 = vmatpush1.bf16.xpose.msra.mxu0 0
        %3590 = vmatprep.subr.bf16.mxu0 0
        %3591 = vmatpush1.bf16.xpose.msra.mxu0 0
        %3592 = vmatprep.subr.bf16.mxu0 0
        %3593 = vmatpush1.bf16.xpose.msra.mxu0 0
        %3594 = vmatprep.subr.bf16.mxu0 0
        %3595 = vmatpush1.bf16.xpose.msra.mxu0 0
        %3596 = vmatprep.subr.bf16.mxu0 0
        %3597 = vmatpush1.bf16.xpose.msra.mxu0 0
        %3598 = vmatprep.subr.bf16.mxu0 0
        %3599 = vmatpush1.bf16.xpose.msra.mxu0 0
        %3600 = vmatprep.subr.bf16.mxu0 0
        %3601 = vmatpush1.bf16.xpose.msra.mxu0 0
        %3602 = vmatprep.mubr.bf16.mxu0 0
        %3603 = vmatmul.mubr.bf16.gmra.mrb[0].mxu0 %v3523
        %v3604 = vpop.f32.mrb[0].mxu0
        %v3605 = vadd.f32 %v1444, %v3604
        %v3606 = vpop.f32.mrb[0].mxu0
        %v3607 = vpop.f32.mrb[0].mxu0
        %v3608 = vadd.f32 %v1445, %v3607
        %v3609 = vpop.f32.mrb[0].mxu0
        %3610 = vmatprep.mubr.bf16.mxu0 0
        %3611 = vmatmul.mubr.bf16.gmra.mrb[0].mxu0 %v3526
        %v3612 = vpop.f32.mrb[0].mxu0
        %v3613 = vadd.f32 %v1446, %v3612
        %v3614 = vpop.f32.mrb[0].mxu0
        %v3615 = vpop.f32.mrb[0].mxu0
        %v3616 = vadd.f32 %v1447, %v3615
        %v3617 = vpop.f32.mrb[0].mxu0
        %3618 = vmatprep.mubr.bf16.mxu0 0
        %3619 = vmatmul.mubr.bf16.gmra.mrb[0].mxu0 %v3529
        %v3620 = vpop.f32.mrb[0].mxu0
        %v3621 = vadd.f32 %v1448, %v3620
        %v3622 = vpop.f32.mrb[0].mxu0
        %v3623 = vpop.f32.mrb[0].mxu0
        %v3624 = vadd.f32 %v1449, %v3623
        %v3625 = vpop.f32.mrb[0].mxu0
        %3626 = vmatprep.mubr.bf16.mxu0 0
        %3627 = vmatmul.mubr.bf16.gmra.mrb[0].mxu0 %v3532
        %v3628 = vpop.f32.mrb[0].mxu0
        %v3629 = vadd.f32 %v1450, %v3628
        %v3630 = vpop.f32.mrb[0].mxu0
        %v3631 = vpop.f32.mrb[0].mxu0
        %v3632 = vadd.f32 %v1451, %v3631
        %v3633 = vpop.f32.mrb[0].mxu0
        %3634 = vmatprep.mubr.bf16.mxu0 0
        %3635 = vmatmul.mubr.bf16.gmra.mrb[0].mxu0 %v3535
        %v3636 = vpop.f32.mrb[0].mxu0
        %v3637 = vadd.f32 %v1452, %v3636
        %v3638 = vpop.f32.mrb[0].mxu0
        %v3639 = vpop.f32.mrb[0].mxu0
        %v3640 = vadd.f32 %v1453, %v3639
        %v3641 = vpop.f32.mrb[0].mxu0
        %3642 = vmatprep.mubr.bf16.mxu0 0
        %3643 = vmatmul.mubr.bf16.gmra.mrb[0].mxu0 %v3538
        %v3644 = vpop.f32.mrb[0].mxu0
        %v3645 = vadd.f32 %v1454, %v3644
        %v3646 = vpop.f32.mrb[0].mxu0
        %v3647 = vpop.f32.mrb[0].mxu0
        %v3648 = vadd.f32 %v1455, %v3647
        %v3649 = vpop.f32.mrb[0].mxu0
        %3650 = vmatprep.mubr.bf16.mxu0 0
        %3651 = vmatmul.mubr.bf16.gmra.mrb[0].mxu0 %v3541
        %v3652 = vpop.f32.mrb[0].mxu0
        %v3653 = vadd.f32 %v1456, %v3652
        %v3654 = vpop.f32.mrb[0].mxu0
        %v3655 = vpop.f32.mrb[0].mxu0
        %v3656 = vadd.f32 %v1457, %v3655
        %v3657 = vpop.f32.mrb[0].mxu0
        %3658 = vmatprep.mubr.bf16.mxu0 0
        %3659 = vmatmul.mubr.bf16.gmra.mrb[0].mxu0 %v3544
        %v3660 = vpop.f32.mrb[0].mxu0
        %v3661 = vadd.f32 %v1458, %v3660
        %v3662 = vpop.f32.mrb[0].mxu0
        %v3663 = vpop.f32.mrb[0].mxu0
        %v3664 = vadd.f32 %v1459, %v3663
        %v3665 = vpop.f32.mrb[0].mxu0
        %3666 = vdwg.mxu0
        %3667 = vmax.xlane.f32.xlu0 %v3605
        %v3668 = vpop.xlane.xlu0 %3667
        %3669 = vmax.xlane.f32.xlu0 %v3608
        %v3670 = vpop.xlane.xlu0 %3669
        %3671 = vmax.xlane.f32.xlu0 %v3613
        %v3672 = vpop.xlane.xlu0 %3671
        %3673 = vmax.xlane.f32.xlu0 %v3616
        %v3674 = vpop.xlane.xlu0 %3673
        %3675 = vmax.xlane.f32.xlu0 %v3621
        %v3676 = vpop.xlane.xlu0 %3675
        %3677 = vmax.xlane.f32.xlu0 %v3624
        %v3678 = vpop.xlane.xlu0 %3677
        %3679 = vmax.xlane.f32.xlu0 %v3629
        %v3680 = vpop.xlane.xlu0 %3679
        %3681 = vmax.xlane.f32.xlu0 %v3632
        %v3682 = vpop.xlane.xlu0 %3681
        %3683 = vmax.xlane.f32.xlu0 %v3637
        %v3684 = vpop.xlane.xlu0 %3683
        %3685 = vmax.xlane.f32.xlu0 %v3640
        %v3686 = vpop.xlane.xlu0 %3685
        %3687 = vmax.xlane.f32.xlu0 %v3645
        %v3688 = vpop.xlane.xlu0 %3687
        %3689 = vmax.xlane.f32.xlu0 %v3648
        %v3690 = vpop.xlane.xlu0 %3689
        %3691 = vmax.xlane.f32.xlu0 %v3653
        %v3692 = vpop.xlane.xlu0 %3691
        %3693 = vmax.xlane.f32.xlu0 %v3656
        %v3694 = vpop.xlane.xlu0 %3693
        %3695 = vmax.xlane.f32.xlu0 %v3661
        %v3696 = vpop.xlane.xlu0 %3695
        %3697 = vmax.xlane.f32.xlu0 %v3664
        %v3698 = vpop.xlane.xlu0 %3697
        %v3699 = vsub.f32 %v3605, %v3668
        %v3700 = vsub.f32 %v3608, %v3670
        %v3701 = vsub.f32 %v3613, %v3672
        %v3702 = vsub.f32 %v3616, %v3674
        %v3703 = vsub.f32 %v3621, %v3676
        %v3704 = vsub.f32 %v3624, %v3678
        %v3705 = vsub.f32 %v3629, %v3680
        %v3706 = vsub.f32 %v3632, %v3682
        %v3707 = vsub.f32 %v3637, %v3684
        %v3708 = vsub.f32 %v3640, %v3686
        %v3709 = vsub.f32 %v3645, %v3688
        %v3710 = vsub.f32 %v3648, %v3690
        %v3711 = vsub.f32 %v3653, %v3692
        %v3712 = vsub.f32 %v3656, %v3694
        %v3713 = vsub.f32 %v3661, %v3696
        %v3714 = vsub.f32 %v3664, %v3698
        %v3715 = vmul.f32 %v3699, 1.442695
        %v3716 = vpow.pop %v3715
        %v3717 = vmul.f32 %v3700, 1.442695
        %v3718 = vpow.pop %v3717
        %v3719 = vmul.f32 %v3701, 1.442695
        %v3720 = vpow.pop %v3719
        %v3721 = vmul.f32 %v3702, 1.442695
        %v3722 = vpow.pop %v3721
        %v3723 = vmul.f32 %v3703, 1.442695
        %v3724 = vpow.pop %v3723
        %v3725 = vmul.f32 %v3704, 1.442695
        %v3726 = vpow.pop %v3725
        %v3727 = vmul.f32 %v3705, 1.442695
        %v3728 = vpow.pop %v3727
        %v3729 = vmul.f32 %v3706, 1.442695
        %v3730 = vpow.pop %v3729
        %v3731 = vmul.f32 %v3707, 1.442695
        %v3732 = vpow.pop %v3731
        %v3733 = vmul.f32 %v3708, 1.442695
        %v3734 = vpow.pop %v3733
        %v3735 = vmul.f32 %v3709, 1.442695
        %v3736 = vpow.pop %v3735
        %v3737 = vmul.f32 %v3710, 1.442695
        %v3738 = vpow.pop %v3737
        %v3739 = vmul.f32 %v3711, 1.442695
        %v3740 = vpow.pop %v3739
        %v3741 = vmul.f32 %v3712, 1.442695
        %v3742 = vpow.pop %v3741
        %v3743 = vmul.f32 %v3713, 1.442695
        %v3744 = vpow.pop %v3743
        %v3745 = vmul.f32 %v3714, 1.442695
        %v3746 = vpow.pop %v3745
        %3747 = vadd.xlane.f32.xlu0 %v3716
        %v3748 = vpop.xlane.xlu0 %3747
        %3749 = vadd.xlane.f32.xlu0 %v3718
        %v3750 = vpop.xlane.xlu0 %3749
        %3751 = vadd.xlane.f32.xlu0 %v3720
        %v3752 = vpop.xlane.xlu0 %3751
        %3753 = vadd.xlane.f32.xlu0 %v3722
        %v3754 = vpop.xlane.xlu0 %3753
        %3755 = vadd.xlane.f32.xlu0 %v3724
        %v3756 = vpop.xlane.xlu0 %3755
        %3757 = vadd.xlane.f32.xlu0 %v3726
        %v3758 = vpop.xlane.xlu0 %3757
        %3759 = vadd.xlane.f32.xlu0 %v3728
        %v3760 = vpop.xlane.xlu0 %3759
        %3761 = vadd.xlane.f32.xlu0 %v3730
        %v3762 = vpop.xlane.xlu0 %3761
        %3763 = vadd.xlane.f32.xlu0 %v3732
        %v3764 = vpop.xlane.xlu0 %3763
        %3765 = vadd.xlane.f32.xlu0 %v3734
        %v3766 = vpop.xlane.xlu0 %3765
        %3767 = vadd.xlane.f32.xlu0 %v3736
        %v3768 = vpop.xlane.xlu0 %3767
        %3769 = vadd.xlane.f32.xlu0 %v3738
        %v3770 = vpop.xlane.xlu0 %3769
        %3771 = vadd.xlane.f32.xlu0 %v3740
        %v3772 = vpop.xlane.xlu0 %3771
        %3773 = vadd.xlane.f32.xlu0 %v3742
        %v3774 = vpop.xlane.xlu0 %3773
        %3775 = vadd.xlane.f32.xlu0 %v3744
        %v3776 = vpop.xlane.xlu0 %3775
        %3777 = vadd.xlane.f32.xlu0 %v3746
        %v3778 = vpop.xlane.xlu0 %3777
        %v3779 = vrcp.pop %v3748
        %v3780 = vrcp.pop %v3750
        %v3781 = vrcp.pop %v3752
        %v3782 = vrcp.pop %v3754
        %v3783 = vrcp.pop %v3756
        %v3784 = vrcp.pop %v3758
        %v3785 = vrcp.pop %v3760
        %v3786 = vrcp.pop %v3762
        %v3787 = vrcp.pop %v3764
        %v3788 = vrcp.pop %v3766
        %v3789 = vrcp.pop %v3768
        %v3790 = vrcp.pop %v3770
        %v3791 = vrcp.pop %v3772
        %v3792 = vrcp.pop %v3774
        %v3793 = vrcp.pop %v3776
        %v3794 = vrcp.pop %v3778
        %v3795 = vmul.f32 %v3716, %v3779
        %v3796 = vmul.f32 %v3718, %v3780
        %v3797 = vmul.f32 %v3720, %v3781
        %v3798 = vmul.f32 %v3722, %v3782
        %v3799 = vmul.f32 %v3724, %v3783
        %v3800 = vmul.f32 %v3726, %v3784
        %v3801 = vmul.f32 %v3728, %v3785
        %v3802 = vmul.f32 %v3730, %v3786
        %v3803 = vmul.f32 %v3732, %v3787
        %v3804 = vmul.f32 %v3734, %v3788
        %v3805 = vmul.f32 %v3736, %v3789
        %v3806 = vmul.f32 %v3738, %v3790
        %v3807 = vmul.f32 %v3740, %v3791
        %v3808 = vmul.f32 %v3742, %v3792
        %v3809 = vmul.f32 %v3744, %v3793
        %v3810 = vmul.f32 %v3746, %v3794
        %v3811 = vpack.c.bf16 %v3796, %v3795
        %v3812 = vpack.c.bf16 %v3798, %v3797
        %v3813 = vpack.c.bf16 %v3800, %v3799
        %v3814 = vpack.c.bf16 %v3802, %v3801
        %v3815 = vpack.c.bf16 %v3804, %v3803
        %v3816 = vpack.c.bf16 %v3806, %v3805
        %v3817 = vpack.c.bf16 %v3808, %v3807
        %v3818 = vpack.c.bf16 %v3810, %v3809
        %3819 = vmatprep.subr.bf16.mxu0 0
        %3820 = vmatpush1.bf16.msra.mxu0 %v1374
        %3821 = vmatprep.subr.bf16.mxu0 0
        %3822 = vmatpush1.bf16.msra.mxu0 %v1377
        %3823 = vmatprep.subr.bf16.mxu0 0
        %3824 = vmatpush1.bf16.msra.mxu0 %v1380
        %3825 = vmatprep.subr.bf16.mxu0 0
        %3826 = vmatpush1.bf16.msra.mxu0 %v1383
        %3827 = vmatprep.subr.bf16.mxu0 0
        %3828 = vmatpush1.bf16.msra.mxu0 %v1386
        %3829 = vmatprep.subr.bf16.mxu0 0
        %3830 = vmatpush1.bf16.msra.mxu0 %v1389
        %3831 = vmatprep.subr.bf16.mxu0 0
        %3832 = vmatpush1.bf16.msra.mxu0 %v1392
        %3833 = vmatprep.subr.bf16.mxu0 0
        %3834 = vmatpush1.bf16.msra.mxu0 %v1395
        %3835 = vmatprep.subr.bf16.mxu0 0
        %3836 = vmatpush1.bf16.msra.mxu0 0
        %3837 = vmatprep.subr.bf16.mxu0 0
        %3838 = vmatpush1.bf16.msra.mxu0 0
        %3839 = vmatprep.subr.bf16.mxu0 0
        %3840 = vmatpush1.bf16.msra.mxu0 0
        %3841 = vmatprep.subr.bf16.mxu0 0
        %3842 = vmatpush1.bf16.msra.mxu0 0
        %3843 = vmatprep.subr.bf16.mxu0 0
        %3844 = vmatpush1.bf16.msra.mxu0 0
        %3845 = vmatprep.subr.bf16.mxu0 0
        %3846 = vmatpush1.bf16.msra.mxu0 0
        %3847 = vmatprep.subr.bf16.mxu0 0
        %3848 = vmatpush1.bf16.msra.mxu0 0
        %3849 = vmatprep.subr.bf16.mxu0 0
        %3850 = vmatpush1.bf16.msra.mxu0 0
        %3851 = vmatprep.mubr.bf16.mxu0 0
        %3852 = vmatmul.mubr.bf16.gmra.mrb[0].mxu0 %v3811
        %v3853 = vpop.f32.mrb[0].mxu0
        %v3854 = vadd.f32 0.0, %v3853
        %v3855 = vpop.f32.mrb[0].mxu0
        %v3856 = vpop.f32.mrb[0].mxu0
        %v3857 = vadd.f32 0.0, %v3856
        %v3858 = vpop.f32.mrb[0].mxu0
        %3859 = vmatprep.mubr.bf16.mxu0 0
        %3860 = vmatmul.mubr.bf16.gmra.mrb[0].mxu0 %v3812
        %v3861 = vpop.f32.mrb[0].mxu0
        %v3862 = vadd.f32 0.0, %v3861
        %v3863 = vpop.f32.mrb[0].mxu0
        %v3864 = vpop.f32.mrb[0].mxu0
        %v3865 = vadd.f32 0.0, %v3864
        %v3866 = vpop.f32.mrb[0].mxu0
        %3867 = vmatprep.mubr.bf16.mxu0 0
        %3868 = vmatmul.mubr.bf16.gmra.mrb[0].mxu0 %v3813
        %v3869 = vpop.f32.mrb[0].mxu0
        %v3870 = vadd.f32 0.0, %v3869
        %v3871 = vpop.f32.mrb[0].mxu0
        %v3872 = vpop.f32.mrb[0].mxu0
        %v3873 = vadd.f32 0.0, %v3872
        %v3874 = vpop.f32.mrb[0].mxu0
        %3875 = vmatprep.mubr.bf16.mxu0 0
        %3876 = vmatmul.mubr.bf16.gmra.mrb[0].mxu0 %v3814
        %v3877 = vpop.f32.mrb[0].mxu0
        %v3878 = vadd.f32 0.0, %v3877
        %v3879 = vpop.f32.mrb[0].mxu0
        %v3880 = vpop.f32.mrb[0].mxu0
        %v3881 = vadd.f32 0.0, %v3880
        %v3882 = vpop.f32.mrb[0].mxu0
        %3883 = vmatprep.mubr.bf16.mxu0 0
        %3884 = vmatmul.mubr.bf16.gmra.mrb[0].mxu0 %v3815
        %v3885 = vpop.f32.mrb[0].mxu0
        %v3886 = vadd.f32 0.0, %v3885
        %v3887 = vpop.f32.mrb[0].mxu0
        %v3888 = vpop.f32.mrb[0].mxu0
        %v3889 = vadd.f32 0.0, %v3888
        %v3890 = vpop.f32.mrb[0].mxu0
        %3891 = vmatprep.mubr.bf16.mxu0 0
        %3892 = vmatmul.mubr.bf16.gmra.mrb[0].mxu0 %v3816
        %v3893 = vpop.f32.mrb[0].mxu0
        %v3894 = vadd.f32 0.0, %v3893
        %v3895 = vpop.f32.mrb[0].mxu0
        %v3896 = vpop.f32.mrb[0].mxu0
        %v3897 = vadd.f32 0.0, %v3896
        %v3898 = vpop.f32.mrb[0].mxu0
        %3899 = vmatprep.mubr.bf16.mxu0 0
        %3900 = vmatmul.mubr.bf16.gmra.mrb[0].mxu0 %v3817
        %v3901 = vpop.f32.mrb[0].mxu0
        %v3902 = vadd.f32 0.0, %v3901
        %v3903 = vpop.f32.mrb[0].mxu0
        %v3904 = vpop.f32.mrb[0].mxu0
        %v3905 = vadd.f32 0.0, %v3904
        %v3906 = vpop.f32.mrb[0].mxu0
        %3907 = vmatprep.mubr.bf16.mxu0 0
        %3908 = vmatmul.mubr.bf16.gmra.mrb[0].mxu0 %v3818
        %v3909 = vpop.f32.mrb[0].mxu0
        %v3910 = vadd.f32 0.0, %v3909
        %v3911 = vpop.f32.mrb[0].mxu0
        %v3912 = vpop.f32.mrb[0].mxu0
        %v3913 = vadd.f32 0.0, %v3912
        %v3914 = vpop.f32.mrb[0].mxu0
        %3915 = vdwg.mxu0
        %3924 = vrot.lane.b32.xlu0 %v1372, 96
        %v3925 = vpop.permute.xlu0 %3924
        %3926 = vrot.lane.b32.xlu0 %v1375, 96
        %v3927 = vpop.permute.xlu0 %3926
        %3928 = vrot.lane.b32.xlu0 %v1378, 96
        %v3929 = vpop.permute.xlu0 %3928
        %3930 = vrot.lane.b32.xlu0 %v1381, 96
        %v3931 = vpop.permute.xlu0 %3930
        %3932 = vrot.lane.b32.xlu0 %v1384, 96
        %v3933 = vpop.permute.xlu0 %3932
        %3934 = vrot.lane.b32.xlu0 %v1387, 96
        %v3935 = vpop.permute.xlu0 %3934
        %3936 = vrot.lane.b32.xlu0 %v1390, 96
        %v3937 = vpop.permute.xlu0 %3936
        %3938 = vrot.lane.b32.xlu0 %v1393, 96
        %v3939 = vpop.permute.xlu0 %3938
        %3948 = vrot.lane.b32.xlu0 %v1373, 96
        %v3949 = vpop.permute.xlu0 %3948
        %3950 = vrot.lane.b32.xlu0 %v1376, 96
        %v3951 = vpop.permute.xlu0 %3950
        %3952 = vrot.lane.b32.xlu0 %v1379, 96
        %v3953 = vpop.permute.xlu0 %3952
        %3954 = vrot.lane.b32.xlu0 %v1382, 96
        %v3955 = vpop.permute.xlu0 %3954
        %3956 = vrot.lane.b32.xlu0 %v1385, 96
        %v3957 = vpop.permute.xlu0 %3956
        %3958 = vrot.lane.b32.xlu0 %v1388, 96
        %v3959 = vpop.permute.xlu0 %3958
        %3960 = vrot.lane.b32.xlu0 %v1391, 96
        %v3961 = vpop.permute.xlu0 %3960
        %3962 = vrot.lane.b32.xlu0 %v1394, 96
        %v3963 = vpop.permute.xlu0 %3962
        %v3965 = vsel %vm1460, %v3925, 0
        %v3968 = vsel %vm1460, %v3927, 0
        %v3971 = vsel %vm1460, %v3929, 0
        %v3974 = vsel %vm1460, %v3931, 0
        %v3977 = vsel %vm1460, %v3933, 0
        %v3980 = vsel %vm1460, %v3935, 0
        %v3983 = vsel %vm1460, %v3937, 0
        %v3986 = vsel %vm1460, %v3939, 0
        %v3989 = vsel %vm1460, %v3949, 0
        %v3992 = vsel %vm1460, %v3951, 0
        %v3995 = vsel %vm1460, %v3953, 0
        %v3998 = vsel %vm1460, %v3955, 0
        %v4001 = vsel %vm1460, %v3957, 0
        %v4004 = vsel %vm1460, %v3959, 0
        %v4007 = vsel %vm1460, %v3961, 0
        %v4010 = vsel %vm1460, %v3963, 0
        %4012 = vmatprep.subr.bf16.mxu0 0
        %4013 = vmatpush1.bf16.xpose.msra.mxu0 %v3989
        %4014 = vmatprep.subr.bf16.mxu0 0
        %4015 = vmatpush1.bf16.xpose.msra.mxu0 %v3992
        %4016 = vmatprep.subr.bf16.mxu0 0
        %4017 = vmatpush1.bf16.xpose.msra.mxu0 %v3995
        %4018 = vmatprep.subr.bf16.mxu0 0
        %4019 = vmatpush1.bf16.xpose.msra.mxu0 %v3998
        %4020 = vmatprep.subr.bf16.mxu0 0
        %4021 = vmatpush1.bf16.xpose.msra.mxu0 %v4001
        %4022 = vmatprep.subr.bf16.mxu0 0
        %4023 = vmatpush1.bf16.xpose.msra.mxu0 %v4004
        %4024 = vmatprep.subr.bf16.mxu0 0
        %4025 = vmatpush1.bf16.xpose.msra.mxu0 %v4007
        %4026 = vmatprep.subr.bf16.mxu0 0
        %4027 = vmatpush1.bf16.xpose.msra.mxu0 %v4010
        %4028 = vmatprep.subr.bf16.mxu0 0
        %4029 = vmatpush1.bf16.xpose.msra.mxu0 0
        %4030 = vmatprep.subr.bf16.mxu0 0
        %4031 = vmatpush1.bf16.xpose.msra.mxu0 0
        %4032 = vmatprep.subr.bf16.mxu0 0
        %4033 = vmatpush1.bf16.xpose.msra.mxu0 0
        %4034 = vmatprep.subr.bf16.mxu0 0
        %4035 = vmatpush1.bf16.xpose.msra.mxu0 0
        %4036 = vmatprep.subr.bf16.mxu0 0
        %4037 = vmatpush1.bf16.xpose.msra.mxu0 0
        %4038 = vmatprep.subr.bf16.mxu0 0
        %4039 = vmatpush1.bf16.xpose.msra.mxu0 0
        %4040 = vmatprep.subr.bf16.mxu0 0
        %4041 = vmatpush1.bf16.xpose.msra.mxu0 0
        %4042 = vmatprep.subr.bf16.mxu0 0
        %4043 = vmatpush1.bf16.xpose.msra.mxu0 0
        %4044 = vmatprep.mubr.bf16.mxu0 0
        %4045 = vmatmul.mubr.bf16.gmra.mrb[0].mxu0 %v3965
        %v4046 = vpop.f32.mrb[0].mxu0
        %v4047 = vadd.f32 %v1856, %v4046
        %v4048 = vpop.f32.mrb[0].mxu0
        %v4049 = vpop.f32.mrb[0].mxu0
        %v4050 = vadd.f32 %v1857, %v4049
        %v4051 = vpop.f32.mrb[0].mxu0
        %4052 = vmatprep.mubr.bf16.mxu0 0
        %4053 = vmatmul.mubr.bf16.gmra.mrb[0].mxu0 %v3968
        %v4054 = vpop.f32.mrb[0].mxu0
        %v4055 = vadd.f32 %v1858, %v4054
        %v4056 = vpop.f32.mrb[0].mxu0
        %v4057 = vpop.f32.mrb[0].mxu0
        %v4058 = vadd.f32 %v1859, %v4057
        %v4059 = vpop.f32.mrb[0].mxu0
        %4060 = vmatprep.mubr.bf16.mxu0 0
        %4061 = vmatmul.mubr.bf16.gmra.mrb[0].mxu0 %v3971
        %v4062 = vpop.f32.mrb[0].mxu0
        %v4063 = vadd.f32 %v1860, %v4062
        %v4064 = vpop.f32.mrb[0].mxu0
        %v4065 = vpop.f32.mrb[0].mxu0
        %v4066 = vadd.f32 %v1861, %v4065
        %v4067 = vpop.f32.mrb[0].mxu0
        %4068 = vmatprep.mubr.bf16.mxu0 0
        %4069 = vmatmul.mubr.bf16.gmra.mrb[0].mxu0 %v3974
        %v4070 = vpop.f32.mrb[0].mxu0
        %v4071 = vadd.f32 %v1862, %v4070
        %v4072 = vpop.f32.mrb[0].mxu0
        %v4073 = vpop.f32.mrb[0].mxu0
        %v4074 = vadd.f32 %v1863, %v4073
        %v4075 = vpop.f32.mrb[0].mxu0
        %4076 = vmatprep.mubr.bf16.mxu0 0
        %4077 = vmatmul.mubr.bf16.gmra.mrb[0].mxu0 %v3977
        %v4078 = vpop.f32.mrb[0].mxu0
        %v4079 = vadd.f32 %v1864, %v4078
        %v4080 = vpop.f32.mrb[0].mxu0
        %v4081 = vpop.f32.mrb[0].mxu0
        %v4082 = vadd.f32 %v1865, %v4081
        %v4083 = vpop.f32.mrb[0].mxu0
        %4084 = vmatprep.mubr.bf16.mxu0 0
        %4085 = vmatmul.mubr.bf16.gmra.mrb[0].mxu0 %v3980
        %v4086 = vpop.f32.mrb[0].mxu0
        %v4087 = vadd.f32 %v1866, %v4086
        %v4088 = vpop.f32.mrb[0].mxu0
        %v4089 = vpop.f32.mrb[0].mxu0
        %v4090 = vadd.f32 %v1867, %v4089
        %v4091 = vpop.f32.mrb[0].mxu0
        %4092 = vmatprep.mubr.bf16.mxu0 0
        %4093 = vmatmul.mubr.bf16.gmra.mrb[0].mxu0 %v3983
        %v4094 = vpop.f32.mrb[0].mxu0
        %v4095 = vadd.f32 %v1868, %v4094
        %v4096 = vpop.f32.mrb[0].mxu0
        %v4097 = vpop.f32.mrb[0].mxu0
        %v4098 = vadd.f32 %v1869, %v4097
        %v4099 = vpop.f32.mrb[0].mxu0
        %4100 = vmatprep.mubr.bf16.mxu0 0
        %4101 = vmatmul.mubr.bf16.gmra.mrb[0].mxu0 %v3986
        %v4102 = vpop.f32.mrb[0].mxu0
        %v4103 = vadd.f32 %v1870, %v4102
        %v4104 = vpop.f32.mrb[0].mxu0
        %v4105 = vpop.f32.mrb[0].mxu0
        %v4106 = vadd.f32 %v1871, %v4105
        %v4107 = vpop.f32.mrb[0].mxu0
        %4108 = vdwg.mxu0
        %4109 = vmax.xlane.f32.xlu0 %v4047
        %v4110 = vpop.xlane.xlu0 %4109
        %4111 = vmax.xlane.f32.xlu0 %v4050
        %v4112 = vpop.xlane.xlu0 %4111
        %4113 = vmax.xlane.f32.xlu0 %v4055
        %v4114 = vpop.xlane.xlu0 %4113
        %4115 = vmax.xlane.f32.xlu0 %v4058
        %v4116 = vpop.xlane.xlu0 %4115
        %4117 = vmax.xlane.f32.xlu0 %v4063
        %v4118 = vpop.xlane.xlu0 %4117
        %4119 = vmax.xlane.f32.xlu0 %v4066
        %v4120 = vpop.xlane.xlu0 %4119
        %4121 = vmax.xlane.f32.xlu0 %v4071
        %v4122 = vpop.xlane.xlu0 %4121
        %4123 = vmax.xlane.f32.xlu0 %v4074
        %v4124 = vpop.xlane.xlu0 %4123
        %4125 = vmax.xlane.f32.xlu0 %v4079
        %v4126 = vpop.xlane.xlu0 %4125
        %4127 = vmax.xlane.f32.xlu0 %v4082
        %v4128 = vpop.xlane.xlu0 %4127
        %4129 = vmax.xlane.f32.xlu0 %v4087
        %v4130 = vpop.xlane.xlu0 %4129
        %4131 = vmax.xlane.f32.xlu0 %v4090
        %v4132 = vpop.xlane.xlu0 %4131
        %4133 = vmax.xlane.f32.xlu0 %v4095
        %v4134 = vpop.xlane.xlu0 %4133
        %4135 = vmax.xlane.f32.xlu0 %v4098
        %v4136 = vpop.xlane.xlu0 %4135
        %4137 = vmax.xlane.f32.xlu0 %v4103
        %v4138 = vpop.xlane.xlu0 %4137
        %4139 = vmax.xlane.f32.xlu0 %v4106
        %v4140 = vpop.xlane.xlu0 %4139
        %v4141 = vsub.f32 %v4047, %v4110
        %v4142 = vsub.f32 %v4050, %v4112
        %v4143 = vsub.f32 %v4055, %v4114
        %v4144 = vsub.f32 %v4058, %v4116
        %v4145 = vsub.f32 %v4063, %v4118
        %v4146 = vsub.f32 %v4066, %v4120
        %v4147 = vsub.f32 %v4071, %v4122
        %v4148 = vsub.f32 %v4074, %v4124
        %v4149 = vsub.f32 %v4079, %v4126
        %v4150 = vsub.f32 %v4082, %v4128
        %v4151 = vsub.f32 %v4087, %v4130
        %v4152 = vsub.f32 %v4090, %v4132
        %v4153 = vsub.f32 %v4095, %v4134
        %v4154 = vsub.f32 %v4098, %v4136
        %v4155 = vsub.f32 %v4103, %v4138
        %v4156 = vsub.f32 %v4106, %v4140
        %v4157 = vmul.f32 %v4141, 1.442695
        %v4158 = vpow.pop %v4157
        %v4159 = vmul.f32 %v4142, 1.442695
        %v4160 = vpow.pop %v4159
        %v4161 = vmul.f32 %v4143, 1.442695
        %v4162 = vpow.pop %v4161
        %v4163 = vmul.f32 %v4144, 1.442695
        %v4164 = vpow.pop %v4163
        %v4165 = vmul.f32 %v4145, 1.442695
        %v4166 = vpow.pop %v4165
        %v4167 = vmul.f32 %v4146, 1.442695
        %v4168 = vpow.pop %v4167
        %v4169 = vmul.f32 %v4147, 1.442695
        %v4170 = vpow.pop %v4169
        %v4171 = vmul.f32 %v4148, 1.442695
        %v4172 = vpow.pop %v4171
        %v4173 = vmul.f32 %v4149, 1.442695
        %v4174 = vpow.pop %v4173
        %v4175 = vmul.f32 %v4150, 1.442695
        %v4176 = vpow.pop %v4175
        %v4177 = vmul.f32 %v4151, 1.442695
        %v4178 = vpow.pop %v4177
        %v4179 = vmul.f32 %v4152, 1.442695
        %v4180 = vpow.pop %v4179
        %v4181 = vmul.f32 %v4153, 1.442695
        %v4182 = vpow.pop %v4181
        %v4183 = vmul.f32 %v4154, 1.442695
        %v4184 = vpow.pop %v4183
        %v4185 = vmul.f32 %v4155, 1.442695
        %v4186 = vpow.pop %v4185
        %v4187 = vmul.f32 %v4156, 1.442695
        %v4188 = vpow.pop %v4187
        %4189 = vadd.xlane.f32.xlu0 %v4158
        %v4190 = vpop.xlane.xlu0 %4189
        %4191 = vadd.xlane.f32.xlu0 %v4160
        %v4192 = vpop.xlane.xlu0 %4191
        %4193 = vadd.xlane.f32.xlu0 %v4162
        %v4194 = vpop.xlane.xlu0 %4193
        %4195 = vadd.xlane.f32.xlu0 %v4164
        %v4196 = vpop.xlane.xlu0 %4195
        %4197 = vadd.xlane.f32.xlu0 %v4166
        %v4198 = vpop.xlane.xlu0 %4197
        %4199 = vadd.xlane.f32.xlu0 %v4168
        %v4200 = vpop.xlane.xlu0 %4199
        %4201 = vadd.xlane.f32.xlu0 %v4170
        %v4202 = vpop.xlane.xlu0 %4201
        %4203 = vadd.xlane.f32.xlu0 %v4172
        %v4204 = vpop.xlane.xlu0 %4203
        %4205 = vadd.xlane.f32.xlu0 %v4174
        %v4206 = vpop.xlane.xlu0 %4205
        %4207 = vadd.xlane.f32.xlu0 %v4176
        %v4208 = vpop.xlane.xlu0 %4207
        %4209 = vadd.xlane.f32.xlu0 %v4178
        %v4210 = vpop.xlane.xlu0 %4209
        %4211 = vadd.xlane.f32.xlu0 %v4180
        %v4212 = vpop.xlane.xlu0 %4211
        %4213 = vadd.xlane.f32.xlu0 %v4182
        %v4214 = vpop.xlane.xlu0 %4213
        %4215 = vadd.xlane.f32.xlu0 %v4184
        %v4216 = vpop.xlane.xlu0 %4215
        %4217 = vadd.xlane.f32.xlu0 %v4186
        %v4218 = vpop.xlane.xlu0 %4217
        %4219 = vadd.xlane.f32.xlu0 %v4188
        %v4220 = vpop.xlane.xlu0 %4219
        %v4221 = vrcp.pop %v4190
        %v4222 = vrcp.pop %v4192
        %v4223 = vrcp.pop %v4194
        %v4224 = vrcp.pop %v4196
        %v4225 = vrcp.pop %v4198
        %v4226 = vrcp.pop %v4200
        %v4227 = vrcp.pop %v4202
        %v4228 = vrcp.pop %v4204
        %v4229 = vrcp.pop %v4206
        %v4230 = vrcp.pop %v4208
        %v4231 = vrcp.pop %v4210
        %v4232 = vrcp.pop %v4212
        %v4233 = vrcp.pop %v4214
        %v4234 = vrcp.pop %v4216
        %v4235 = vrcp.pop %v4218
        %v4236 = vrcp.pop %v4220
        %v4237 = vmul.f32 %v4158, %v4221
        %v4238 = vmul.f32 %v4160, %v4222
        %v4239 = vmul.f32 %v4162, %v4223
        %v4240 = vmul.f32 %v4164, %v4224
        %v4241 = vmul.f32 %v4166, %v4225
        %v4242 = vmul.f32 %v4168, %v4226
        %v4243 = vmul.f32 %v4170, %v4227
        %v4244 = vmul.f32 %v4172, %v4228
        %v4245 = vmul.f32 %v4174, %v4229
        %v4246 = vmul.f32 %v4176, %v4230
        %v4247 = vmul.f32 %v4178, %v4231
        %v4248 = vmul.f32 %v4180, %v4232
        %v4249 = vmul.f32 %v4182, %v4233
        %v4250 = vmul.f32 %v4184, %v4234
        %v4251 = vmul.f32 %v4186, %v4235
        %v4252 = vmul.f32 %v4188, %v4236
        %v4253 = vpack.c.bf16 %v4238, %v4237
        %v4254 = vpack.c.bf16 %v4240, %v4239
        %v4255 = vpack.c.bf16 %v4242, %v4241
        %v4256 = vpack.c.bf16 %v4244, %v4243
        %v4257 = vpack.c.bf16 %v4246, %v4245
        %v4258 = vpack.c.bf16 %v4248, %v4247
        %v4259 = vpack.c.bf16 %v4250, %v4249
        %v4260 = vpack.c.bf16 %v4252, %v4251
        %4269 = vrot.lane.b32.xlu0 %v1374, 96
        %v4270 = vpop.permute.xlu0 %4269
        %4271 = vrot.lane.b32.xlu0 %v1377, 96
        %v4272 = vpop.permute.xlu0 %4271
        %4273 = vrot.lane.b32.xlu0 %v1380, 96
        %v4274 = vpop.permute.xlu0 %4273
        %4275 = vrot.lane.b32.xlu0 %v1383, 96
        %v4276 = vpop.permute.xlu0 %4275
        %4277 = vrot.lane.b32.xlu0 %v1386, 96
        %v4278 = vpop.permute.xlu0 %4277
        %4279 = vrot.lane.b32.xlu0 %v1389, 96
        %v4280 = vpop.permute.xlu0 %4279
        %4281 = vrot.lane.b32.xlu0 %v1392, 96
        %v4282 = vpop.permute.xlu0 %4281
        %4283 = vrot.lane.b32.xlu0 %v1395, 96
        %v4284 = vpop.permute.xlu0 %4283
        %4293 = vmatprep.subr.bf16.mxu0 0
        %4294 = vmatpush1.bf16.msra.mxu0 %v4270
        %4295 = vmatprep.subr.bf16.mxu0 0
        %4296 = vmatpush1.bf16.msra.mxu0 %v4272
        %4297 = vmatprep.subr.bf16.mxu0 0
        %4298 = vmatpush1.bf16.msra.mxu0 %v4274
        %4299 = vmatprep.subr.bf16.mxu0 0
        %4300 = vmatpush1.bf16.msra.mxu0 %v4276
        %4301 = vmatprep.subr.bf16.mxu0 0
        %4302 = vmatpush1.bf16.msra.mxu0 %v4278
        %4303 = vmatprep.subr.bf16.mxu0 0
        %4304 = vmatpush1.bf16.msra.mxu0 %v4280
        %4305 = vmatprep.subr.bf16.mxu0 0
        %4306 = vmatpush1.bf16.msra.mxu0 %v4282
        %4307 = vmatprep.subr.bf16.mxu0 0
        %4308 = vmatpush1.bf16.msra.mxu0 %v4284
        %4309 = vmatprep.subr.bf16.mxu0 0
        %4310 = vmatpush1.bf16.msra.mxu0 0
        %4311 = vmatprep.subr.bf16.mxu0 0
        %4312 = vmatpush1.bf16.msra.mxu0 0
        %4313 = vmatprep.subr.bf16.mxu0 0
        %4314 = vmatpush1.bf16.msra.mxu0 0
        %4315 = vmatprep.subr.bf16.mxu0 0
        %4316 = vmatpush1.bf16.msra.mxu0 0
        %4317 = vmatprep.subr.bf16.mxu0 0
        %4318 = vmatpush1.bf16.msra.mxu0 0
        %4319 = vmatprep.subr.bf16.mxu0 0
        %4320 = vmatpush1.bf16.msra.mxu0 0
        %4321 = vmatprep.subr.bf16.mxu0 0
        %4322 = vmatpush1.bf16.msra.mxu0 0
        %4323 = vmatprep.subr.bf16.mxu0 0
        %4324 = vmatpush1.bf16.msra.mxu0 0
        %4325 = vmatprep.mubr.bf16.mxu0 0
        %4326 = vmatmul.mubr.bf16.gmra.mrb[0].mxu0 %v4253
        %v4327 = vpop.f32.mrb[0].mxu0
        %v4328 = vadd.f32 0.0, %v4327
        %v4329 = vpop.f32.mrb[0].mxu0
        %v4330 = vpop.f32.mrb[0].mxu0
        %v4331 = vadd.f32 0.0, %v4330
        %v4332 = vpop.f32.mrb[0].mxu0
        %4333 = vmatprep.mubr.bf16.mxu0 0
        %4334 = vmatmul.mubr.bf16.gmra.mrb[0].mxu0 %v4254
        %v4335 = vpop.f32.mrb[0].mxu0
        %v4336 = vadd.f32 0.0, %v4335
        %v4337 = vpop.f32.mrb[0].mxu0
        %v4338 = vpop.f32.mrb[0].mxu0
        %v4339 = vadd.f32 0.0, %v4338
        %v4340 = vpop.f32.mrb[0].mxu0
        %4341 = vmatprep.mubr.bf16.mxu0 0
        %4342 = vmatmul.mubr.bf16.gmra.mrb[0].mxu0 %v4255
        %v4343 = vpop.f32.mrb[0].mxu0
        %v4344 = vadd.f32 0.0, %v4343
        %v4345 = vpop.f32.mrb[0].mxu0
        %v4346 = vpop.f32.mrb[0].mxu0
        %v4347 = vadd.f32 0.0, %v4346
        %v4348 = vpop.f32.mrb[0].mxu0
        %4349 = vmatprep.mubr.bf16.mxu0 0
        %4350 = vmatmul.mubr.bf16.gmra.mrb[0].mxu0 %v4256
        %v4351 = vpop.f32.mrb[0].mxu0
        %v4352 = vadd.f32 0.0, %v4351
        %v4353 = vpop.f32.mrb[0].mxu0
        %v4354 = vpop.f32.mrb[0].mxu0
        %v4355 = vadd.f32 0.0, %v4354
        %v4356 = vpop.f32.mrb[0].mxu0
        %4357 = vmatprep.mubr.bf16.mxu0 0
        %4358 = vmatmul.mubr.bf16.gmra.mrb[0].mxu0 %v4257
        %v4359 = vpop.f32.mrb[0].mxu0
        %v4360 = vadd.f32 0.0, %v4359
        %v4361 = vpop.f32.mrb[0].mxu0
        %v4362 = vpop.f32.mrb[0].mxu0
        %v4363 = vadd.f32 0.0, %v4362
        %v4364 = vpop.f32.mrb[0].mxu0
        %4365 = vmatprep.mubr.bf16.mxu0 0
        %4366 = vmatmul.mubr.bf16.gmra.mrb[0].mxu0 %v4258
        %v4367 = vpop.f32.mrb[0].mxu0
        %v4368 = vadd.f32 0.0, %v4367
        %v4369 = vpop.f32.mrb[0].mxu0
        %v4370 = vpop.f32.mrb[0].mxu0
        %v4371 = vadd.f32 0.0, %v4370
        %v4372 = vpop.f32.mrb[0].mxu0
        %4373 = vmatprep.mubr.bf16.mxu0 0
        %4374 = vmatmul.mubr.bf16.gmra.mrb[0].mxu0 %v4259
        %v4375 = vpop.f32.mrb[0].mxu0
        %v4376 = vadd.f32 0.0, %v4375
        %v4377 = vpop.f32.mrb[0].mxu0
        %v4378 = vpop.f32.mrb[0].mxu0
        %v4379 = vadd.f32 0.0, %v4378
        %v4380 = vpop.f32.mrb[0].mxu0
        %4381 = vmatprep.mubr.bf16.mxu0 0
        %4382 = vmatmul.mubr.bf16.gmra.mrb[0].mxu0 %v4260
        %v4383 = vpop.f32.mrb[0].mxu0
        %v4384 = vadd.f32 0.0, %v4383
        %v4385 = vpop.f32.mrb[0].mxu0
        %v4386 = vpop.f32.mrb[0].mxu0
        %v4387 = vadd.f32 0.0, %v4386
        %v4388 = vpop.f32.mrb[0].mxu0
        %4389 = vdwg.mxu0
        %4390 = vrot.lane.b32.xlu0 %v1372, 64
        %v4391 = vpop.permute.xlu0 %4390
        %4392 = vrot.lane.b32.xlu0 %v1375, 64
        %v4393 = vpop.permute.xlu0 %4392
        %4394 = vrot.lane.b32.xlu0 %v1378, 64
        %v4395 = vpop.permute.xlu0 %4394
        %4396 = vrot.lane.b32.xlu0 %v1381, 64
        %v4397 = vpop.permute.xlu0 %4396
        %4398 = vrot.lane.b32.xlu0 %v1384, 64
        %v4399 = vpop.permute.xlu0 %4398
        %4400 = vrot.lane.b32.xlu0 %v1387, 64
        %v4401 = vpop.permute.xlu0 %4400
        %4402 = vrot.lane.b32.xlu0 %v1390, 64
        %v4403 = vpop.permute.xlu0 %4402
        %4404 = vrot.lane.b32.xlu0 %v1393, 64
        %v4405 = vpop.permute.xlu0 %4404
        %4406 = vrot.lane.b32.xlu0 %v1373, 64
        %v4407 = vpop.permute.xlu0 %4406
        %4408 = vrot.lane.b32.xlu0 %v1376, 64
        %v4409 = vpop.permute.xlu0 %4408
        %4410 = vrot.lane.b32.xlu0 %v1379, 64
        %v4411 = vpop.permute.xlu0 %4410
        %4412 = vrot.lane.b32.xlu0 %v1382, 64
        %v4413 = vpop.permute.xlu0 %4412
        %4414 = vrot.lane.b32.xlu0 %v1385, 64
        %v4415 = vpop.permute.xlu0 %4414
        %4416 = vrot.lane.b32.xlu0 %v1388, 64
        %v4417 = vpop.permute.xlu0 %4416
        %4418 = vrot.lane.b32.xlu0 %v1391, 64
        %v4419 = vpop.permute.xlu0 %4418
        %4420 = vrot.lane.b32.xlu0 %v1394, 64
        %v4421 = vpop.permute.xlu0 %4420
        %v4423 = vsel %vm1460, %v4391, 0
        %v4426 = vsel %vm1460, %v4393, 0
        %v4429 = vsel %vm1460, %v4395, 0
        %v4432 = vsel %vm1460, %v4397, 0
        %v4435 = vsel %vm1460, %v4399, 0
        %v4438 = vsel %vm1460, %v4401, 0
        %v4441 = vsel %vm1460, %v4403, 0
        %v4444 = vsel %vm1460, %v4405, 0
        %v4447 = vsel %vm1460, %v4407, 0
        %v4450 = vsel %vm1460, %v4409, 0
        %v4453 = vsel %vm1460, %v4411, 0
        %v4456 = vsel %vm1460, %v4413, 0
        %v4459 = vsel %vm1460, %v4415, 0
        %v4462 = vsel %vm1460, %v4417, 0
        %v4465 = vsel %vm1460, %v4419, 0
        %v4468 = vsel %vm1460, %v4421, 0
        %4470 = vmatprep.subr.bf16.mxu0 0
        %4471 = vmatpush1.bf16.xpose.msra.mxu0 %v4447
        %4472 = vmatprep.subr.bf16.mxu0 0
        %4473 = vmatpush1.bf16.xpose.msra.mxu0 %v4450
        %4474 = vmatprep.subr.bf16.mxu0 0
        %4475 = vmatpush1.bf16.xpose.msra.mxu0 %v4453
        %4476 = vmatprep.subr.bf16.mxu0 0
        %4477 = vmatpush1.bf16.xpose.msra.mxu0 %v4456
        %4478 = vmatprep.subr.bf16.mxu0 0
        %4479 = vmatpush1.bf16.xpose.msra.mxu0 %v4459
        %4480 = vmatprep.subr.bf16.mxu0 0
        %4481 = vmatpush1.bf16.xpose.msra.mxu0 %v4462
        %4482 = vmatprep.subr.bf16.mxu0 0
        %4483 = vmatpush1.bf16.xpose.msra.mxu0 %v4465
        %4484 = vmatprep.subr.bf16.mxu0 0
        %4485 = vmatpush1.bf16.xpose.msra.mxu0 %v4468
        %4486 = vmatprep.subr.bf16.mxu0 0
        %4487 = vmatpush1.bf16.xpose.msra.mxu0 0
        %4488 = vmatprep.subr.bf16.mxu0 0
        %4489 = vmatpush1.bf16.xpose.msra.mxu0 0
        %4490 = vmatprep.subr.bf16.mxu0 0
        %4491 = vmatpush1.bf16.xpose.msra.mxu0 0
        %4492 = vmatprep.subr.bf16.mxu0 0
        %4493 = vmatpush1.bf16.xpose.msra.mxu0 0
        %4494 = vmatprep.subr.bf16.mxu0 0
        %4495 = vmatpush1.bf16.xpose.msra.mxu0 0
        %4496 = vmatprep.subr.bf16.mxu0 0
        %4497 = vmatpush1.bf16.xpose.msra.mxu0 0
        %4498 = vmatprep.subr.bf16.mxu0 0
        %4499 = vmatpush1.bf16.xpose.msra.mxu0 0
        %4500 = vmatprep.subr.bf16.mxu0 0
        %4501 = vmatpush1.bf16.xpose.msra.mxu0 0
        %4502 = vmatprep.mubr.bf16.mxu0 0
        %4503 = vmatmul.mubr.bf16.gmra.mrb[0].mxu0 %v4423
        %v4504 = vpop.f32.mrb[0].mxu0
        %v4505 = vadd.f32 %v2347, %v4504
        %v4506 = vpop.f32.mrb[0].mxu0
        %v4507 = vpop.f32.mrb[0].mxu0
        %v4508 = vadd.f32 %v2348, %v4507
        %v4509 = vpop.f32.mrb[0].mxu0
        %4510 = vmatprep.mubr.bf16.mxu0 0
        %4511 = vmatmul.mubr.bf16.gmra.mrb[0].mxu0 %v4426
        %v4512 = vpop.f32.mrb[0].mxu0
        %v4513 = vadd.f32 %v2349, %v4512
        %v4514 = vpop.f32.mrb[0].mxu0
        %v4515 = vpop.f32.mrb[0].mxu0
        %v4516 = vadd.f32 %v2350, %v4515
        %v4517 = vpop.f32.mrb[0].mxu0
        %4518 = vmatprep.mubr.bf16.mxu0 0
        %4519 = vmatmul.mubr.bf16.gmra.mrb[0].mxu0 %v4429
        %v4520 = vpop.f32.mrb[0].mxu0
        %v4521 = vadd.f32 %v2351, %v4520
        %v4522 = vpop.f32.mrb[0].mxu0
        %v4523 = vpop.f32.mrb[0].mxu0
        %v4524 = vadd.f32 %v2352, %v4523
        %v4525 = vpop.f32.mrb[0].mxu0
        %4526 = vmatprep.mubr.bf16.mxu0 0
        %4527 = vmatmul.mubr.bf16.gmra.mrb[0].mxu0 %v4432
        %v4528 = vpop.f32.mrb[0].mxu0
        %v4529 = vadd.f32 %v2353, %v4528
        %v4530 = vpop.f32.mrb[0].mxu0
        %v4531 = vpop.f32.mrb[0].mxu0
        %v4532 = vadd.f32 %v2354, %v4531
        %v4533 = vpop.f32.mrb[0].mxu0
        %4534 = vmatprep.mubr.bf16.mxu0 0
        %4535 = vmatmul.mubr.bf16.gmra.mrb[0].mxu0 %v4435
        %v4536 = vpop.f32.mrb[0].mxu0
        %v4537 = vadd.f32 %v2355, %v4536
        %v4538 = vpop.f32.mrb[0].mxu0
        %v4539 = vpop.f32.mrb[0].mxu0
        %v4540 = vadd.f32 %v2356, %v4539
        %v4541 = vpop.f32.mrb[0].mxu0
        %4542 = vmatprep.mubr.bf16.mxu0 0
        %4543 = vmatmul.mubr.bf16.gmra.mrb[0].mxu0 %v4438
        %v4544 = vpop.f32.mrb[0].mxu0
        %v4545 = vadd.f32 %v2357, %v4544
        %v4546 = vpop.f32.mrb[0].mxu0
        %v4547 = vpop.f32.mrb[0].mxu0
        %v4548 = vadd.f32 %v2358, %v4547
        %v4549 = vpop.f32.mrb[0].mxu0
        %4550 = vmatprep.mubr.bf16.mxu0 0
        %4551 = vmatmul.mubr.bf16.gmra.mrb[0].mxu0 %v4441
        %v4552 = vpop.f32.mrb[0].mxu0
        %v4553 = vadd.f32 %v2359, %v4552
        %v4554 = vpop.f32.mrb[0].mxu0
        %v4555 = vpop.f32.mrb[0].mxu0
        %v4556 = vadd.f32 %v2360, %v4555
        %v4557 = vpop.f32.mrb[0].mxu0
        %4558 = vmatprep.mubr.bf16.mxu0 0
        %4559 = vmatmul.mubr.bf16.gmra.mrb[0].mxu0 %v4444
        %v4560 = vpop.f32.mrb[0].mxu0
        %v4561 = vadd.f32 %v2361, %v4560
        %v4562 = vpop.f32.mrb[0].mxu0
        %v4563 = vpop.f32.mrb[0].mxu0
        %v4564 = vadd.f32 %v2362, %v4563
        %v4565 = vpop.f32.mrb[0].mxu0
        %4566 = vdwg.mxu0
        %4567 = vmax.xlane.f32.xlu0 %v4505
        %v4568 = vpop.xlane.xlu0 %4567
        %4569 = vmax.xlane.f32.xlu0 %v4508
        %v4570 = vpop.xlane.xlu0 %4569
        %4571 = vmax.xlane.f32.xlu0 %v4513
        %v4572 = vpop.xlane.xlu0 %4571
        %4573 = vmax.xlane.f32.xlu0 %v4516
        %v4574 = vpop.xlane.xlu0 %4573
        %4575 = vmax.xlane.f32.xlu0 %v4521
        %v4576 = vpop.xlane.xlu0 %4575
        %4577 = vmax.xlane.f32.xlu0 %v4524
        %v4578 = vpop.xlane.xlu0 %4577
        %4579 = vmax.xlane.f32.xlu0 %v4529
        %v4580 = vpop.xlane.xlu0 %4579
        %4581 = vmax.xlane.f32.xlu0 %v4532
        %v4582 = vpop.xlane.xlu0 %4581
        %4583 = vmax.xlane.f32.xlu0 %v4537
        %v4584 = vpop.xlane.xlu0 %4583
        %4585 = vmax.xlane.f32.xlu0 %v4540
        %v4586 = vpop.xlane.xlu0 %4585
        %4587 = vmax.xlane.f32.xlu0 %v4545
        %v4588 = vpop.xlane.xlu0 %4587
        %4589 = vmax.xlane.f32.xlu0 %v4548
        %v4590 = vpop.xlane.xlu0 %4589
        %4591 = vmax.xlane.f32.xlu0 %v4553
        %v4592 = vpop.xlane.xlu0 %4591
        %4593 = vmax.xlane.f32.xlu0 %v4556
        %v4594 = vpop.xlane.xlu0 %4593
        %4595 = vmax.xlane.f32.xlu0 %v4561
        %v4596 = vpop.xlane.xlu0 %4595
        %4597 = vmax.xlane.f32.xlu0 %v4564
        %v4598 = vpop.xlane.xlu0 %4597
        %v4599 = vsub.f32 %v4505, %v4568
        %v4600 = vsub.f32 %v4508, %v4570
        %v4601 = vsub.f32 %v4513, %v4572
        %v4602 = vsub.f32 %v4516, %v4574
        %v4603 = vsub.f32 %v4521, %v4576
        %v4604 = vsub.f32 %v4524, %v4578
        %v4605 = vsub.f32 %v4529, %v4580
        %v4606 = vsub.f32 %v4532, %v4582
        %v4607 = vsub.f32 %v4537, %v4584
        %v4608 = vsub.f32 %v4540, %v4586
        %v4609 = vsub.f32 %v4545, %v4588
        %v4610 = vsub.f32 %v4548, %v4590
        %v4611 = vsub.f32 %v4553, %v4592
        %v4612 = vsub.f32 %v4556, %v4594
        %v4613 = vsub.f32 %v4561, %v4596
        %v4614 = vsub.f32 %v4564, %v4598
        %v4615 = vmul.f32 %v4599, 1.442695
        %v4616 = vpow.pop %v4615
        %v4617 = vmul.f32 %v4600, 1.442695
        %v4618 = vpow.pop %v4617
        %v4619 = vmul.f32 %v4601, 1.442695
        %v4620 = vpow.pop %v4619
        %v4621 = vmul.f32 %v4602, 1.442695
        %v4622 = vpow.pop %v4621
        %v4623 = vmul.f32 %v4603, 1.442695
        %v4624 = vpow.pop %v4623
        %v4625 = vmul.f32 %v4604, 1.442695
        %v4626 = vpow.pop %v4625
        %v4627 = vmul.f32 %v4605, 1.442695
        %v4628 = vpow.pop %v4627
        %v4629 = vmul.f32 %v4606, 1.442695
        %v4630 = vpow.pop %v4629
        %v4631 = vmul.f32 %v4607, 1.442695
        %v4632 = vpow.pop %v4631
        %v4633 = vmul.f32 %v4608, 1.442695
        %v4634 = vpow.pop %v4633
        %v4635 = vmul.f32 %v4609, 1.442695
        %v4636 = vpow.pop %v4635
        %v4637 = vmul.f32 %v4610, 1.442695
        %v4638 = vpow.pop %v4637
        %v4639 = vmul.f32 %v4611, 1.442695
        %v4640 = vpow.pop %v4639
        %v4641 = vmul.f32 %v4612, 1.442695
        %v4642 = vpow.pop %v4641
        %v4643 = vmul.f32 %v4613, 1.442695
        %v4644 = vpow.pop %v4643
        %v4645 = vmul.f32 %v4614, 1.442695
        %v4646 = vpow.pop %v4645
        %4647 = vadd.xlane.f32.xlu0 %v4616
        %v4648 = vpop.xlane.xlu0 %4647
        %4649 = vadd.xlane.f32.xlu0 %v4618
        %v4650 = vpop.xlane.xlu0 %4649
        %4651 = vadd.xlane.f32.xlu0 %v4620
        %v4652 = vpop.xlane.xlu0 %4651
        %4653 = vadd.xlane.f32.xlu0 %v4622
        %v4654 = vpop.xlane.xlu0 %4653
        %4655 = vadd.xlane.f32.xlu0 %v4624
        %v4656 = vpop.xlane.xlu0 %4655
        %4657 = vadd.xlane.f32.xlu0 %v4626
        %v4658 = vpop.xlane.xlu0 %4657
        %4659 = vadd.xlane.f32.xlu0 %v4628
        %v4660 = vpop.xlane.xlu0 %4659
        %4661 = vadd.xlane.f32.xlu0 %v4630
        %v4662 = vpop.xlane.xlu0 %4661
        %4663 = vadd.xlane.f32.xlu0 %v4632
        %v4664 = vpop.xlane.xlu0 %4663
        %4665 = vadd.xlane.f32.xlu0 %v4634
        %v4666 = vpop.xlane.xlu0 %4665
        %4667 = vadd.xlane.f32.xlu0 %v4636
        %v4668 = vpop.xlane.xlu0 %4667
        %4669 = vadd.xlane.f32.xlu0 %v4638
        %v4670 = vpop.xlane.xlu0 %4669
        %4671 = vadd.xlane.f32.xlu0 %v4640
        %v4672 = vpop.xlane.xlu0 %4671
        %4673 = vadd.xlane.f32.xlu0 %v4642
        %v4674 = vpop.xlane.xlu0 %4673
        %4675 = vadd.xlane.f32.xlu0 %v4644
        %v4676 = vpop.xlane.xlu0 %4675
        %4677 = vadd.xlane.f32.xlu0 %v4646
        %v4678 = vpop.xlane.xlu0 %4677
        %v4679 = vrcp.pop %v4648
        %v4680 = vrcp.pop %v4650
        %v4681 = vrcp.pop %v4652
        %v4682 = vrcp.pop %v4654
        %v4683 = vrcp.pop %v4656
        %v4684 = vrcp.pop %v4658
        %v4685 = vrcp.pop %v4660
        %v4686 = vrcp.pop %v4662
        %v4687 = vrcp.pop %v4664
        %v4688 = vrcp.pop %v4666
        %v4689 = vrcp.pop %v4668
        %v4690 = vrcp.pop %v4670
        %v4691 = vrcp.pop %v4672
        %v4692 = vrcp.pop %v4674
        %v4693 = vrcp.pop %v4676
        %v4694 = vrcp.pop %v4678
        %v4695 = vmul.f32 %v4616, %v4679
        %v4696 = vmul.f32 %v4618, %v4680
        %v4697 = vmul.f32 %v4620, %v4681
        %v4698 = vmul.f32 %v4622, %v4682
        %v4699 = vmul.f32 %v4624, %v4683
        %v4700 = vmul.f32 %v4626, %v4684
        %v4701 = vmul.f32 %v4628, %v4685
        %v4702 = vmul.f32 %v4630, %v4686
        %v4703 = vmul.f32 %v4632, %v4687
        %v4704 = vmul.f32 %v4634, %v4688
        %v4705 = vmul.f32 %v4636, %v4689
        %v4706 = vmul.f32 %v4638, %v4690
        %v4707 = vmul.f32 %v4640, %v4691
        %v4708 = vmul.f32 %v4642, %v4692
        %v4709 = vmul.f32 %v4644, %v4693
        %v4710 = vmul.f32 %v4646, %v4694
        %v4711 = vpack.c.bf16 %v4696, %v4695
        %v4712 = vpack.c.bf16 %v4698, %v4697
        %v4713 = vpack.c.bf16 %v4700, %v4699
        %v4714 = vpack.c.bf16 %v4702, %v4701
        %v4715 = vpack.c.bf16 %v4704, %v4703
        %v4716 = vpack.c.bf16 %v4706, %v4705
        %v4717 = vpack.c.bf16 %v4708, %v4707
        %v4718 = vpack.c.bf16 %v4710, %v4709
        %4719 = vrot.lane.b32.xlu0 %v1374, 64
        %v4720 = vpop.permute.xlu0 %4719
        %4721 = vrot.lane.b32.xlu0 %v1377, 64
        %v4722 = vpop.permute.xlu0 %4721
        %4723 = vrot.lane.b32.xlu0 %v1380, 64
        %v4724 = vpop.permute.xlu0 %4723
        %4725 = vrot.lane.b32.xlu0 %v1383, 64
        %v4726 = vpop.permute.xlu0 %4725
        %4727 = vrot.lane.b32.xlu0 %v1386, 64
        %v4728 = vpop.permute.xlu0 %4727
        %4729 = vrot.lane.b32.xlu0 %v1389, 64
        %v4730 = vpop.permute.xlu0 %4729
        %4731 = vrot.lane.b32.xlu0 %v1392, 64
        %v4732 = vpop.permute.xlu0 %4731
        %4733 = vrot.lane.b32.xlu0 %v1395, 64
        %v4734 = vpop.permute.xlu0 %4733
        %4743 = vmatprep.subr.bf16.mxu0 0
        %4744 = vmatpush1.bf16.msra.mxu0 %v4720
        %4745 = vmatprep.subr.bf16.mxu0 0
        %4746 = vmatpush1.bf16.msra.mxu0 %v4722
        %4747 = vmatprep.subr.bf16.mxu0 0
        %4748 = vmatpush1.bf16.msra.mxu0 %v4724
        %4749 = vmatprep.subr.bf16.mxu0 0
        %4750 = vmatpush1.bf16.msra.mxu0 %v4726
        %4751 = vmatprep.subr.bf16.mxu0 0
        %4752 = vmatpush1.bf16.msra.mxu0 %v4728
        %4753 = vmatprep.subr.bf16.mxu0 0
        %4754 = vmatpush1.bf16.msra.mxu0 %v4730
        %4755 = vmatprep.subr.bf16.mxu0 0
        %4756 = vmatpush1.bf16.msra.mxu0 %v4732
        %4757 = vmatprep.subr.bf16.mxu0 0
        %4758 = vmatpush1.bf16.msra.mxu0 %v4734
        %4759 = vmatprep.subr.bf16.mxu0 0
        %4760 = vmatpush1.bf16.msra.mxu0 0
        %4761 = vmatprep.subr.bf16.mxu0 0
        %4762 = vmatpush1.bf16.msra.mxu0 0
        %4763 = vmatprep.subr.bf16.mxu0 0
        %4764 = vmatpush1.bf16.msra.mxu0 0
        %4765 = vmatprep.subr.bf16.mxu0 0
        %4766 = vmatpush1.bf16.msra.mxu0 0
        %4767 = vmatprep.subr.bf16.mxu0 0
        %4768 = vmatpush1.bf16.msra.mxu0 0
        %4769 = vmatprep.subr.bf16.mxu0 0
        %4770 = vmatpush1.bf16.msra.mxu0 0
        %4771 = vmatprep.subr.bf16.mxu0 0
        %4772 = vmatpush1.bf16.msra.mxu0 0
        %4773 = vmatprep.subr.bf16.mxu0 0
        %4774 = vmatpush1.bf16.msra.mxu0 0
        %4775 = vmatprep.mubr.bf16.mxu0 0
        %4776 = vmatmul.mubr.bf16.gmra.mrb[0].mxu0 %v4711
        %v4777 = vpop.f32.mrb[0].mxu0
        %v4778 = vadd.f32 0.0, %v4777
        %v4779 = vpop.f32.mrb[0].mxu0
        %v4780 = vpop.f32.mrb[0].mxu0
        %v4781 = vadd.f32 0.0, %v4780
        %v4782 = vpop.f32.mrb[0].mxu0
        %4783 = vmatprep.mubr.bf16.mxu0 0
        %4784 = vmatmul.mubr.bf16.gmra.mrb[0].mxu0 %v4712
        %v4785 = vpop.f32.mrb[0].mxu0
        %v4786 = vadd.f32 0.0, %v4785
        %v4787 = vpop.f32.mrb[0].mxu0
        %v4788 = vpop.f32.mrb[0].mxu0
        %v4789 = vadd.f32 0.0, %v4788
        %v4790 = vpop.f32.mrb[0].mxu0
        %4791 = vmatprep.mubr.bf16.mxu0 0
        %4792 = vmatmul.mubr.bf16.gmra.mrb[0].mxu0 %v4713
        %v4793 = vpop.f32.mrb[0].mxu0
        %v4794 = vadd.f32 0.0, %v4793
        %v4795 = vpop.f32.mrb[0].mxu0
        %v4796 = vpop.f32.mrb[0].mxu0
        %v4797 = vadd.f32 0.0, %v4796
        %v4798 = vpop.f32.mrb[0].mxu0
        %4799 = vmatprep.mubr.bf16.mxu0 0
        %4800 = vmatmul.mubr.bf16.gmra.mrb[0].mxu0 %v4714
        %v4801 = vpop.f32.mrb[0].mxu0
        %v4802 = vadd.f32 0.0, %v4801
        %v4803 = vpop.f32.mrb[0].mxu0
        %v4804 = vpop.f32.mrb[0].mxu0
        %v4805 = vadd.f32 0.0, %v4804
        %v4806 = vpop.f32.mrb[0].mxu0
        %4807 = vmatprep.mubr.bf16.mxu0 0
        %4808 = vmatmul.mubr.bf16.gmra.mrb[0].mxu0 %v4715
        %v4809 = vpop.f32.mrb[0].mxu0
        %v4810 = vadd.f32 0.0, %v4809
        %v4811 = vpop.f32.mrb[0].mxu0
        %v4812 = vpop.f32.mrb[0].mxu0
        %v4813 = vadd.f32 0.0, %v4812
        %v4814 = vpop.f32.mrb[0].mxu0
        %4815 = vmatprep.mubr.bf16.mxu0 0
        %4816 = vmatmul.mubr.bf16.gmra.mrb[0].mxu0 %v4716
        %v4817 = vpop.f32.mrb[0].mxu0
        %v4818 = vadd.f32 0.0, %v4817
        %v4819 = vpop.f32.mrb[0].mxu0
        %v4820 = vpop.f32.mrb[0].mxu0
        %v4821 = vadd.f32 0.0, %v4820
        %v4822 = vpop.f32.mrb[0].mxu0
        %4823 = vmatprep.mubr.bf16.mxu0 0
        %4824 = vmatmul.mubr.bf16.gmra.mrb[0].mxu0 %v4717
        %v4825 = vpop.f32.mrb[0].mxu0
        %v4826 = vadd.f32 0.0, %v4825
        %v4827 = vpop.f32.mrb[0].mxu0
        %v4828 = vpop.f32.mrb[0].mxu0
        %v4829 = vadd.f32 0.0, %v4828
        %v4830 = vpop.f32.mrb[0].mxu0
        %4831 = vmatprep.mubr.bf16.mxu0 0
        %4832 = vmatmul.mubr.bf16.gmra.mrb[0].mxu0 %v4718
        %v4833 = vpop.f32.mrb[0].mxu0
        %v4834 = vadd.f32 0.0, %v4833
        %v4835 = vpop.f32.mrb[0].mxu0
        %v4836 = vpop.f32.mrb[0].mxu0
        %v4837 = vadd.f32 0.0, %v4836
        %v4838 = vpop.f32.mrb[0].mxu0
        %4839 = vdwg.mxu0
        %4840 = vrot.lane.b32.xlu0 %v1372, 32
        %v4841 = vpop.permute.xlu0 %4840
        %4842 = vrot.lane.b32.xlu0 %v1375, 32
        %v4843 = vpop.permute.xlu0 %4842
        %4844 = vrot.lane.b32.xlu0 %v1378, 32
        %v4845 = vpop.permute.xlu0 %4844
        %4846 = vrot.lane.b32.xlu0 %v1381, 32
        %v4847 = vpop.permute.xlu0 %4846
        %4848 = vrot.lane.b32.xlu0 %v1384, 32
        %v4849 = vpop.permute.xlu0 %4848
        %4850 = vrot.lane.b32.xlu0 %v1387, 32
        %v4851 = vpop.permute.xlu0 %4850
        %4852 = vrot.lane.b32.xlu0 %v1390, 32
        %v4853 = vpop.permute.xlu0 %4852
        %4854 = vrot.lane.b32.xlu0 %v1393, 32
        %v4855 = vpop.permute.xlu0 %4854
        %4856 = vrot.lane.b32.xlu0 %v1373, 32
        %v4857 = vpop.permute.xlu0 %4856
        %4858 = vrot.lane.b32.xlu0 %v1376, 32
        %v4859 = vpop.permute.xlu0 %4858
        %4860 = vrot.lane.b32.xlu0 %v1379, 32
        %v4861 = vpop.permute.xlu0 %4860
        %4862 = vrot.lane.b32.xlu0 %v1382, 32
        %v4863 = vpop.permute.xlu0 %4862
        %4864 = vrot.lane.b32.xlu0 %v1385, 32
        %v4865 = vpop.permute.xlu0 %4864
        %4866 = vrot.lane.b32.xlu0 %v1388, 32
        %v4867 = vpop.permute.xlu0 %4866
        %4868 = vrot.lane.b32.xlu0 %v1391, 32
        %v4869 = vpop.permute.xlu0 %4868
        %4870 = vrot.lane.b32.xlu0 %v1394, 32
        %v4871 = vpop.permute.xlu0 %4870
        %v4873 = vsel %vm1460, %v4841, 0
        %v4876 = vsel %vm1460, %v4843, 0
        %v4879 = vsel %vm1460, %v4845, 0
        %v4882 = vsel %vm1460, %v4847, 0
        %v4885 = vsel %vm1460, %v4849, 0
        %v4888 = vsel %vm1460, %v4851, 0
        %v4891 = vsel %vm1460, %v4853, 0
        %v4894 = vsel %vm1460, %v4855, 0
        %v4897 = vsel %vm1460, %v4857, 0
        %v4900 = vsel %vm1460, %v4859, 0
        %v4903 = vsel %vm1460, %v4861, 0
        %v4906 = vsel %vm1460, %v4863, 0
        %v4909 = vsel %vm1460, %v4865, 0
        %v4912 = vsel %vm1460, %v4867, 0
        %v4915 = vsel %vm1460, %v4869, 0
        %v4918 = vsel %vm1460, %v4871, 0
        %4920 = vmatprep.subr.bf16.mxu0 0
        %4921 = vmatpush1.bf16.xpose.msra.mxu0 %v4897
        %4922 = vmatprep.subr.bf16.mxu0 0
        %4923 = vmatpush1.bf16.xpose.msra.mxu0 %v4900
        %4924 = vmatprep.subr.bf16.mxu0 0
        %4925 = vmatpush1.bf16.xpose.msra.mxu0 %v4903
        %4926 = vmatprep.subr.bf16.mxu0 0
        %4927 = vmatpush1.bf16.xpose.msra.mxu0 %v4906
        %4928 = vmatprep.subr.bf16.mxu0 0
        %4929 = vmatpush1.bf16.xpose.msra.mxu0 %v4909
        %4930 = vmatprep.subr.bf16.mxu0 0
        %4931 = vmatpush1.bf16.xpose.msra.mxu0 %v4912
        %4932 = vmatprep.subr.bf16.mxu0 0
        %4933 = vmatpush1.bf16.xpose.msra.mxu0 %v4915
        %4934 = vmatprep.subr.bf16.mxu0 0
        %4935 = vmatpush1.bf16.xpose.msra.mxu0 %v4918
        %4936 = vmatprep.subr.bf16.mxu0 0
        %4937 = vmatpush1.bf16.xpose.msra.mxu0 0
        %4938 = vmatprep.subr.bf16.mxu0 0
        %4939 = vmatpush1.bf16.xpose.msra.mxu0 0
        %4940 = vmatprep.subr.bf16.mxu0 0
        %4941 = vmatpush1.bf16.xpose.msra.mxu0 0
        %4942 = vmatprep.subr.bf16.mxu0 0
        %4943 = vmatpush1.bf16.xpose.msra.mxu0 0
        %4944 = vmatprep.subr.bf16.mxu0 0
        %4945 = vmatpush1.bf16.xpose.msra.mxu0 0
        %4946 = vmatprep.subr.bf16.mxu0 0
        %4947 = vmatpush1.bf16.xpose.msra.mxu0 0
        %4948 = vmatprep.subr.bf16.mxu0 0
        %4949 = vmatpush1.bf16.xpose.msra.mxu0 0
        %4950 = vmatprep.subr.bf16.mxu0 0
        %4951 = vmatpush1.bf16.xpose.msra.mxu0 0
        %4952 = vmatprep.mubr.bf16.mxu0 0
        %4953 = vmatmul.mubr.bf16.gmra.mrb[0].mxu0 %v4873
        %v4954 = vpop.f32.mrb[0].mxu0
        %v4955 = vadd.f32 %v2814, %v4954
        %v4956 = vpop.f32.mrb[0].mxu0
        %v4957 = vpop.f32.mrb[0].mxu0
        %v4958 = vadd.f32 %v2815, %v4957
        %v4959 = vpop.f32.mrb[0].mxu0
        %4960 = vmatprep.mubr.bf16.mxu0 0
        %4961 = vmatmul.mubr.bf16.gmra.mrb[0].mxu0 %v4876
        %v4962 = vpop.f32.mrb[0].mxu0
        %v4963 = vadd.f32 %v2816, %v4962
        %v4964 = vpop.f32.mrb[0].mxu0
        %v4965 = vpop.f32.mrb[0].mxu0
        %v4966 = vadd.f32 %v2817, %v4965
        %v4967 = vpop.f32.mrb[0].mxu0
        %4968 = vmatprep.mubr.bf16.mxu0 0
        %4969 = vmatmul.mubr.bf16.gmra.mrb[0].mxu0 %v4879
        %v4970 = vpop.f32.mrb[0].mxu0
        %v4971 = vadd.f32 %v2818, %v4970
        %v4972 = vpop.f32.mrb[0].mxu0
        %v4973 = vpop.f32.mrb[0].mxu0
        %v4974 = vadd.f32 %v2819, %v4973
        %v4975 = vpop.f32.mrb[0].mxu0
        %4976 = vmatprep.mubr.bf16.mxu0 0
        %4977 = vmatmul.mubr.bf16.gmra.mrb[0].mxu0 %v4882
        %v4978 = vpop.f32.mrb[0].mxu0
        %v4979 = vadd.f32 %v2820, %v4978
        %v4980 = vpop.f32.mrb[0].mxu0
        %v4981 = vpop.f32.mrb[0].mxu0
        %v4982 = vadd.f32 %v2821, %v4981
        %v4983 = vpop.f32.mrb[0].mxu0
        %4984 = vmatprep.mubr.bf16.mxu0 0
        %4985 = vmatmul.mubr.bf16.gmra.mrb[0].mxu0 %v4885
        %v4986 = vpop.f32.mrb[0].mxu0
        %v4987 = vadd.f32 %v2822, %v4986
        %v4988 = vpop.f32.mrb[0].mxu0
        %v4989 = vpop.f32.mrb[0].mxu0
        %v4990 = vadd.f32 %v2823, %v4989
        %v4991 = vpop.f32.mrb[0].mxu0
        %4992 = vmatprep.mubr.bf16.mxu0 0
        %4993 = vmatmul.mubr.bf16.gmra.mrb[0].mxu0 %v4888
        %v4994 = vpop.f32.mrb[0].mxu0
        %v4995 = vadd.f32 %v2824, %v4994
        %v4996 = vpop.f32.mrb[0].mxu0
        %v4997 = vpop.f32.mrb[0].mxu0
        %v4998 = vadd.f32 %v2825, %v4997
        %v4999 = vpop.f32.mrb[0].mxu0
        %5000 = vmatprep.mubr.bf16.mxu0 0
        %5001 = vmatmul.mubr.bf16.gmra.mrb[0].mxu0 %v4891
        %v5002 = vpop.f32.mrb[0].mxu0
        %v5003 = vadd.f32 %v2826, %v5002
        %v5004 = vpop.f32.mrb[0].mxu0
        %v5005 = vpop.f32.mrb[0].mxu0
        %v5006 = vadd.f32 %v2827, %v5005
        %v5007 = vpop.f32.mrb[0].mxu0
        %5008 = vmatprep.mubr.bf16.mxu0 0
        %5009 = vmatmul.mubr.bf16.gmra.mrb[0].mxu0 %v4894
        %v5010 = vpop.f32.mrb[0].mxu0
        %v5011 = vadd.f32 %v2828, %v5010
        %v5012 = vpop.f32.mrb[0].mxu0
        %v5013 = vpop.f32.mrb[0].mxu0
        %v5014 = vadd.f32 %v2829, %v5013
        %v5015 = vpop.f32.mrb[0].mxu0
        %5016 = vdwg.mxu0
        %5017 = vmax.xlane.f32.xlu0 %v4955
        %v5018 = vpop.xlane.xlu0 %5017
        %5019 = vmax.xlane.f32.xlu0 %v4958
        %v5020 = vpop.xlane.xlu0 %5019
        %5021 = vmax.xlane.f32.xlu0 %v4963
        %v5022 = vpop.xlane.xlu0 %5021
        %5023 = vmax.xlane.f32.xlu0 %v4966
        %v5024 = vpop.xlane.xlu0 %5023
        %5025 = vmax.xlane.f32.xlu0 %v4971
        %v5026 = vpop.xlane.xlu0 %5025
        %5027 = vmax.xlane.f32.xlu0 %v4974
        %v5028 = vpop.xlane.xlu0 %5027
        %5029 = vmax.xlane.f32.xlu0 %v4979
        %v5030 = vpop.xlane.xlu0 %5029
        %5031 = vmax.xlane.f32.xlu0 %v4982
        %v5032 = vpop.xlane.xlu0 %5031
        %5033 = vmax.xlane.f32.xlu0 %v4987
        %v5034 = vpop.xlane.xlu0 %5033
        %5035 = vmax.xlane.f32.xlu0 %v4990
        %v5036 = vpop.xlane.xlu0 %5035
        %5037 = vmax.xlane.f32.xlu0 %v4995
        %v5038 = vpop.xlane.xlu0 %5037
        %5039 = vmax.xlane.f32.xlu0 %v4998
        %v5040 = vpop.xlane.xlu0 %5039
        %5041 = vmax.xlane.f32.xlu0 %v5003
        %v5042 = vpop.xlane.xlu0 %5041
        %5043 = vmax.xlane.f32.xlu0 %v5006
        %v5044 = vpop.xlane.xlu0 %5043
        %5045 = vmax.xlane.f32.xlu0 %v5011
        %v5046 = vpop.xlane.xlu0 %5045
        %5047 = vmax.xlane.f32.xlu0 %v5014
        %v5048 = vpop.xlane.xlu0 %5047
        %v5049 = vsub.f32 %v4955, %v5018
        %v5050 = vsub.f32 %v4958, %v5020
        %v5051 = vsub.f32 %v4963, %v5022
        %v5052 = vsub.f32 %v4966, %v5024
        %v5053 = vsub.f32 %v4971, %v5026
        %v5054 = vsub.f32 %v4974, %v5028
        %v5055 = vsub.f32 %v4979, %v5030
        %v5056 = vsub.f32 %v4982, %v5032
        %v5057 = vsub.f32 %v4987, %v5034
        %v5058 = vsub.f32 %v4990, %v5036
        %v5059 = vsub.f32 %v4995, %v5038
        %v5060 = vsub.f32 %v4998, %v5040
        %v5061 = vsub.f32 %v5003, %v5042
        %v5062 = vsub.f32 %v5006, %v5044
        %v5063 = vsub.f32 %v5011, %v5046
        %v5064 = vsub.f32 %v5014, %v5048
        %v5065 = vmul.f32 %v5049, 1.442695
        %v5066 = vpow.pop %v5065
        %v5067 = vmul.f32 %v5050, 1.442695
        %v5068 = vpow.pop %v5067
        %v5069 = vmul.f32 %v5051, 1.442695
        %v5070 = vpow.pop %v5069
        %v5071 = vmul.f32 %v5052, 1.442695
        %v5072 = vpow.pop %v5071
        %v5073 = vmul.f32 %v5053, 1.442695
        %v5074 = vpow.pop %v5073
        %v5075 = vmul.f32 %v5054, 1.442695
        %v5076 = vpow.pop %v5075
        %v5077 = vmul.f32 %v5055, 1.442695
        %v5078 = vpow.pop %v5077
        %v5079 = vmul.f32 %v5056, 1.442695
        %v5080 = vpow.pop %v5079
        %v5081 = vmul.f32 %v5057, 1.442695
        %v5082 = vpow.pop %v5081
        %v5083 = vmul.f32 %v5058, 1.442695
        %v5084 = vpow.pop %v5083
        %v5085 = vmul.f32 %v5059, 1.442695
        %v5086 = vpow.pop %v5085
        %v5087 = vmul.f32 %v5060, 1.442695
        %v5088 = vpow.pop %v5087
        %v5089 = vmul.f32 %v5061, 1.442695
        %v5090 = vpow.pop %v5089
        %v5091 = vmul.f32 %v5062, 1.442695
        %v5092 = vpow.pop %v5091
        %v5093 = vmul.f32 %v5063, 1.442695
        %v5094 = vpow.pop %v5093
        %v5095 = vmul.f32 %v5064, 1.442695
        %v5096 = vpow.pop %v5095
        %5097 = vadd.xlane.f32.xlu0 %v5066
        %v5098 = vpop.xlane.xlu0 %5097
        %5099 = vadd.xlane.f32.xlu0 %v5068
        %v5100 = vpop.xlane.xlu0 %5099
        %5101 = vadd.xlane.f32.xlu0 %v5070
        %v5102 = vpop.xlane.xlu0 %5101
        %5103 = vadd.xlane.f32.xlu0 %v5072
        %v5104 = vpop.xlane.xlu0 %5103
        %5105 = vadd.xlane.f32.xlu0 %v5074
        %v5106 = vpop.xlane.xlu0 %5105
        %5107 = vadd.xlane.f32.xlu0 %v5076
        %v5108 = vpop.xlane.xlu0 %5107
        %5109 = vadd.xlane.f32.xlu0 %v5078
        %v5110 = vpop.xlane.xlu0 %5109
        %5111 = vadd.xlane.f32.xlu0 %v5080
        %v5112 = vpop.xlane.xlu0 %5111
        %5113 = vadd.xlane.f32.xlu0 %v5082
        %v5114 = vpop.xlane.xlu0 %5113
        %5115 = vadd.xlane.f32.xlu0 %v5084
        %v5116 = vpop.xlane.xlu0 %5115
        %5117 = vadd.xlane.f32.xlu0 %v5086
        %v5118 = vpop.xlane.xlu0 %5117
        %5119 = vadd.xlane.f32.xlu0 %v5088
        %v5120 = vpop.xlane.xlu0 %5119
        %5121 = vadd.xlane.f32.xlu0 %v5090
        %v5122 = vpop.xlane.xlu0 %5121
        %5123 = vadd.xlane.f32.xlu0 %v5092
        %v5124 = vpop.xlane.xlu0 %5123
        %5125 = vadd.xlane.f32.xlu0 %v5094
        %v5126 = vpop.xlane.xlu0 %5125
        %5127 = vadd.xlane.f32.xlu0 %v5096
        %v5128 = vpop.xlane.xlu0 %5127
        %v5129 = vrcp.pop %v5098
        %v5130 = vrcp.pop %v5100
        %v5131 = vrcp.pop %v5102
        %v5132 = vrcp.pop %v5104
        %v5133 = vrcp.pop %v5106
        %v5134 = vrcp.pop %v5108
        %v5135 = vrcp.pop %v5110
        %v5136 = vrcp.pop %v5112
        %v5137 = vrcp.pop %v5114
        %v5138 = vrcp.pop %v5116
        %v5139 = vrcp.pop %v5118
        %v5140 = vrcp.pop %v5120
        %v5141 = vrcp.pop %v5122
        %v5142 = vrcp.pop %v5124
        %v5143 = vrcp.pop %v5126
        %v5144 = vrcp.pop %v5128
        %v5145 = vmul.f32 %v5066, %v5129
        %v5146 = vmul.f32 %v5068, %v5130
        %v5147 = vmul.f32 %v5070, %v5131
        %v5148 = vmul.f32 %v5072, %v5132
        %v5149 = vmul.f32 %v5074, %v5133
        %v5150 = vmul.f32 %v5076, %v5134
        %v5151 = vmul.f32 %v5078, %v5135
        %v5152 = vmul.f32 %v5080, %v5136
        %v5153 = vmul.f32 %v5082, %v5137
        %v5154 = vmul.f32 %v5084, %v5138
        %v5155 = vmul.f32 %v5086, %v5139
        %v5156 = vmul.f32 %v5088, %v5140
        %v5157 = vmul.f32 %v5090, %v5141
        %v5158 = vmul.f32 %v5092, %v5142
        %v5159 = vmul.f32 %v5094, %v5143
        %v5160 = vmul.f32 %v5096, %v5144
        %v5161 = vpack.c.bf16 %v5146, %v5145
        %v5162 = vpack.c.bf16 %v5148, %v5147
        %v5163 = vpack.c.bf16 %v5150, %v5149
        %v5164 = vpack.c.bf16 %v5152, %v5151
        %v5165 = vpack.c.bf16 %v5154, %v5153
        %v5166 = vpack.c.bf16 %v5156, %v5155
        %v5167 = vpack.c.bf16 %v5158, %v5157
        %v5168 = vpack.c.bf16 %v5160, %v5159
        %5169 = vrot.lane.b32.xlu0 %v1374, 32
        %v5170 = vpop.permute.xlu0 %5169
        %5171 = vrot.lane.b32.xlu0 %v1377, 32
        %v5172 = vpop.permute.xlu0 %5171
        %5173 = vrot.lane.b32.xlu0 %v1380, 32
        %v5174 = vpop.permute.xlu0 %5173
        %5175 = vrot.lane.b32.xlu0 %v1383, 32
        %v5176 = vpop.permute.xlu0 %5175
        %5177 = vrot.lane.b32.xlu0 %v1386, 32
        %v5178 = vpop.permute.xlu0 %5177
        %5179 = vrot.lane.b32.xlu0 %v1389, 32
        %v5180 = vpop.permute.xlu0 %5179
        %5181 = vrot.lane.b32.xlu0 %v1392, 32
        %v5182 = vpop.permute.xlu0 %5181
        %5183 = vrot.lane.b32.xlu0 %v1395, 32
        %v5184 = vpop.permute.xlu0 %5183
        %5193 = vmatprep.subr.bf16.mxu0 0
        %5194 = vmatpush1.bf16.msra.mxu0 %v5170
        %5195 = vmatprep.subr.bf16.mxu0 0
        %5196 = vmatpush1.bf16.msra.mxu0 %v5172
        %5197 = vmatprep.subr.bf16.mxu0 0
        %5198 = vmatpush1.bf16.msra.mxu0 %v5174
        %5199 = vmatprep.subr.bf16.mxu0 0
        %5200 = vmatpush1.bf16.msra.mxu0 %v5176
        %5201 = vmatprep.subr.bf16.mxu0 0
        %5202 = vmatpush1.bf16.msra.mxu0 %v5178
        %5203 = vmatprep.subr.bf16.mxu0 0
        %5204 = vmatpush1.bf16.msra.mxu0 %v5180
        %5205 = vmatprep.subr.bf16.mxu0 0
        %5206 = vmatpush1.bf16.msra.mxu0 %v5182
        %5207 = vmatprep.subr.bf16.mxu0 0
        %5208 = vmatpush1.bf16.msra.mxu0 %v5184
        %5209 = vmatprep.subr.bf16.mxu0 0
        %5210 = vmatpush1.bf16.msra.mxu0 0
        %5211 = vmatprep.subr.bf16.mxu0 0
        %5212 = vmatpush1.bf16.msra.mxu0 0
        %5213 = vmatprep.subr.bf16.mxu0 0
        %5214 = vmatpush1.bf16.msra.mxu0 0
        %5215 = vmatprep.subr.bf16.mxu0 0
        %5216 = vmatpush1.bf16.msra.mxu0 0
        %5217 = vmatprep.subr.bf16.mxu0 0
        %5218 = vmatpush1.bf16.msra.mxu0 0
        %5219 = vmatprep.subr.bf16.mxu0 0
        %5220 = vmatpush1.bf16.msra.mxu0 0
        %5221 = vmatprep.subr.bf16.mxu0 0
        %5222 = vmatpush1.bf16.msra.mxu0 0
        %5223 = vmatprep.subr.bf16.mxu0 0
        %5224 = vmatpush1.bf16.msra.mxu0 0
        %5225 = vmatprep.mubr.bf16.mxu0 0
        %5226 = vmatmul.mubr.bf16.gmra.mrb[0].mxu0 %v5161
        %v5227 = vpop.f32.mrb[0].mxu0
        %v5228 = vadd.f32 0.0, %v5227
        %v5229 = vpop.f32.mrb[0].mxu0
        %v5230 = vpop.f32.mrb[0].mxu0
        %v5231 = vadd.f32 0.0, %v5230
        %v5232 = vpop.f32.mrb[0].mxu0
        %5233 = vmatprep.mubr.bf16.mxu0 0
        %5234 = vmatmul.mubr.bf16.gmra.mrb[0].mxu0 %v5162
        %v5235 = vpop.f32.mrb[0].mxu0
        %v5236 = vadd.f32 0.0, %v5235
        %v5237 = vpop.f32.mrb[0].mxu0
        %v5238 = vpop.f32.mrb[0].mxu0
        %v5239 = vadd.f32 0.0, %v5238
        %v5240 = vpop.f32.mrb[0].mxu0
        %5241 = vmatprep.mubr.bf16.mxu0 0
        %5242 = vmatmul.mubr.bf16.gmra.mrb[0].mxu0 %v5163
        %v5243 = vpop.f32.mrb[0].mxu0
        %v5244 = vadd.f32 0.0, %v5243
        %v5245 = vpop.f32.mrb[0].mxu0
        %v5246 = vpop.f32.mrb[0].mxu0
        %v5247 = vadd.f32 0.0, %v5246
        %v5248 = vpop.f32.mrb[0].mxu0
        %5249 = vmatprep.mubr.bf16.mxu0 0
        %5250 = vmatmul.mubr.bf16.gmra.mrb[0].mxu0 %v5164
        %v5251 = vpop.f32.mrb[0].mxu0
        %v5252 = vadd.f32 0.0, %v5251
        %v5253 = vpop.f32.mrb[0].mxu0
        %v5254 = vpop.f32.mrb[0].mxu0
        %v5255 = vadd.f32 0.0, %v5254
        %v5256 = vpop.f32.mrb[0].mxu0
        %5257 = vmatprep.mubr.bf16.mxu0 0
        %5258 = vmatmul.mubr.bf16.gmra.mrb[0].mxu0 %v5165
        %v5259 = vpop.f32.mrb[0].mxu0
        %v5260 = vadd.f32 0.0, %v5259
        %v5261 = vpop.f32.mrb[0].mxu0
        %v5262 = vpop.f32.mrb[0].mxu0
        %v5263 = vadd.f32 0.0, %v5262
        %v5264 = vpop.f32.mrb[0].mxu0
        %5265 = vmatprep.mubr.bf16.mxu0 0
        %5266 = vmatmul.mubr.bf16.gmra.mrb[0].mxu0 %v5166
        %v5267 = vpop.f32.mrb[0].mxu0
        %v5268 = vadd.f32 0.0, %v5267
        %v5269 = vpop.f32.mrb[0].mxu0
        %v5270 = vpop.f32.mrb[0].mxu0
        %v5271 = vadd.f32 0.0, %v5270
        %v5272 = vpop.f32.mrb[0].mxu0
        %5273 = vmatprep.mubr.bf16.mxu0 0
        %5274 = vmatmul.mubr.bf16.gmra.mrb[0].mxu0 %v5167
        %v5275 = vpop.f32.mrb[0].mxu0
        %v5276 = vadd.f32 0.0, %v5275
        %v5277 = vpop.f32.mrb[0].mxu0
        %v5278 = vpop.f32.mrb[0].mxu0
        %v5279 = vadd.f32 0.0, %v5278
        %v5280 = vpop.f32.mrb[0].mxu0
        %5281 = vmatprep.mubr.bf16.mxu0 0
        %5282 = vmatmul.mubr.bf16.gmra.mrb[0].mxu0 %v5168
        %v5283 = vpop.f32.mrb[0].mxu0
        %v5284 = vadd.f32 0.0, %v5283
        %v5285 = vpop.f32.mrb[0].mxu0
        %v5286 = vpop.f32.mrb[0].mxu0
        %v5287 = vadd.f32 0.0, %v5286
        %v5288 = vpop.f32.mrb[0].mxu0
        %5289 = vdwg.mxu0
        %5306 = vrot.lane.b32.xlu0 %v4328, 32
        %v5307 = vpop.permute.xlu0 %5306
        %5308 = vrot.lane.b32.xlu0 %v4331, 32
        %v5309 = vpop.permute.xlu0 %5308
        %5310 = vrot.lane.b32.xlu0 %v4336, 32
        %v5311 = vpop.permute.xlu0 %5310
        %5312 = vrot.lane.b32.xlu0 %v4339, 32
        %v5313 = vpop.permute.xlu0 %5312
        %5314 = vrot.lane.b32.xlu0 %v4344, 32
        %v5315 = vpop.permute.xlu0 %5314
        %5316 = vrot.lane.b32.xlu0 %v4347, 32
        %v5317 = vpop.permute.xlu0 %5316
        %5318 = vrot.lane.b32.xlu0 %v4352, 32
        %v5319 = vpop.permute.xlu0 %5318
        %5320 = vrot.lane.b32.xlu0 %v4355, 32
        %v5321 = vpop.permute.xlu0 %5320
        %5322 = vrot.lane.b32.xlu0 %v4360, 32
        %v5323 = vpop.permute.xlu0 %5322
        %5324 = vrot.lane.b32.xlu0 %v4363, 32
        %v5325 = vpop.permute.xlu0 %5324
        %5326 = vrot.lane.b32.xlu0 %v4368, 32
        %v5327 = vpop.permute.xlu0 %5326
        %5328 = vrot.lane.b32.xlu0 %v4371, 32
        %v5329 = vpop.permute.xlu0 %5328
        %5330 = vrot.lane.b32.xlu0 %v4376, 32
        %v5331 = vpop.permute.xlu0 %5330
        %5332 = vrot.lane.b32.xlu0 %v4379, 32
        %v5333 = vpop.permute.xlu0 %5332
        %5334 = vrot.lane.b32.xlu0 %v4384, 32
        %v5335 = vpop.permute.xlu0 %5334
        %5336 = vrot.lane.b32.xlu0 %v4387, 32
        %v5337 = vpop.permute.xlu0 %5336
        %5370 = vrot.lane.b32.xlu0 %v4778, 64
        %v5371 = vpop.permute.xlu0 %5370
        %5372 = vrot.lane.b32.xlu0 %v4781, 64
        %v5373 = vpop.permute.xlu0 %5372
        %5374 = vrot.lane.b32.xlu0 %v4786, 64
        %v5375 = vpop.permute.xlu0 %5374
        %5376 = vrot.lane.b32.xlu0 %v4789, 64
        %v5377 = vpop.permute.xlu0 %5376
        %5378 = vrot.lane.b32.xlu0 %v4794, 64
        %v5379 = vpop.permute.xlu0 %5378
        %5380 = vrot.lane.b32.xlu0 %v4797, 64
        %v5381 = vpop.permute.xlu0 %5380
        %5382 = vrot.lane.b32.xlu0 %v4802, 64
        %v5383 = vpop.permute.xlu0 %5382
        %5384 = vrot.lane.b32.xlu0 %v4805, 64
        %v5385 = vpop.permute.xlu0 %5384
        %5386 = vrot.lane.b32.xlu0 %v4810, 64
        %v5387 = vpop.permute.xlu0 %5386
        %5388 = vrot.lane.b32.xlu0 %v4813, 64
        %v5389 = vpop.permute.xlu0 %5388
        %5390 = vrot.lane.b32.xlu0 %v4818, 64
        %v5391 = vpop.permute.xlu0 %5390
        %5392 = vrot.lane.b32.xlu0 %v4821, 64
        %v5393 = vpop.permute.xlu0 %5392
        %5394 = vrot.lane.b32.xlu0 %v4826, 64
        %v5395 = vpop.permute.xlu0 %5394
        %5396 = vrot.lane.b32.xlu0 %v4829, 64
        %v5397 = vpop.permute.xlu0 %5396
        %5398 = vrot.lane.b32.xlu0 %v4834, 64
        %v5399 = vpop.permute.xlu0 %5398
        %5400 = vrot.lane.b32.xlu0 %v4837, 64
        %v5401 = vpop.permute.xlu0 %5400
        %5434 = vrot.lane.b32.xlu0 %v5228, 96
        %v5435 = vpop.permute.xlu0 %5434
        %5436 = vrot.lane.b32.xlu0 %v5231, 96
        %v5437 = vpop.permute.xlu0 %5436
        %5438 = vrot.lane.b32.xlu0 %v5236, 96
        %v5439 = vpop.permute.xlu0 %5438
        %5440 = vrot.lane.b32.xlu0 %v5239, 96
        %v5441 = vpop.permute.xlu0 %5440
        %5442 = vrot.lane.b32.xlu0 %v5244, 96
        %v5443 = vpop.permute.xlu0 %5442
        %5444 = vrot.lane.b32.xlu0 %v5247, 96
        %v5445 = vpop.permute.xlu0 %5444
        %5446 = vrot.lane.b32.xlu0 %v5252, 96
        %v5447 = vpop.permute.xlu0 %5446
        %5448 = vrot.lane.b32.xlu0 %v5255, 96
        %v5449 = vpop.permute.xlu0 %5448
        %5450 = vrot.lane.b32.xlu0 %v5260, 96
        %v5451 = vpop.permute.xlu0 %5450
        %5452 = vrot.lane.b32.xlu0 %v5263, 96
        %v5453 = vpop.permute.xlu0 %5452
        %5454 = vrot.lane.b32.xlu0 %v5268, 96
        %v5455 = vpop.permute.xlu0 %5454
        %5456 = vrot.lane.b32.xlu0 %v5271, 96
        %v5457 = vpop.permute.xlu0 %5456
        %5458 = vrot.lane.b32.xlu0 %v5276, 96
        %v5459 = vpop.permute.xlu0 %5458
        %5460 = vrot.lane.b32.xlu0 %v5279, 96
        %v5461 = vpop.permute.xlu0 %5460
        %5462 = vrot.lane.b32.xlu0 %v5284, 96
        %v5463 = vpop.permute.xlu0 %5462
        %5464 = vrot.lane.b32.xlu0 %v5287, 96
        %v5465 = vpop.permute.xlu0 %5464
        %v5482 = vsel %vm1460, %v3854, %v5307
        %v5483 = vsel %vm1460, %v3857, %v5309
        %v5484 = vsel %vm1460, %v3862, %v5311
        %v5485 = vsel %vm1460, %v3865, %v5313
        %v5486 = vsel %vm1460, %v3870, %v5315
        %v5487 = vsel %vm1460, %v3873, %v5317
        %v5488 = vsel %vm1460, %v3878, %v5319
        %v5489 = vsel %vm1460, %v3881, %v5321
        %v5490 = vsel %vm1460, %v3886, %v5323
        %v5491 = vsel %vm1460, %v3889, %v5325
        %v5492 = vsel %vm1460, %v3894, %v5327
        %v5493 = vsel %vm1460, %v3897, %v5329
        %v5494 = vsel %vm1460, %v3902, %v5331
        %v5495 = vsel %vm1460, %v3905, %v5333
        %v5496 = vsel %vm1460, %v3910, %v5335
        %v5497 = vsel %vm1460, %v3913, %v5337
        %v5498 = vsel %vm3488, %v5482, %v5371
        %v5499 = vsel %vm3488, %v5483, %v5373
        %v5500 = vsel %vm3488, %v5484, %v5375
        %v5501 = vsel %vm3488, %v5485, %v5377
        %v5502 = vsel %vm3488, %v5486, %v5379
        %v5503 = vsel %vm3488, %v5487, %v5381
        %v5504 = vsel %vm3488, %v5488, %v5383
        %v5505 = vsel %vm3488, %v5489, %v5385
        %v5506 = vsel %vm3488, %v5490, %v5387
        %v5507 = vsel %vm3488, %v5491, %v5389
        %v5508 = vsel %vm3488, %v5492, %v5391
        %v5509 = vsel %vm3488, %v5493, %v5393
        %v5510 = vsel %vm3488, %v5494, %v5395
        %v5511 = vsel %vm3488, %v5495, %v5397
        %v5512 = vsel %vm3488, %v5496, %v5399
        %v5513 = vsel %vm3488, %v5497, %v5401
        %v5514 = vsel %vm3505, %v5498, %v5435
        %v5515 = vsel %vm3505, %v5499, %v5437
        %v5516 = vsel %vm3505, %v5500, %v5439
        %v5517 = vsel %vm3505, %v5501, %v5441
        %v5518 = vsel %vm3505, %v5502, %v5443
        %v5519 = vsel %vm3505, %v5503, %v5445
        %v5520 = vsel %vm3505, %v5504, %v5447
        %v5521 = vsel %vm3505, %v5505, %v5449
        %v5522 = vsel %vm3505, %v5506, %v5451
        %v5523 = vsel %vm3505, %v5507, %v5453
        %v5524 = vsel %vm3505, %v5508, %v5455
        %v5525 = vsel %vm3505, %v5509, %v5457
        %v5526 = vsel %vm3505, %v5510, %v5459
        %v5527 = vsel %vm3505, %v5511, %v5461
        %v5528 = vsel %vm3505, %v5512, %v5463
        %v5529 = vsel %vm3505, %v5513, %v5465
        %v5531 = vsel %vm1460, %v1396, 0
        %v5534 = vsel %vm1460, %v1399, 0
        %v5537 = vsel %vm1460, %v1402, 0
        %v5540 = vsel %vm1460, %v1405, 0
        %v5543 = vsel %vm1460, %v1408, 0
        %v5546 = vsel %vm1460, %v1411, 0
        %v5549 = vsel %vm1460, %v1414, 0
        %v5552 = vsel %vm1460, %v1417, 0
        %v5555 = vsel %vm1460, %v1397, 0
        %v5558 = vsel %vm1460, %v1400, 0
        %v5561 = vsel %vm1460, %v1403, 0
        %v5564 = vsel %vm1460, %v1406, 0
        %v5567 = vsel %vm1460, %v1409, 0
        %v5570 = vsel %vm1460, %v1412, 0
        %v5573 = vsel %vm1460, %v1415, 0
        %v5576 = vsel %vm1460, %v1418, 0
        %5578 = vmatprep.subr.bf16.mxu0 0
        %5579 = vmatpush1.bf16.xpose.msra.mxu0 %v5555
        %5580 = vmatprep.subr.bf16.mxu0 0
        %5581 = vmatpush1.bf16.xpose.msra.mxu0 %v5558
        %5582 = vmatprep.subr.bf16.mxu0 0
        %5583 = vmatpush1.bf16.xpose.msra.mxu0 %v5561
        %5584 = vmatprep.subr.bf16.mxu0 0
        %5585 = vmatpush1.bf16.xpose.msra.mxu0 %v5564
        %5586 = vmatprep.subr.bf16.mxu0 0
        %5587 = vmatpush1.bf16.xpose.msra.mxu0 %v5567
        %5588 = vmatprep.subr.bf16.mxu0 0
        %5589 = vmatpush1.bf16.xpose.msra.mxu0 %v5570
        %5590 = vmatprep.subr.bf16.mxu0 0
        %5591 = vmatpush1.bf16.xpose.msra.mxu0 %v5573
        %5592 = vmatprep.subr.bf16.mxu0 0
        %5593 = vmatpush1.bf16.xpose.msra.mxu0 %v5576
        %5594 = vmatprep.subr.bf16.mxu0 0
        %5595 = vmatpush1.bf16.xpose.msra.mxu0 0
        %5596 = vmatprep.subr.bf16.mxu0 0
        %5597 = vmatpush1.bf16.xpose.msra.mxu0 0
        %5598 = vmatprep.subr.bf16.mxu0 0
        %5599 = vmatpush1.bf16.xpose.msra.mxu0 0
        %5600 = vmatprep.subr.bf16.mxu0 0
        %5601 = vmatpush1.bf16.xpose.msra.mxu0 0
        %5602 = vmatprep.subr.bf16.mxu0 0
        %5603 = vmatpush1.bf16.xpose.msra.mxu0 0
        %5604 = vmatprep.subr.bf16.mxu0 0
        %5605 = vmatpush1.bf16.xpose.msra.mxu0 0
        %5606 = vmatprep.subr.bf16.mxu0 0
        %5607 = vmatpush1.bf16.xpose.msra.mxu0 0
        %5608 = vmatprep.subr.bf16.mxu0 0
        %5609 = vmatpush1.bf16.xpose.msra.mxu0 0
        %5610 = vmatprep.mubr.bf16.mxu0 0
        %5611 = vmatmul.mubr.bf16.gmra.mrb[0].mxu0 %v5531
        %v5612 = vpop.f32.mrb[0].mxu0
        %v5613 = vadd.f32 %v1444, %v5612
        %v5614 = vpop.f32.mrb[0].mxu0
        %v5615 = vpop.f32.mrb[0].mxu0
        %v5616 = vadd.f32 %v1445, %v5615
        %v5617 = vpop.f32.mrb[0].mxu0
        %5618 = vmatprep.mubr.bf16.mxu0 0
        %5619 = vmatmul.mubr.bf16.gmra.mrb[0].mxu0 %v5534
        %v5620 = vpop.f32.mrb[0].mxu0
        %v5621 = vadd.f32 %v1446, %v5620
        %v5622 = vpop.f32.mrb[0].mxu0
        %v5623 = vpop.f32.mrb[0].mxu0
        %v5624 = vadd.f32 %v1447, %v5623
        %v5625 = vpop.f32.mrb[0].mxu0
        %5626 = vmatprep.mubr.bf16.mxu0 0
        %5627 = vmatmul.mubr.bf16.gmra.mrb[0].mxu0 %v5537
        %v5628 = vpop.f32.mrb[0].mxu0
        %v5629 = vadd.f32 %v1448, %v5628
        %v5630 = vpop.f32.mrb[0].mxu0
        %v5631 = vpop.f32.mrb[0].mxu0
        %v5632 = vadd.f32 %v1449, %v5631
        %v5633 = vpop.f32.mrb[0].mxu0
        %5634 = vmatprep.mubr.bf16.mxu0 0
        %5635 = vmatmul.mubr.bf16.gmra.mrb[0].mxu0 %v5540
        %v5636 = vpop.f32.mrb[0].mxu0
        %v5637 = vadd.f32 %v1450, %v5636
        %v5638 = vpop.f32.mrb[0].mxu0
        %v5639 = vpop.f32.mrb[0].mxu0
        %v5640 = vadd.f32 %v1451, %v5639
        %v5641 = vpop.f32.mrb[0].mxu0
        %5642 = vmatprep.mubr.bf16.mxu0 0
        %5643 = vmatmul.mubr.bf16.gmra.mrb[0].mxu0 %v5543
        %v5644 = vpop.f32.mrb[0].mxu0
        %v5645 = vadd.f32 %v1452, %v5644
        %v5646 = vpop.f32.mrb[0].mxu0
        %v5647 = vpop.f32.mrb[0].mxu0
        %v5648 = vadd.f32 %v1453, %v5647
        %v5649 = vpop.f32.mrb[0].mxu0
        %5650 = vmatprep.mubr.bf16.mxu0 0
        %5651 = vmatmul.mubr.bf16.gmra.mrb[0].mxu0 %v5546
        %v5652 = vpop.f32.mrb[0].mxu0
        %v5653 = vadd.f32 %v1454, %v5652
        %v5654 = vpop.f32.mrb[0].mxu0
        %v5655 = vpop.f32.mrb[0].mxu0
        %v5656 = vadd.f32 %v1455, %v5655
        %v5657 = vpop.f32.mrb[0].mxu0
        %5658 = vmatprep.mubr.bf16.mxu0 0
        %5659 = vmatmul.mubr.bf16.gmra.mrb[0].mxu0 %v5549
        %v5660 = vpop.f32.mrb[0].mxu0
        %v5661 = vadd.f32 %v1456, %v5660
        %v5662 = vpop.f32.mrb[0].mxu0
        %v5663 = vpop.f32.mrb[0].mxu0
        %v5664 = vadd.f32 %v1457, %v5663
        %v5665 = vpop.f32.mrb[0].mxu0
        %5666 = vmatprep.mubr.bf16.mxu0 0
        %5667 = vmatmul.mubr.bf16.gmra.mrb[0].mxu0 %v5552
        %v5668 = vpop.f32.mrb[0].mxu0
        %v5669 = vadd.f32 %v1458, %v5668
        %v5670 = vpop.f32.mrb[0].mxu0
        %v5671 = vpop.f32.mrb[0].mxu0
        %v5672 = vadd.f32 %v1459, %v5671
        %v5673 = vpop.f32.mrb[0].mxu0
        %5674 = vdwg.mxu0
        %5675 = vmax.xlane.f32.xlu0 %v5613
        %v5676 = vpop.xlane.xlu0 %5675
        %5677 = vmax.xlane.f32.xlu0 %v5616
        %v5678 = vpop.xlane.xlu0 %5677
        %5679 = vmax.xlane.f32.xlu0 %v5621
        %v5680 = vpop.xlane.xlu0 %5679
        %5681 = vmax.xlane.f32.xlu0 %v5624
        %v5682 = vpop.xlane.xlu0 %5681
        %5683 = vmax.xlane.f32.xlu0 %v5629
        %v5684 = vpop.xlane.xlu0 %5683
        %5685 = vmax.xlane.f32.xlu0 %v5632
        %v5686 = vpop.xlane.xlu0 %5685
        %5687 = vmax.xlane.f32.xlu0 %v5637
        %v5688 = vpop.xlane.xlu0 %5687
        %5689 = vmax.xlane.f32.xlu0 %v5640
        %v5690 = vpop.xlane.xlu0 %5689
        %5691 = vmax.xlane.f32.xlu0 %v5645
        %v5692 = vpop.xlane.xlu0 %5691
        %5693 = vmax.xlane.f32.xlu0 %v5648
        %v5694 = vpop.xlane.xlu0 %5693
        %5695 = vmax.xlane.f32.xlu0 %v5653
        %v5696 = vpop.xlane.xlu0 %5695
        %5697 = vmax.xlane.f32.xlu0 %v5656
        %v5698 = vpop.xlane.xlu0 %5697
        %5699 = vmax.xlane.f32.xlu0 %v5661
        %v5700 = vpop.xlane.xlu0 %5699
        %5701 = vmax.xlane.f32.xlu0 %v5664
        %v5702 = vpop.xlane.xlu0 %5701
        %5703 = vmax.xlane.f32.xlu0 %v5669
        %v5704 = vpop.xlane.xlu0 %5703
        %5705 = vmax.xlane.f32.xlu0 %v5672
        %v5706 = vpop.xlane.xlu0 %5705
        %v5707 = vsub.f32 %v5613, %v5676
        %v5708 = vsub.f32 %v5616, %v5678
        %v5709 = vsub.f32 %v5621, %v5680
        %v5710 = vsub.f32 %v5624, %v5682
        %v5711 = vsub.f32 %v5629, %v5684
        %v5712 = vsub.f32 %v5632, %v5686
        %v5713 = vsub.f32 %v5637, %v5688
        %v5714 = vsub.f32 %v5640, %v5690
        %v5715 = vsub.f32 %v5645, %v5692
        %v5716 = vsub.f32 %v5648, %v5694
        %v5717 = vsub.f32 %v5653, %v5696
        %v5718 = vsub.f32 %v5656, %v5698
        %v5719 = vsub.f32 %v5661, %v5700
        %v5720 = vsub.f32 %v5664, %v5702
        %v5721 = vsub.f32 %v5669, %v5704
        %v5722 = vsub.f32 %v5672, %v5706
        %v5723 = vmul.f32 %v5707, 1.442695
        %v5724 = vpow.pop %v5723
        %v5725 = vmul.f32 %v5708, 1.442695
        %v5726 = vpow.pop %v5725
        %v5727 = vmul.f32 %v5709, 1.442695
        %v5728 = vpow.pop %v5727
        %v5729 = vmul.f32 %v5710, 1.442695
        %v5730 = vpow.pop %v5729
        %v5731 = vmul.f32 %v5711, 1.442695
        %v5732 = vpow.pop %v5731
        %v5733 = vmul.f32 %v5712, 1.442695
        %v5734 = vpow.pop %v5733
        %v5735 = vmul.f32 %v5713, 1.442695
        %v5736 = vpow.pop %v5735
        %v5737 = vmul.f32 %v5714, 1.442695
        %v5738 = vpow.pop %v5737
        %v5739 = vmul.f32 %v5715, 1.442695
        %v5740 = vpow.pop %v5739
        %v5741 = vmul.f32 %v5716, 1.442695
        %v5742 = vpow.pop %v5741
        %v5743 = vmul.f32 %v5717, 1.442695
        %v5744 = vpow.pop %v5743
        %v5745 = vmul.f32 %v5718, 1.442695
        %v5746 = vpow.pop %v5745
        %v5747 = vmul.f32 %v5719, 1.442695
        %v5748 = vpow.pop %v5747
        %v5749 = vmul.f32 %v5720, 1.442695
        %v5750 = vpow.pop %v5749
        %v5751 = vmul.f32 %v5721, 1.442695
        %v5752 = vpow.pop %v5751
        %v5753 = vmul.f32 %v5722, 1.442695
        %v5754 = vpow.pop %v5753
        %5755 = vadd.xlane.f32.xlu0 %v5724
        %v5756 = vpop.xlane.xlu0 %5755
        %5757 = vadd.xlane.f32.xlu0 %v5726
        %v5758 = vpop.xlane.xlu0 %5757
        %5759 = vadd.xlane.f32.xlu0 %v5728
        %v5760 = vpop.xlane.xlu0 %5759
        %5761 = vadd.xlane.f32.xlu0 %v5730
        %v5762 = vpop.xlane.xlu0 %5761
        %5763 = vadd.xlane.f32.xlu0 %v5732
        %v5764 = vpop.xlane.xlu0 %5763
        %5765 = vadd.xlane.f32.xlu0 %v5734
        %v5766 = vpop.xlane.xlu0 %5765
        %5767 = vadd.xlane.f32.xlu0 %v5736
        %v5768 = vpop.xlane.xlu0 %5767
        %5769 = vadd.xlane.f32.xlu0 %v5738
        %v5770 = vpop.xlane.xlu0 %5769
        %5771 = vadd.xlane.f32.xlu0 %v5740
        %v5772 = vpop.xlane.xlu0 %5771
        %5773 = vadd.xlane.f32.xlu0 %v5742
        %v5774 = vpop.xlane.xlu0 %5773
        %5775 = vadd.xlane.f32.xlu0 %v5744
        %v5776 = vpop.xlane.xlu0 %5775
        %5777 = vadd.xlane.f32.xlu0 %v5746
        %v5778 = vpop.xlane.xlu0 %5777
        %5779 = vadd.xlane.f32.xlu0 %v5748
        %v5780 = vpop.xlane.xlu0 %5779
        %5781 = vadd.xlane.f32.xlu0 %v5750
        %v5782 = vpop.xlane.xlu0 %5781
        %5783 = vadd.xlane.f32.xlu0 %v5752
        %v5784 = vpop.xlane.xlu0 %5783
        %5785 = vadd.xlane.f32.xlu0 %v5754
        %v5786 = vpop.xlane.xlu0 %5785
        %v5787 = vrcp.pop %v5756
        %v5788 = vrcp.pop %v5758
        %v5789 = vrcp.pop %v5760
        %v5790 = vrcp.pop %v5762
        %v5791 = vrcp.pop %v5764
        %v5792 = vrcp.pop %v5766
        %v5793 = vrcp.pop %v5768
        %v5794 = vrcp.pop %v5770
        %v5795 = vrcp.pop %v5772
        %v5796 = vrcp.pop %v5774
        %v5797 = vrcp.pop %v5776
        %v5798 = vrcp.pop %v5778
        %v5799 = vrcp.pop %v5780
        %v5800 = vrcp.pop %v5782
        %v5801 = vrcp.pop %v5784
        %v5802 = vrcp.pop %v5786
        %v5803 = vmul.f32 %v5724, %v5787
        %v5804 = vmul.f32 %v5726, %v5788
        %v5805 = vmul.f32 %v5728, %v5789
        %v5806 = vmul.f32 %v5730, %v5790
        %v5807 = vmul.f32 %v5732, %v5791
        %v5808 = vmul.f32 %v5734, %v5792
        %v5809 = vmul.f32 %v5736, %v5793
        %v5810 = vmul.f32 %v5738, %v5794
        %v5811 = vmul.f32 %v5740, %v5795
        %v5812 = vmul.f32 %v5742, %v5796
        %v5813 = vmul.f32 %v5744, %v5797
        %v5814 = vmul.f32 %v5746, %v5798
        %v5815 = vmul.f32 %v5748, %v5799
        %v5816 = vmul.f32 %v5750, %v5800
        %v5817 = vmul.f32 %v5752, %v5801
        %v5818 = vmul.f32 %v5754, %v5802
        %v5819 = vpack.c.bf16 %v5804, %v5803
        %v5820 = vpack.c.bf16 %v5806, %v5805
        %v5821 = vpack.c.bf16 %v5808, %v5807
        %v5822 = vpack.c.bf16 %v5810, %v5809
        %v5823 = vpack.c.bf16 %v5812, %v5811
        %v5824 = vpack.c.bf16 %v5814, %v5813
        %v5825 = vpack.c.bf16 %v5816, %v5815
        %v5826 = vpack.c.bf16 %v5818, %v5817
        %5827 = vmatprep.subr.bf16.mxu0 0
        %5828 = vmatpush1.bf16.msra.mxu0 %v1398
        %5829 = vmatprep.subr.bf16.mxu0 0
        %5830 = vmatpush1.bf16.msra.mxu0 %v1401
        %5831 = vmatprep.subr.bf16.mxu0 0
        %5832 = vmatpush1.bf16.msra.mxu0 %v1404
        %5833 = vmatprep.subr.bf16.mxu0 0
        %5834 = vmatpush1.bf16.msra.mxu0 %v1407
        %5835 = vmatprep.subr.bf16.mxu0 0
        %5836 = vmatpush1.bf16.msra.mxu0 %v1410
        %5837 = vmatprep.subr.bf16.mxu0 0
        %5838 = vmatpush1.bf16.msra.mxu0 %v1413
        %5839 = vmatprep.subr.bf16.mxu0 0
        %5840 = vmatpush1.bf16.msra.mxu0 %v1416
        %5841 = vmatprep.subr.bf16.mxu0 0
        %5842 = vmatpush1.bf16.msra.mxu0 %v1419
        %5843 = vmatprep.subr.bf16.mxu0 0
        %5844 = vmatpush1.bf16.msra.mxu0 0
        %5845 = vmatprep.subr.bf16.mxu0 0
        %5846 = vmatpush1.bf16.msra.mxu0 0
        %5847 = vmatprep.subr.bf16.mxu0 0
        %5848 = vmatpush1.bf16.msra.mxu0 0
        %5849 = vmatprep.subr.bf16.mxu0 0
        %5850 = vmatpush1.bf16.msra.mxu0 0
        %5851 = vmatprep.subr.bf16.mxu0 0
        %5852 = vmatpush1.bf16.msra.mxu0 0
        %5853 = vmatprep.subr.bf16.mxu0 0
        %5854 = vmatpush1.bf16.msra.mxu0 0
        %5855 = vmatprep.subr.bf16.mxu0 0
        %5856 = vmatpush1.bf16.msra.mxu0 0
        %5857 = vmatprep.subr.bf16.mxu0 0
        %5858 = vmatpush1.bf16.msra.mxu0 0
        %5859 = vmatprep.mubr.bf16.mxu0 0
        %5860 = vmatmul.mubr.bf16.gmra.mrb[0].mxu0 %v5819
        %v5861 = vpop.f32.mrb[0].mxu0
        %v5862 = vadd.f32 0.0, %v5861
        %v5863 = vpop.f32.mrb[0].mxu0
        %v5864 = vpop.f32.mrb[0].mxu0
        %v5865 = vadd.f32 0.0, %v5864
        %v5866 = vpop.f32.mrb[0].mxu0
        %5867 = vmatprep.mubr.bf16.mxu0 0
        %5868 = vmatmul.mubr.bf16.gmra.mrb[0].mxu0 %v5820
        %v5869 = vpop.f32.mrb[0].mxu0
        %v5870 = vadd.f32 0.0, %v5869
        %v5871 = vpop.f32.mrb[0].mxu0
        %v5872 = vpop.f32.mrb[0].mxu0
        %v5873 = vadd.f32 0.0, %v5872
        %v5874 = vpop.f32.mrb[0].mxu0
        %5875 = vmatprep.mubr.bf16.mxu0 0
        %5876 = vmatmul.mubr.bf16.gmra.mrb[0].mxu0 %v5821
        %v5877 = vpop.f32.mrb[0].mxu0
        %v5878 = vadd.f32 0.0, %v5877
        %v5879 = vpop.f32.mrb[0].mxu0
        %v5880 = vpop.f32.mrb[0].mxu0
        %v5881 = vadd.f32 0.0, %v5880
        %v5882 = vpop.f32.mrb[0].mxu0
        %5883 = vmatprep.mubr.bf16.mxu0 0
        %5884 = vmatmul.mubr.bf16.gmra.mrb[0].mxu0 %v5822
        %v5885 = vpop.f32.mrb[0].mxu0
        %v5886 = vadd.f32 0.0, %v5885
        %v5887 = vpop.f32.mrb[0].mxu0
        %v5888 = vpop.f32.mrb[0].mxu0
        %v5889 = vadd.f32 0.0, %v5888
        %v5890 = vpop.f32.mrb[0].mxu0
        %5891 = vmatprep.mubr.bf16.mxu0 0
        %5892 = vmatmul.mubr.bf16.gmra.mrb[0].mxu0 %v5823
        %v5893 = vpop.f32.mrb[0].mxu0
        %v5894 = vadd.f32 0.0, %v5893
        %v5895 = vpop.f32.mrb[0].mxu0
        %v5896 = vpop.f32.mrb[0].mxu0
        %v5897 = vadd.f32 0.0, %v5896
        %v5898 = vpop.f32.mrb[0].mxu0
        %5899 = vmatprep.mubr.bf16.mxu0 0
        %5900 = vmatmul.mubr.bf16.gmra.mrb[0].mxu0 %v5824
        %v5901 = vpop.f32.mrb[0].mxu0
        %v5902 = vadd.f32 0.0, %v5901
        %v5903 = vpop.f32.mrb[0].mxu0
        %v5904 = vpop.f32.mrb[0].mxu0
        %v5905 = vadd.f32 0.0, %v5904
        %v5906 = vpop.f32.mrb[0].mxu0
        %5907 = vmatprep.mubr.bf16.mxu0 0
        %5908 = vmatmul.mubr.bf16.gmra.mrb[0].mxu0 %v5825
        %v5909 = vpop.f32.mrb[0].mxu0
        %v5910 = vadd.f32 0.0, %v5909
        %v5911 = vpop.f32.mrb[0].mxu0
        %v5912 = vpop.f32.mrb[0].mxu0
        %v5913 = vadd.f32 0.0, %v5912
        %v5914 = vpop.f32.mrb[0].mxu0
        %5915 = vmatprep.mubr.bf16.mxu0 0
        %5916 = vmatmul.mubr.bf16.gmra.mrb[0].mxu0 %v5826
        %v5917 = vpop.f32.mrb[0].mxu0
        %v5918 = vadd.f32 0.0, %v5917
        %v5919 = vpop.f32.mrb[0].mxu0
        %v5920 = vpop.f32.mrb[0].mxu0
        %v5921 = vadd.f32 0.0, %v5920
        %v5922 = vpop.f32.mrb[0].mxu0
        %5923 = vdwg.mxu0
        %5932 = vrot.lane.b32.xlu0 %v1396, 96
        %v5933 = vpop.permute.xlu0 %5932
        %5934 = vrot.lane.b32.xlu0 %v1399, 96
        %v5935 = vpop.permute.xlu0 %5934
        %5936 = vrot.lane.b32.xlu0 %v1402, 96
        %v5937 = vpop.permute.xlu0 %5936
        %5938 = vrot.lane.b32.xlu0 %v1405, 96
        %v5939 = vpop.permute.xlu0 %5938
        %5940 = vrot.lane.b32.xlu0 %v1408, 96
        %v5941 = vpop.permute.xlu0 %5940
        %5942 = vrot.lane.b32.xlu0 %v1411, 96
        %v5943 = vpop.permute.xlu0 %5942
        %5944 = vrot.lane.b32.xlu0 %v1414, 96
        %v5945 = vpop.permute.xlu0 %5944
        %5946 = vrot.lane.b32.xlu0 %v1417, 96
        %v5947 = vpop.permute.xlu0 %5946
        %5956 = vrot.lane.b32.xlu0 %v1397, 96
        %v5957 = vpop.permute.xlu0 %5956
        %5958 = vrot.lane.b32.xlu0 %v1400, 96
        %v5959 = vpop.permute.xlu0 %5958
        %5960 = vrot.lane.b32.xlu0 %v1403, 96
        %v5961 = vpop.permute.xlu0 %5960
        %5962 = vrot.lane.b32.xlu0 %v1406, 96
        %v5963 = vpop.permute.xlu0 %5962
        %5964 = vrot.lane.b32.xlu0 %v1409, 96
        %v5965 = vpop.permute.xlu0 %5964
        %5966 = vrot.lane.b32.xlu0 %v1412, 96
        %v5967 = vpop.permute.xlu0 %5966
        %5968 = vrot.lane.b32.xlu0 %v1415, 96
        %v5969 = vpop.permute.xlu0 %5968
        %5970 = vrot.lane.b32.xlu0 %v1418, 96
        %v5971 = vpop.permute.xlu0 %5970
        %v5973 = vsel %vm1460, %v5933, 0
        %v5976 = vsel %vm1460, %v5935, 0
        %v5979 = vsel %vm1460, %v5937, 0
        %v5982 = vsel %vm1460, %v5939, 0
        %v5985 = vsel %vm1460, %v5941, 0
        %v5988 = vsel %vm1460, %v5943, 0
        %v5991 = vsel %vm1460, %v5945, 0
        %v5994 = vsel %vm1460, %v5947, 0
        %v5997 = vsel %vm1460, %v5957, 0
        %v6000 = vsel %vm1460, %v5959, 0
        %v6003 = vsel %vm1460, %v5961, 0
        %v6006 = vsel %vm1460, %v5963, 0
        %v6009 = vsel %vm1460, %v5965, 0
        %v6012 = vsel %vm1460, %v5967, 0
        %v6015 = vsel %vm1460, %v5969, 0
        %v6018 = vsel %vm1460, %v5971, 0
        %6020 = vmatprep.subr.bf16.mxu0 0
        %6021 = vmatpush1.bf16.xpose.msra.mxu0 %v5997
        %6022 = vmatprep.subr.bf16.mxu0 0
        %6023 = vmatpush1.bf16.xpose.msra.mxu0 %v6000
        %6024 = vmatprep.subr.bf16.mxu0 0
        %6025 = vmatpush1.bf16.xpose.msra.mxu0 %v6003
        %6026 = vmatprep.subr.bf16.mxu0 0
        %6027 = vmatpush1.bf16.xpose.msra.mxu0 %v6006
        %6028 = vmatprep.subr.bf16.mxu0 0
        %6029 = vmatpush1.bf16.xpose.msra.mxu0 %v6009
        %6030 = vmatprep.subr.bf16.mxu0 0
        %6031 = vmatpush1.bf16.xpose.msra.mxu0 %v6012
        %6032 = vmatprep.subr.bf16.mxu0 0
        %6033 = vmatpush1.bf16.xpose.msra.mxu0 %v6015
        %6034 = vmatprep.subr.bf16.mxu0 0
        %6035 = vmatpush1.bf16.xpose.msra.mxu0 %v6018
        %6036 = vmatprep.subr.bf16.mxu0 0
        %6037 = vmatpush1.bf16.xpose.msra.mxu0 0
        %6038 = vmatprep.subr.bf16.mxu0 0
        %6039 = vmatpush1.bf16.xpose.msra.mxu0 0
        %6040 = vmatprep.subr.bf16.mxu0 0
        %6041 = vmatpush1.bf16.xpose.msra.mxu0 0
        %6042 = vmatprep.subr.bf16.mxu0 0
        %6043 = vmatpush1.bf16.xpose.msra.mxu0 0
        %6044 = vmatprep.subr.bf16.mxu0 0
        %6045 = vmatpush1.bf16.xpose.msra.mxu0 0
        %6046 = vmatprep.subr.bf16.mxu0 0
        %6047 = vmatpush1.bf16.xpose.msra.mxu0 0
        %6048 = vmatprep.subr.bf16.mxu0 0
        %6049 = vmatpush1.bf16.xpose.msra.mxu0 0
        %6050 = vmatprep.subr.bf16.mxu0 0
        %6051 = vmatpush1.bf16.xpose.msra.mxu0 0
        %6052 = vmatprep.mubr.bf16.mxu0 0
        %6053 = vmatmul.mubr.bf16.gmra.mrb[0].mxu0 %v5973
        %v6054 = vpop.f32.mrb[0].mxu0
        %v6055 = vadd.f32 %v1856, %v6054
        %v6056 = vpop.f32.mrb[0].mxu0
        %v6057 = vpop.f32.mrb[0].mxu0
        %v6058 = vadd.f32 %v1857, %v6057
        %v6059 = vpop.f32.mrb[0].mxu0
        %6060 = vmatprep.mubr.bf16.mxu0 0
        %6061 = vmatmul.mubr.bf16.gmra.mrb[0].mxu0 %v5976
        %v6062 = vpop.f32.mrb[0].mxu0
        %v6063 = vadd.f32 %v1858, %v6062
        %v6064 = vpop.f32.mrb[0].mxu0
        %v6065 = vpop.f32.mrb[0].mxu0
        %v6066 = vadd.f32 %v1859, %v6065
        %v6067 = vpop.f32.mrb[0].mxu0
        %6068 = vmatprep.mubr.bf16.mxu0 0
        %6069 = vmatmul.mubr.bf16.gmra.mrb[0].mxu0 %v5979
        %v6070 = vpop.f32.mrb[0].mxu0
        %v6071 = vadd.f32 %v1860, %v6070
        %v6072 = vpop.f32.mrb[0].mxu0
        %v6073 = vpop.f32.mrb[0].mxu0
        %v6074 = vadd.f32 %v1861, %v6073
        %v6075 = vpop.f32.mrb[0].mxu0
        %6076 = vmatprep.mubr.bf16.mxu0 0
        %6077 = vmatmul.mubr.bf16.gmra.mrb[0].mxu0 %v5982
        %v6078 = vpop.f32.mrb[0].mxu0
        %v6079 = vadd.f32 %v1862, %v6078
        %v6080 = vpop.f32.mrb[0].mxu0
        %v6081 = vpop.f32.mrb[0].mxu0
        %v6082 = vadd.f32 %v1863, %v6081
        %v6083 = vpop.f32.mrb[0].mxu0
        %6084 = vmatprep.mubr.bf16.mxu0 0
        %6085 = vmatmul.mubr.bf16.gmra.mrb[0].mxu0 %v5985
        %v6086 = vpop.f32.mrb[0].mxu0
        %v6087 = vadd.f32 %v1864, %v6086
        %v6088 = vpop.f32.mrb[0].mxu0
        %v6089 = vpop.f32.mrb[0].mxu0
        %v6090 = vadd.f32 %v1865, %v6089
        %v6091 = vpop.f32.mrb[0].mxu0
        %6092 = vmatprep.mubr.bf16.mxu0 0
        %6093 = vmatmul.mubr.bf16.gmra.mrb[0].mxu0 %v5988
        %v6094 = vpop.f32.mrb[0].mxu0
        %v6095 = vadd.f32 %v1866, %v6094
        %v6096 = vpop.f32.mrb[0].mxu0
        %v6097 = vpop.f32.mrb[0].mxu0
        %v6098 = vadd.f32 %v1867, %v6097
        %v6099 = vpop.f32.mrb[0].mxu0
        %6100 = vmatprep.mubr.bf16.mxu0 0
        %6101 = vmatmul.mubr.bf16.gmra.mrb[0].mxu0 %v5991
        %v6102 = vpop.f32.mrb[0].mxu0
        %v6103 = vadd.f32 %v1868, %v6102
        %v6104 = vpop.f32.mrb[0].mxu0
        %v6105 = vpop.f32.mrb[0].mxu0
        %v6106 = vadd.f32 %v1869, %v6105
        %v6107 = vpop.f32.mrb[0].mxu0
        %6108 = vmatprep.mubr.bf16.mxu0 0
        %6109 = vmatmul.mubr.bf16.gmra.mrb[0].mxu0 %v5994
        %v6110 = vpop.f32.mrb[0].mxu0
        %v6111 = vadd.f32 %v1870, %v6110
        %v6112 = vpop.f32.mrb[0].mxu0
        %v6113 = vpop.f32.mrb[0].mxu0
        %v6114 = vadd.f32 %v1871, %v6113
        %v6115 = vpop.f32.mrb[0].mxu0
        %6116 = vdwg.mxu0
        %6117 = vmax.xlane.f32.xlu0 %v6055
        %v6118 = vpop.xlane.xlu0 %6117
        %6119 = vmax.xlane.f32.xlu0 %v6058
        %v6120 = vpop.xlane.xlu0 %6119
        %6121 = vmax.xlane.f32.xlu0 %v6063
        %v6122 = vpop.xlane.xlu0 %6121
        %6123 = vmax.xlane.f32.xlu0 %v6066
        %v6124 = vpop.xlane.xlu0 %6123
        %6125 = vmax.xlane.f32.xlu0 %v6071
        %v6126 = vpop.xlane.xlu0 %6125
        %6127 = vmax.xlane.f32.xlu0 %v6074
        %v6128 = vpop.xlane.xlu0 %6127
        %6129 = vmax.xlane.f32.xlu0 %v6079
        %v6130 = vpop.xlane.xlu0 %6129
        %6131 = vmax.xlane.f32.xlu0 %v6082
        %v6132 = vpop.xlane.xlu0 %6131
        %6133 = vmax.xlane.f32.xlu0 %v6087
        %v6134 = vpop.xlane.xlu0 %6133
        %6135 = vmax.xlane.f32.xlu0 %v6090
        %v6136 = vpop.xlane.xlu0 %6135
        %6137 = vmax.xlane.f32.xlu0 %v6095
        %v6138 = vpop.xlane.xlu0 %6137
        %6139 = vmax.xlane.f32.xlu0 %v6098
        %v6140 = vpop.xlane.xlu0 %6139
        %6141 = vmax.xlane.f32.xlu0 %v6103
        %v6142 = vpop.xlane.xlu0 %6141
        %6143 = vmax.xlane.f32.xlu0 %v6106
        %v6144 = vpop.xlane.xlu0 %6143
        %6145 = vmax.xlane.f32.xlu0 %v6111
        %v6146 = vpop.xlane.xlu0 %6145
        %6147 = vmax.xlane.f32.xlu0 %v6114
        %v6148 = vpop.xlane.xlu0 %6147
        %v6149 = vsub.f32 %v6055, %v6118
        %v6150 = vsub.f32 %v6058, %v6120
        %v6151 = vsub.f32 %v6063, %v6122
        %v6152 = vsub.f32 %v6066, %v6124
        %v6153 = vsub.f32 %v6071, %v6126
        %v6154 = vsub.f32 %v6074, %v6128
        %v6155 = vsub.f32 %v6079, %v6130
        %v6156 = vsub.f32 %v6082, %v6132
        %v6157 = vsub.f32 %v6087, %v6134
        %v6158 = vsub.f32 %v6090, %v6136
        %v6159 = vsub.f32 %v6095, %v6138
        %v6160 = vsub.f32 %v6098, %v6140
        %v6161 = vsub.f32 %v6103, %v6142
        %v6162 = vsub.f32 %v6106, %v6144
        %v6163 = vsub.f32 %v6111, %v6146
        %v6164 = vsub.f32 %v6114, %v6148
        %v6165 = vmul.f32 %v6149, 1.442695
        %v6166 = vpow.pop %v6165
        %v6167 = vmul.f32 %v6150, 1.442695
        %v6168 = vpow.pop %v6167
        %v6169 = vmul.f32 %v6151, 1.442695
        %v6170 = vpow.pop %v6169
        %v6171 = vmul.f32 %v6152, 1.442695
        %v6172 = vpow.pop %v6171
        %v6173 = vmul.f32 %v6153, 1.442695
        %v6174 = vpow.pop %v6173
        %v6175 = vmul.f32 %v6154, 1.442695
        %v6176 = vpow.pop %v6175
        %v6177 = vmul.f32 %v6155, 1.442695
        %v6178 = vpow.pop %v6177
        %v6179 = vmul.f32 %v6156, 1.442695
        %v6180 = vpow.pop %v6179
        %v6181 = vmul.f32 %v6157, 1.442695
        %v6182 = vpow.pop %v6181
        %v6183 = vmul.f32 %v6158, 1.442695
        %v6184 = vpow.pop %v6183
        %v6185 = vmul.f32 %v6159, 1.442695
        %v6186 = vpow.pop %v6185
        %v6187 = vmul.f32 %v6160, 1.442695
        %v6188 = vpow.pop %v6187
        %v6189 = vmul.f32 %v6161, 1.442695
        %v6190 = vpow.pop %v6189
        %v6191 = vmul.f32 %v6162, 1.442695
        %v6192 = vpow.pop %v6191
        %v6193 = vmul.f32 %v6163, 1.442695
        %v6194 = vpow.pop %v6193
        %v6195 = vmul.f32 %v6164, 1.442695
        %v6196 = vpow.pop %v6195
        %6197 = vadd.xlane.f32.xlu0 %v6166
        %v6198 = vpop.xlane.xlu0 %6197
        %6199 = vadd.xlane.f32.xlu0 %v6168
        %v6200 = vpop.xlane.xlu0 %6199
        %6201 = vadd.xlane.f32.xlu0 %v6170
        %v6202 = vpop.xlane.xlu0 %6201
        %6203 = vadd.xlane.f32.xlu0 %v6172
        %v6204 = vpop.xlane.xlu0 %6203
        %6205 = vadd.xlane.f32.xlu0 %v6174
        %v6206 = vpop.xlane.xlu0 %6205
        %6207 = vadd.xlane.f32.xlu0 %v6176
        %v6208 = vpop.xlane.xlu0 %6207
        %6209 = vadd.xlane.f32.xlu0 %v6178
        %v6210 = vpop.xlane.xlu0 %6209
        %6211 = vadd.xlane.f32.xlu0 %v6180
        %v6212 = vpop.xlane.xlu0 %6211
        %6213 = vadd.xlane.f32.xlu0 %v6182
        %v6214 = vpop.xlane.xlu0 %6213
        %6215 = vadd.xlane.f32.xlu0 %v6184
        %v6216 = vpop.xlane.xlu0 %6215
        %6217 = vadd.xlane.f32.xlu0 %v6186
        %v6218 = vpop.xlane.xlu0 %6217
        %6219 = vadd.xlane.f32.xlu0 %v6188
        %v6220 = vpop.xlane.xlu0 %6219
        %6221 = vadd.xlane.f32.xlu0 %v6190
        %v6222 = vpop.xlane.xlu0 %6221
        %6223 = vadd.xlane.f32.xlu0 %v6192
        %v6224 = vpop.xlane.xlu0 %6223
        %6225 = vadd.xlane.f32.xlu0 %v6194
        %v6226 = vpop.xlane.xlu0 %6225
        %6227 = vadd.xlane.f32.xlu0 %v6196
        %v6228 = vpop.xlane.xlu0 %6227
        %v6229 = vrcp.pop %v6198
        %v6230 = vrcp.pop %v6200
        %v6231 = vrcp.pop %v6202
        %v6232 = vrcp.pop %v6204
        %v6233 = vrcp.pop %v6206
        %v6234 = vrcp.pop %v6208
        %v6235 = vrcp.pop %v6210
        %v6236 = vrcp.pop %v6212
        %v6237 = vrcp.pop %v6214
        %v6238 = vrcp.pop %v6216
        %v6239 = vrcp.pop %v6218
        %v6240 = vrcp.pop %v6220
        %v6241 = vrcp.pop %v6222
        %v6242 = vrcp.pop %v6224
        %v6243 = vrcp.pop %v6226
        %v6244 = vrcp.pop %v6228
        %v6245 = vmul.f32 %v6166, %v6229
        %v6246 = vmul.f32 %v6168, %v6230
        %v6247 = vmul.f32 %v6170, %v6231
        %v6248 = vmul.f32 %v6172, %v6232
        %v6249 = vmul.f32 %v6174, %v6233
        %v6250 = vmul.f32 %v6176, %v6234
        %v6251 = vmul.f32 %v6178, %v6235
        %v6252 = vmul.f32 %v6180, %v6236
        %v6253 = vmul.f32 %v6182, %v6237
        %v6254 = vmul.f32 %v6184, %v6238
        %v6255 = vmul.f32 %v6186, %v6239
        %v6256 = vmul.f32 %v6188, %v6240
        %v6257 = vmul.f32 %v6190, %v6241
        %v6258 = vmul.f32 %v6192, %v6242
        %v6259 = vmul.f32 %v6194, %v6243
        %v6260 = vmul.f32 %v6196, %v6244
        %v6261 = vpack.c.bf16 %v6246, %v6245
        %v6262 = vpack.c.bf16 %v6248, %v6247
        %v6263 = vpack.c.bf16 %v6250, %v6249
        %v6264 = vpack.c.bf16 %v6252, %v6251
        %v6265 = vpack.c.bf16 %v6254, %v6253
        %v6266 = vpack.c.bf16 %v6256, %v6255
        %v6267 = vpack.c.bf16 %v6258, %v6257
        %v6268 = vpack.c.bf16 %v6260, %v6259
        %6277 = vrot.lane.b32.xlu0 %v1398, 96
        %v6278 = vpop.permute.xlu0 %6277
        %6279 = vrot.lane.b32.xlu0 %v1401, 96
        %v6280 = vpop.permute.xlu0 %6279
        %6281 = vrot.lane.b32.xlu0 %v1404, 96
        %v6282 = vpop.permute.xlu0 %6281
        %6283 = vrot.lane.b32.xlu0 %v1407, 96
        %v6284 = vpop.permute.xlu0 %6283
        %6285 = vrot.lane.b32.xlu0 %v1410, 96
        %v6286 = vpop.permute.xlu0 %6285
        %6287 = vrot.lane.b32.xlu0 %v1413, 96
        %v6288 = vpop.permute.xlu0 %6287
        %6289 = vrot.lane.b32.xlu0 %v1416, 96
        %v6290 = vpop.permute.xlu0 %6289
        %6291 = vrot.lane.b32.xlu0 %v1419, 96
        %v6292 = vpop.permute.xlu0 %6291
        %6301 = vmatprep.subr.bf16.mxu0 0
        %6302 = vmatpush1.bf16.msra.mxu0 %v6278
        %6303 = vmatprep.subr.bf16.mxu0 0
        %6304 = vmatpush1.bf16.msra.mxu0 %v6280
        %6305 = vmatprep.subr.bf16.mxu0 0
        %6306 = vmatpush1.bf16.msra.mxu0 %v6282
        %6307 = vmatprep.subr.bf16.mxu0 0
        %6308 = vmatpush1.bf16.msra.mxu0 %v6284
        %6309 = vmatprep.subr.bf16.mxu0 0
        %6310 = vmatpush1.bf16.msra.mxu0 %v6286
        %6311 = vmatprep.subr.bf16.mxu0 0
        %6312 = vmatpush1.bf16.msra.mxu0 %v6288
        %6313 = vmatprep.subr.bf16.mxu0 0
        %6314 = vmatpush1.bf16.msra.mxu0 %v6290
        %6315 = vmatprep.subr.bf16.mxu0 0
        %6316 = vmatpush1.bf16.msra.mxu0 %v6292
        %6317 = vmatprep.subr.bf16.mxu0 0
        %6318 = vmatpush1.bf16.msra.mxu0 0
        %6319 = vmatprep.subr.bf16.mxu0 0
        %6320 = vmatpush1.bf16.msra.mxu0 0
        %6321 = vmatprep.subr.bf16.mxu0 0
        %6322 = vmatpush1.bf16.msra.mxu0 0
        %6323 = vmatprep.subr.bf16.mxu0 0
        %6324 = vmatpush1.bf16.msra.mxu0 0
        %6325 = vmatprep.subr.bf16.mxu0 0
        %6326 = vmatpush1.bf16.msra.mxu0 0
        %6327 = vmatprep.subr.bf16.mxu0 0
        %6328 = vmatpush1.bf16.msra.mxu0 0
        %6329 = vmatprep.subr.bf16.mxu0 0
        %6330 = vmatpush1.bf16.msra.mxu0 0
        %6331 = vmatprep.subr.bf16.mxu0 0
        %6332 = vmatpush1.bf16.msra.mxu0 0
        %6333 = vmatprep.mubr.bf16.mxu0 0
        %6334 = vmatmul.mubr.bf16.gmra.mrb[0].mxu0 %v6261
        %v6335 = vpop.f32.mrb[0].mxu0
        %v6336 = vadd.f32 0.0, %v6335
        %v6337 = vpop.f32.mrb[0].mxu0
        %v6338 = vpop.f32.mrb[0].mxu0
        %v6339 = vadd.f32 0.0, %v6338
        %v6340 = vpop.f32.mrb[0].mxu0
        %6341 = vmatprep.mubr.bf16.mxu0 0
        %6342 = vmatmul.mubr.bf16.gmra.mrb[0].mxu0 %v6262
        %v6343 = vpop.f32.mrb[0].mxu0
        %v6344 = vadd.f32 0.0, %v6343
        %v6345 = vpop.f32.mrb[0].mxu0
        %v6346 = vpop.f32.mrb[0].mxu0
        %v6347 = vadd.f32 0.0, %v6346
        %v6348 = vpop.f32.mrb[0].mxu0
        %6349 = vmatprep.mubr.bf16.mxu0 0
        %6350 = vmatmul.mubr.bf16.gmra.mrb[0].mxu0 %v6263
        %v6351 = vpop.f32.mrb[0].mxu0
        %v6352 = vadd.f32 0.0, %v6351
        %v6353 = vpop.f32.mrb[0].mxu0
        %v6354 = vpop.f32.mrb[0].mxu0
        %v6355 = vadd.f32 0.0, %v6354
        %v6356 = vpop.f32.mrb[0].mxu0
        %6357 = vmatprep.mubr.bf16.mxu0 0
        %6358 = vmatmul.mubr.bf16.gmra.mrb[0].mxu0 %v6264
        %v6359 = vpop.f32.mrb[0].mxu0
        %v6360 = vadd.f32 0.0, %v6359
        %v6361 = vpop.f32.mrb[0].mxu0
        %v6362 = vpop.f32.mrb[0].mxu0
        %v6363 = vadd.f32 0.0, %v6362
        %v6364 = vpop.f32.mrb[0].mxu0
        %6365 = vmatprep.mubr.bf16.mxu0 0
        %6366 = vmatmul.mubr.bf16.gmra.mrb[0].mxu0 %v6265
        %v6367 = vpop.f32.mrb[0].mxu0
        %v6368 = vadd.f32 0.0, %v6367
        %v6369 = vpop.f32.mrb[0].mxu0
        %v6370 = vpop.f32.mrb[0].mxu0
        %v6371 = vadd.f32 0.0, %v6370
        %v6372 = vpop.f32.mrb[0].mxu0
        %6373 = vmatprep.mubr.bf16.mxu0 0
        %6374 = vmatmul.mubr.bf16.gmra.mrb[0].mxu0 %v6266
        %v6375 = vpop.f32.mrb[0].mxu0
        %v6376 = vadd.f32 0.0, %v6375
        %v6377 = vpop.f32.mrb[0].mxu0
        %v6378 = vpop.f32.mrb[0].mxu0
        %v6379 = vadd.f32 0.0, %v6378
        %v6380 = vpop.f32.mrb[0].mxu0
        %6381 = vmatprep.mubr.bf16.mxu0 0
        %6382 = vmatmul.mubr.bf16.gmra.mrb[0].mxu0 %v6267
        %v6383 = vpop.f32.mrb[0].mxu0
        %v6384 = vadd.f32 0.0, %v6383
        %v6385 = vpop.f32.mrb[0].mxu0
        %v6386 = vpop.f32.mrb[0].mxu0
        %v6387 = vadd.f32 0.0, %v6386
        %v6388 = vpop.f32.mrb[0].mxu0
        %6389 = vmatprep.mubr.bf16.mxu0 0
        %6390 = vmatmul.mubr.bf16.gmra.mrb[0].mxu0 %v6268
        %v6391 = vpop.f32.mrb[0].mxu0
        %v6392 = vadd.f32 0.0, %v6391
        %v6393 = vpop.f32.mrb[0].mxu0
        %v6394 = vpop.f32.mrb[0].mxu0
        %v6395 = vadd.f32 0.0, %v6394
        %v6396 = vpop.f32.mrb[0].mxu0
        %6397 = vdwg.mxu0
        %6398 = vrot.lane.b32.xlu0 %v1396, 64
        %v6399 = vpop.permute.xlu0 %6398
        %6400 = vrot.lane.b32.xlu0 %v1399, 64
        %v6401 = vpop.permute.xlu0 %6400
        %6402 = vrot.lane.b32.xlu0 %v1402, 64
        %v6403 = vpop.permute.xlu0 %6402
        %6404 = vrot.lane.b32.xlu0 %v1405, 64
        %v6405 = vpop.permute.xlu0 %6404
        %6406 = vrot.lane.b32.xlu0 %v1408, 64
        %v6407 = vpop.permute.xlu0 %6406
        %6408 = vrot.lane.b32.xlu0 %v1411, 64
        %v6409 = vpop.permute.xlu0 %6408
        %6410 = vrot.lane.b32.xlu0 %v1414, 64
        %v6411 = vpop.permute.xlu0 %6410
        %6412 = vrot.lane.b32.xlu0 %v1417, 64
        %v6413 = vpop.permute.xlu0 %6412
        %6414 = vrot.lane.b32.xlu0 %v1397, 64
        %v6415 = vpop.permute.xlu0 %6414
        %6416 = vrot.lane.b32.xlu0 %v1400, 64
        %v6417 = vpop.permute.xlu0 %6416
        %6418 = vrot.lane.b32.xlu0 %v1403, 64
        %v6419 = vpop.permute.xlu0 %6418
        %6420 = vrot.lane.b32.xlu0 %v1406, 64
        %v6421 = vpop.permute.xlu0 %6420
        %6422 = vrot.lane.b32.xlu0 %v1409, 64
        %v6423 = vpop.permute.xlu0 %6422
        %6424 = vrot.lane.b32.xlu0 %v1412, 64
        %v6425 = vpop.permute.xlu0 %6424
        %6426 = vrot.lane.b32.xlu0 %v1415, 64
        %v6427 = vpop.permute.xlu0 %6426
        %6428 = vrot.lane.b32.xlu0 %v1418, 64
        %v6429 = vpop.permute.xlu0 %6428
        %v6431 = vsel %vm1460, %v6399, 0
        %v6434 = vsel %vm1460, %v6401, 0
        %v6437 = vsel %vm1460, %v6403, 0
        %v6440 = vsel %vm1460, %v6405, 0
        %v6443 = vsel %vm1460, %v6407, 0
        %v6446 = vsel %vm1460, %v6409, 0
        %v6449 = vsel %vm1460, %v6411, 0
        %v6452 = vsel %vm1460, %v6413, 0
        %v6455 = vsel %vm1460, %v6415, 0
        %v6458 = vsel %vm1460, %v6417, 0
        %v6461 = vsel %vm1460, %v6419, 0
        %v6464 = vsel %vm1460, %v6421, 0
        %v6467 = vsel %vm1460, %v6423, 0
        %v6470 = vsel %vm1460, %v6425, 0
        %v6473 = vsel %vm1460, %v6427, 0
        %v6476 = vsel %vm1460, %v6429, 0
        %6478 = vmatprep.subr.bf16.mxu0 0
        %6479 = vmatpush1.bf16.xpose.msra.mxu0 %v6455
        %6480 = vmatprep.subr.bf16.mxu0 0
        %6481 = vmatpush1.bf16.xpose.msra.mxu0 %v6458
        %6482 = vmatprep.subr.bf16.mxu0 0
        %6483 = vmatpush1.bf16.xpose.msra.mxu0 %v6461
        %6484 = vmatprep.subr.bf16.mxu0 0
        %6485 = vmatpush1.bf16.xpose.msra.mxu0 %v6464
        %6486 = vmatprep.subr.bf16.mxu0 0
        %6487 = vmatpush1.bf16.xpose.msra.mxu0 %v6467
        %6488 = vmatprep.subr.bf16.mxu0 0
        %6489 = vmatpush1.bf16.xpose.msra.mxu0 %v6470
        %6490 = vmatprep.subr.bf16.mxu0 0
        %6491 = vmatpush1.bf16.xpose.msra.mxu0 %v6473
        %6492 = vmatprep.subr.bf16.mxu0 0
        %6493 = vmatpush1.bf16.xpose.msra.mxu0 %v6476
        %6494 = vmatprep.subr.bf16.mxu0 0
        %6495 = vmatpush1.bf16.xpose.msra.mxu0 0
        %6496 = vmatprep.subr.bf16.mxu0 0
        %6497 = vmatpush1.bf16.xpose.msra.mxu0 0
        %6498 = vmatprep.subr.bf16.mxu0 0
        %6499 = vmatpush1.bf16.xpose.msra.mxu0 0
        %6500 = vmatprep.subr.bf16.mxu0 0
        %6501 = vmatpush1.bf16.xpose.msra.mxu0 0
        %6502 = vmatprep.subr.bf16.mxu0 0
        %6503 = vmatpush1.bf16.xpose.msra.mxu0 0
        %6504 = vmatprep.subr.bf16.mxu0 0
        %6505 = vmatpush1.bf16.xpose.msra.mxu0 0
        %6506 = vmatprep.subr.bf16.mxu0 0
        %6507 = vmatpush1.bf16.xpose.msra.mxu0 0
        %6508 = vmatprep.subr.bf16.mxu0 0
        %6509 = vmatpush1.bf16.xpose.msra.mxu0 0
        %6510 = vmatprep.mubr.bf16.mxu0 0
        %6511 = vmatmul.mubr.bf16.gmra.mrb[0].mxu0 %v6431
        %v6512 = vpop.f32.mrb[0].mxu0
        %v6513 = vadd.f32 %v2347, %v6512
        %v6514 = vpop.f32.mrb[0].mxu0
        %v6515 = vpop.f32.mrb[0].mxu0
        %v6516 = vadd.f32 %v2348, %v6515
        %v6517 = vpop.f32.mrb[0].mxu0
        %6518 = vmatprep.mubr.bf16.mxu0 0
        %6519 = vmatmul.mubr.bf16.gmra.mrb[0].mxu0 %v6434
        %v6520 = vpop.f32.mrb[0].mxu0
        %v6521 = vadd.f32 %v2349, %v6520
        %v6522 = vpop.f32.mrb[0].mxu0
        %v6523 = vpop.f32.mrb[0].mxu0
        %v6524 = vadd.f32 %v2350, %v6523
        %v6525 = vpop.f32.mrb[0].mxu0
        %6526 = vmatprep.mubr.bf16.mxu0 0
        %6527 = vmatmul.mubr.bf16.gmra.mrb[0].mxu0 %v6437
        %v6528 = vpop.f32.mrb[0].mxu0
        %v6529 = vadd.f32 %v2351, %v6528
        %v6530 = vpop.f32.mrb[0].mxu0
        %v6531 = vpop.f32.mrb[0].mxu0
        %v6532 = vadd.f32 %v2352, %v6531
        %v6533 = vpop.f32.mrb[0].mxu0
        %6534 = vmatprep.mubr.bf16.mxu0 0
        %6535 = vmatmul.mubr.bf16.gmra.mrb[0].mxu0 %v6440
        %v6536 = vpop.f32.mrb[0].mxu0
        %v6537 = vadd.f32 %v2353, %v6536
        %v6538 = vpop.f32.mrb[0].mxu0
        %v6539 = vpop.f32.mrb[0].mxu0
        %v6540 = vadd.f32 %v2354, %v6539
        %v6541 = vpop.f32.mrb[0].mxu0
        %6542 = vmatprep.mubr.bf16.mxu0 0
        %6543 = vmatmul.mubr.bf16.gmra.mrb[0].mxu0 %v6443
        %v6544 = vpop.f32.mrb[0].mxu0
        %v6545 = vadd.f32 %v2355, %v6544
        %v6546 = vpop.f32.mrb[0].mxu0
        %v6547 = vpop.f32.mrb[0].mxu0
        %v6548 = vadd.f32 %v2356, %v6547
        %v6549 = vpop.f32.mrb[0].mxu0
        %6550 = vmatprep.mubr.bf16.mxu0 0
        %6551 = vmatmul.mubr.bf16.gmra.mrb[0].mxu0 %v6446
        %v6552 = vpop.f32.mrb[0].mxu0
        %v6553 = vadd.f32 %v2357, %v6552
        %v6554 = vpop.f32.mrb[0].mxu0
        %v6555 = vpop.f32.mrb[0].mxu0
        %v6556 = vadd.f32 %v2358, %v6555
        %v6557 = vpop.f32.mrb[0].mxu0
        %6558 = vmatprep.mubr.bf16.mxu0 0
        %6559 = vmatmul.mubr.bf16.gmra.mrb[0].mxu0 %v6449
        %v6560 = vpop.f32.mrb[0].mxu0
        %v6561 = vadd.f32 %v2359, %v6560
        %v6562 = vpop.f32.mrb[0].mxu0
        %v6563 = vpop.f32.mrb[0].mxu0
        %v6564 = vadd.f32 %v2360, %v6563
        %v6565 = vpop.f32.mrb[0].mxu0
        %6566 = vmatprep.mubr.bf16.mxu0 0
        %6567 = vmatmul.mubr.bf16.gmra.mrb[0].mxu0 %v6452
        %v6568 = vpop.f32.mrb[0].mxu0
        %v6569 = vadd.f32 %v2361, %v6568
        %v6570 = vpop.f32.mrb[0].mxu0
        %v6571 = vpop.f32.mrb[0].mxu0
        %v6572 = vadd.f32 %v2362, %v6571
        %v6573 = vpop.f32.mrb[0].mxu0
        %6574 = vdwg.mxu0
        %6575 = vmax.xlane.f32.xlu0 %v6513
        %v6576 = vpop.xlane.xlu0 %6575
        %6577 = vmax.xlane.f32.xlu0 %v6516
        %v6578 = vpop.xlane.xlu0 %6577
        %6579 = vmax.xlane.f32.xlu0 %v6521
        %v6580 = vpop.xlane.xlu0 %6579
        %6581 = vmax.xlane.f32.xlu0 %v6524
        %v6582 = vpop.xlane.xlu0 %6581
        %6583 = vmax.xlane.f32.xlu0 %v6529
        %v6584 = vpop.xlane.xlu0 %6583
        %6585 = vmax.xlane.f32.xlu0 %v6532
        %v6586 = vpop.xlane.xlu0 %6585
        %6587 = vmax.xlane.f32.xlu0 %v6537
        %v6588 = vpop.xlane.xlu0 %6587
        %6589 = vmax.xlane.f32.xlu0 %v6540
        %v6590 = vpop.xlane.xlu0 %6589
        %6591 = vmax.xlane.f32.xlu0 %v6545
        %v6592 = vpop.xlane.xlu0 %6591
        %6593 = vmax.xlane.f32.xlu0 %v6548
        %v6594 = vpop.xlane.xlu0 %6593
        %6595 = vmax.xlane.f32.xlu0 %v6553
        %v6596 = vpop.xlane.xlu0 %6595
        %6597 = vmax.xlane.f32.xlu0 %v6556
        %v6598 = vpop.xlane.xlu0 %6597
        %6599 = vmax.xlane.f32.xlu0 %v6561
        %v6600 = vpop.xlane.xlu0 %6599
        %6601 = vmax.xlane.f32.xlu0 %v6564
        %v6602 = vpop.xlane.xlu0 %6601
        %6603 = vmax.xlane.f32.xlu0 %v6569
        %v6604 = vpop.xlane.xlu0 %6603
        %6605 = vmax.xlane.f32.xlu0 %v6572
        %v6606 = vpop.xlane.xlu0 %6605
        %v6607 = vsub.f32 %v6513, %v6576
        %v6608 = vsub.f32 %v6516, %v6578
        %v6609 = vsub.f32 %v6521, %v6580
        %v6610 = vsub.f32 %v6524, %v6582
        %v6611 = vsub.f32 %v6529, %v6584
        %v6612 = vsub.f32 %v6532, %v6586
        %v6613 = vsub.f32 %v6537, %v6588
        %v6614 = vsub.f32 %v6540, %v6590
        %v6615 = vsub.f32 %v6545, %v6592
        %v6616 = vsub.f32 %v6548, %v6594
        %v6617 = vsub.f32 %v6553, %v6596
        %v6618 = vsub.f32 %v6556, %v6598
        %v6619 = vsub.f32 %v6561, %v6600
        %v6620 = vsub.f32 %v6564, %v6602
        %v6621 = vsub.f32 %v6569, %v6604
        %v6622 = vsub.f32 %v6572, %v6606
        %v6623 = vmul.f32 %v6607, 1.442695
        %v6624 = vpow.pop %v6623
        %v6625 = vmul.f32 %v6608, 1.442695
        %v6626 = vpow.pop %v6625
        %v6627 = vmul.f32 %v6609, 1.442695
        %v6628 = vpow.pop %v6627
        %v6629 = vmul.f32 %v6610, 1.442695
        %v6630 = vpow.pop %v6629
        %v6631 = vmul.f32 %v6611, 1.442695
        %v6632 = vpow.pop %v6631
        %v6633 = vmul.f32 %v6612, 1.442695
        %v6634 = vpow.pop %v6633
        %v6635 = vmul.f32 %v6613, 1.442695
        %v6636 = vpow.pop %v6635
        %v6637 = vmul.f32 %v6614, 1.442695
        %v6638 = vpow.pop %v6637
        %v6639 = vmul.f32 %v6615, 1.442695
        %v6640 = vpow.pop %v6639
        %v6641 = vmul.f32 %v6616, 1.442695
        %v6642 = vpow.pop %v6641
        %v6643 = vmul.f32 %v6617, 1.442695
        %v6644 = vpow.pop %v6643
        %v6645 = vmul.f32 %v6618, 1.442695
        %v6646 = vpow.pop %v6645
        %v6647 = vmul.f32 %v6619, 1.442695
        %v6648 = vpow.pop %v6647
        %v6649 = vmul.f32 %v6620, 1.442695
        %v6650 = vpow.pop %v6649
        %v6651 = vmul.f32 %v6621, 1.442695
        %v6652 = vpow.pop %v6651
        %v6653 = vmul.f32 %v6622, 1.442695
        %v6654 = vpow.pop %v6653
        %6655 = vadd.xlane.f32.xlu0 %v6624
        %v6656 = vpop.xlane.xlu0 %6655
        %6657 = vadd.xlane.f32.xlu0 %v6626
        %v6658 = vpop.xlane.xlu0 %6657
        %6659 = vadd.xlane.f32.xlu0 %v6628
        %v6660 = vpop.xlane.xlu0 %6659
        %6661 = vadd.xlane.f32.xlu0 %v6630
        %v6662 = vpop.xlane.xlu0 %6661
        %6663 = vadd.xlane.f32.xlu0 %v6632
        %v6664 = vpop.xlane.xlu0 %6663
        %6665 = vadd.xlane.f32.xlu0 %v6634
        %v6666 = vpop.xlane.xlu0 %6665
        %6667 = vadd.xlane.f32.xlu0 %v6636
        %v6668 = vpop.xlane.xlu0 %6667
        %6669 = vadd.xlane.f32.xlu0 %v6638
        %v6670 = vpop.xlane.xlu0 %6669
        %6671 = vadd.xlane.f32.xlu0 %v6640
        %v6672 = vpop.xlane.xlu0 %6671
        %6673 = vadd.xlane.f32.xlu0 %v6642
        %v6674 = vpop.xlane.xlu0 %6673
        %6675 = vadd.xlane.f32.xlu0 %v6644
        %v6676 = vpop.xlane.xlu0 %6675
        %6677 = vadd.xlane.f32.xlu0 %v6646
        %v6678 = vpop.xlane.xlu0 %6677
        %6679 = vadd.xlane.f32.xlu0 %v6648
        %v6680 = vpop.xlane.xlu0 %6679
        %6681 = vadd.xlane.f32.xlu0 %v6650
        %v6682 = vpop.xlane.xlu0 %6681
        %6683 = vadd.xlane.f32.xlu0 %v6652
        %v6684 = vpop.xlane.xlu0 %6683
        %6685 = vadd.xlane.f32.xlu0 %v6654
        %v6686 = vpop.xlane.xlu0 %6685
        %v6687 = vrcp.pop %v6656
        %v6688 = vrcp.pop %v6658
        %v6689 = vrcp.pop %v6660
        %v6690 = vrcp.pop %v6662
        %v6691 = vrcp.pop %v6664
        %v6692 = vrcp.pop %v6666
        %v6693 = vrcp.pop %v6668
        %v6694 = vrcp.pop %v6670
        %v6695 = vrcp.pop %v6672
        %v6696 = vrcp.pop %v6674
        %v6697 = vrcp.pop %v6676
        %v6698 = vrcp.pop %v6678
        %v6699 = vrcp.pop %v6680
        %v6700 = vrcp.pop %v6682
        %v6701 = vrcp.pop %v6684
        %v6702 = vrcp.pop %v6686
        %v6703 = vmul.f32 %v6624, %v6687
        %v6704 = vmul.f32 %v6626, %v6688
        %v6705 = vmul.f32 %v6628, %v6689
        %v6706 = vmul.f32 %v6630, %v6690
        %v6707 = vmul.f32 %v6632, %v6691
        %v6708 = vmul.f32 %v6634, %v6692
        %v6709 = vmul.f32 %v6636, %v6693
        %v6710 = vmul.f32 %v6638, %v6694
        %v6711 = vmul.f32 %v6640, %v6695
        %v6712 = vmul.f32 %v6642, %v6696
        %v6713 = vmul.f32 %v6644, %v6697
        %v6714 = vmul.f32 %v6646, %v6698
        %v6715 = vmul.f32 %v6648, %v6699
        %v6716 = vmul.f32 %v6650, %v6700
        %v6717 = vmul.f32 %v6652, %v6701
        %v6718 = vmul.f32 %v6654, %v6702
        %v6719 = vpack.c.bf16 %v6704, %v6703
        %v6720 = vpack.c.bf16 %v6706, %v6705
        %v6721 = vpack.c.bf16 %v6708, %v6707
        %v6722 = vpack.c.bf16 %v6710, %v6709
        %v6723 = vpack.c.bf16 %v6712, %v6711
        %v6724 = vpack.c.bf16 %v6714, %v6713
        %v6725 = vpack.c.bf16 %v6716, %v6715
        %v6726 = vpack.c.bf16 %v6718, %v6717
        %6727 = vrot.lane.b32.xlu0 %v1398, 64
        %v6728 = vpop.permute.xlu0 %6727
        %6729 = vrot.lane.b32.xlu0 %v1401, 64
        %v6730 = vpop.permute.xlu0 %6729
        %6731 = vrot.lane.b32.xlu0 %v1404, 64
        %v6732 = vpop.permute.xlu0 %6731
        %6733 = vrot.lane.b32.xlu0 %v1407, 64
        %v6734 = vpop.permute.xlu0 %6733
        %6735 = vrot.lane.b32.xlu0 %v1410, 64
        %v6736 = vpop.permute.xlu0 %6735
        %6737 = vrot.lane.b32.xlu0 %v1413, 64
        %v6738 = vpop.permute.xlu0 %6737
        %6739 = vrot.lane.b32.xlu0 %v1416, 64
        %v6740 = vpop.permute.xlu0 %6739
        %6741 = vrot.lane.b32.xlu0 %v1419, 64
        %v6742 = vpop.permute.xlu0 %6741
        %6751 = vmatprep.subr.bf16.mxu0 0
        %6752 = vmatpush1.bf16.msra.mxu0 %v6728
        %6753 = vmatprep.subr.bf16.mxu0 0
        %6754 = vmatpush1.bf16.msra.mxu0 %v6730
        %6755 = vmatprep.subr.bf16.mxu0 0
        %6756 = vmatpush1.bf16.msra.mxu0 %v6732
        %6757 = vmatprep.subr.bf16.mxu0 0
        %6758 = vmatpush1.bf16.msra.mxu0 %v6734
        %6759 = vmatprep.subr.bf16.mxu0 0
        %6760 = vmatpush1.bf16.msra.mxu0 %v6736
        %6761 = vmatprep.subr.bf16.mxu0 0
        %6762 = vmatpush1.bf16.msra.mxu0 %v6738
        %6763 = vmatprep.subr.bf16.mxu0 0
        %6764 = vmatpush1.bf16.msra.mxu0 %v6740
        %6765 = vmatprep.subr.bf16.mxu0 0
        %6766 = vmatpush1.bf16.msra.mxu0 %v6742
        %6767 = vmatprep.subr.bf16.mxu0 0
        %6768 = vmatpush1.bf16.msra.mxu0 0
        %6769 = vmatprep.subr.bf16.mxu0 0
        %6770 = vmatpush1.bf16.msra.mxu0 0
        %6771 = vmatprep.subr.bf16.mxu0 0
        %6772 = vmatpush1.bf16.msra.mxu0 0
        %6773 = vmatprep.subr.bf16.mxu0 0
        %6774 = vmatpush1.bf16.msra.mxu0 0
        %6775 = vmatprep.subr.bf16.mxu0 0
        %6776 = vmatpush1.bf16.msra.mxu0 0
        %6777 = vmatprep.subr.bf16.mxu0 0
        %6778 = vmatpush1.bf16.msra.mxu0 0
        %6779 = vmatprep.subr.bf16.mxu0 0
        %6780 = vmatpush1.bf16.msra.mxu0 0
        %6781 = vmatprep.subr.bf16.mxu0 0
        %6782 = vmatpush1.bf16.msra.mxu0 0
        %6783 = vmatprep.mubr.bf16.mxu0 0
        %6784 = vmatmul.mubr.bf16.gmra.mrb[0].mxu0 %v6719
        %v6785 = vpop.f32.mrb[0].mxu0
        %v6786 = vadd.f32 0.0, %v6785
        %v6787 = vpop.f32.mrb[0].mxu0
        %v6788 = vpop.f32.mrb[0].mxu0
        %v6789 = vadd.f32 0.0, %v6788
        %v6790 = vpop.f32.mrb[0].mxu0
        %6791 = vmatprep.mubr.bf16.mxu0 0
        %6792 = vmatmul.mubr.bf16.gmra.mrb[0].mxu0 %v6720
        %v6793 = vpop.f32.mrb[0].mxu0
        %v6794 = vadd.f32 0.0, %v6793
        %v6795 = vpop.f32.mrb[0].mxu0
        %v6796 = vpop.f32.mrb[0].mxu0
        %v6797 = vadd.f32 0.0, %v6796
        %v6798 = vpop.f32.mrb[0].mxu0
        %6799 = vmatprep.mubr.bf16.mxu0 0
        %6800 = vmatmul.mubr.bf16.gmra.mrb[0].mxu0 %v6721
        %v6801 = vpop.f32.mrb[0].mxu0
        %v6802 = vadd.f32 0.0, %v6801
        %v6803 = vpop.f32.mrb[0].mxu0
        %v6804 = vpop.f32.mrb[0].mxu0
        %v6805 = vadd.f32 0.0, %v6804
        %v6806 = vpop.f32.mrb[0].mxu0
        %6807 = vmatprep.mubr.bf16.mxu0 0
        %6808 = vmatmul.mubr.bf16.gmra.mrb[0].mxu0 %v6722
        %v6809 = vpop.f32.mrb[0].mxu0
        %v6810 = vadd.f32 0.0, %v6809
        %v6811 = vpop.f32.mrb[0].mxu0
        %v6812 = vpop.f32.mrb[0].mxu0
        %v6813 = vadd.f32 0.0, %v6812
        %v6814 = vpop.f32.mrb[0].mxu0
        %6815 = vmatprep.mubr.bf16.mxu0 0
        %6816 = vmatmul.mubr.bf16.gmra.mrb[0].mxu0 %v6723
        %v6817 = vpop.f32.mrb[0].mxu0
        %v6818 = vadd.f32 0.0, %v6817
        %v6819 = vpop.f32.mrb[0].mxu0
        %v6820 = vpop.f32.mrb[0].mxu0
        %v6821 = vadd.f32 0.0, %v6820
        %v6822 = vpop.f32.mrb[0].mxu0
        %6823 = vmatprep.mubr.bf16.mxu0 0
        %6824 = vmatmul.mubr.bf16.gmra.mrb[0].mxu0 %v6724
        %v6825 = vpop.f32.mrb[0].mxu0
        %v6826 = vadd.f32 0.0, %v6825
        %v6827 = vpop.f32.mrb[0].mxu0
        %v6828 = vpop.f32.mrb[0].mxu0
        %v6829 = vadd.f32 0.0, %v6828
        %v6830 = vpop.f32.mrb[0].mxu0
        %6831 = vmatprep.mubr.bf16.mxu0 0
        %6832 = vmatmul.mubr.bf16.gmra.mrb[0].mxu0 %v6725
        %v6833 = vpop.f32.mrb[0].mxu0
        %v6834 = vadd.f32 0.0, %v6833
        %v6835 = vpop.f32.mrb[0].mxu0
        %v6836 = vpop.f32.mrb[0].mxu0
        %v6837 = vadd.f32 0.0, %v6836
        %v6838 = vpop.f32.mrb[0].mxu0
        %6839 = vmatprep.mubr.bf16.mxu0 0
        %6840 = vmatmul.mubr.bf16.gmra.mrb[0].mxu0 %v6726
        %v6841 = vpop.f32.mrb[0].mxu0
        %v6842 = vadd.f32 0.0, %v6841
        %v6843 = vpop.f32.mrb[0].mxu0
        %v6844 = vpop.f32.mrb[0].mxu0
        %v6845 = vadd.f32 0.0, %v6844
        %v6846 = vpop.f32.mrb[0].mxu0
        %6847 = vdwg.mxu0
        %6848 = vrot.lane.b32.xlu0 %v1396, 32
        %v6849 = vpop.permute.xlu0 %6848
        %6850 = vrot.lane.b32.xlu0 %v1399, 32
        %v6851 = vpop.permute.xlu0 %6850
        %6852 = vrot.lane.b32.xlu0 %v1402, 32
        %v6853 = vpop.permute.xlu0 %6852
        %6854 = vrot.lane.b32.xlu0 %v1405, 32
        %v6855 = vpop.permute.xlu0 %6854
        %6856 = vrot.lane.b32.xlu0 %v1408, 32
        %v6857 = vpop.permute.xlu0 %6856
        %6858 = vrot.lane.b32.xlu0 %v1411, 32
        %v6859 = vpop.permute.xlu0 %6858
        %6860 = vrot.lane.b32.xlu0 %v1414, 32
        %v6861 = vpop.permute.xlu0 %6860
        %6862 = vrot.lane.b32.xlu0 %v1417, 32
        %v6863 = vpop.permute.xlu0 %6862
        %6864 = vrot.lane.b32.xlu0 %v1397, 32
        %v6865 = vpop.permute.xlu0 %6864
        %6866 = vrot.lane.b32.xlu0 %v1400, 32
        %v6867 = vpop.permute.xlu0 %6866
        %6868 = vrot.lane.b32.xlu0 %v1403, 32
        %v6869 = vpop.permute.xlu0 %6868
        %6870 = vrot.lane.b32.xlu0 %v1406, 32
        %v6871 = vpop.permute.xlu0 %6870
        %6872 = vrot.lane.b32.xlu0 %v1409, 32
        %v6873 = vpop.permute.xlu0 %6872
        %6874 = vrot.lane.b32.xlu0 %v1412, 32
        %v6875 = vpop.permute.xlu0 %6874
        %6876 = vrot.lane.b32.xlu0 %v1415, 32
        %v6877 = vpop.permute.xlu0 %6876
        %6878 = vrot.lane.b32.xlu0 %v1418, 32
        %v6879 = vpop.permute.xlu0 %6878
        %v6881 = vsel %vm1460, %v6849, 0
        %v6884 = vsel %vm1460, %v6851, 0
        %v6887 = vsel %vm1460, %v6853, 0
        %v6890 = vsel %vm1460, %v6855, 0
        %v6893 = vsel %vm1460, %v6857, 0
        %v6896 = vsel %vm1460, %v6859, 0
        %v6899 = vsel %vm1460, %v6861, 0
        %v6902 = vsel %vm1460, %v6863, 0
        %v6905 = vsel %vm1460, %v6865, 0
        %v6908 = vsel %vm1460, %v6867, 0
        %v6911 = vsel %vm1460, %v6869, 0
        %v6914 = vsel %vm1460, %v6871, 0
        %v6917 = vsel %vm1460, %v6873, 0
        %v6920 = vsel %vm1460, %v6875, 0
        %v6923 = vsel %vm1460, %v6877, 0
        %v6926 = vsel %vm1460, %v6879, 0
        %6928 = vmatprep.subr.bf16.mxu0 0
        %6929 = vmatpush1.bf16.xpose.msra.mxu0 %v6905
        %6930 = vmatprep.subr.bf16.mxu0 0
        %6931 = vmatpush1.bf16.xpose.msra.mxu0 %v6908
        %6932 = vmatprep.subr.bf16.mxu0 0
        %6933 = vmatpush1.bf16.xpose.msra.mxu0 %v6911
        %6934 = vmatprep.subr.bf16.mxu0 0
        %6935 = vmatpush1.bf16.xpose.msra.mxu0 %v6914
        %6936 = vmatprep.subr.bf16.mxu0 0
        %6937 = vmatpush1.bf16.xpose.msra.mxu0 %v6917
        %6938 = vmatprep.subr.bf16.mxu0 0
        %6939 = vmatpush1.bf16.xpose.msra.mxu0 %v6920
        %6940 = vmatprep.subr.bf16.mxu0 0
        %6941 = vmatpush1.bf16.xpose.msra.mxu0 %v6923
        %6942 = vmatprep.subr.bf16.mxu0 0
        %6943 = vmatpush1.bf16.xpose.msra.mxu0 %v6926
        %6944 = vmatprep.subr.bf16.mxu0 0
        %6945 = vmatpush1.bf16.xpose.msra.mxu0 0
        %6946 = vmatprep.subr.bf16.mxu0 0
        %6947 = vmatpush1.bf16.xpose.msra.mxu0 0
        %6948 = vmatprep.subr.bf16.mxu0 0
        %6949 = vmatpush1.bf16.xpose.msra.mxu0 0
        %6950 = vmatprep.subr.bf16.mxu0 0
        %6951 = vmatpush1.bf16.xpose.msra.mxu0 0
        %6952 = vmatprep.subr.bf16.mxu0 0
        %6953 = vmatpush1.bf16.xpose.msra.mxu0 0
        %6954 = vmatprep.subr.bf16.mxu0 0
        %6955 = vmatpush1.bf16.xpose.msra.mxu0 0
        %6956 = vmatprep.subr.bf16.mxu0 0
        %6957 = vmatpush1.bf16.xpose.msra.mxu0 0
        %6958 = vmatprep.subr.bf16.mxu0 0
        %6959 = vmatpush1.bf16.xpose.msra.mxu0 0
        %6960 = vmatprep.mubr.bf16.mxu0 0
        %6961 = vmatmul.mubr.bf16.gmra.mrb[0].mxu0 %v6881
        %v6962 = vpop.f32.mrb[0].mxu0
        %v6963 = vadd.f32 %v2814, %v6962
        %v6964 = vpop.f32.mrb[0].mxu0
        %v6965 = vpop.f32.mrb[0].mxu0
        %v6966 = vadd.f32 %v2815, %v6965
        %v6967 = vpop.f32.mrb[0].mxu0
        %6968 = vmatprep.mubr.bf16.mxu0 0
        %6969 = vmatmul.mubr.bf16.gmra.mrb[0].mxu0 %v6884
        %v6970 = vpop.f32.mrb[0].mxu0
        %v6971 = vadd.f32 %v2816, %v6970
        %v6972 = vpop.f32.mrb[0].mxu0
        %v6973 = vpop.f32.mrb[0].mxu0
        %v6974 = vadd.f32 %v2817, %v6973
        %v6975 = vpop.f32.mrb[0].mxu0
        %6976 = vmatprep.mubr.bf16.mxu0 0
        %6977 = vmatmul.mubr.bf16.gmra.mrb[0].mxu0 %v6887
        %v6978 = vpop.f32.mrb[0].mxu0
        %v6979 = vadd.f32 %v2818, %v6978
        %v6980 = vpop.f32.mrb[0].mxu0
        %v6981 = vpop.f32.mrb[0].mxu0
        %v6982 = vadd.f32 %v2819, %v6981
        %v6983 = vpop.f32.mrb[0].mxu0
        %6984 = vmatprep.mubr.bf16.mxu0 0
        %6985 = vmatmul.mubr.bf16.gmra.mrb[0].mxu0 %v6890
        %v6986 = vpop.f32.mrb[0].mxu0
        %v6987 = vadd.f32 %v2820, %v6986
        %v6988 = vpop.f32.mrb[0].mxu0
        %v6989 = vpop.f32.mrb[0].mxu0
        %v6990 = vadd.f32 %v2821, %v6989
        %v6991 = vpop.f32.mrb[0].mxu0
        %6992 = vmatprep.mubr.bf16.mxu0 0
        %6993 = vmatmul.mubr.bf16.gmra.mrb[0].mxu0 %v6893
        %v6994 = vpop.f32.mrb[0].mxu0
        %v6995 = vadd.f32 %v2822, %v6994
        %v6996 = vpop.f32.mrb[0].mxu0
        %v6997 = vpop.f32.mrb[0].mxu0
        %v6998 = vadd.f32 %v2823, %v6997
        %v6999 = vpop.f32.mrb[0].mxu0
        %7000 = vmatprep.mubr.bf16.mxu0 0
        %7001 = vmatmul.mubr.bf16.gmra.mrb[0].mxu0 %v6896
        %v7002 = vpop.f32.mrb[0].mxu0
        %v7003 = vadd.f32 %v2824, %v7002
        %v7004 = vpop.f32.mrb[0].mxu0
        %v7005 = vpop.f32.mrb[0].mxu0
        %v7006 = vadd.f32 %v2825, %v7005
        %v7007 = vpop.f32.mrb[0].mxu0
        %7008 = vmatprep.mubr.bf16.mxu0 0
        %7009 = vmatmul.mubr.bf16.gmra.mrb[0].mxu0 %v6899
        %v7010 = vpop.f32.mrb[0].mxu0
        %v7011 = vadd.f32 %v2826, %v7010
        %v7012 = vpop.f32.mrb[0].mxu0
        %v7013 = vpop.f32.mrb[0].mxu0
        %v7014 = vadd.f32 %v2827, %v7013
        %v7015 = vpop.f32.mrb[0].mxu0
        %7016 = vmatprep.mubr.bf16.mxu0 0
        %7017 = vmatmul.mubr.bf16.gmra.mrb[0].mxu0 %v6902
        %v7018 = vpop.f32.mrb[0].mxu0
        %v7019 = vadd.f32 %v2828, %v7018
        %v7020 = vpop.f32.mrb[0].mxu0
        %v7021 = vpop.f32.mrb[0].mxu0
        %v7022 = vadd.f32 %v2829, %v7021
        %v7023 = vpop.f32.mrb[0].mxu0
        %7024 = vdwg.mxu0
        %7025 = vmax.xlane.f32.xlu0 %v6963
        %v7026 = vpop.xlane.xlu0 %7025
        %7027 = vmax.xlane.f32.xlu0 %v6966
        %v7028 = vpop.xlane.xlu0 %7027
        %7029 = vmax.xlane.f32.xlu0 %v6971
        %v7030 = vpop.xlane.xlu0 %7029
        %7031 = vmax.xlane.f32.xlu0 %v6974
        %v7032 = vpop.xlane.xlu0 %7031
        %7033 = vmax.xlane.f32.xlu0 %v6979
        %v7034 = vpop.xlane.xlu0 %7033
        %7035 = vmax.xlane.f32.xlu0 %v6982
        %v7036 = vpop.xlane.xlu0 %7035
        %7037 = vmax.xlane.f32.xlu0 %v6987
        %v7038 = vpop.xlane.xlu0 %7037
        %7039 = vmax.xlane.f32.xlu0 %v6990
        %v7040 = vpop.xlane.xlu0 %7039
        %7041 = vmax.xlane.f32.xlu0 %v6995
        %v7042 = vpop.xlane.xlu0 %7041
        %7043 = vmax.xlane.f32.xlu0 %v6998
        %v7044 = vpop.xlane.xlu0 %7043
        %7045 = vmax.xlane.f32.xlu0 %v7003
        %v7046 = vpop.xlane.xlu0 %7045
        %7047 = vmax.xlane.f32.xlu0 %v7006
        %v7048 = vpop.xlane.xlu0 %7047
        %7049 = vmax.xlane.f32.xlu0 %v7011
        %v7050 = vpop.xlane.xlu0 %7049
        %7051 = vmax.xlane.f32.xlu0 %v7014
        %v7052 = vpop.xlane.xlu0 %7051
        %7053 = vmax.xlane.f32.xlu0 %v7019
        %v7054 = vpop.xlane.xlu0 %7053
        %7055 = vmax.xlane.f32.xlu0 %v7022
        %v7056 = vpop.xlane.xlu0 %7055
        %v7057 = vsub.f32 %v6963, %v7026
        %v7058 = vsub.f32 %v6966, %v7028
        %v7059 = vsub.f32 %v6971, %v7030
        %v7060 = vsub.f32 %v6974, %v7032
        %v7061 = vsub.f32 %v6979, %v7034
        %v7062 = vsub.f32 %v6982, %v7036
        %v7063 = vsub.f32 %v6987, %v7038
        %v7064 = vsub.f32 %v6990, %v7040
        %v7065 = vsub.f32 %v6995, %v7042
        %v7066 = vsub.f32 %v6998, %v7044
        %v7067 = vsub.f32 %v7003, %v7046
        %v7068 = vsub.f32 %v7006, %v7048
        %v7069 = vsub.f32 %v7011, %v7050
        %v7070 = vsub.f32 %v7014, %v7052
        %v7071 = vsub.f32 %v7019, %v7054
        %v7072 = vsub.f32 %v7022, %v7056
        %v7073 = vmul.f32 %v7057, 1.442695
        %v7074 = vpow.pop %v7073
        %v7075 = vmul.f32 %v7058, 1.442695
        %v7076 = vpow.pop %v7075
        %v7077 = vmul.f32 %v7059, 1.442695
        %v7078 = vpow.pop %v7077
        %v7079 = vmul.f32 %v7060, 1.442695
        %v7080 = vpow.pop %v7079
        %v7081 = vmul.f32 %v7061, 1.442695
        %v7082 = vpow.pop %v7081
        %v7083 = vmul.f32 %v7062, 1.442695
        %v7084 = vpow.pop %v7083
        %v7085 = vmul.f32 %v7063, 1.442695
        %v7086 = vpow.pop %v7085
        %v7087 = vmul.f32 %v7064, 1.442695
        %v7088 = vpow.pop %v7087
        %v7089 = vmul.f32 %v7065, 1.442695
        %v7090 = vpow.pop %v7089
        %v7091 = vmul.f32 %v7066, 1.442695
        %v7092 = vpow.pop %v7091
        %v7093 = vmul.f32 %v7067, 1.442695
        %v7094 = vpow.pop %v7093
        %v7095 = vmul.f32 %v7068, 1.442695
        %v7096 = vpow.pop %v7095
        %v7097 = vmul.f32 %v7069, 1.442695
        %v7098 = vpow.pop %v7097
        %v7099 = vmul.f32 %v7070, 1.442695
        %v7100 = vpow.pop %v7099
        %v7101 = vmul.f32 %v7071, 1.442695
        %v7102 = vpow.pop %v7101
        %v7103 = vmul.f32 %v7072, 1.442695
        %v7104 = vpow.pop %v7103
        %7105 = vadd.xlane.f32.xlu0 %v7074
        %v7106 = vpop.xlane.xlu0 %7105
        %7107 = vadd.xlane.f32.xlu0 %v7076
        %v7108 = vpop.xlane.xlu0 %7107
        %7109 = vadd.xlane.f32.xlu0 %v7078
        %v7110 = vpop.xlane.xlu0 %7109
        %7111 = vadd.xlane.f32.xlu0 %v7080
        %v7112 = vpop.xlane.xlu0 %7111
        %7113 = vadd.xlane.f32.xlu0 %v7082
        %v7114 = vpop.xlane.xlu0 %7113
        %7115 = vadd.xlane.f32.xlu0 %v7084
        %v7116 = vpop.xlane.xlu0 %7115
        %7117 = vadd.xlane.f32.xlu0 %v7086
        %v7118 = vpop.xlane.xlu0 %7117
        %7119 = vadd.xlane.f32.xlu0 %v7088
        %v7120 = vpop.xlane.xlu0 %7119
        %7121 = vadd.xlane.f32.xlu0 %v7090
        %v7122 = vpop.xlane.xlu0 %7121
        %7123 = vadd.xlane.f32.xlu0 %v7092
        %v7124 = vpop.xlane.xlu0 %7123
        %7125 = vadd.xlane.f32.xlu0 %v7094
        %v7126 = vpop.xlane.xlu0 %7125
        %7127 = vadd.xlane.f32.xlu0 %v7096
        %v7128 = vpop.xlane.xlu0 %7127
        %7129 = vadd.xlane.f32.xlu0 %v7098
        %v7130 = vpop.xlane.xlu0 %7129
        %7131 = vadd.xlane.f32.xlu0 %v7100
        %v7132 = vpop.xlane.xlu0 %7131
        %7133 = vadd.xlane.f32.xlu0 %v7102
        %v7134 = vpop.xlane.xlu0 %7133
        %7135 = vadd.xlane.f32.xlu0 %v7104
        %v7136 = vpop.xlane.xlu0 %7135
        %v7137 = vrcp.pop %v7106
        %v7138 = vrcp.pop %v7108
        %v7139 = vrcp.pop %v7110
        %v7140 = vrcp.pop %v7112
        %v7141 = vrcp.pop %v7114
        %v7142 = vrcp.pop %v7116
        %v7143 = vrcp.pop %v7118
        %v7144 = vrcp.pop %v7120
        %v7145 = vrcp.pop %v7122
        %v7146 = vrcp.pop %v7124
        %v7147 = vrcp.pop %v7126
        %v7148 = vrcp.pop %v7128
        %v7149 = vrcp.pop %v7130
        %v7150 = vrcp.pop %v7132
        %v7151 = vrcp.pop %v7134
        %v7152 = vrcp.pop %v7136
        %v7153 = vmul.f32 %v7074, %v7137
        %v7154 = vmul.f32 %v7076, %v7138
        %v7155 = vmul.f32 %v7078, %v7139
        %v7156 = vmul.f32 %v7080, %v7140
        %v7157 = vmul.f32 %v7082, %v7141
        %v7158 = vmul.f32 %v7084, %v7142
        %v7159 = vmul.f32 %v7086, %v7143
        %v7160 = vmul.f32 %v7088, %v7144
        %v7161 = vmul.f32 %v7090, %v7145
        %v7162 = vmul.f32 %v7092, %v7146
        %v7163 = vmul.f32 %v7094, %v7147
        %v7164 = vmul.f32 %v7096, %v7148
        %v7165 = vmul.f32 %v7098, %v7149
        %v7166 = vmul.f32 %v7100, %v7150
        %v7167 = vmul.f32 %v7102, %v7151
        %v7168 = vmul.f32 %v7104, %v7152
        %v7169 = vpack.c.bf16 %v7154, %v7153
        %v7170 = vpack.c.bf16 %v7156, %v7155
        %v7171 = vpack.c.bf16 %v7158, %v7157
        %v7172 = vpack.c.bf16 %v7160, %v7159
        %v7173 = vpack.c.bf16 %v7162, %v7161
        %v7174 = vpack.c.bf16 %v7164, %v7163
        %v7175 = vpack.c.bf16 %v7166, %v7165
        %v7176 = vpack.c.bf16 %v7168, %v7167
        %7177 = vrot.lane.b32.xlu0 %v1398, 32
        %v7178 = vpop.permute.xlu0 %7177
        %7179 = vrot.lane.b32.xlu0 %v1401, 32
        %v7180 = vpop.permute.xlu0 %7179
        %7181 = vrot.lane.b32.xlu0 %v1404, 32
        %v7182 = vpop.permute.xlu0 %7181
        %7183 = vrot.lane.b32.xlu0 %v1407, 32
        %v7184 = vpop.permute.xlu0 %7183
        %7185 = vrot.lane.b32.xlu0 %v1410, 32
        %v7186 = vpop.permute.xlu0 %7185
        %7187 = vrot.lane.b32.xlu0 %v1413, 32
        %v7188 = vpop.permute.xlu0 %7187
        %7189 = vrot.lane.b32.xlu0 %v1416, 32
        %v7190 = vpop.permute.xlu0 %7189
        %7191 = vrot.lane.b32.xlu0 %v1419, 32
        %v7192 = vpop.permute.xlu0 %7191
        %7201 = vmatprep.subr.bf16.mxu0 0
        %7202 = vmatpush1.bf16.msra.mxu0 %v7178
        %7203 = vmatprep.subr.bf16.mxu0 0
        %7204 = vmatpush1.bf16.msra.mxu0 %v7180
        %7205 = vmatprep.subr.bf16.mxu0 0
        %7206 = vmatpush1.bf16.msra.mxu0 %v7182
        %7207 = vmatprep.subr.bf16.mxu0 0
        %7208 = vmatpush1.bf16.msra.mxu0 %v7184
        %7209 = vmatprep.subr.bf16.mxu0 0
        %7210 = vmatpush1.bf16.msra.mxu0 %v7186
        %7211 = vmatprep.subr.bf16.mxu0 0
        %7212 = vmatpush1.bf16.msra.mxu0 %v7188
        %7213 = vmatprep.subr.bf16.mxu0 0
        %7214 = vmatpush1.bf16.msra.mxu0 %v7190
        %7215 = vmatprep.subr.bf16.mxu0 0
        %7216 = vmatpush1.bf16.msra.mxu0 %v7192
        %7217 = vmatprep.subr.bf16.mxu0 0
        %7218 = vmatpush1.bf16.msra.mxu0 0
        %7219 = vmatprep.subr.bf16.mxu0 0
        %7220 = vmatpush1.bf16.msra.mxu0 0
        %7221 = vmatprep.subr.bf16.mxu0 0
        %7222 = vmatpush1.bf16.msra.mxu0 0
        %7223 = vmatprep.subr.bf16.mxu0 0
        %7224 = vmatpush1.bf16.msra.mxu0 0
        %7225 = vmatprep.subr.bf16.mxu0 0
        %7226 = vmatpush1.bf16.msra.mxu0 0
        %7227 = vmatprep.subr.bf16.mxu0 0
        %7228 = vmatpush1.bf16.msra.mxu0 0
        %7229 = vmatprep.subr.bf16.mxu0 0
        %7230 = vmatpush1.bf16.msra.mxu0 0
        %7231 = vmatprep.subr.bf16.mxu0 0
        %7232 = vmatpush1.bf16.msra.mxu0 0
        %7233 = vmatprep.mubr.bf16.mxu0 0
        %7234 = vmatmul.mubr.bf16.gmra.mrb[0].mxu0 %v7169
        %v7235 = vpop.f32.mrb[0].mxu0
        %v7236 = vadd.f32 0.0, %v7235
        %v7237 = vpop.f32.mrb[0].mxu0
        %v7238 = vpop.f32.mrb[0].mxu0
        %v7239 = vadd.f32 0.0, %v7238
        %v7240 = vpop.f32.mrb[0].mxu0
        %7241 = vmatprep.mubr.bf16.mxu0 0
        %7242 = vmatmul.mubr.bf16.gmra.mrb[0].mxu0 %v7170
        %v7243 = vpop.f32.mrb[0].mxu0
        %v7244 = vadd.f32 0.0, %v7243
        %v7245 = vpop.f32.mrb[0].mxu0
        %v7246 = vpop.f32.mrb[0].mxu0
        %v7247 = vadd.f32 0.0, %v7246
        %v7248 = vpop.f32.mrb[0].mxu0
        %7249 = vmatprep.mubr.bf16.mxu0 0
        %7250 = vmatmul.mubr.bf16.gmra.mrb[0].mxu0 %v7171
        %v7251 = vpop.f32.mrb[0].mxu0
        %v7252 = vadd.f32 0.0, %v7251
        %v7253 = vpop.f32.mrb[0].mxu0
        %v7254 = vpop.f32.mrb[0].mxu0
        %v7255 = vadd.f32 0.0, %v7254
        %v7256 = vpop.f32.mrb[0].mxu0
        %7257 = vmatprep.mubr.bf16.mxu0 0
        %7258 = vmatmul.mubr.bf16.gmra.mrb[0].mxu0 %v7172
        %v7259 = vpop.f32.mrb[0].mxu0
        %v7260 = vadd.f32 0.0, %v7259
        %v7261 = vpop.f32.mrb[0].mxu0
        %v7262 = vpop.f32.mrb[0].mxu0
        %v7263 = vadd.f32 0.0, %v7262
        %v7264 = vpop.f32.mrb[0].mxu0
        %7265 = vmatprep.mubr.bf16.mxu0 0
        %7266 = vmatmul.mubr.bf16.gmra.mrb[0].mxu0 %v7173
        %v7267 = vpop.f32.mrb[0].mxu0
        %v7268 = vadd.f32 0.0, %v7267
        %v7269 = vpop.f32.mrb[0].mxu0
        %v7270 = vpop.f32.mrb[0].mxu0
        %v7271 = vadd.f32 0.0, %v7270
        %v7272 = vpop.f32.mrb[0].mxu0
        %7273 = vmatprep.mubr.bf16.mxu0 0
        %7274 = vmatmul.mubr.bf16.gmra.mrb[0].mxu0 %v7174
        %v7275 = vpop.f32.mrb[0].mxu0
        %v7276 = vadd.f32 0.0, %v7275
        %v7277 = vpop.f32.mrb[0].mxu0
        %v7278 = vpop.f32.mrb[0].mxu0
        %v7279 = vadd.f32 0.0, %v7278
        %v7280 = vpop.f32.mrb[0].mxu0
        %7281 = vmatprep.mubr.bf16.mxu0 0
        %7282 = vmatmul.mubr.bf16.gmra.mrb[0].mxu0 %v7175
        %v7283 = vpop.f32.mrb[0].mxu0
        %v7284 = vadd.f32 0.0, %v7283
        %v7285 = vpop.f32.mrb[0].mxu0
        %v7286 = vpop.f32.mrb[0].mxu0
        %v7287 = vadd.f32 0.0, %v7286
        %v7288 = vpop.f32.mrb[0].mxu0
        %7289 = vmatprep.mubr.bf16.mxu0 0
        %7290 = vmatmul.mubr.bf16.gmra.mrb[0].mxu0 %v7176
        %v7291 = vpop.f32.mrb[0].mxu0
        %v7292 = vadd.f32 0.0, %v7291
        %v7293 = vpop.f32.mrb[0].mxu0
        %v7294 = vpop.f32.mrb[0].mxu0
        %v7295 = vadd.f32 0.0, %v7294
        %v7296 = vpop.f32.mrb[0].mxu0
        %7297 = vdwg.mxu0
        %7314 = vrot.lane.b32.xlu0 %v6336, 32
        %v7315 = vpop.permute.xlu0 %7314
        %7316 = vrot.lane.b32.xlu0 %v6339, 32
        %v7317 = vpop.permute.xlu0 %7316
        %7318 = vrot.lane.b32.xlu0 %v6344, 32
        %v7319 = vpop.permute.xlu0 %7318
        %7320 = vrot.lane.b32.xlu0 %v6347, 32
        %v7321 = vpop.permute.xlu0 %7320
        %7322 = vrot.lane.b32.xlu0 %v6352, 32
        %v7323 = vpop.permute.xlu0 %7322
        %7324 = vrot.lane.b32.xlu0 %v6355, 32
        %v7325 = vpop.permute.xlu0 %7324
        %7326 = vrot.lane.b32.xlu0 %v6360, 32
        %v7327 = vpop.permute.xlu0 %7326
        %7328 = vrot.lane.b32.xlu0 %v6363, 32
        %v7329 = vpop.permute.xlu0 %7328
        %7330 = vrot.lane.b32.xlu0 %v6368, 32
        %v7331 = vpop.permute.xlu0 %7330
        %7332 = vrot.lane.b32.xlu0 %v6371, 32
        %v7333 = vpop.permute.xlu0 %7332
        %7334 = vrot.lane.b32.xlu0 %v6376, 32
        %v7335 = vpop.permute.xlu0 %7334
        %7336 = vrot.lane.b32.xlu0 %v6379, 32
        %v7337 = vpop.permute.xlu0 %7336
        %7338 = vrot.lane.b32.xlu0 %v6384, 32
        %v7339 = vpop.permute.xlu0 %7338
        %7340 = vrot.lane.b32.xlu0 %v6387, 32
        %v7341 = vpop.permute.xlu0 %7340
        %7342 = vrot.lane.b32.xlu0 %v6392, 32
        %v7343 = vpop.permute.xlu0 %7342
        %7344 = vrot.lane.b32.xlu0 %v6395, 32
        %v7345 = vpop.permute.xlu0 %7344
        %7378 = vrot.lane.b32.xlu0 %v6786, 64
        %v7379 = vpop.permute.xlu0 %7378
        %7380 = vrot.lane.b32.xlu0 %v6789, 64
        %v7381 = vpop.permute.xlu0 %7380
        %7382 = vrot.lane.b32.xlu0 %v6794, 64
        %v7383 = vpop.permute.xlu0 %7382
        %7384 = vrot.lane.b32.xlu0 %v6797, 64
        %v7385 = vpop.permute.xlu0 %7384
        %7386 = vrot.lane.b32.xlu0 %v6802, 64
        %v7387 = vpop.permute.xlu0 %7386
        %7388 = vrot.lane.b32.xlu0 %v6805, 64
        %v7389 = vpop.permute.xlu0 %7388
        %7390 = vrot.lane.b32.xlu0 %v6810, 64
        %v7391 = vpop.permute.xlu0 %7390
        %7392 = vrot.lane.b32.xlu0 %v6813, 64
        %v7393 = vpop.permute.xlu0 %7392
        %7394 = vrot.lane.b32.xlu0 %v6818, 64
        %v7395 = vpop.permute.xlu0 %7394
        %7396 = vrot.lane.b32.xlu0 %v6821, 64
        %v7397 = vpop.permute.xlu0 %7396
        %7398 = vrot.lane.b32.xlu0 %v6826, 64
        %v7399 = vpop.permute.xlu0 %7398
        %7400 = vrot.lane.b32.xlu0 %v6829, 64
        %v7401 = vpop.permute.xlu0 %7400
        %7402 = vrot.lane.b32.xlu0 %v6834, 64
        %v7403 = vpop.permute.xlu0 %7402
        %7404 = vrot.lane.b32.xlu0 %v6837, 64
        %v7405 = vpop.permute.xlu0 %7404
        %7406 = vrot.lane.b32.xlu0 %v6842, 64
        %v7407 = vpop.permute.xlu0 %7406
        %7408 = vrot.lane.b32.xlu0 %v6845, 64
        %v7409 = vpop.permute.xlu0 %7408
        %7442 = vrot.lane.b32.xlu0 %v7236, 96
        %v7443 = vpop.permute.xlu0 %7442
        %7444 = vrot.lane.b32.xlu0 %v7239, 96
        %v7445 = vpop.permute.xlu0 %7444
        %7446 = vrot.lane.b32.xlu0 %v7244, 96
        %v7447 = vpop.permute.xlu0 %7446
        %7448 = vrot.lane.b32.xlu0 %v7247, 96
        %v7449 = vpop.permute.xlu0 %7448
        %7450 = vrot.lane.b32.xlu0 %v7252, 96
        %v7451 = vpop.permute.xlu0 %7450
        %7452 = vrot.lane.b32.xlu0 %v7255, 96
        %v7453 = vpop.permute.xlu0 %7452
        %7454 = vrot.lane.b32.xlu0 %v7260, 96
        %v7455 = vpop.permute.xlu0 %7454
        %7456 = vrot.lane.b32.xlu0 %v7263, 96
        %v7457 = vpop.permute.xlu0 %7456
        %7458 = vrot.lane.b32.xlu0 %v7268, 96
        %v7459 = vpop.permute.xlu0 %7458
        %7460 = vrot.lane.b32.xlu0 %v7271, 96
        %v7461 = vpop.permute.xlu0 %7460
        %7462 = vrot.lane.b32.xlu0 %v7276, 96
        %v7463 = vpop.permute.xlu0 %7462
        %7464 = vrot.lane.b32.xlu0 %v7279, 96
        %v7465 = vpop.permute.xlu0 %7464
        %7466 = vrot.lane.b32.xlu0 %v7284, 96
        %v7467 = vpop.permute.xlu0 %7466
        %7468 = vrot.lane.b32.xlu0 %v7287, 96
        %v7469 = vpop.permute.xlu0 %7468
        %7470 = vrot.lane.b32.xlu0 %v7292, 96
        %v7471 = vpop.permute.xlu0 %7470
        %7472 = vrot.lane.b32.xlu0 %v7295, 96
        %v7473 = vpop.permute.xlu0 %7472
        %v7490 = vsel %vm1460, %v5862, %v7315
        %v7491 = vsel %vm1460, %v5865, %v7317
        %v7492 = vsel %vm1460, %v5870, %v7319
        %v7493 = vsel %vm1460, %v5873, %v7321
        %v7494 = vsel %vm1460, %v5878, %v7323
        %v7495 = vsel %vm1460, %v5881, %v7325
        %v7496 = vsel %vm1460, %v5886, %v7327
        %v7497 = vsel %vm1460, %v5889, %v7329
        %v7498 = vsel %vm1460, %v5894, %v7331
        %v7499 = vsel %vm1460, %v5897, %v7333
        %v7500 = vsel %vm1460, %v5902, %v7335
        %v7501 = vsel %vm1460, %v5905, %v7337
        %v7502 = vsel %vm1460, %v5910, %v7339
        %v7503 = vsel %vm1460, %v5913, %v7341
        %v7504 = vsel %vm1460, %v5918, %v7343
        %v7505 = vsel %vm1460, %v5921, %v7345
        %v7506 = vsel %vm3488, %v7490, %v7379
        %v7507 = vsel %vm3488, %v7491, %v7381
        %v7508 = vsel %vm3488, %v7492, %v7383
        %v7509 = vsel %vm3488, %v7493, %v7385
        %v7510 = vsel %vm3488, %v7494, %v7387
        %v7511 = vsel %vm3488, %v7495, %v7389
        %v7512 = vsel %vm3488, %v7496, %v7391
        %v7513 = vsel %vm3488, %v7497, %v7393
        %v7514 = vsel %vm3488, %v7498, %v7395
        %v7515 = vsel %vm3488, %v7499, %v7397
        %v7516 = vsel %vm3488, %v7500, %v7399
        %v7517 = vsel %vm3488, %v7501, %v7401
        %v7518 = vsel %vm3488, %v7502, %v7403
        %v7519 = vsel %vm3488, %v7503, %v7405
        %v7520 = vsel %vm3488, %v7504, %v7407
        %v7521 = vsel %vm3488, %v7505, %v7409
        %v7522 = vsel %vm3505, %v7506, %v7443
        %v7523 = vsel %vm3505, %v7507, %v7445
        %v7524 = vsel %vm3505, %v7508, %v7447
        %v7525 = vsel %vm3505, %v7509, %v7449
        %v7526 = vsel %vm3505, %v7510, %v7451
        %v7527 = vsel %vm3505, %v7511, %v7453
        %v7528 = vsel %vm3505, %v7512, %v7455
        %v7529 = vsel %vm3505, %v7513, %v7457
        %v7530 = vsel %vm3505, %v7514, %v7459
        %v7531 = vsel %vm3505, %v7515, %v7461
        %v7532 = vsel %vm3505, %v7516, %v7463
        %v7533 = vsel %vm3505, %v7517, %v7465
        %v7534 = vsel %vm3505, %v7518, %v7467
        %v7535 = vsel %vm3505, %v7519, %v7469
        %v7536 = vsel %vm3505, %v7520, %v7471
        %v7537 = vsel %vm3505, %v7521, %v7473
        %v7539 = vsel %vm1460, %v1420, 0
        %v7542 = vsel %vm1460, %v1423, 0
        %v7545 = vsel %vm1460, %v1426, 0
        %v7548 = vsel %vm1460, %v1429, 0
        %v7551 = vsel %vm1460, %v1432, 0
        %v7554 = vsel %vm1460, %v1435, 0
        %v7557 = vsel %vm1460, %v1438, 0
        %v7560 = vsel %vm1460, %v1441, 0
        %v7563 = vsel %vm1460, %v1421, 0
        %v7566 = vsel %vm1460, %v1424, 0
        %v7569 = vsel %vm1460, %v1427, 0
        %v7572 = vsel %vm1460, %v1430, 0
        %v7575 = vsel %vm1460, %v1433, 0
        %v7578 = vsel %vm1460, %v1436, 0
        %v7581 = vsel %vm1460, %v1439, 0
        %v7584 = vsel %vm1460, %v1442, 0
        %7586 = vmatprep.subr.bf16.mxu0 0
        %7587 = vmatpush1.bf16.xpose.msra.mxu0 %v7563
        %7588 = vmatprep.subr.bf16.mxu0 0
        %7589 = vmatpush1.bf16.xpose.msra.mxu0 %v7566
        %7590 = vmatprep.subr.bf16.mxu0 0
        %7591 = vmatpush1.bf16.xpose.msra.mxu0 %v7569
        %7592 = vmatprep.subr.bf16.mxu0 0
        %7593 = vmatpush1.bf16.xpose.msra.mxu0 %v7572
        %7594 = vmatprep.subr.bf16.mxu0 0
        %7595 = vmatpush1.bf16.xpose.msra.mxu0 %v7575
        %7596 = vmatprep.subr.bf16.mxu0 0
        %7597 = vmatpush1.bf16.xpose.msra.mxu0 %v7578
        %7598 = vmatprep.subr.bf16.mxu0 0
        %7599 = vmatpush1.bf16.xpose.msra.mxu0 %v7581
        %7600 = vmatprep.subr.bf16.mxu0 0
        %7601 = vmatpush1.bf16.xpose.msra.mxu0 %v7584
        %7602 = vmatprep.subr.bf16.mxu0 0
        %7603 = vmatpush1.bf16.xpose.msra.mxu0 0
        %7604 = vmatprep.subr.bf16.mxu0 0
        %7605 = vmatpush1.bf16.xpose.msra.mxu0 0
        %7606 = vmatprep.subr.bf16.mxu0 0
        %7607 = vmatpush1.bf16.xpose.msra.mxu0 0
        %7608 = vmatprep.subr.bf16.mxu0 0
        %7609 = vmatpush1.bf16.xpose.msra.mxu0 0
        %7610 = vmatprep.subr.bf16.mxu0 0
        %7611 = vmatpush1.bf16.xpose.msra.mxu0 0
        %7612 = vmatprep.subr.bf16.mxu0 0
        %7613 = vmatpush1.bf16.xpose.msra.mxu0 0
        %7614 = vmatprep.subr.bf16.mxu0 0
        %7615 = vmatpush1.bf16.xpose.msra.mxu0 0
        %7616 = vmatprep.subr.bf16.mxu0 0
        %7617 = vmatpush1.bf16.xpose.msra.mxu0 0
        %7618 = vmatprep.mubr.bf16.mxu0 0
        %7619 = vmatmul.mubr.bf16.gmra.mrb[0].mxu0 %v7539
        %v7620 = vpop.f32.mrb[0].mxu0
        %v7621 = vadd.f32 %v1444, %v7620
        %v7622 = vpop.f32.mrb[0].mxu0
        %v7623 = vpop.f32.mrb[0].mxu0
        %v7624 = vadd.f32 %v1445, %v7623
        %v7625 = vpop.f32.mrb[0].mxu0
        %7626 = vmatprep.mubr.bf16.mxu0 0
        %7627 = vmatmul.mubr.bf16.gmra.mrb[0].mxu0 %v7542
        %v7628 = vpop.f32.mrb[0].mxu0
        %v7629 = vadd.f32 %v1446, %v7628
        %v7630 = vpop.f32.mrb[0].mxu0
        %v7631 = vpop.f32.mrb[0].mxu0
        %v7632 = vadd.f32 %v1447, %v7631
        %v7633 = vpop.f32.mrb[0].mxu0
        %7634 = vmatprep.mubr.bf16.mxu0 0
        %7635 = vmatmul.mubr.bf16.gmra.mrb[0].mxu0 %v7545
        %v7636 = vpop.f32.mrb[0].mxu0
        %v7637 = vadd.f32 %v1448, %v7636
        %v7638 = vpop.f32.mrb[0].mxu0
        %v7639 = vpop.f32.mrb[0].mxu0
        %v7640 = vadd.f32 %v1449, %v7639
        %v7641 = vpop.f32.mrb[0].mxu0
        %7642 = vmatprep.mubr.bf16.mxu0 0
        %7643 = vmatmul.mubr.bf16.gmra.mrb[0].mxu0 %v7548
        %v7644 = vpop.f32.mrb[0].mxu0
        %v7645 = vadd.f32 %v1450, %v7644
        %v7646 = vpop.f32.mrb[0].mxu0
        %v7647 = vpop.f32.mrb[0].mxu0
        %v7648 = vadd.f32 %v1451, %v7647
        %v7649 = vpop.f32.mrb[0].mxu0
        %7650 = vmatprep.mubr.bf16.mxu0 0
        %7651 = vmatmul.mubr.bf16.gmra.mrb[0].mxu0 %v7551
        %v7652 = vpop.f32.mrb[0].mxu0
        %v7653 = vadd.f32 %v1452, %v7652
        %v7654 = vpop.f32.mrb[0].mxu0
        %v7655 = vpop.f32.mrb[0].mxu0
        %v7656 = vadd.f32 %v1453, %v7655
        %v7657 = vpop.f32.mrb[0].mxu0
        %7658 = vmatprep.mubr.bf16.mxu0 0
        %7659 = vmatmul.mubr.bf16.gmra.mrb[0].mxu0 %v7554
        %v7660 = vpop.f32.mrb[0].mxu0
        %v7661 = vadd.f32 %v1454, %v7660
        %v7662 = vpop.f32.mrb[0].mxu0
        %v7663 = vpop.f32.mrb[0].mxu0
        %v7664 = vadd.f32 %v1455, %v7663
        %v7665 = vpop.f32.mrb[0].mxu0
        %7666 = vmatprep.mubr.bf16.mxu0 0
        %7667 = vmatmul.mubr.bf16.gmra.mrb[0].mxu0 %v7557
        %v7668 = vpop.f32.mrb[0].mxu0
        %v7669 = vadd.f32 %v1456, %v7668
        %v7670 = vpop.f32.mrb[0].mxu0
        %v7671 = vpop.f32.mrb[0].mxu0
        %v7672 = vadd.f32 %v1457, %v7671
        %v7673 = vpop.f32.mrb[0].mxu0
        %7674 = vmatprep.mubr.bf16.mxu0 0
        %7675 = vmatmul.mubr.bf16.gmra.mrb[0].mxu0 %v7560
        %v7676 = vpop.f32.mrb[0].mxu0
        %v7677 = vadd.f32 %v1458, %v7676
        %v7678 = vpop.f32.mrb[0].mxu0
        %v7679 = vpop.f32.mrb[0].mxu0
        %v7680 = vadd.f32 %v1459, %v7679
        %v7681 = vpop.f32.mrb[0].mxu0
        %7682 = vdwg.mxu0
        %7683 = vmax.xlane.f32.xlu0 %v7621
        %v7684 = vpop.xlane.xlu0 %7683
        %7685 = vmax.xlane.f32.xlu0 %v7624
        %v7686 = vpop.xlane.xlu0 %7685
        %7687 = vmax.xlane.f32.xlu0 %v7629
        %v7688 = vpop.xlane.xlu0 %7687
        %7689 = vmax.xlane.f32.xlu0 %v7632
        %v7690 = vpop.xlane.xlu0 %7689
        %7691 = vmax.xlane.f32.xlu0 %v7637
        %v7692 = vpop.xlane.xlu0 %7691
        %7693 = vmax.xlane.f32.xlu0 %v7640
        %v7694 = vpop.xlane.xlu0 %7693
        %7695 = vmax.xlane.f32.xlu0 %v7645
        %v7696 = vpop.xlane.xlu0 %7695
        %7697 = vmax.xlane.f32.xlu0 %v7648
        %v7698 = vpop.xlane.xlu0 %7697
        %7699 = vmax.xlane.f32.xlu0 %v7653
        %v7700 = vpop.xlane.xlu0 %7699
        %7701 = vmax.xlane.f32.xlu0 %v7656
        %v7702 = vpop.xlane.xlu0 %7701
        %7703 = vmax.xlane.f32.xlu0 %v7661
        %v7704 = vpop.xlane.xlu0 %7703
        %7705 = vmax.xlane.f32.xlu0 %v7664
        %v7706 = vpop.xlane.xlu0 %7705
        %7707 = vmax.xlane.f32.xlu0 %v7669
        %v7708 = vpop.xlane.xlu0 %7707
        %7709 = vmax.xlane.f32.xlu0 %v7672
        %v7710 = vpop.xlane.xlu0 %7709
        %7711 = vmax.xlane.f32.xlu0 %v7677
        %v7712 = vpop.xlane.xlu0 %7711
        %7713 = vmax.xlane.f32.xlu0 %v7680
        %v7714 = vpop.xlane.xlu0 %7713
        %v7715 = vsub.f32 %v7621, %v7684
        %v7716 = vsub.f32 %v7624, %v7686
        %v7717 = vsub.f32 %v7629, %v7688
        %v7718 = vsub.f32 %v7632, %v7690
        %v7719 = vsub.f32 %v7637, %v7692
        %v7720 = vsub.f32 %v7640, %v7694
        %v7721 = vsub.f32 %v7645, %v7696
        %v7722 = vsub.f32 %v7648, %v7698
        %v7723 = vsub.f32 %v7653, %v7700
        %v7724 = vsub.f32 %v7656, %v7702
        %v7725 = vsub.f32 %v7661, %v7704
        %v7726 = vsub.f32 %v7664, %v7706
        %v7727 = vsub.f32 %v7669, %v7708
        %v7728 = vsub.f32 %v7672, %v7710
        %v7729 = vsub.f32 %v7677, %v7712
        %v7730 = vsub.f32 %v7680, %v7714
        %v7731 = vmul.f32 %v7715, 1.442695
        %v7732 = vpow.pop %v7731
        %v7733 = vmul.f32 %v7716, 1.442695
        %v7734 = vpow.pop %v7733
        %v7735 = vmul.f32 %v7717, 1.442695
        %v7736 = vpow.pop %v7735
        %v7737 = vmul.f32 %v7718, 1.442695
        %v7738 = vpow.pop %v7737
        %v7739 = vmul.f32 %v7719, 1.442695
        %v7740 = vpow.pop %v7739
        %v7741 = vmul.f32 %v7720, 1.442695
        %v7742 = vpow.pop %v7741
        %v7743 = vmul.f32 %v7721, 1.442695
        %v7744 = vpow.pop %v7743
        %v7745 = vmul.f32 %v7722, 1.442695
        %v7746 = vpow.pop %v7745
        %v7747 = vmul.f32 %v7723, 1.442695
        %v7748 = vpow.pop %v7747
        %v7749 = vmul.f32 %v7724, 1.442695
        %v7750 = vpow.pop %v7749
        %v7751 = vmul.f32 %v7725, 1.442695
        %v7752 = vpow.pop %v7751
        %v7753 = vmul.f32 %v7726, 1.442695
        %v7754 = vpow.pop %v7753
        %v7755 = vmul.f32 %v7727, 1.442695
        %v7756 = vpow.pop %v7755
        %v7757 = vmul.f32 %v7728, 1.442695
        %v7758 = vpow.pop %v7757
        %v7759 = vmul.f32 %v7729, 1.442695
        %v7760 = vpow.pop %v7759
        %v7761 = vmul.f32 %v7730, 1.442695
        %v7762 = vpow.pop %v7761
        %7763 = vadd.xlane.f32.xlu0 %v7732
        %v7764 = vpop.xlane.xlu0 %7763
        %7765 = vadd.xlane.f32.xlu0 %v7734
        %v7766 = vpop.xlane.xlu0 %7765
        %7767 = vadd.xlane.f32.xlu0 %v7736
        %v7768 = vpop.xlane.xlu0 %7767
        %7769 = vadd.xlane.f32.xlu0 %v7738
        %v7770 = vpop.xlane.xlu0 %7769
        %7771 = vadd.xlane.f32.xlu0 %v7740
        %v7772 = vpop.xlane.xlu0 %7771
        %7773 = vadd.xlane.f32.xlu0 %v7742
        %v7774 = vpop.xlane.xlu0 %7773
        %7775 = vadd.xlane.f32.xlu0 %v7744
        %v7776 = vpop.xlane.xlu0 %7775
        %7777 = vadd.xlane.f32.xlu0 %v7746
        %v7778 = vpop.xlane.xlu0 %7777
        %7779 = vadd.xlane.f32.xlu0 %v7748
        %v7780 = vpop.xlane.xlu0 %7779
        %7781 = vadd.xlane.f32.xlu0 %v7750
        %v7782 = vpop.xlane.xlu0 %7781
        %7783 = vadd.xlane.f32.xlu0 %v7752
        %v7784 = vpop.xlane.xlu0 %7783
        %7785 = vadd.xlane.f32.xlu0 %v7754
        %v7786 = vpop.xlane.xlu0 %7785
        %7787 = vadd.xlane.f32.xlu0 %v7756
        %v7788 = vpop.xlane.xlu0 %7787
        %7789 = vadd.xlane.f32.xlu0 %v7758
        %v7790 = vpop.xlane.xlu0 %7789
        %7791 = vadd.xlane.f32.xlu0 %v7760
        %v7792 = vpop.xlane.xlu0 %7791
        %7793 = vadd.xlane.f32.xlu0 %v7762
        %v7794 = vpop.xlane.xlu0 %7793
        %v7795 = vrcp.pop %v7764
        %v7796 = vrcp.pop %v7766
        %v7797 = vrcp.pop %v7768
        %v7798 = vrcp.pop %v7770
        %v7799 = vrcp.pop %v7772
        %v7800 = vrcp.pop %v7774
        %v7801 = vrcp.pop %v7776
        %v7802 = vrcp.pop %v7778
        %v7803 = vrcp.pop %v7780
        %v7804 = vrcp.pop %v7782
        %v7805 = vrcp.pop %v7784
        %v7806 = vrcp.pop %v7786
        %v7807 = vrcp.pop %v7788
        %v7808 = vrcp.pop %v7790
        %v7809 = vrcp.pop %v7792
        %v7810 = vrcp.pop %v7794
        %v7811 = vmul.f32 %v7732, %v7795
        %v7812 = vmul.f32 %v7734, %v7796
        %v7813 = vmul.f32 %v7736, %v7797
        %v7814 = vmul.f32 %v7738, %v7798
        %v7815 = vmul.f32 %v7740, %v7799
        %v7816 = vmul.f32 %v7742, %v7800
        %v7817 = vmul.f32 %v7744, %v7801
        %v7818 = vmul.f32 %v7746, %v7802
        %v7819 = vmul.f32 %v7748, %v7803
        %v7820 = vmul.f32 %v7750, %v7804
        %v7821 = vmul.f32 %v7752, %v7805
        %v7822 = vmul.f32 %v7754, %v7806
        %v7823 = vmul.f32 %v7756, %v7807
        %v7824 = vmul.f32 %v7758, %v7808
        %v7825 = vmul.f32 %v7760, %v7809
        %v7826 = vmul.f32 %v7762, %v7810
        %v7827 = vpack.c.bf16 %v7812, %v7811
        %v7828 = vpack.c.bf16 %v7814, %v7813
        %v7829 = vpack.c.bf16 %v7816, %v7815
        %v7830 = vpack.c.bf16 %v7818, %v7817
        %v7831 = vpack.c.bf16 %v7820, %v7819
        %v7832 = vpack.c.bf16 %v7822, %v7821
        %v7833 = vpack.c.bf16 %v7824, %v7823
        %v7834 = vpack.c.bf16 %v7826, %v7825
        %7835 = vmatprep.subr.bf16.mxu0 0
        %7836 = vmatpush1.bf16.msra.mxu0 %v1422
        %7837 = vmatprep.subr.bf16.mxu0 0
        %7838 = vmatpush1.bf16.msra.mxu0 %v1425
        %7839 = vmatprep.subr.bf16.mxu0 0
        %7840 = vmatpush1.bf16.msra.mxu0 %v1428
        %7841 = vmatprep.subr.bf16.mxu0 0
        %7842 = vmatpush1.bf16.msra.mxu0 %v1431
        %7843 = vmatprep.subr.bf16.mxu0 0
        %7844 = vmatpush1.bf16.msra.mxu0 %v1434
        %7845 = vmatprep.subr.bf16.mxu0 0
        %7846 = vmatpush1.bf16.msra.mxu0 %v1437
        %7847 = vmatprep.subr.bf16.mxu0 0
        %7848 = vmatpush1.bf16.msra.mxu0 %v1440
        %7849 = vmatprep.subr.bf16.mxu0 0
        %7850 = vmatpush1.bf16.msra.mxu0 %v1443
        %7851 = vmatprep.subr.bf16.mxu0 0
        %7852 = vmatpush1.bf16.msra.mxu0 0
        %7853 = vmatprep.subr.bf16.mxu0 0
        %7854 = vmatpush1.bf16.msra.mxu0 0
        %7855 = vmatprep.subr.bf16.mxu0 0
        %7856 = vmatpush1.bf16.msra.mxu0 0
        %7857 = vmatprep.subr.bf16.mxu0 0
        %7858 = vmatpush1.bf16.msra.mxu0 0
        %7859 = vmatprep.subr.bf16.mxu0 0
        %7860 = vmatpush1.bf16.msra.mxu0 0
        %7861 = vmatprep.subr.bf16.mxu0 0
        %7862 = vmatpush1.bf16.msra.mxu0 0
        %7863 = vmatprep.subr.bf16.mxu0 0
        %7864 = vmatpush1.bf16.msra.mxu0 0
        %7865 = vmatprep.subr.bf16.mxu0 0
        %7866 = vmatpush1.bf16.msra.mxu0 0
        %7867 = vmatprep.mubr.bf16.mxu0 0
        %7868 = vmatmul.mubr.bf16.gmra.mrb[0].mxu0 %v7827
        %v7869 = vpop.f32.mrb[0].mxu0
        %v7870 = vadd.f32 0.0, %v7869
        %v7871 = vpop.f32.mrb[0].mxu0
        %v7872 = vpop.f32.mrb[0].mxu0
        %v7873 = vadd.f32 0.0, %v7872
        %v7874 = vpop.f32.mrb[0].mxu0
        %7875 = vmatprep.mubr.bf16.mxu0 0
        %7876 = vmatmul.mubr.bf16.gmra.mrb[0].mxu0 %v7828
        %v7877 = vpop.f32.mrb[0].mxu0
        %v7878 = vadd.f32 0.0, %v7877
        %v7879 = vpop.f32.mrb[0].mxu0
        %v7880 = vpop.f32.mrb[0].mxu0
        %v7881 = vadd.f32 0.0, %v7880
        %v7882 = vpop.f32.mrb[0].mxu0
        %7883 = vmatprep.mubr.bf16.mxu0 0
        %7884 = vmatmul.mubr.bf16.gmra.mrb[0].mxu0 %v7829
        %v7885 = vpop.f32.mrb[0].mxu0
        %v7886 = vadd.f32 0.0, %v7885
        %v7887 = vpop.f32.mrb[0].mxu0
        %v7888 = vpop.f32.mrb[0].mxu0
        %v7889 = vadd.f32 0.0, %v7888
        %v7890 = vpop.f32.mrb[0].mxu0
        %7891 = vmatprep.mubr.bf16.mxu0 0
        %7892 = vmatmul.mubr.bf16.gmra.mrb[0].mxu0 %v7830
        %v7893 = vpop.f32.mrb[0].mxu0
        %v7894 = vadd.f32 0.0, %v7893
        %v7895 = vpop.f32.mrb[0].mxu0
        %v7896 = vpop.f32.mrb[0].mxu0
        %v7897 = vadd.f32 0.0, %v7896
        %v7898 = vpop.f32.mrb[0].mxu0
        %7899 = vmatprep.mubr.bf16.mxu0 0
        %7900 = vmatmul.mubr.bf16.gmra.mrb[0].mxu0 %v7831
        %v7901 = vpop.f32.mrb[0].mxu0
        %v7902 = vadd.f32 0.0, %v7901
        %v7903 = vpop.f32.mrb[0].mxu0
        %v7904 = vpop.f32.mrb[0].mxu0
        %v7905 = vadd.f32 0.0, %v7904
        %v7906 = vpop.f32.mrb[0].mxu0
        %7907 = vmatprep.mubr.bf16.mxu0 0
        %7908 = vmatmul.mubr.bf16.gmra.mrb[0].mxu0 %v7832
        %v7909 = vpop.f32.mrb[0].mxu0
        %v7910 = vadd.f32 0.0, %v7909
        %v7911 = vpop.f32.mrb[0].mxu0
        %v7912 = vpop.f32.mrb[0].mxu0
        %v7913 = vadd.f32 0.0, %v7912
        %v7914 = vpop.f32.mrb[0].mxu0
        %7915 = vmatprep.mubr.bf16.mxu0 0
        %7916 = vmatmul.mubr.bf16.gmra.mrb[0].mxu0 %v7833
        %v7917 = vpop.f32.mrb[0].mxu0
        %v7918 = vadd.f32 0.0, %v7917
        %v7919 = vpop.f32.mrb[0].mxu0
        %v7920 = vpop.f32.mrb[0].mxu0
        %v7921 = vadd.f32 0.0, %v7920
        %v7922 = vpop.f32.mrb[0].mxu0
        %7923 = vmatprep.mubr.bf16.mxu0 0
        %7924 = vmatmul.mubr.bf16.gmra.mrb[0].mxu0 %v7834
        %v7925 = vpop.f32.mrb[0].mxu0
        %v7926 = vadd.f32 0.0, %v7925
        %v7927 = vpop.f32.mrb[0].mxu0
        %v7928 = vpop.f32.mrb[0].mxu0
        %v7929 = vadd.f32 0.0, %v7928
        %v7930 = vpop.f32.mrb[0].mxu0
        %7931 = vdwg.mxu0
        %7940 = vrot.lane.b32.xlu0 %v1420, 96
        %v7941 = vpop.permute.xlu0 %7940
        %7942 = vrot.lane.b32.xlu0 %v1423, 96
        %v7943 = vpop.permute.xlu0 %7942
        %7944 = vrot.lane.b32.xlu0 %v1426, 96
        %v7945 = vpop.permute.xlu0 %7944
        %7946 = vrot.lane.b32.xlu0 %v1429, 96
        %v7947 = vpop.permute.xlu0 %7946
        %7948 = vrot.lane.b32.xlu0 %v1432, 96
        %v7949 = vpop.permute.xlu0 %7948
        %7950 = vrot.lane.b32.xlu0 %v1435, 96
        %v7951 = vpop.permute.xlu0 %7950
        %7952 = vrot.lane.b32.xlu0 %v1438, 96
        %v7953 = vpop.permute.xlu0 %7952
        %7954 = vrot.lane.b32.xlu0 %v1441, 96
        %v7955 = vpop.permute.xlu0 %7954
        %7964 = vrot.lane.b32.xlu0 %v1421, 96
        %v7965 = vpop.permute.xlu0 %7964
        %7966 = vrot.lane.b32.xlu0 %v1424, 96
        %v7967 = vpop.permute.xlu0 %7966
        %7968 = vrot.lane.b32.xlu0 %v1427, 96
        %v7969 = vpop.permute.xlu0 %7968
        %7970 = vrot.lane.b32.xlu0 %v1430, 96
        %v7971 = vpop.permute.xlu0 %7970
        %7972 = vrot.lane.b32.xlu0 %v1433, 96
        %v7973 = vpop.permute.xlu0 %7972
        %7974 = vrot.lane.b32.xlu0 %v1436, 96
        %v7975 = vpop.permute.xlu0 %7974
        %7976 = vrot.lane.b32.xlu0 %v1439, 96
        %v7977 = vpop.permute.xlu0 %7976
        %7978 = vrot.lane.b32.xlu0 %v1442, 96
        %v7979 = vpop.permute.xlu0 %7978
        %v7981 = vsel %vm1460, %v7941, 0
        %v7984 = vsel %vm1460, %v7943, 0
        %v7987 = vsel %vm1460, %v7945, 0
        %v7990 = vsel %vm1460, %v7947, 0
        %v7993 = vsel %vm1460, %v7949, 0
        %v7996 = vsel %vm1460, %v7951, 0
        %v7999 = vsel %vm1460, %v7953, 0
        %v8002 = vsel %vm1460, %v7955, 0
        %v8005 = vsel %vm1460, %v7965, 0
        %v8008 = vsel %vm1460, %v7967, 0
        %v8011 = vsel %vm1460, %v7969, 0
        %v8014 = vsel %vm1460, %v7971, 0
        %v8017 = vsel %vm1460, %v7973, 0
        %v8020 = vsel %vm1460, %v7975, 0
        %v8023 = vsel %vm1460, %v7977, 0
        %v8026 = vsel %vm1460, %v7979, 0
        %8028 = vmatprep.subr.bf16.mxu0 0
        %8029 = vmatpush1.bf16.xpose.msra.mxu0 %v8005
        %8030 = vmatprep.subr.bf16.mxu0 0
        %8031 = vmatpush1.bf16.xpose.msra.mxu0 %v8008
        %8032 = vmatprep.subr.bf16.mxu0 0
        %8033 = vmatpush1.bf16.xpose.msra.mxu0 %v8011
        %8034 = vmatprep.subr.bf16.mxu0 0
        %8035 = vmatpush1.bf16.xpose.msra.mxu0 %v8014
        %8036 = vmatprep.subr.bf16.mxu0 0
        %8037 = vmatpush1.bf16.xpose.msra.mxu0 %v8017
        %8038 = vmatprep.subr.bf16.mxu0 0
        %8039 = vmatpush1.bf16.xpose.msra.mxu0 %v8020
        %8040 = vmatprep.subr.bf16.mxu0 0
        %8041 = vmatpush1.bf16.xpose.msra.mxu0 %v8023
        %8042 = vmatprep.subr.bf16.mxu0 0
        %8043 = vmatpush1.bf16.xpose.msra.mxu0 %v8026
        %8044 = vmatprep.subr.bf16.mxu0 0
        %8045 = vmatpush1.bf16.xpose.msra.mxu0 0
        %8046 = vmatprep.subr.bf16.mxu0 0
        %8047 = vmatpush1.bf16.xpose.msra.mxu0 0
        %8048 = vmatprep.subr.bf16.mxu0 0
        %8049 = vmatpush1.bf16.xpose.msra.mxu0 0
        %8050 = vmatprep.subr.bf16.mxu0 0
        %8051 = vmatpush1.bf16.xpose.msra.mxu0 0
        %8052 = vmatprep.subr.bf16.mxu0 0
        %8053 = vmatpush1.bf16.xpose.msra.mxu0 0
        %8054 = vmatprep.subr.bf16.mxu0 0
        %8055 = vmatpush1.bf16.xpose.msra.mxu0 0
        %8056 = vmatprep.subr.bf16.mxu0 0
        %8057 = vmatpush1.bf16.xpose.msra.mxu0 0
        %8058 = vmatprep.subr.bf16.mxu0 0
        %8059 = vmatpush1.bf16.xpose.msra.mxu0 0
        %8060 = vmatprep.mubr.bf16.mxu0 0
        %8061 = vmatmul.mubr.bf16.gmra.mrb[0].mxu0 %v7981
        %v8062 = vpop.f32.mrb[0].mxu0
        %v8063 = vadd.f32 %v1856, %v8062
        %v8064 = vpop.f32.mrb[0].mxu0
        %v8065 = vpop.f32.mrb[0].mxu0
        %v8066 = vadd.f32 %v1857, %v8065
        %v8067 = vpop.f32.mrb[0].mxu0
        %8068 = vmatprep.mubr.bf16.mxu0 0
        %8069 = vmatmul.mubr.bf16.gmra.mrb[0].mxu0 %v7984
        %v8070 = vpop.f32.mrb[0].mxu0
        %v8071 = vadd.f32 %v1858, %v8070
        %v8072 = vpop.f32.mrb[0].mxu0
        %v8073 = vpop.f32.mrb[0].mxu0
        %v8074 = vadd.f32 %v1859, %v8073
        %v8075 = vpop.f32.mrb[0].mxu0
        %8076 = vmatprep.mubr.bf16.mxu0 0
        %8077 = vmatmul.mubr.bf16.gmra.mrb[0].mxu0 %v7987
        %v8078 = vpop.f32.mrb[0].mxu0
        %v8079 = vadd.f32 %v1860, %v8078
        %v8080 = vpop.f32.mrb[0].mxu0
        %v8081 = vpop.f32.mrb[0].mxu0
        %v8082 = vadd.f32 %v1861, %v8081
        %v8083 = vpop.f32.mrb[0].mxu0
        %8084 = vmatprep.mubr.bf16.mxu0 0
        %8085 = vmatmul.mubr.bf16.gmra.mrb[0].mxu0 %v7990
        %v8086 = vpop.f32.mrb[0].mxu0
        %v8087 = vadd.f32 %v1862, %v8086
        %v8088 = vpop.f32.mrb[0].mxu0
        %v8089 = vpop.f32.mrb[0].mxu0
        %v8090 = vadd.f32 %v1863, %v8089
        %v8091 = vpop.f32.mrb[0].mxu0
        %8092 = vmatprep.mubr.bf16.mxu0 0
        %8093 = vmatmul.mubr.bf16.gmra.mrb[0].mxu0 %v7993
        %v8094 = vpop.f32.mrb[0].mxu0
        %v8095 = vadd.f32 %v1864, %v8094
        %v8096 = vpop.f32.mrb[0].mxu0
        %v8097 = vpop.f32.mrb[0].mxu0
        %v8098 = vadd.f32 %v1865, %v8097
        %v8099 = vpop.f32.mrb[0].mxu0
        %8100 = vmatprep.mubr.bf16.mxu0 0
        %8101 = vmatmul.mubr.bf16.gmra.mrb[0].mxu0 %v7996
        %v8102 = vpop.f32.mrb[0].mxu0
        %v8103 = vadd.f32 %v1866, %v8102
        %v8104 = vpop.f32.mrb[0].mxu0
        %v8105 = vpop.f32.mrb[0].mxu0
        %v8106 = vadd.f32 %v1867, %v8105
        %v8107 = vpop.f32.mrb[0].mxu0
        %8108 = vmatprep.mubr.bf16.mxu0 0
        %8109 = vmatmul.mubr.bf16.gmra.mrb[0].mxu0 %v7999
        %v8110 = vpop.f32.mrb[0].mxu0
        %v8111 = vadd.f32 %v1868, %v8110
        %v8112 = vpop.f32.mrb[0].mxu0
        %v8113 = vpop.f32.mrb[0].mxu0
        %v8114 = vadd.f32 %v1869, %v8113
        %v8115 = vpop.f32.mrb[0].mxu0
        %8116 = vmatprep.mubr.bf16.mxu0 0
        %8117 = vmatmul.mubr.bf16.gmra.mrb[0].mxu0 %v8002
        %v8118 = vpop.f32.mrb[0].mxu0
        %v8119 = vadd.f32 %v1870, %v8118
        %v8120 = vpop.f32.mrb[0].mxu0
        %v8121 = vpop.f32.mrb[0].mxu0
        %v8122 = vadd.f32 %v1871, %v8121
        %v8123 = vpop.f32.mrb[0].mxu0
        %8124 = vdwg.mxu0
        %8125 = vmax.xlane.f32.xlu0 %v8063
        %v8126 = vpop.xlane.xlu0 %8125
        %8127 = vmax.xlane.f32.xlu0 %v8066
        %v8128 = vpop.xlane.xlu0 %8127
        %8129 = vmax.xlane.f32.xlu0 %v8071
        %v8130 = vpop.xlane.xlu0 %8129
        %8131 = vmax.xlane.f32.xlu0 %v8074
        %v8132 = vpop.xlane.xlu0 %8131
        %8133 = vmax.xlane.f32.xlu0 %v8079
        %v8134 = vpop.xlane.xlu0 %8133
        %8135 = vmax.xlane.f32.xlu0 %v8082
        %v8136 = vpop.xlane.xlu0 %8135
        %8137 = vmax.xlane.f32.xlu0 %v8087
        %v8138 = vpop.xlane.xlu0 %8137
        %8139 = vmax.xlane.f32.xlu0 %v8090
        %v8140 = vpop.xlane.xlu0 %8139
        %8141 = vmax.xlane.f32.xlu0 %v8095
        %v8142 = vpop.xlane.xlu0 %8141
        %8143 = vmax.xlane.f32.xlu0 %v8098
        %v8144 = vpop.xlane.xlu0 %8143
        %8145 = vmax.xlane.f32.xlu0 %v8103
        %v8146 = vpop.xlane.xlu0 %8145
        %8147 = vmax.xlane.f32.xlu0 %v8106
        %v8148 = vpop.xlane.xlu0 %8147
        %8149 = vmax.xlane.f32.xlu0 %v8111
        %v8150 = vpop.xlane.xlu0 %8149
        %8151 = vmax.xlane.f32.xlu0 %v8114
        %v8152 = vpop.xlane.xlu0 %8151
        %8153 = vmax.xlane.f32.xlu0 %v8119
        %v8154 = vpop.xlane.xlu0 %8153
        %8155 = vmax.xlane.f32.xlu0 %v8122
        %v8156 = vpop.xlane.xlu0 %8155
        %v8157 = vsub.f32 %v8063, %v8126
        %v8158 = vsub.f32 %v8066, %v8128
        %v8159 = vsub.f32 %v8071, %v8130
        %v8160 = vsub.f32 %v8074, %v8132
        %v8161 = vsub.f32 %v8079, %v8134
        %v8162 = vsub.f32 %v8082, %v8136
        %v8163 = vsub.f32 %v8087, %v8138
        %v8164 = vsub.f32 %v8090, %v8140
        %v8165 = vsub.f32 %v8095, %v8142
        %v8166 = vsub.f32 %v8098, %v8144
        %v8167 = vsub.f32 %v8103, %v8146
        %v8168 = vsub.f32 %v8106, %v8148
        %v8169 = vsub.f32 %v8111, %v8150
        %v8170 = vsub.f32 %v8114, %v8152
        %v8171 = vsub.f32 %v8119, %v8154
        %v8172 = vsub.f32 %v8122, %v8156
        %v8173 = vmul.f32 %v8157, 1.442695
        %v8174 = vpow.pop %v8173
        %v8175 = vmul.f32 %v8158, 1.442695
        %v8176 = vpow.pop %v8175
        %v8177 = vmul.f32 %v8159, 1.442695
        %v8178 = vpow.pop %v8177
        %v8179 = vmul.f32 %v8160, 1.442695
        %v8180 = vpow.pop %v8179
        %v8181 = vmul.f32 %v8161, 1.442695
        %v8182 = vpow.pop %v8181
        %v8183 = vmul.f32 %v8162, 1.442695
        %v8184 = vpow.pop %v8183
        %v8185 = vmul.f32 %v8163, 1.442695
        %v8186 = vpow.pop %v8185
        %v8187 = vmul.f32 %v8164, 1.442695
        %v8188 = vpow.pop %v8187
        %v8189 = vmul.f32 %v8165, 1.442695
        %v8190 = vpow.pop %v8189
        %v8191 = vmul.f32 %v8166, 1.442695
        %v8192 = vpow.pop %v8191
        %v8193 = vmul.f32 %v8167, 1.442695
        %v8194 = vpow.pop %v8193
        %v8195 = vmul.f32 %v8168, 1.442695
        %v8196 = vpow.pop %v8195
        %v8197 = vmul.f32 %v8169, 1.442695
        %v8198 = vpow.pop %v8197
        %v8199 = vmul.f32 %v8170, 1.442695
        %v8200 = vpow.pop %v8199
        %v8201 = vmul.f32 %v8171, 1.442695
        %v8202 = vpow.pop %v8201
        %v8203 = vmul.f32 %v8172, 1.442695
        %v8204 = vpow.pop %v8203
        %8205 = vadd.xlane.f32.xlu0 %v8174
        %v8206 = vpop.xlane.xlu0 %8205
        %8207 = vadd.xlane.f32.xlu0 %v8176
        %v8208 = vpop.xlane.xlu0 %8207
        %8209 = vadd.xlane.f32.xlu0 %v8178
        %v8210 = vpop.xlane.xlu0 %8209
        %8211 = vadd.xlane.f32.xlu0 %v8180
        %v8212 = vpop.xlane.xlu0 %8211
        %8213 = vadd.xlane.f32.xlu0 %v8182
        %v8214 = vpop.xlane.xlu0 %8213
        %8215 = vadd.xlane.f32.xlu0 %v8184
        %v8216 = vpop.xlane.xlu0 %8215
        %8217 = vadd.xlane.f32.xlu0 %v8186
        %v8218 = vpop.xlane.xlu0 %8217
        %8219 = vadd.xlane.f32.xlu0 %v8188
        %v8220 = vpop.xlane.xlu0 %8219
        %8221 = vadd.xlane.f32.xlu0 %v8190
        %v8222 = vpop.xlane.xlu0 %8221
        %8223 = vadd.xlane.f32.xlu0 %v8192
        %v8224 = vpop.xlane.xlu0 %8223
        %8225 = vadd.xlane.f32.xlu0 %v8194
        %v8226 = vpop.xlane.xlu0 %8225
        %8227 = vadd.xlane.f32.xlu0 %v8196
        %v8228 = vpop.xlane.xlu0 %8227
        %8229 = vadd.xlane.f32.xlu0 %v8198
        %v8230 = vpop.xlane.xlu0 %8229
        %8231 = vadd.xlane.f32.xlu0 %v8200
        %v8232 = vpop.xlane.xlu0 %8231
        %8233 = vadd.xlane.f32.xlu0 %v8202
        %v8234 = vpop.xlane.xlu0 %8233
        %8235 = vadd.xlane.f32.xlu0 %v8204
        %v8236 = vpop.xlane.xlu0 %8235
        %v8237 = vrcp.pop %v8206
        %v8238 = vrcp.pop %v8208
        %v8239 = vrcp.pop %v8210
        %v8240 = vrcp.pop %v8212
        %v8241 = vrcp.pop %v8214
        %v8242 = vrcp.pop %v8216
        %v8243 = vrcp.pop %v8218
        %v8244 = vrcp.pop %v8220
        %v8245 = vrcp.pop %v8222
        %v8246 = vrcp.pop %v8224
        %v8247 = vrcp.pop %v8226
        %v8248 = vrcp.pop %v8228
        %v8249 = vrcp.pop %v8230
        %v8250 = vrcp.pop %v8232
        %v8251 = vrcp.pop %v8234
        %v8252 = vrcp.pop %v8236
        %v8253 = vmul.f32 %v8174, %v8237
        %v8254 = vmul.f32 %v8176, %v8238
        %v8255 = vmul.f32 %v8178, %v8239
        %v8256 = vmul.f32 %v8180, %v8240
        %v8257 = vmul.f32 %v8182, %v8241
        %v8258 = vmul.f32 %v8184, %v8242
        %v8259 = vmul.f32 %v8186, %v8243
        %v8260 = vmul.f32 %v8188, %v8244
        %v8261 = vmul.f32 %v8190, %v8245
        %v8262 = vmul.f32 %v8192, %v8246
        %v8263 = vmul.f32 %v8194, %v8247
        %v8264 = vmul.f32 %v8196, %v8248
        %v8265 = vmul.f32 %v8198, %v8249
        %v8266 = vmul.f32 %v8200, %v8250
        %v8267 = vmul.f32 %v8202, %v8251
        %v8268 = vmul.f32 %v8204, %v8252
        %v8269 = vpack.c.bf16 %v8254, %v8253
        %v8270 = vpack.c.bf16 %v8256, %v8255
        %v8271 = vpack.c.bf16 %v8258, %v8257
        %v8272 = vpack.c.bf16 %v8260, %v8259
        %v8273 = vpack.c.bf16 %v8262, %v8261
        %v8274 = vpack.c.bf16 %v8264, %v8263
        %v8275 = vpack.c.bf16 %v8266, %v8265
        %v8276 = vpack.c.bf16 %v8268, %v8267
        %8285 = vrot.lane.b32.xlu0 %v1422, 96
        %v8286 = vpop.permute.xlu0 %8285
        %8287 = vrot.lane.b32.xlu0 %v1425, 96
        %v8288 = vpop.permute.xlu0 %8287
        %8289 = vrot.lane.b32.xlu0 %v1428, 96
        %v8290 = vpop.permute.xlu0 %8289
        %8291 = vrot.lane.b32.xlu0 %v1431, 96
        %v8292 = vpop.permute.xlu0 %8291
        %8293 = vrot.lane.b32.xlu0 %v1434, 96
        %v8294 = vpop.permute.xlu0 %8293
        %8295 = vrot.lane.b32.xlu0 %v1437, 96
        %v8296 = vpop.permute.xlu0 %8295
        %8297 = vrot.lane.b32.xlu0 %v1440, 96
        %v8298 = vpop.permute.xlu0 %8297
        %8299 = vrot.lane.b32.xlu0 %v1443, 96
        %v8300 = vpop.permute.xlu0 %8299
        %8309 = vmatprep.subr.bf16.mxu0 0
        %8310 = vmatpush1.bf16.msra.mxu0 %v8286
        %8311 = vmatprep.subr.bf16.mxu0 0
        %8312 = vmatpush1.bf16.msra.mxu0 %v8288
        %8313 = vmatprep.subr.bf16.mxu0 0
        %8314 = vmatpush1.bf16.msra.mxu0 %v8290
        %8315 = vmatprep.subr.bf16.mxu0 0
        %8316 = vmatpush1.bf16.msra.mxu0 %v8292
        %8317 = vmatprep.subr.bf16.mxu0 0
        %8318 = vmatpush1.bf16.msra.mxu0 %v8294
        %8319 = vmatprep.subr.bf16.mxu0 0
        %8320 = vmatpush1.bf16.msra.mxu0 %v8296
        %8321 = vmatprep.subr.bf16.mxu0 0
        %8322 = vmatpush1.bf16.msra.mxu0 %v8298
        %8323 = vmatprep.subr.bf16.mxu0 0
        %8324 = vmatpush1.bf16.msra.mxu0 %v8300
        %8325 = vmatprep.subr.bf16.mxu0 0
        %8326 = vmatpush1.bf16.msra.mxu0 0
        %8327 = vmatprep.subr.bf16.mxu0 0
        %8328 = vmatpush1.bf16.msra.mxu0 0
        %8329 = vmatprep.subr.bf16.mxu0 0
        %8330 = vmatpush1.bf16.msra.mxu0 0
        %8331 = vmatprep.subr.bf16.mxu0 0
        %8332 = vmatpush1.bf16.msra.mxu0 0
        %8333 = vmatprep.subr.bf16.mxu0 0
        %8334 = vmatpush1.bf16.msra.mxu0 0
        %8335 = vmatprep.subr.bf16.mxu0 0
        %8336 = vmatpush1.bf16.msra.mxu0 0
        %8337 = vmatprep.subr.bf16.mxu0 0
        %8338 = vmatpush1.bf16.msra.mxu0 0
        %8339 = vmatprep.subr.bf16.mxu0 0
        %8340 = vmatpush1.bf16.msra.mxu0 0
        %8341 = vmatprep.mubr.bf16.mxu0 0
        %8342 = vmatmul.mubr.bf16.gmra.mrb[0].mxu0 %v8269
        %v8343 = vpop.f32.mrb[0].mxu0
        %v8344 = vadd.f32 0.0, %v8343
        %v8345 = vpop.f32.mrb[0].mxu0
        %v8346 = vpop.f32.mrb[0].mxu0
        %v8347 = vadd.f32 0.0, %v8346
        %v8348 = vpop.f32.mrb[0].mxu0
        %8349 = vmatprep.mubr.bf16.mxu0 0
        %8350 = vmatmul.mubr.bf16.gmra.mrb[0].mxu0 %v8270
        %v8351 = vpop.f32.mrb[0].mxu0
        %v8352 = vadd.f32 0.0, %v8351
        %v8353 = vpop.f32.mrb[0].mxu0
        %v8354 = vpop.f32.mrb[0].mxu0
        %v8355 = vadd.f32 0.0, %v8354
        %v8356 = vpop.f32.mrb[0].mxu0
        %8357 = vmatprep.mubr.bf16.mxu0 0
        %8358 = vmatmul.mubr.bf16.gmra.mrb[0].mxu0 %v8271
        %v8359 = vpop.f32.mrb[0].mxu0
        %v8360 = vadd.f32 0.0, %v8359
        %v8361 = vpop.f32.mrb[0].mxu0
        %v8362 = vpop.f32.mrb[0].mxu0
        %v8363 = vadd.f32 0.0, %v8362
        %v8364 = vpop.f32.mrb[0].mxu0
        %8365 = vmatprep.mubr.bf16.mxu0 0
        %8366 = vmatmul.mubr.bf16.gmra.mrb[0].mxu0 %v8272
        %v8367 = vpop.f32.mrb[0].mxu0
        %v8368 = vadd.f32 0.0, %v8367
        %v8369 = vpop.f32.mrb[0].mxu0
        %v8370 = vpop.f32.mrb[0].mxu0
        %v8371 = vadd.f32 0.0, %v8370
        %v8372 = vpop.f32.mrb[0].mxu0
        %8373 = vmatprep.mubr.bf16.mxu0 0
        %8374 = vmatmul.mubr.bf16.gmra.mrb[0].mxu0 %v8273
        %v8375 = vpop.f32.mrb[0].mxu0
        %v8376 = vadd.f32 0.0, %v8375
        %v8377 = vpop.f32.mrb[0].mxu0
        %v8378 = vpop.f32.mrb[0].mxu0
        %v8379 = vadd.f32 0.0, %v8378
        %v8380 = vpop.f32.mrb[0].mxu0
        %8381 = vmatprep.mubr.bf16.mxu0 0
        %8382 = vmatmul.mubr.bf16.gmra.mrb[0].mxu0 %v8274
        %v8383 = vpop.f32.mrb[0].mxu0
        %v8384 = vadd.f32 0.0, %v8383
        %v8385 = vpop.f32.mrb[0].mxu0
        %v8386 = vpop.f32.mrb[0].mxu0
        %v8387 = vadd.f32 0.0, %v8386
        %v8388 = vpop.f32.mrb[0].mxu0
        %8389 = vmatprep.mubr.bf16.mxu0 0
        %8390 = vmatmul.mubr.bf16.gmra.mrb[0].mxu0 %v8275
        %v8391 = vpop.f32.mrb[0].mxu0
        %v8392 = vadd.f32 0.0, %v8391
        %v8393 = vpop.f32.mrb[0].mxu0
        %v8394 = vpop.f32.mrb[0].mxu0
        %v8395 = vadd.f32 0.0, %v8394
        %v8396 = vpop.f32.mrb[0].mxu0
        %8397 = vmatprep.mubr.bf16.mxu0 0
        %8398 = vmatmul.mubr.bf16.gmra.mrb[0].mxu0 %v8276
        %v8399 = vpop.f32.mrb[0].mxu0
        %v8400 = vadd.f32 0.0, %v8399
        %v8401 = vpop.f32.mrb[0].mxu0
        %v8402 = vpop.f32.mrb[0].mxu0
        %v8403 = vadd.f32 0.0, %v8402
        %v8404 = vpop.f32.mrb[0].mxu0
        %8405 = vdwg.mxu0
        %8406 = vrot.lane.b32.xlu0 %v1420, 64
        %v8407 = vpop.permute.xlu0 %8406
        %8408 = vrot.lane.b32.xlu0 %v1423, 64
        %v8409 = vpop.permute.xlu0 %8408
        %8410 = vrot.lane.b32.xlu0 %v1426, 64
        %v8411 = vpop.permute.xlu0 %8410
        %8412 = vrot.lane.b32.xlu0 %v1429, 64
        %v8413 = vpop.permute.xlu0 %8412
        %8414 = vrot.lane.b32.xlu0 %v1432, 64
        %v8415 = vpop.permute.xlu0 %8414
        %8416 = vrot.lane.b32.xlu0 %v1435, 64
        %v8417 = vpop.permute.xlu0 %8416
        %8418 = vrot.lane.b32.xlu0 %v1438, 64
        %v8419 = vpop.permute.xlu0 %8418
        %8420 = vrot.lane.b32.xlu0 %v1441, 64
        %v8421 = vpop.permute.xlu0 %8420
        %8422 = vrot.lane.b32.xlu0 %v1421, 64
        %v8423 = vpop.permute.xlu0 %8422
        %8424 = vrot.lane.b32.xlu0 %v1424, 64
        %v8425 = vpop.permute.xlu0 %8424
        %8426 = vrot.lane.b32.xlu0 %v1427, 64
        %v8427 = vpop.permute.xlu0 %8426
        %8428 = vrot.lane.b32.xlu0 %v1430, 64
        %v8429 = vpop.permute.xlu0 %8428
        %8430 = vrot.lane.b32.xlu0 %v1433, 64
        %v8431 = vpop.permute.xlu0 %8430
        %8432 = vrot.lane.b32.xlu0 %v1436, 64
        %v8433 = vpop.permute.xlu0 %8432
        %8434 = vrot.lane.b32.xlu0 %v1439, 64
        %v8435 = vpop.permute.xlu0 %8434
        %8436 = vrot.lane.b32.xlu0 %v1442, 64
        %v8437 = vpop.permute.xlu0 %8436
        %v8439 = vsel %vm1460, %v8407, 0
        %v8442 = vsel %vm1460, %v8409, 0
        %v8445 = vsel %vm1460, %v8411, 0
        %v8448 = vsel %vm1460, %v8413, 0
        %v8451 = vsel %vm1460, %v8415, 0
        %v8454 = vsel %vm1460, %v8417, 0
        %v8457 = vsel %vm1460, %v8419, 0
        %v8460 = vsel %vm1460, %v8421, 0
        %v8463 = vsel %vm1460, %v8423, 0
        %v8466 = vsel %vm1460, %v8425, 0
        %v8469 = vsel %vm1460, %v8427, 0
        %v8472 = vsel %vm1460, %v8429, 0
        %v8475 = vsel %vm1460, %v8431, 0
        %v8478 = vsel %vm1460, %v8433, 0
        %v8481 = vsel %vm1460, %v8435, 0
        %v8484 = vsel %vm1460, %v8437, 0
        %8486 = vmatprep.subr.bf16.mxu0 0
        %8487 = vmatpush1.bf16.xpose.msra.mxu0 %v8463
        %8488 = vmatprep.subr.bf16.mxu0 0
        %8489 = vmatpush1.bf16.xpose.msra.mxu0 %v8466
        %8490 = vmatprep.subr.bf16.mxu0 0
        %8491 = vmatpush1.bf16.xpose.msra.mxu0 %v8469
        %8492 = vmatprep.subr.bf16.mxu0 0
        %8493 = vmatpush1.bf16.xpose.msra.mxu0 %v8472
        %8494 = vmatprep.subr.bf16.mxu0 0
        %8495 = vmatpush1.bf16.xpose.msra.mxu0 %v8475
        %8496 = vmatprep.subr.bf16.mxu0 0
        %8497 = vmatpush1.bf16.xpose.msra.mxu0 %v8478
        %8498 = vmatprep.subr.bf16.mxu0 0
        %8499 = vmatpush1.bf16.xpose.msra.mxu0 %v8481
        %8500 = vmatprep.subr.bf16.mxu0 0
        %8501 = vmatpush1.bf16.xpose.msra.mxu0 %v8484
        %8502 = vmatprep.subr.bf16.mxu0 0
        %8503 = vmatpush1.bf16.xpose.msra.mxu0 0
        %8504 = vmatprep.subr.bf16.mxu0 0
        %8505 = vmatpush1.bf16.xpose.msra.mxu0 0
        %8506 = vmatprep.subr.bf16.mxu0 0
        %8507 = vmatpush1.bf16.xpose.msra.mxu0 0
        %8508 = vmatprep.subr.bf16.mxu0 0
        %8509 = vmatpush1.bf16.xpose.msra.mxu0 0
        %8510 = vmatprep.subr.bf16.mxu0 0
        %8511 = vmatpush1.bf16.xpose.msra.mxu0 0
        %8512 = vmatprep.subr.bf16.mxu0 0
        %8513 = vmatpush1.bf16.xpose.msra.mxu0 0
        %8514 = vmatprep.subr.bf16.mxu0 0
        %8515 = vmatpush1.bf16.xpose.msra.mxu0 0
        %8516 = vmatprep.subr.bf16.mxu0 0
        %8517 = vmatpush1.bf16.xpose.msra.mxu0 0
        %8518 = vmatprep.mubr.bf16.mxu0 0
        %8519 = vmatmul.mubr.bf16.gmra.mrb[0].mxu0 %v8439
        %v8520 = vpop.f32.mrb[0].mxu0
        %v8521 = vadd.f32 %v2347, %v8520
        %v8522 = vpop.f32.mrb[0].mxu0
        %v8523 = vpop.f32.mrb[0].mxu0
        %v8524 = vadd.f32 %v2348, %v8523
        %v8525 = vpop.f32.mrb[0].mxu0
        %8526 = vmatprep.mubr.bf16.mxu0 0
        %8527 = vmatmul.mubr.bf16.gmra.mrb[0].mxu0 %v8442
        %v8528 = vpop.f32.mrb[0].mxu0
        %v8529 = vadd.f32 %v2349, %v8528
        %v8530 = vpop.f32.mrb[0].mxu0
        %v8531 = vpop.f32.mrb[0].mxu0
        %v8532 = vadd.f32 %v2350, %v8531
        %v8533 = vpop.f32.mrb[0].mxu0
        %8534 = vmatprep.mubr.bf16.mxu0 0
        %8535 = vmatmul.mubr.bf16.gmra.mrb[0].mxu0 %v8445
        %v8536 = vpop.f32.mrb[0].mxu0
        %v8537 = vadd.f32 %v2351, %v8536
        %v8538 = vpop.f32.mrb[0].mxu0
        %v8539 = vpop.f32.mrb[0].mxu0
        %v8540 = vadd.f32 %v2352, %v8539
        %v8541 = vpop.f32.mrb[0].mxu0
        %8542 = vmatprep.mubr.bf16.mxu0 0
        %8543 = vmatmul.mubr.bf16.gmra.mrb[0].mxu0 %v8448
        %v8544 = vpop.f32.mrb[0].mxu0
        %v8545 = vadd.f32 %v2353, %v8544
        %v8546 = vpop.f32.mrb[0].mxu0
        %v8547 = vpop.f32.mrb[0].mxu0
        %v8548 = vadd.f32 %v2354, %v8547
        %v8549 = vpop.f32.mrb[0].mxu0
        %8550 = vmatprep.mubr.bf16.mxu0 0
        %8551 = vmatmul.mubr.bf16.gmra.mrb[0].mxu0 %v8451
        %v8552 = vpop.f32.mrb[0].mxu0
        %v8553 = vadd.f32 %v2355, %v8552
        %v8554 = vpop.f32.mrb[0].mxu0
        %v8555 = vpop.f32.mrb[0].mxu0
        %v8556 = vadd.f32 %v2356, %v8555
        %v8557 = vpop.f32.mrb[0].mxu0
        %8558 = vmatprep.mubr.bf16.mxu0 0
        %8559 = vmatmul.mubr.bf16.gmra.mrb[0].mxu0 %v8454
        %v8560 = vpop.f32.mrb[0].mxu0
        %v8561 = vadd.f32 %v2357, %v8560
        %v8562 = vpop.f32.mrb[0].mxu0
        %v8563 = vpop.f32.mrb[0].mxu0
        %v8564 = vadd.f32 %v2358, %v8563
        %v8565 = vpop.f32.mrb[0].mxu0
        %8566 = vmatprep.mubr.bf16.mxu0 0
        %8567 = vmatmul.mubr.bf16.gmra.mrb[0].mxu0 %v8457
        %v8568 = vpop.f32.mrb[0].mxu0
        %v8569 = vadd.f32 %v2359, %v8568
        %v8570 = vpop.f32.mrb[0].mxu0
        %v8571 = vpop.f32.mrb[0].mxu0
        %v8572 = vadd.f32 %v2360, %v8571
        %v8573 = vpop.f32.mrb[0].mxu0
        %8574 = vmatprep.mubr.bf16.mxu0 0
        %8575 = vmatmul.mubr.bf16.gmra.mrb[0].mxu0 %v8460
        %v8576 = vpop.f32.mrb[0].mxu0
        %v8577 = vadd.f32 %v2361, %v8576
        %v8578 = vpop.f32.mrb[0].mxu0
        %v8579 = vpop.f32.mrb[0].mxu0
        %v8580 = vadd.f32 %v2362, %v8579
        %v8581 = vpop.f32.mrb[0].mxu0
        %8582 = vdwg.mxu0
        %8583 = vmax.xlane.f32.xlu0 %v8521
        %v8584 = vpop.xlane.xlu0 %8583
        %8585 = vmax.xlane.f32.xlu0 %v8524
        %v8586 = vpop.xlane.xlu0 %8585
        %8587 = vmax.xlane.f32.xlu0 %v8529
        %v8588 = vpop.xlane.xlu0 %8587
        %8589 = vmax.xlane.f32.xlu0 %v8532
        %v8590 = vpop.xlane.xlu0 %8589
        %8591 = vmax.xlane.f32.xlu0 %v8537
        %v8592 = vpop.xlane.xlu0 %8591
        %8593 = vmax.xlane.f32.xlu0 %v8540
        %v8594 = vpop.xlane.xlu0 %8593
        %8595 = vmax.xlane.f32.xlu0 %v8545
        %v8596 = vpop.xlane.xlu0 %8595
        %8597 = vmax.xlane.f32.xlu0 %v8548
        %v8598 = vpop.xlane.xlu0 %8597
        %8599 = vmax.xlane.f32.xlu0 %v8553
        %v8600 = vpop.xlane.xlu0 %8599
        %8601 = vmax.xlane.f32.xlu0 %v8556
        %v8602 = vpop.xlane.xlu0 %8601
        %8603 = vmax.xlane.f32.xlu0 %v8561
        %v8604 = vpop.xlane.xlu0 %8603
        %8605 = vmax.xlane.f32.xlu0 %v8564
        %v8606 = vpop.xlane.xlu0 %8605
        %8607 = vmax.xlane.f32.xlu0 %v8569
        %v8608 = vpop.xlane.xlu0 %8607
        %8609 = vmax.xlane.f32.xlu0 %v8572
        %v8610 = vpop.xlane.xlu0 %8609
        %8611 = vmax.xlane.f32.xlu0 %v8577
        %v8612 = vpop.xlane.xlu0 %8611
        %8613 = vmax.xlane.f32.xlu0 %v8580
        %v8614 = vpop.xlane.xlu0 %8613
        %v8615 = vsub.f32 %v8521, %v8584
        %v8616 = vsub.f32 %v8524, %v8586
        %v8617 = vsub.f32 %v8529, %v8588
        %v8618 = vsub.f32 %v8532, %v8590
        %v8619 = vsub.f32 %v8537, %v8592
        %v8620 = vsub.f32 %v8540, %v8594
        %v8621 = vsub.f32 %v8545, %v8596
        %v8622 = vsub.f32 %v8548, %v8598
        %v8623 = vsub.f32 %v8553, %v8600
        %v8624 = vsub.f32 %v8556, %v8602
        %v8625 = vsub.f32 %v8561, %v8604
        %v8626 = vsub.f32 %v8564, %v8606
        %v8627 = vsub.f32 %v8569, %v8608
        %v8628 = vsub.f32 %v8572, %v8610
        %v8629 = vsub.f32 %v8577, %v8612
        %v8630 = vsub.f32 %v8580, %v8614
        %v8631 = vmul.f32 %v8615, 1.442695
        %v8632 = vpow.pop %v8631
        %v8633 = vmul.f32 %v8616, 1.442695
        %v8634 = vpow.pop %v8633
        %v8635 = vmul.f32 %v8617, 1.442695
        %v8636 = vpow.pop %v8635
        %v8637 = vmul.f32 %v8618, 1.442695
        %v8638 = vpow.pop %v8637
        %v8639 = vmul.f32 %v8619, 1.442695
        %v8640 = vpow.pop %v8639
        %v8641 = vmul.f32 %v8620, 1.442695
        %v8642 = vpow.pop %v8641
        %v8643 = vmul.f32 %v8621, 1.442695
        %v8644 = vpow.pop %v8643
        %v8645 = vmul.f32 %v8622, 1.442695
        %v8646 = vpow.pop %v8645
        %v8647 = vmul.f32 %v8623, 1.442695
        %v8648 = vpow.pop %v8647
        %v8649 = vmul.f32 %v8624, 1.442695
        %v8650 = vpow.pop %v8649
        %v8651 = vmul.f32 %v8625, 1.442695
        %v8652 = vpow.pop %v8651
        %v8653 = vmul.f32 %v8626, 1.442695
        %v8654 = vpow.pop %v8653
        %v8655 = vmul.f32 %v8627, 1.442695
        %v8656 = vpow.pop %v8655
        %v8657 = vmul.f32 %v8628, 1.442695
        %v8658 = vpow.pop %v8657
        %v8659 = vmul.f32 %v8629, 1.442695
        %v8660 = vpow.pop %v8659
        %v8661 = vmul.f32 %v8630, 1.442695
        %v8662 = vpow.pop %v8661
        %8663 = vadd.xlane.f32.xlu0 %v8632
        %v8664 = vpop.xlane.xlu0 %8663
        %8665 = vadd.xlane.f32.xlu0 %v8634
        %v8666 = vpop.xlane.xlu0 %8665
        %8667 = vadd.xlane.f32.xlu0 %v8636
        %v8668 = vpop.xlane.xlu0 %8667
        %8669 = vadd.xlane.f32.xlu0 %v8638
        %v8670 = vpop.xlane.xlu0 %8669
        %8671 = vadd.xlane.f32.xlu0 %v8640
        %v8672 = vpop.xlane.xlu0 %8671
        %8673 = vadd.xlane.f32.xlu0 %v8642
        %v8674 = vpop.xlane.xlu0 %8673
        %8675 = vadd.xlane.f32.xlu0 %v8644
        %v8676 = vpop.xlane.xlu0 %8675
        %8677 = vadd.xlane.f32.xlu0 %v8646
        %v8678 = vpop.xlane.xlu0 %8677
        %8679 = vadd.xlane.f32.xlu0 %v8648
        %v8680 = vpop.xlane.xlu0 %8679
        %8681 = vadd.xlane.f32.xlu0 %v8650
        %v8682 = vpop.xlane.xlu0 %8681
        %8683 = vadd.xlane.f32.xlu0 %v8652
        %v8684 = vpop.xlane.xlu0 %8683
        %8685 = vadd.xlane.f32.xlu0 %v8654
        %v8686 = vpop.xlane.xlu0 %8685
        %8687 = vadd.xlane.f32.xlu0 %v8656
        %v8688 = vpop.xlane.xlu0 %8687
        %8689 = vadd.xlane.f32.xlu0 %v8658
        %v8690 = vpop.xlane.xlu0 %8689
        %8691 = vadd.xlane.f32.xlu0 %v8660
        %v8692 = vpop.xlane.xlu0 %8691
        %8693 = vadd.xlane.f32.xlu0 %v8662
        %v8694 = vpop.xlane.xlu0 %8693
        %v8695 = vrcp.pop %v8664
        %v8696 = vrcp.pop %v8666
        %v8697 = vrcp.pop %v8668
        %v8698 = vrcp.pop %v8670
        %v8699 = vrcp.pop %v8672
        %v8700 = vrcp.pop %v8674
        %v8701 = vrcp.pop %v8676
        %v8702 = vrcp.pop %v8678
        %v8703 = vrcp.pop %v8680
        %v8704 = vrcp.pop %v8682
        %v8705 = vrcp.pop %v8684
        %v8706 = vrcp.pop %v8686
        %v8707 = vrcp.pop %v8688
        %v8708 = vrcp.pop %v8690
        %v8709 = vrcp.pop %v8692
        %v8710 = vrcp.pop %v8694
        %v8711 = vmul.f32 %v8632, %v8695
        %v8712 = vmul.f32 %v8634, %v8696
        %v8713 = vmul.f32 %v8636, %v8697
        %v8714 = vmul.f32 %v8638, %v8698
        %v8715 = vmul.f32 %v8640, %v8699
        %v8716 = vmul.f32 %v8642, %v8700
        %v8717 = vmul.f32 %v8644, %v8701
        %v8718 = vmul.f32 %v8646, %v8702
        %v8719 = vmul.f32 %v8648, %v8703
        %v8720 = vmul.f32 %v8650, %v8704
        %v8721 = vmul.f32 %v8652, %v8705
        %v8722 = vmul.f32 %v8654, %v8706
        %v8723 = vmul.f32 %v8656, %v8707
        %v8724 = vmul.f32 %v8658, %v8708
        %v8725 = vmul.f32 %v8660, %v8709
        %v8726 = vmul.f32 %v8662, %v8710
        %v8727 = vpack.c.bf16 %v8712, %v8711
        %v8728 = vpack.c.bf16 %v8714, %v8713
        %v8729 = vpack.c.bf16 %v8716, %v8715
        %v8730 = vpack.c.bf16 %v8718, %v8717
        %v8731 = vpack.c.bf16 %v8720, %v8719
        %v8732 = vpack.c.bf16 %v8722, %v8721
        %v8733 = vpack.c.bf16 %v8724, %v8723
        %v8734 = vpack.c.bf16 %v8726, %v8725
        %8735 = vrot.lane.b32.xlu0 %v1422, 64
        %v8736 = vpop.permute.xlu0 %8735
        %8737 = vrot.lane.b32.xlu0 %v1425, 64
        %v8738 = vpop.permute.xlu0 %8737
        %8739 = vrot.lane.b32.xlu0 %v1428, 64
        %v8740 = vpop.permute.xlu0 %8739
        %8741 = vrot.lane.b32.xlu0 %v1431, 64
        %v8742 = vpop.permute.xlu0 %8741
        %8743 = vrot.lane.b32.xlu0 %v1434, 64
        %v8744 = vpop.permute.xlu0 %8743
        %8745 = vrot.lane.b32.xlu0 %v1437, 64
        %v8746 = vpop.permute.xlu0 %8745
        %8747 = vrot.lane.b32.xlu0 %v1440, 64
        %v8748 = vpop.permute.xlu0 %8747
        %8749 = vrot.lane.b32.xlu0 %v1443, 64
        %v8750 = vpop.permute.xlu0 %8749
        %8759 = vmatprep.subr.bf16.mxu0 0
        %8760 = vmatpush1.bf16.msra.mxu0 %v8736
        %8761 = vmatprep.subr.bf16.mxu0 0
        %8762 = vmatpush1.bf16.msra.mxu0 %v8738
        %8763 = vmatprep.subr.bf16.mxu0 0
        %8764 = vmatpush1.bf16.msra.mxu0 %v8740
        %8765 = vmatprep.subr.bf16.mxu0 0
        %8766 = vmatpush1.bf16.msra.mxu0 %v8742
        %8767 = vmatprep.subr.bf16.mxu0 0
        %8768 = vmatpush1.bf16.msra.mxu0 %v8744
        %8769 = vmatprep.subr.bf16.mxu0 0
        %8770 = vmatpush1.bf16.msra.mxu0 %v8746
        %8771 = vmatprep.subr.bf16.mxu0 0
        %8772 = vmatpush1.bf16.msra.mxu0 %v8748
        %8773 = vmatprep.subr.bf16.mxu0 0
        %8774 = vmatpush1.bf16.msra.mxu0 %v8750
        %8775 = vmatprep.subr.bf16.mxu0 0
        %8776 = vmatpush1.bf16.msra.mxu0 0
        %8777 = vmatprep.subr.bf16.mxu0 0
        %8778 = vmatpush1.bf16.msra.mxu0 0
        %8779 = vmatprep.subr.bf16.mxu0 0
        %8780 = vmatpush1.bf16.msra.mxu0 0
        %8781 = vmatprep.subr.bf16.mxu0 0
        %8782 = vmatpush1.bf16.msra.mxu0 0
        %8783 = vmatprep.subr.bf16.mxu0 0
        %8784 = vmatpush1.bf16.msra.mxu0 0
        %8785 = vmatprep.subr.bf16.mxu0 0
        %8786 = vmatpush1.bf16.msra.mxu0 0
        %8787 = vmatprep.subr.bf16.mxu0 0
        %8788 = vmatpush1.bf16.msra.mxu0 0
        %8789 = vmatprep.subr.bf16.mxu0 0
        %8790 = vmatpush1.bf16.msra.mxu0 0
        %8791 = vmatprep.mubr.bf16.mxu0 0
        %8792 = vmatmul.mubr.bf16.gmra.mrb[0].mxu0 %v8727
        %v8793 = vpop.f32.mrb[0].mxu0
        %v8794 = vadd.f32 0.0, %v8793
        %v8795 = vpop.f32.mrb[0].mxu0
        %v8796 = vpop.f32.mrb[0].mxu0
        %v8797 = vadd.f32 0.0, %v8796
        %v8798 = vpop.f32.mrb[0].mxu0
        %8799 = vmatprep.mubr.bf16.mxu0 0
        %8800 = vmatmul.mubr.bf16.gmra.mrb[0].mxu0 %v8728
        %v8801 = vpop.f32.mrb[0].mxu0
        %v8802 = vadd.f32 0.0, %v8801
        %v8803 = vpop.f32.mrb[0].mxu0
        %v8804 = vpop.f32.mrb[0].mxu0
        %v8805 = vadd.f32 0.0, %v8804
        %v8806 = vpop.f32.mrb[0].mxu0
        %8807 = vmatprep.mubr.bf16.mxu0 0
        %8808 = vmatmul.mubr.bf16.gmra.mrb[0].mxu0 %v8729
        %v8809 = vpop.f32.mrb[0].mxu0
        %v8810 = vadd.f32 0.0, %v8809
        %v8811 = vpop.f32.mrb[0].mxu0
        %v8812 = vpop.f32.mrb[0].mxu0
        %v8813 = vadd.f32 0.0, %v8812
        %v8814 = vpop.f32.mrb[0].mxu0
        %8815 = vmatprep.mubr.bf16.mxu0 0
        %8816 = vmatmul.mubr.bf16.gmra.mrb[0].mxu0 %v8730
        %v8817 = vpop.f32.mrb[0].mxu0
        %v8818 = vadd.f32 0.0, %v8817
        %v8819 = vpop.f32.mrb[0].mxu0
        %v8820 = vpop.f32.mrb[0].mxu0
        %v8821 = vadd.f32 0.0, %v8820
        %v8822 = vpop.f32.mrb[0].mxu0
        %8823 = vmatprep.mubr.bf16.mxu0 0
        %8824 = vmatmul.mubr.bf16.gmra.mrb[0].mxu0 %v8731
        %v8825 = vpop.f32.mrb[0].mxu0
        %v8826 = vadd.f32 0.0, %v8825
        %v8827 = vpop.f32.mrb[0].mxu0
        %v8828 = vpop.f32.mrb[0].mxu0
        %v8829 = vadd.f32 0.0, %v8828
        %v8830 = vpop.f32.mrb[0].mxu0
        %8831 = vmatprep.mubr.bf16.mxu0 0
        %8832 = vmatmul.mubr.bf16.gmra.mrb[0].mxu0 %v8732
        %v8833 = vpop.f32.mrb[0].mxu0
        %v8834 = vadd.f32 0.0, %v8833
        %v8835 = vpop.f32.mrb[0].mxu0
        %v8836 = vpop.f32.mrb[0].mxu0
        %v8837 = vadd.f32 0.0, %v8836
        %v8838 = vpop.f32.mrb[0].mxu0
        %8839 = vmatprep.mubr.bf16.mxu0 0
        %8840 = vmatmul.mubr.bf16.gmra.mrb[0].mxu0 %v8733
        %v8841 = vpop.f32.mrb[0].mxu0
        %v8842 = vadd.f32 0.0, %v8841
        %v8843 = vpop.f32.mrb[0].mxu0
        %v8844 = vpop.f32.mrb[0].mxu0
        %v8845 = vadd.f32 0.0, %v8844
        %v8846 = vpop.f32.mrb[0].mxu0
        %8847 = vmatprep.mubr.bf16.mxu0 0
        %8848 = vmatmul.mubr.bf16.gmra.mrb[0].mxu0 %v8734
        %v8849 = vpop.f32.mrb[0].mxu0
        %v8850 = vadd.f32 0.0, %v8849
        %v8851 = vpop.f32.mrb[0].mxu0
        %v8852 = vpop.f32.mrb[0].mxu0
        %v8853 = vadd.f32 0.0, %v8852
        %v8854 = vpop.f32.mrb[0].mxu0
        %8855 = vdwg.mxu0
        %8856 = vrot.lane.b32.xlu0 %v1420, 32
        %v8857 = vpop.permute.xlu0 %8856
        %8858 = vrot.lane.b32.xlu0 %v1423, 32
        %v8859 = vpop.permute.xlu0 %8858
        %8860 = vrot.lane.b32.xlu0 %v1426, 32
        %v8861 = vpop.permute.xlu0 %8860
        %8862 = vrot.lane.b32.xlu0 %v1429, 32
        %v8863 = vpop.permute.xlu0 %8862
        %8864 = vrot.lane.b32.xlu0 %v1432, 32
        %v8865 = vpop.permute.xlu0 %8864
        %8866 = vrot.lane.b32.xlu0 %v1435, 32
        %v8867 = vpop.permute.xlu0 %8866
        %8868 = vrot.lane.b32.xlu0 %v1438, 32
        %v8869 = vpop.permute.xlu0 %8868
        %8870 = vrot.lane.b32.xlu0 %v1441, 32
        %v8871 = vpop.permute.xlu0 %8870
        %8872 = vrot.lane.b32.xlu0 %v1421, 32
        %v8873 = vpop.permute.xlu0 %8872
        %8874 = vrot.lane.b32.xlu0 %v1424, 32
        %v8875 = vpop.permute.xlu0 %8874
        %8876 = vrot.lane.b32.xlu0 %v1427, 32
        %v8877 = vpop.permute.xlu0 %8876
        %8878 = vrot.lane.b32.xlu0 %v1430, 32
        %v8879 = vpop.permute.xlu0 %8878
        %8880 = vrot.lane.b32.xlu0 %v1433, 32
        %v8881 = vpop.permute.xlu0 %8880
        %8882 = vrot.lane.b32.xlu0 %v1436, 32
        %v8883 = vpop.permute.xlu0 %8882
        %8884 = vrot.lane.b32.xlu0 %v1439, 32
        %v8885 = vpop.permute.xlu0 %8884
        %8886 = vrot.lane.b32.xlu0 %v1442, 32
        %v8887 = vpop.permute.xlu0 %8886
        %v8889 = vsel %vm1460, %v8857, 0
        %v8892 = vsel %vm1460, %v8859, 0
        %v8895 = vsel %vm1460, %v8861, 0
        %v8898 = vsel %vm1460, %v8863, 0
        %v8901 = vsel %vm1460, %v8865, 0
        %v8904 = vsel %vm1460, %v8867, 0
        %v8907 = vsel %vm1460, %v8869, 0
        %v8910 = vsel %vm1460, %v8871, 0
        %v8913 = vsel %vm1460, %v8873, 0
        %v8916 = vsel %vm1460, %v8875, 0
        %v8919 = vsel %vm1460, %v8877, 0
        %v8922 = vsel %vm1460, %v8879, 0
        %v8925 = vsel %vm1460, %v8881, 0
        %v8928 = vsel %vm1460, %v8883, 0
        %v8931 = vsel %vm1460, %v8885, 0
        %v8934 = vsel %vm1460, %v8887, 0
        %8936 = vmatprep.subr.bf16.mxu0 0
        %8937 = vmatpush1.bf16.xpose.msra.mxu0 %v8913
        %8938 = vmatprep.subr.bf16.mxu0 0
        %8939 = vmatpush1.bf16.xpose.msra.mxu0 %v8916
        %8940 = vmatprep.subr.bf16.mxu0 0
        %8941 = vmatpush1.bf16.xpose.msra.mxu0 %v8919
        %8942 = vmatprep.subr.bf16.mxu0 0
        %8943 = vmatpush1.bf16.xpose.msra.mxu0 %v8922
        %8944 = vmatprep.subr.bf16.mxu0 0
        %8945 = vmatpush1.bf16.xpose.msra.mxu0 %v8925
        %8946 = vmatprep.subr.bf16.mxu0 0
        %8947 = vmatpush1.bf16.xpose.msra.mxu0 %v8928
        %8948 = vmatprep.subr.bf16.mxu0 0
        %8949 = vmatpush1.bf16.xpose.msra.mxu0 %v8931
        %8950 = vmatprep.subr.bf16.mxu0 0
        %8951 = vmatpush1.bf16.xpose.msra.mxu0 %v8934
        %8952 = vmatprep.subr.bf16.mxu0 0
        %8953 = vmatpush1.bf16.xpose.msra.mxu0 0
        %8954 = vmatprep.subr.bf16.mxu0 0
        %8955 = vmatpush1.bf16.xpose.msra.mxu0 0
        %8956 = vmatprep.subr.bf16.mxu0 0
        %8957 = vmatpush1.bf16.xpose.msra.mxu0 0
        %8958 = vmatprep.subr.bf16.mxu0 0
        %8959 = vmatpush1.bf16.xpose.msra.mxu0 0
        %8960 = vmatprep.subr.bf16.mxu0 0
        %8961 = vmatpush1.bf16.xpose.msra.mxu0 0
        %8962 = vmatprep.subr.bf16.mxu0 0
        %8963 = vmatpush1.bf16.xpose.msra.mxu0 0
        %8964 = vmatprep.subr.bf16.mxu0 0
        %8965 = vmatpush1.bf16.xpose.msra.mxu0 0
        %8966 = vmatprep.subr.bf16.mxu0 0
        %8967 = vmatpush1.bf16.xpose.msra.mxu0 0
        %8968 = vmatprep.mubr.bf16.mxu0 0
        %8969 = vmatmul.mubr.bf16.gmra.mrb[0].mxu0 %v8889
        %v8970 = vpop.f32.mrb[0].mxu0
        %v8971 = vadd.f32 %v2814, %v8970
        %v8972 = vpop.f32.mrb[0].mxu0
        %v8973 = vpop.f32.mrb[0].mxu0
        %v8974 = vadd.f32 %v2815, %v8973
        %v8975 = vpop.f32.mrb[0].mxu0
        %8976 = vmatprep.mubr.bf16.mxu0 0
        %8977 = vmatmul.mubr.bf16.gmra.mrb[0].mxu0 %v8892
        %v8978 = vpop.f32.mrb[0].mxu0
        %v8979 = vadd.f32 %v2816, %v8978
        %v8980 = vpop.f32.mrb[0].mxu0
        %v8981 = vpop.f32.mrb[0].mxu0
        %v8982 = vadd.f32 %v2817, %v8981
        %v8983 = vpop.f32.mrb[0].mxu0
        %8984 = vmatprep.mubr.bf16.mxu0 0
        %8985 = vmatmul.mubr.bf16.gmra.mrb[0].mxu0 %v8895
        %v8986 = vpop.f32.mrb[0].mxu0
        %v8987 = vadd.f32 %v2818, %v8986
        %v8988 = vpop.f32.mrb[0].mxu0
        %v8989 = vpop.f32.mrb[0].mxu0
        %v8990 = vadd.f32 %v2819, %v8989
        %v8991 = vpop.f32.mrb[0].mxu0
        %8992 = vmatprep.mubr.bf16.mxu0 0
        %8993 = vmatmul.mubr.bf16.gmra.mrb[0].mxu0 %v8898
        %v8994 = vpop.f32.mrb[0].mxu0
        %v8995 = vadd.f32 %v2820, %v8994
        %v8996 = vpop.f32.mrb[0].mxu0
        %v8997 = vpop.f32.mrb[0].mxu0
        %v8998 = vadd.f32 %v2821, %v8997
        %v8999 = vpop.f32.mrb[0].mxu0
        %9000 = vmatprep.mubr.bf16.mxu0 0
        %9001 = vmatmul.mubr.bf16.gmra.mrb[0].mxu0 %v8901
        %v9002 = vpop.f32.mrb[0].mxu0
        %v9003 = vadd.f32 %v2822, %v9002
        %v9004 = vpop.f32.mrb[0].mxu0
        %v9005 = vpop.f32.mrb[0].mxu0
        %v9006 = vadd.f32 %v2823, %v9005
        %v9007 = vpop.f32.mrb[0].mxu0
        %9008 = vmatprep.mubr.bf16.mxu0 0
        %9009 = vmatmul.mubr.bf16.gmra.mrb[0].mxu0 %v8904
        %v9010 = vpop.f32.mrb[0].mxu0
        %v9011 = vadd.f32 %v2824, %v9010
        %v9012 = vpop.f32.mrb[0].mxu0
        %v9013 = vpop.f32.mrb[0].mxu0
        %v9014 = vadd.f32 %v2825, %v9013
        %v9015 = vpop.f32.mrb[0].mxu0
        %9016 = vmatprep.mubr.bf16.mxu0 0
        %9017 = vmatmul.mubr.bf16.gmra.mrb[0].mxu0 %v8907
        %v9018 = vpop.f32.mrb[0].mxu0
        %v9019 = vadd.f32 %v2826, %v9018
        %v9020 = vpop.f32.mrb[0].mxu0
        %v9021 = vpop.f32.mrb[0].mxu0
        %v9022 = vadd.f32 %v2827, %v9021
        %v9023 = vpop.f32.mrb[0].mxu0
        %9024 = vmatprep.mubr.bf16.mxu0 0
        %9025 = vmatmul.mubr.bf16.gmra.mrb[0].mxu0 %v8910
        %v9026 = vpop.f32.mrb[0].mxu0
        %v9027 = vadd.f32 %v2828, %v9026
        %v9028 = vpop.f32.mrb[0].mxu0
        %v9029 = vpop.f32.mrb[0].mxu0
        %v9030 = vadd.f32 %v2829, %v9029
        %v9031 = vpop.f32.mrb[0].mxu0
        %9032 = vdwg.mxu0
        %9033 = vmax.xlane.f32.xlu0 %v8971
        %v9034 = vpop.xlane.xlu0 %9033
        %9035 = vmax.xlane.f32.xlu0 %v8974
        %v9036 = vpop.xlane.xlu0 %9035
        %9037 = vmax.xlane.f32.xlu0 %v8979
        %v9038 = vpop.xlane.xlu0 %9037
        %9039 = vmax.xlane.f32.xlu0 %v8982
        %v9040 = vpop.xlane.xlu0 %9039
        %9041 = vmax.xlane.f32.xlu0 %v8987
        %v9042 = vpop.xlane.xlu0 %9041
        %9043 = vmax.xlane.f32.xlu0 %v8990
        %v9044 = vpop.xlane.xlu0 %9043
        %9045 = vmax.xlane.f32.xlu0 %v8995
        %v9046 = vpop.xlane.xlu0 %9045
        %9047 = vmax.xlane.f32.xlu0 %v8998
        %v9048 = vpop.xlane.xlu0 %9047
        %9049 = vmax.xlane.f32.xlu0 %v9003
        %v9050 = vpop.xlane.xlu0 %9049
        %9051 = vmax.xlane.f32.xlu0 %v9006
        %v9052 = vpop.xlane.xlu0 %9051
        %9053 = vmax.xlane.f32.xlu0 %v9011
        %v9054 = vpop.xlane.xlu0 %9053
        %9055 = vmax.xlane.f32.xlu0 %v9014
        %v9056 = vpop.xlane.xlu0 %9055
        %9057 = vmax.xlane.f32.xlu0 %v9019
        %v9058 = vpop.xlane.xlu0 %9057
        %9059 = vmax.xlane.f32.xlu0 %v9022
        %v9060 = vpop.xlane.xlu0 %9059
        %9061 = vmax.xlane.f32.xlu0 %v9027
        %v9062 = vpop.xlane.xlu0 %9061
        %9063 = vmax.xlane.f32.xlu0 %v9030
        %v9064 = vpop.xlane.xlu0 %9063
        %v9065 = vsub.f32 %v8971, %v9034
        %v9066 = vsub.f32 %v8974, %v9036
        %v9067 = vsub.f32 %v8979, %v9038
        %v9068 = vsub.f32 %v8982, %v9040
        %v9069 = vsub.f32 %v8987, %v9042
        %v9070 = vsub.f32 %v8990, %v9044
        %v9071 = vsub.f32 %v8995, %v9046
        %v9072 = vsub.f32 %v8998, %v9048
        %v9073 = vsub.f32 %v9003, %v9050
        %v9074 = vsub.f32 %v9006, %v9052
        %v9075 = vsub.f32 %v9011, %v9054
        %v9076 = vsub.f32 %v9014, %v9056
        %v9077 = vsub.f32 %v9019, %v9058
        %v9078 = vsub.f32 %v9022, %v9060
        %v9079 = vsub.f32 %v9027, %v9062
        %v9080 = vsub.f32 %v9030, %v9064
        %v9081 = vmul.f32 %v9065, 1.442695
        %v9082 = vpow.pop %v9081
        %v9083 = vmul.f32 %v9066, 1.442695
        %v9084 = vpow.pop %v9083
        %v9085 = vmul.f32 %v9067, 1.442695
        %v9086 = vpow.pop %v9085
        %v9087 = vmul.f32 %v9068, 1.442695
        %v9088 = vpow.pop %v9087
        %v9089 = vmul.f32 %v9069, 1.442695
        %v9090 = vpow.pop %v9089
        %v9091 = vmul.f32 %v9070, 1.442695
        %v9092 = vpow.pop %v9091
        %v9093 = vmul.f32 %v9071, 1.442695
        %v9094 = vpow.pop %v9093
        %v9095 = vmul.f32 %v9072, 1.442695
        %v9096 = vpow.pop %v9095
        %v9097 = vmul.f32 %v9073, 1.442695
        %v9098 = vpow.pop %v9097
        %v9099 = vmul.f32 %v9074, 1.442695
        %v9100 = vpow.pop %v9099
        %v9101 = vmul.f32 %v9075, 1.442695
        %v9102 = vpow.pop %v9101
        %v9103 = vmul.f32 %v9076, 1.442695
        %v9104 = vpow.pop %v9103
        %v9105 = vmul.f32 %v9077, 1.442695
        %v9106 = vpow.pop %v9105
        %v9107 = vmul.f32 %v9078, 1.442695
        %v9108 = vpow.pop %v9107
        %v9109 = vmul.f32 %v9079, 1.442695
        %v9110 = vpow.pop %v9109
        %v9111 = vmul.f32 %v9080, 1.442695
        %v9112 = vpow.pop %v9111
        %9113 = vadd.xlane.f32.xlu0 %v9082
        %v9114 = vpop.xlane.xlu0 %9113
        %9115 = vadd.xlane.f32.xlu0 %v9084
        %v9116 = vpop.xlane.xlu0 %9115
        %9117 = vadd.xlane.f32.xlu0 %v9086
        %v9118 = vpop.xlane.xlu0 %9117
        %9119 = vadd.xlane.f32.xlu0 %v9088
        %v9120 = vpop.xlane.xlu0 %9119
        %9121 = vadd.xlane.f32.xlu0 %v9090
        %v9122 = vpop.xlane.xlu0 %9121
        %9123 = vadd.xlane.f32.xlu0 %v9092
        %v9124 = vpop.xlane.xlu0 %9123
        %9125 = vadd.xlane.f32.xlu0 %v9094
        %v9126 = vpop.xlane.xlu0 %9125
        %9127 = vadd.xlane.f32.xlu0 %v9096
        %v9128 = vpop.xlane.xlu0 %9127
        %9129 = vadd.xlane.f32.xlu0 %v9098
        %v9130 = vpop.xlane.xlu0 %9129
        %9131 = vadd.xlane.f32.xlu0 %v9100
        %v9132 = vpop.xlane.xlu0 %9131
        %9133 = vadd.xlane.f32.xlu0 %v9102
        %v9134 = vpop.xlane.xlu0 %9133
        %9135 = vadd.xlane.f32.xlu0 %v9104
        %v9136 = vpop.xlane.xlu0 %9135
        %9137 = vadd.xlane.f32.xlu0 %v9106
        %v9138 = vpop.xlane.xlu0 %9137
        %9139 = vadd.xlane.f32.xlu0 %v9108
        %v9140 = vpop.xlane.xlu0 %9139
        %9141 = vadd.xlane.f32.xlu0 %v9110
        %v9142 = vpop.xlane.xlu0 %9141
        %9143 = vadd.xlane.f32.xlu0 %v9112
        %v9144 = vpop.xlane.xlu0 %9143
        %v9145 = vrcp.pop %v9114
        %v9146 = vrcp.pop %v9116
        %v9147 = vrcp.pop %v9118
        %v9148 = vrcp.pop %v9120
        %v9149 = vrcp.pop %v9122
        %v9150 = vrcp.pop %v9124
        %v9151 = vrcp.pop %v9126
        %v9152 = vrcp.pop %v9128
        %v9153 = vrcp.pop %v9130
        %v9154 = vrcp.pop %v9132
        %v9155 = vrcp.pop %v9134
        %v9156 = vrcp.pop %v9136
        %v9157 = vrcp.pop %v9138
        %v9158 = vrcp.pop %v9140
        %v9159 = vrcp.pop %v9142
        %v9160 = vrcp.pop %v9144
        %v9161 = vmul.f32 %v9082, %v9145
        %v9162 = vmul.f32 %v9084, %v9146
        %v9163 = vmul.f32 %v9086, %v9147
        %v9164 = vmul.f32 %v9088, %v9148
        %v9165 = vmul.f32 %v9090, %v9149
        %v9166 = vmul.f32 %v9092, %v9150
        %v9167 = vmul.f32 %v9094, %v9151
        %v9168 = vmul.f32 %v9096, %v9152
        %v9169 = vmul.f32 %v9098, %v9153
        %v9170 = vmul.f32 %v9100, %v9154
        %v9171 = vmul.f32 %v9102, %v9155
        %v9172 = vmul.f32 %v9104, %v9156
        %v9173 = vmul.f32 %v9106, %v9157
        %v9174 = vmul.f32 %v9108, %v9158
        %v9175 = vmul.f32 %v9110, %v9159
        %v9176 = vmul.f32 %v9112, %v9160
        %v9177 = vpack.c.bf16 %v9162, %v9161
        %v9178 = vpack.c.bf16 %v9164, %v9163
        %v9179 = vpack.c.bf16 %v9166, %v9165
        %v9180 = vpack.c.bf16 %v9168, %v9167
        %v9181 = vpack.c.bf16 %v9170, %v9169
        %v9182 = vpack.c.bf16 %v9172, %v9171
        %v9183 = vpack.c.bf16 %v9174, %v9173
        %v9184 = vpack.c.bf16 %v9176, %v9175
        %9185 = vrot.lane.b32.xlu0 %v1422, 32
        %v9186 = vpop.permute.xlu0 %9185
        %9187 = vrot.lane.b32.xlu0 %v1425, 32
        %v9188 = vpop.permute.xlu0 %9187
        %9189 = vrot.lane.b32.xlu0 %v1428, 32
        %v9190 = vpop.permute.xlu0 %9189
        %9191 = vrot.lane.b32.xlu0 %v1431, 32
        %v9192 = vpop.permute.xlu0 %9191
        %9193 = vrot.lane.b32.xlu0 %v1434, 32
        %v9194 = vpop.permute.xlu0 %9193
        %9195 = vrot.lane.b32.xlu0 %v1437, 32
        %v9196 = vpop.permute.xlu0 %9195
        %9197 = vrot.lane.b32.xlu0 %v1440, 32
        %v9198 = vpop.permute.xlu0 %9197
        %9199 = vrot.lane.b32.xlu0 %v1443, 32
        %v9200 = vpop.permute.xlu0 %9199
        %9209 = vmatprep.subr.bf16.mxu0 0
        %9210 = vmatpush1.bf16.msra.mxu0 %v9186
        %9211 = vmatprep.subr.bf16.mxu0 0
        %9212 = vmatpush1.bf16.msra.mxu0 %v9188
        %9213 = vmatprep.subr.bf16.mxu0 0
        %9214 = vmatpush1.bf16.msra.mxu0 %v9190
        %9215 = vmatprep.subr.bf16.mxu0 0
        %9216 = vmatpush1.bf16.msra.mxu0 %v9192
        %9217 = vmatprep.subr.bf16.mxu0 0
        %9218 = vmatpush1.bf16.msra.mxu0 %v9194
        %9219 = vmatprep.subr.bf16.mxu0 0
        %9220 = vmatpush1.bf16.msra.mxu0 %v9196
        %9221 = vmatprep.subr.bf16.mxu0 0
        %9222 = vmatpush1.bf16.msra.mxu0 %v9198
        %9223 = vmatprep.subr.bf16.mxu0 0
        %9224 = vmatpush1.bf16.msra.mxu0 %v9200
        %9225 = vmatprep.subr.bf16.mxu0 0
        %9226 = vmatpush1.bf16.msra.mxu0 0
        %9227 = vmatprep.subr.bf16.mxu0 0
        %9228 = vmatpush1.bf16.msra.mxu0 0
        %9229 = vmatprep.subr.bf16.mxu0 0
        %9230 = vmatpush1.bf16.msra.mxu0 0
        %9231 = vmatprep.subr.bf16.mxu0 0
        %9232 = vmatpush1.bf16.msra.mxu0 0
        %9233 = vmatprep.subr.bf16.mxu0 0
        %9234 = vmatpush1.bf16.msra.mxu0 0
        %9235 = vmatprep.subr.bf16.mxu0 0
        %9236 = vmatpush1.bf16.msra.mxu0 0
        %9237 = vmatprep.subr.bf16.mxu0 0
        %9238 = vmatpush1.bf16.msra.mxu0 0
        %9239 = vmatprep.subr.bf16.mxu0 0
        %9240 = vmatpush1.bf16.msra.mxu0 0
        %9241 = vmatprep.mubr.bf16.mxu0 0
        %9242 = vmatmul.mubr.bf16.gmra.mrb[0].mxu0 %v9177
        %v9243 = vpop.f32.mrb[0].mxu0
        %v9244 = vadd.f32 0.0, %v9243
        %v9245 = vpop.f32.mrb[0].mxu0
        %v9246 = vpop.f32.mrb[0].mxu0
        %v9247 = vadd.f32 0.0, %v9246
        %v9248 = vpop.f32.mrb[0].mxu0
        %9249 = vmatprep.mubr.bf16.mxu0 0
        %9250 = vmatmul.mubr.bf16.gmra.mrb[0].mxu0 %v9178
        %v9251 = vpop.f32.mrb[0].mxu0
        %v9252 = vadd.f32 0.0, %v9251
        %v9253 = vpop.f32.mrb[0].mxu0
        %v9254 = vpop.f32.mrb[0].mxu0
        %v9255 = vadd.f32 0.0, %v9254
        %v9256 = vpop.f32.mrb[0].mxu0
        %9257 = vmatprep.mubr.bf16.mxu0 0
        %9258 = vmatmul.mubr.bf16.gmra.mrb[0].mxu0 %v9179
        %v9259 = vpop.f32.mrb[0].mxu0
        %v9260 = vadd.f32 0.0, %v9259
        %v9261 = vpop.f32.mrb[0].mxu0
        %v9262 = vpop.f32.mrb[0].mxu0
        %v9263 = vadd.f32 0.0, %v9262
        %v9264 = vpop.f32.mrb[0].mxu0
        %9265 = vmatprep.mubr.bf16.mxu0 0
        %9266 = vmatmul.mubr.bf16.gmra.mrb[0].mxu0 %v9180
        %v9267 = vpop.f32.mrb[0].mxu0
        %v9268 = vadd.f32 0.0, %v9267
        %v9269 = vpop.f32.mrb[0].mxu0
        %v9270 = vpop.f32.mrb[0].mxu0
        %v9271 = vadd.f32 0.0, %v9270
        %v9272 = vpop.f32.mrb[0].mxu0
        %9273 = vmatprep.mubr.bf16.mxu0 0
        %9274 = vmatmul.mubr.bf16.gmra.mrb[0].mxu0 %v9181
        %v9275 = vpop.f32.mrb[0].mxu0
        %v9276 = vadd.f32 0.0, %v9275
        %v9277 = vpop.f32.mrb[0].mxu0
        %v9278 = vpop.f32.mrb[0].mxu0
        %v9279 = vadd.f32 0.0, %v9278
        %v9280 = vpop.f32.mrb[0].mxu0
        %9281 = vmatprep.mubr.bf16.mxu0 0
        %9282 = vmatmul.mubr.bf16.gmra.mrb[0].mxu0 %v9182
        %v9283 = vpop.f32.mrb[0].mxu0
        %v9284 = vadd.f32 0.0, %v9283
        %v9285 = vpop.f32.mrb[0].mxu0
        %v9286 = vpop.f32.mrb[0].mxu0
        %v9287 = vadd.f32 0.0, %v9286
        %v9288 = vpop.f32.mrb[0].mxu0
        %9289 = vmatprep.mubr.bf16.mxu0 0
        %9290 = vmatmul.mubr.bf16.gmra.mrb[0].mxu0 %v9183
        %v9291 = vpop.f32.mrb[0].mxu0
        %v9292 = vadd.f32 0.0, %v9291
        %v9293 = vpop.f32.mrb[0].mxu0
        %v9294 = vpop.f32.mrb[0].mxu0
        %v9295 = vadd.f32 0.0, %v9294
        %v9296 = vpop.f32.mrb[0].mxu0
        %9297 = vmatprep.mubr.bf16.mxu0 0
        %9298 = vmatmul.mubr.bf16.gmra.mrb[0].mxu0 %v9184
        %v9299 = vpop.f32.mrb[0].mxu0
        %v9300 = vadd.f32 0.0, %v9299
        %v9301 = vpop.f32.mrb[0].mxu0
        %v9302 = vpop.f32.mrb[0].mxu0
        %v9303 = vadd.f32 0.0, %v9302
        %v9304 = vpop.f32.mrb[0].mxu0
        %9305 = vdwg.mxu0
        %9322 = vrot.lane.b32.xlu0 %v8344, 32
        %v9323 = vpop.permute.xlu0 %9322
        %9324 = vrot.lane.b32.xlu0 %v8347, 32
        %v9325 = vpop.permute.xlu0 %9324
        %9326 = vrot.lane.b32.xlu0 %v8352, 32
        %v9327 = vpop.permute.xlu0 %9326
        %9328 = vrot.lane.b32.xlu0 %v8355, 32
        %v9329 = vpop.permute.xlu0 %9328
        %9330 = vrot.lane.b32.xlu0 %v8360, 32
        %v9331 = vpop.permute.xlu0 %9330
        %9332 = vrot.lane.b32.xlu0 %v8363, 32
        %v9333 = vpop.permute.xlu0 %9332
        %9334 = vrot.lane.b32.xlu0 %v8368, 32
        %v9335 = vpop.permute.xlu0 %9334
        %9336 = vrot.lane.b32.xlu0 %v8371, 32
        %v9337 = vpop.permute.xlu0 %9336
        %9338 = vrot.lane.b32.xlu0 %v8376, 32
        %v9339 = vpop.permute.xlu0 %9338
        %9340 = vrot.lane.b32.xlu0 %v8379, 32
        %v9341 = vpop.permute.xlu0 %9340
        %9342 = vrot.lane.b32.xlu0 %v8384, 32
        %v9343 = vpop.permute.xlu0 %9342
        %9344 = vrot.lane.b32.xlu0 %v8387, 32
        %v9345 = vpop.permute.xlu0 %9344
        %9346 = vrot.lane.b32.xlu0 %v8392, 32
        %v9347 = vpop.permute.xlu0 %9346
        %9348 = vrot.lane.b32.xlu0 %v8395, 32
        %v9349 = vpop.permute.xlu0 %9348
        %9350 = vrot.lane.b32.xlu0 %v8400, 32
        %v9351 = vpop.permute.xlu0 %9350
        %9352 = vrot.lane.b32.xlu0 %v8403, 32
        %v9353 = vpop.permute.xlu0 %9352
        %9386 = vrot.lane.b32.xlu0 %v8794, 64
        %v9387 = vpop.permute.xlu0 %9386
        %9388 = vrot.lane.b32.xlu0 %v8797, 64
        %v9389 = vpop.permute.xlu0 %9388
        %9390 = vrot.lane.b32.xlu0 %v8802, 64
        %v9391 = vpop.permute.xlu0 %9390
        %9392 = vrot.lane.b32.xlu0 %v8805, 64
        %v9393 = vpop.permute.xlu0 %9392
        %9394 = vrot.lane.b32.xlu0 %v8810, 64
        %v9395 = vpop.permute.xlu0 %9394
        %9396 = vrot.lane.b32.xlu0 %v8813, 64
        %v9397 = vpop.permute.xlu0 %9396
        %9398 = vrot.lane.b32.xlu0 %v8818, 64
        %v9399 = vpop.permute.xlu0 %9398
        %9400 = vrot.lane.b32.xlu0 %v8821, 64
        %v9401 = vpop.permute.xlu0 %9400
        %9402 = vrot.lane.b32.xlu0 %v8826, 64
        %v9403 = vpop.permute.xlu0 %9402
        %9404 = vrot.lane.b32.xlu0 %v8829, 64
        %v9405 = vpop.permute.xlu0 %9404
        %9406 = vrot.lane.b32.xlu0 %v8834, 64
        %v9407 = vpop.permute.xlu0 %9406
        %9408 = vrot.lane.b32.xlu0 %v8837, 64
        %v9409 = vpop.permute.xlu0 %9408
        %9410 = vrot.lane.b32.xlu0 %v8842, 64
        %v9411 = vpop.permute.xlu0 %9410
        %9412 = vrot.lane.b32.xlu0 %v8845, 64
        %v9413 = vpop.permute.xlu0 %9412
        %9414 = vrot.lane.b32.xlu0 %v8850, 64
        %v9415 = vpop.permute.xlu0 %9414
        %9416 = vrot.lane.b32.xlu0 %v8853, 64
        %v9417 = vpop.permute.xlu0 %9416
        %9450 = vrot.lane.b32.xlu0 %v9244, 96
        %v9451 = vpop.permute.xlu0 %9450
        %9452 = vrot.lane.b32.xlu0 %v9247, 96
        %v9453 = vpop.permute.xlu0 %9452
        %9454 = vrot.lane.b32.xlu0 %v9252, 96
        %v9455 = vpop.permute.xlu0 %9454
        %9456 = vrot.lane.b32.xlu0 %v9255, 96
        %v9457 = vpop.permute.xlu0 %9456
        %9458 = vrot.lane.b32.xlu0 %v9260, 96
        %v9459 = vpop.permute.xlu0 %9458
        %9460 = vrot.lane.b32.xlu0 %v9263, 96
        %v9461 = vpop.permute.xlu0 %9460
        %9462 = vrot.lane.b32.xlu0 %v9268, 96
        %v9463 = vpop.permute.xlu0 %9462
        %9464 = vrot.lane.b32.xlu0 %v9271, 96
        %v9465 = vpop.permute.xlu0 %9464
        %9466 = vrot.lane.b32.xlu0 %v9276, 96
        %v9467 = vpop.permute.xlu0 %9466
        %9468 = vrot.lane.b32.xlu0 %v9279, 96
        %v9469 = vpop.permute.xlu0 %9468
        %9470 = vrot.lane.b32.xlu0 %v9284, 96
        %v9471 = vpop.permute.xlu0 %9470
        %9472 = vrot.lane.b32.xlu0 %v9287, 96
        %v9473 = vpop.permute.xlu0 %9472
        %9474 = vrot.lane.b32.xlu0 %v9292, 96
        %v9475 = vpop.permute.xlu0 %9474
        %9476 = vrot.lane.b32.xlu0 %v9295, 96
        %v9477 = vpop.permute.xlu0 %9476
        %9478 = vrot.lane.b32.xlu0 %v9300, 96
        %v9479 = vpop.permute.xlu0 %9478
        %9480 = vrot.lane.b32.xlu0 %v9303, 96
        %v9481 = vpop.permute.xlu0 %9480
        %v9498 = vsel %vm1460, %v7870, %v9323
        %v9499 = vsel %vm1460, %v7873, %v9325
        %v9500 = vsel %vm1460, %v7878, %v9327
        %v9501 = vsel %vm1460, %v7881, %v9329
        %v9502 = vsel %vm1460, %v7886, %v9331
        %v9503 = vsel %vm1460, %v7889, %v9333
        %v9504 = vsel %vm1460, %v7894, %v9335
        %v9505 = vsel %vm1460, %v7897, %v9337
        %v9506 = vsel %vm1460, %v7902, %v9339
        %v9507 = vsel %vm1460, %v7905, %v9341
        %v9508 = vsel %vm1460, %v7910, %v9343
        %v9509 = vsel %vm1460, %v7913, %v9345
        %v9510 = vsel %vm1460, %v7918, %v9347
        %v9511 = vsel %vm1460, %v7921, %v9349
        %v9512 = vsel %vm1460, %v7926, %v9351
        %v9513 = vsel %vm1460, %v7929, %v9353
        %v9514 = vsel %vm3488, %v9498, %v9387
        %v9515 = vsel %vm3488, %v9499, %v9389
        %v9516 = vsel %vm3488, %v9500, %v9391
        %v9517 = vsel %vm3488, %v9501, %v9393
        %v9518 = vsel %vm3488, %v9502, %v9395
        %v9519 = vsel %vm3488, %v9503, %v9397
        %v9520 = vsel %vm3488, %v9504, %v9399
        %v9521 = vsel %vm3488, %v9505, %v9401
        %v9522 = vsel %vm3488, %v9506, %v9403
        %v9523 = vsel %vm3488, %v9507, %v9405
        %v9524 = vsel %vm3488, %v9508, %v9407
        %v9525 = vsel %vm3488, %v9509, %v9409
        %v9526 = vsel %vm3488, %v9510, %v9411
        %v9527 = vsel %vm3488, %v9511, %v9413
        %v9528 = vsel %vm3488, %v9512, %v9415
        %v9529 = vsel %vm3488, %v9513, %v9417
        %v9530 = vsel %vm3505, %v9514, %v9451
        %v9531 = vsel %vm3505, %v9515, %v9453
        %v9532 = vsel %vm3505, %v9516, %v9455
        %v9533 = vsel %vm3505, %v9517, %v9457
        %v9534 = vsel %vm3505, %v9518, %v9459
        %v9535 = vsel %vm3505, %v9519, %v9461
        %v9536 = vsel %vm3505, %v9520, %v9463
        %v9537 = vsel %vm3505, %v9521, %v9465
        %v9538 = vsel %vm3505, %v9522, %v9467
        %v9539 = vsel %vm3505, %v9523, %v9469
        %v9540 = vsel %vm3505, %v9524, %v9471
        %v9541 = vsel %vm3505, %v9525, %v9473
        %v9542 = vsel %vm3505, %v9526, %v9475
        %v9543 = vsel %vm3505, %v9527, %v9477
        %v9544 = vsel %vm3505, %v9528, %v9479
        %v9545 = vsel %vm3505, %v9529, %v9481
        %v9546 = vpack.c.bf16 %v3507, %v3506
        %v9547 = vpack.c.bf16 %v3509, %v3508
        %v9548 = vpack.c.bf16 %v3511, %v3510
        %v9549 = vpack.c.bf16 %v3513, %v3512
        %v9550 = vpack.c.bf16 %v3515, %v3514
        %v9551 = vpack.c.bf16 %v3517, %v3516
        %v9552 = vpack.c.bf16 %v3519, %v3518
        %v9553 = vpack.c.bf16 %v3521, %v3520
        %v9554 = vpack.c.bf16 %v5515, %v5514
        %v9555 = vpack.c.bf16 %v5517, %v5516
        %v9556 = vpack.c.bf16 %v5519, %v5518
        %v9557 = vpack.c.bf16 %v5521, %v5520
        %v9558 = vpack.c.bf16 %v5523, %v5522
        %v9559 = vpack.c.bf16 %v5525, %v5524
        %v9560 = vpack.c.bf16 %v5527, %v5526
        %v9561 = vpack.c.bf16 %v5529, %v5528
        %v9562 = vpack.c.bf16 %v7523, %v7522
        %v9563 = vpack.c.bf16 %v7525, %v7524
        %v9564 = vpack.c.bf16 %v7527, %v7526
        %v9565 = vpack.c.bf16 %v7529, %v7528
        %v9566 = vpack.c.bf16 %v7531, %v7530
        %v9567 = vpack.c.bf16 %v7533, %v7532
        %v9568 = vpack.c.bf16 %v7535, %v7534
        %v9569 = vpack.c.bf16 %v7537, %v7536
        %v9570 = vpack.c.bf16 %v9531, %v9530
        %v9571 = vpack.c.bf16 %v9533, %v9532
        %v9572 = vpack.c.bf16 %v9535, %v9534
        %v9573 = vpack.c.bf16 %v9537, %v9536
        %v9574 = vpack.c.bf16 %v9539, %v9538
        %v9575 = vpack.c.bf16 %v9541, %v9540
        %v9576 = vpack.c.bf16 %v9543, %v9542
        %v9577 = vpack.c.bf16 %v9545, %v9544
        %v9578 = vld [vmem:[#allocation8] sm:$0xf]
        %v9579 = vld [vmem:[#allocation8 + $0x4] sm:$0xf]
        %v9580 = vld [vmem:[#allocation8 + $0x8] sm:$0xf]
        %v9581 = vld [vmem:[#allocation8 + $0xc] sm:$0xf]
        %v9582 = vld [vmem:[#allocation8 + $0x10] sm:$0xf]
        %v9583 = vld [vmem:[#allocation8 + $0x14] sm:$0xf]
        %v9584 = vld [vmem:[#allocation8 + $0x18] sm:$0xf]
        %v9585 = vld [vmem:[#allocation8 + $0x1c] sm:$0xf]
        %v9586 = vld [vmem:[#allocation8 + $0x20] sm:$0xf]
        %v9587 = vld [vmem:[#allocation8 + $0x24] sm:$0xf]
        %v9588 = vld [vmem:[#allocation8 + $0x28] sm:$0xf]
        %v9589 = vld [vmem:[#allocation8 + $0x2c] sm:$0xf]
        %v9590 = vld [vmem:[#allocation8 + $0x30] sm:$0xf]
        %v9591 = vld [vmem:[#allocation8 + $0x34] sm:$0xf]
        %v9592 = vld [vmem:[#allocation8 + $0x38] sm:$0xf]
        %v9593 = vld [vmem:[#allocation8 + $0x3c] sm:$0xf]
        %v9594 = vld [vmem:[%s4] sm:$0x1]
        %v9596 = vlaneseq
        %v9597 = vshrl.u32 %v9596, 7
        %v9598 = vsub.s32 0, %v9597
        %v9599 = vrot.slane %v9594, %v9598
        %v9617 = vunpack.c.l.b16 %v9578
        %v9618 = vunpack.c.l.b16 %v9579
        %v9619 = vunpack.c.l.b16 %v9580
        %v9620 = vunpack.c.l.b16 %v9581
        %v9621 = vunpack.c.l.b16 %v9582
        %v9622 = vunpack.c.l.b16 %v9583
        %v9623 = vunpack.c.l.b16 %v9584
        %v9624 = vunpack.c.l.b16 %v9585
        %v9625 = vunpack.c.l.b16 %v9586
        %v9626 = vunpack.c.l.b16 %v9587
        %v9627 = vunpack.c.l.b16 %v9588
        %v9628 = vunpack.c.l.b16 %v9589
        %v9629 = vunpack.c.l.b16 %v9590
        %v9630 = vunpack.c.l.b16 %v9591
        %v9631 = vunpack.c.l.b16 %v9592
        %v9632 = vunpack.c.l.b16 %v9593
        %v9633 = vpack.c.b16 %v9618, %v9617
        %v9634 = vpack.c.b16 %v9620, %v9619
        %v9635 = vpack.c.b16 %v9622, %v9621
        %v9636 = vpack.c.b16 %v9624, %v9623
        %v9637 = vpack.c.b16 %v9626, %v9625
        %v9638 = vpack.c.b16 %v9628, %v9627
        %v9639 = vpack.c.b16 %v9630, %v9629
        %v9640 = vpack.c.b16 %v9632, %v9631
        %9649 = vmatprep.subr.bf16.mxu0 0
        %9650 = vmatpush1.bf16.msra.mxu0 %v9633
        %9651 = vmatprep.subr.bf16.mxu0 0
        %9652 = vmatpush1.bf16.msra.mxu0 %v9634
        %9653 = vmatprep.subr.bf16.mxu0 0
        %9654 = vmatpush1.bf16.msra.mxu0 %v9635
        %9655 = vmatprep.subr.bf16.mxu0 0
        %9656 = vmatpush1.bf16.msra.mxu0 %v9636
        %9657 = vmatprep.subr.bf16.mxu0 0
        %9658 = vmatpush1.bf16.msra.mxu0 %v9637
        %9659 = vmatprep.subr.bf16.mxu0 0
        %9660 = vmatpush1.bf16.msra.mxu0 %v9638
        %9661 = vmatprep.subr.bf16.mxu0 0
        %9662 = vmatpush1.bf16.msra.mxu0 %v9639
        %9663 = vmatprep.subr.bf16.mxu0 0
        %9664 = vmatpush1.bf16.msra.mxu0 %v9640
        %9665 = vmatprep.subr.bf16.mxu0 0
        %9666 = vmatpush1.bf16.msra.mxu0 0
        %9667 = vmatprep.subr.bf16.mxu0 0
        %9668 = vmatpush1.bf16.msra.mxu0 0
        %9669 = vmatprep.subr.bf16.mxu0 0
        %9670 = vmatpush1.bf16.msra.mxu0 0
        %9671 = vmatprep.subr.bf16.mxu0 0
        %9672 = vmatpush1.bf16.msra.mxu0 0
        %9673 = vmatprep.subr.bf16.mxu0 0
        %9674 = vmatpush1.bf16.msra.mxu0 0
        %9675 = vmatprep.subr.bf16.mxu0 0
        %9676 = vmatpush1.bf16.msra.mxu0 0
        %9677 = vmatprep.subr.bf16.mxu0 0
        %9678 = vmatpush1.bf16.msra.mxu0 0
        %9679 = vmatprep.subr.bf16.mxu0 0
        %9680 = vmatpush1.bf16.msra.mxu0 0
        %9681 = vmatprep.mubr.bf16.mxu0 0
        %9682 = vmatmul.mubr.bf16.gmra.mrb[0].mxu0 %v9546
        %v9683 = vpop.f32.mrb[0].mxu0
        %v9684 = vadd.f32 %v9599, %v9683
        %v9685 = vpop.f32.mrb[0].mxu0
        %v9686 = vpop.f32.mrb[0].mxu0
        %v9687 = vadd.f32 %v9599, %v9686
        %v9688 = vpop.f32.mrb[0].mxu0
        %9689 = vmatprep.mubr.bf16.mxu0 0
        %9690 = vmatmul.mubr.bf16.gmra.mrb[0].mxu0 %v9547
        %v9691 = vpop.f32.mrb[0].mxu0
        %v9692 = vadd.f32 %v9599, %v9691
        %v9693 = vpop.f32.mrb[0].mxu0
        %v9694 = vpop.f32.mrb[0].mxu0
        %v9695 = vadd.f32 %v9599, %v9694
        %v9696 = vpop.f32.mrb[0].mxu0
        %9697 = vmatprep.mubr.bf16.mxu0 0
        %9698 = vmatmul.mubr.bf16.gmra.mrb[0].mxu0 %v9548
        %v9699 = vpop.f32.mrb[0].mxu0
        %v9700 = vadd.f32 %v9599, %v9699
        %v9701 = vpop.f32.mrb[0].mxu0
        %v9702 = vpop.f32.mrb[0].mxu0
        %v9703 = vadd.f32 %v9599, %v9702
        %v9704 = vpop.f32.mrb[0].mxu0
        %9705 = vmatprep.mubr.bf16.mxu0 0
        %9706 = vmatmul.mubr.bf16.gmra.mrb[0].mxu0 %v9549
        %v9707 = vpop.f32.mrb[0].mxu0
        %v9708 = vadd.f32 %v9599, %v9707
        %v9709 = vpop.f32.mrb[0].mxu0
        %v9710 = vpop.f32.mrb[0].mxu0
        %v9711 = vadd.f32 %v9599, %v9710
        %v9712 = vpop.f32.mrb[0].mxu0
        %9713 = vmatprep.mubr.bf16.mxu0 0
        %9714 = vmatmul.mubr.bf16.gmra.mrb[0].mxu0 %v9550
        %v9715 = vpop.f32.mrb[0].mxu0
        %v9716 = vadd.f32 %v9599, %v9715
        %v9717 = vpop.f32.mrb[0].mxu0
        %v9718 = vpop.f32.mrb[0].mxu0
        %v9719 = vadd.f32 %v9599, %v9718
        %v9720 = vpop.f32.mrb[0].mxu0
        %9721 = vmatprep.mubr.bf16.mxu0 0
        %9722 = vmatmul.mubr.bf16.gmra.mrb[0].mxu0 %v9551
        %v9723 = vpop.f32.mrb[0].mxu0
        %v9724 = vadd.f32 %v9599, %v9723
        %v9725 = vpop.f32.mrb[0].mxu0
        %v9726 = vpop.f32.mrb[0].mxu0
        %v9727 = vadd.f32 %v9599, %v9726
        %v9728 = vpop.f32.mrb[0].mxu0
        %9729 = vmatprep.mubr.bf16.mxu0 0
        %9730 = vmatmul.mubr.bf16.gmra.mrb[0].mxu0 %v9552
        %v9731 = vpop.f32.mrb[0].mxu0
        %v9732 = vadd.f32 %v9599, %v9731
        %v9733 = vpop.f32.mrb[0].mxu0
        %v9734 = vpop.f32.mrb[0].mxu0
        %v9735 = vadd.f32 %v9599, %v9734
        %v9736 = vpop.f32.mrb[0].mxu0
        %9737 = vmatprep.mubr.bf16.mxu0 0
        %9738 = vmatmul.mubr.bf16.gmra.mrb[0].mxu0 %v9553
        %v9739 = vpop.f32.mrb[0].mxu0
        %v9740 = vadd.f32 %v9599, %v9739
        %v9741 = vpop.f32.mrb[0].mxu0
        %v9742 = vpop.f32.mrb[0].mxu0
        %v9743 = vadd.f32 %v9599, %v9742
        %v9744 = vpop.f32.mrb[0].mxu0
        %9745 = vmatprep.mubr.bf16.mxu0 0
        %9746 = vmatmul.mubr.bf16.gmra.mrb[0].mxu0 %v9554
        %v9747 = vpop.f32.mrb[0].mxu0
        %v9748 = vadd.f32 %v9599, %v9747
        %v9749 = vpop.f32.mrb[0].mxu0
        %v9750 = vpop.f32.mrb[0].mxu0
        %v9751 = vadd.f32 %v9599, %v9750
        %v9752 = vpop.f32.mrb[0].mxu0
        %9753 = vmatprep.mubr.bf16.mxu0 0
        %9754 = vmatmul.mubr.bf16.gmra.mrb[0].mxu0 %v9555
        %v9755 = vpop.f32.mrb[0].mxu0
        %v9756 = vadd.f32 %v9599, %v9755
        %v9757 = vpop.f32.mrb[0].mxu0
        %v9758 = vpop.f32.mrb[0].mxu0
        %v9759 = vadd.f32 %v9599, %v9758
        %v9760 = vpop.f32.mrb[0].mxu0
        %9761 = vmatprep.mubr.bf16.mxu0 0
        %9762 = vmatmul.mubr.bf16.gmra.mrb[0].mxu0 %v9556
        %v9763 = vpop.f32.mrb[0].mxu0
        %v9764 = vadd.f32 %v9599, %v9763
        %v9765 = vpop.f32.mrb[0].mxu0
        %v9766 = vpop.f32.mrb[0].mxu0
        %v9767 = vadd.f32 %v9599, %v9766
        %v9768 = vpop.f32.mrb[0].mxu0
        %9769 = vmatprep.mubr.bf16.mxu0 0
        %9770 = vmatmul.mubr.bf16.gmra.mrb[0].mxu0 %v9557
        %v9771 = vpop.f32.mrb[0].mxu0
        %v9772 = vadd.f32 %v9599, %v9771
        %v9773 = vpop.f32.mrb[0].mxu0
        %v9774 = vpop.f32.mrb[0].mxu0
        %v9775 = vadd.f32 %v9599, %v9774
        %v9776 = vpop.f32.mrb[0].mxu0
        %9777 = vmatprep.mubr.bf16.mxu0 0
        %9778 = vmatmul.mubr.bf16.gmra.mrb[0].mxu0 %v9558
        %v9779 = vpop.f32.mrb[0].mxu0
        %v9780 = vadd.f32 %v9599, %v9779
        %v9781 = vpop.f32.mrb[0].mxu0
        %v9782 = vpop.f32.mrb[0].mxu0
        %v9783 = vadd.f32 %v9599, %v9782
        %v9784 = vpop.f32.mrb[0].mxu0
        %9785 = vmatprep.mubr.bf16.mxu0 0
        %9786 = vmatmul.mubr.bf16.gmra.mrb[0].mxu0 %v9559
        %v9787 = vpop.f32.mrb[0].mxu0
        %v9788 = vadd.f32 %v9599, %v9787
        %v9789 = vpop.f32.mrb[0].mxu0
        %v9790 = vpop.f32.mrb[0].mxu0
        %v9791 = vadd.f32 %v9599, %v9790
        %v9792 = vpop.f32.mrb[0].mxu0
        %9793 = vmatprep.mubr.bf16.mxu0 0
        %9794 = vmatmul.mubr.bf16.gmra.mrb[0].mxu0 %v9560
        %v9795 = vpop.f32.mrb[0].mxu0
        %v9796 = vadd.f32 %v9599, %v9795
        %v9797 = vpop.f32.mrb[0].mxu0
        %v9798 = vpop.f32.mrb[0].mxu0
        %v9799 = vadd.f32 %v9599, %v9798
        %v9800 = vpop.f32.mrb[0].mxu0
        %9801 = vmatprep.mubr.bf16.mxu0 0
        %9802 = vmatmul.mubr.bf16.gmra.mrb[0].mxu0 %v9561
        %v9803 = vpop.f32.mrb[0].mxu0
        %v9804 = vadd.f32 %v9599, %v9803
        %v9805 = vpop.f32.mrb[0].mxu0
        %v9806 = vpop.f32.mrb[0].mxu0
        %v9807 = vadd.f32 %v9599, %v9806
        %v9808 = vpop.f32.mrb[0].mxu0
        %9809 = vmatprep.mubr.bf16.mxu0 0
        %9810 = vmatmul.mubr.bf16.gmra.mrb[0].mxu0 %v9562
        %v9811 = vpop.f32.mrb[0].mxu0
        %v9812 = vadd.f32 %v9599, %v9811
        %v9813 = vpop.f32.mrb[0].mxu0
        %v9814 = vpop.f32.mrb[0].mxu0
        %v9815 = vadd.f32 %v9599, %v9814
        %v9816 = vpop.f32.mrb[0].mxu0
        %9817 = vmatprep.mubr.bf16.mxu0 0
        %9818 = vmatmul.mubr.bf16.gmra.mrb[0].mxu0 %v9563
        %v9819 = vpop.f32.mrb[0].mxu0
        %v9820 = vadd.f32 %v9599, %v9819
        %v9821 = vpop.f32.mrb[0].mxu0
        %v9822 = vpop.f32.mrb[0].mxu0
        %v9823 = vadd.f32 %v9599, %v9822
        %v9824 = vpop.f32.mrb[0].mxu0
        %9825 = vmatprep.mubr.bf16.mxu0 0
        %9826 = vmatmul.mubr.bf16.gmra.mrb[0].mxu0 %v9564
        %v9827 = vpop.f32.mrb[0].mxu0
        %v9828 = vadd.f32 %v9599, %v9827
        %v9829 = vpop.f32.mrb[0].mxu0
        %v9830 = vpop.f32.mrb[0].mxu0
        %v9831 = vadd.f32 %v9599, %v9830
        %v9832 = vpop.f32.mrb[0].mxu0
        %9833 = vmatprep.mubr.bf16.mxu0 0
        %9834 = vmatmul.mubr.bf16.gmra.mrb[0].mxu0 %v9565
        %v9835 = vpop.f32.mrb[0].mxu0
        %v9836 = vadd.f32 %v9599, %v9835
        %v9837 = vpop.f32.mrb[0].mxu0
        %v9838 = vpop.f32.mrb[0].mxu0
        %v9839 = vadd.f32 %v9599, %v9838
        %v9840 = vpop.f32.mrb[0].mxu0
        %9841 = vmatprep.mubr.bf16.mxu0 0
        %9842 = vmatmul.mubr.bf16.gmra.mrb[0].mxu0 %v9566
        %v9843 = vpop.f32.mrb[0].mxu0
        %v9844 = vadd.f32 %v9599, %v9843
        %v9845 = vpop.f32.mrb[0].mxu0
        %v9846 = vpop.f32.mrb[0].mxu0
        %v9847 = vadd.f32 %v9599, %v9846
        %v9848 = vpop.f32.mrb[0].mxu0
        %9849 = vmatprep.mubr.bf16.mxu0 0
        %9850 = vmatmul.mubr.bf16.gmra.mrb[0].mxu0 %v9567
        %v9851 = vpop.f32.mrb[0].mxu0
        %v9852 = vadd.f32 %v9599, %v9851
        %v9853 = vpop.f32.mrb[0].mxu0
        %v9854 = vpop.f32.mrb[0].mxu0
        %v9855 = vadd.f32 %v9599, %v9854
        %v9856 = vpop.f32.mrb[0].mxu0
        %9857 = vmatprep.mubr.bf16.mxu0 0
        %9858 = vmatmul.mubr.bf16.gmra.mrb[0].mxu0 %v9568
        %v9859 = vpop.f32.mrb[0].mxu0
        %v9860 = vadd.f32 %v9599, %v9859
        %v9861 = vpop.f32.mrb[0].mxu0
        %v9862 = vpop.f32.mrb[0].mxu0
        %v9863 = vadd.f32 %v9599, %v9862
        %v9864 = vpop.f32.mrb[0].mxu0
        %9865 = vmatprep.mubr.bf16.mxu0 0
        %9866 = vmatmul.mubr.bf16.gmra.mrb[0].mxu0 %v9569
        %v9867 = vpop.f32.mrb[0].mxu0
        %v9868 = vadd.f32 %v9599, %v9867
        %v9869 = vpop.f32.mrb[0].mxu0
        %v9870 = vpop.f32.mrb[0].mxu0
        %v9871 = vadd.f32 %v9599, %v9870
        %v9872 = vpop.f32.mrb[0].mxu0
        %9873 = vmatprep.mubr.bf16.mxu0 0
        %9874 = vmatmul.mubr.bf16.gmra.mrb[0].mxu0 %v9570
        %v9875 = vpop.f32.mrb[0].mxu0
        %v9876 = vadd.f32 %v9599, %v9875
        %v9877 = vpop.f32.mrb[0].mxu0
        %v9878 = vpop.f32.mrb[0].mxu0
        %v9879 = vadd.f32 %v9599, %v9878
        %v9880 = vpop.f32.mrb[0].mxu0
        %9881 = vmatprep.mubr.bf16.mxu0 0
        %9882 = vmatmul.mubr.bf16.gmra.mrb[0].mxu0 %v9571
        %v9883 = vpop.f32.mrb[0].mxu0
        %v9884 = vadd.f32 %v9599, %v9883
        %v9885 = vpop.f32.mrb[0].mxu0
        %v9886 = vpop.f32.mrb[0].mxu0
        %v9887 = vadd.f32 %v9599, %v9886
        %v9888 = vpop.f32.mrb[0].mxu0
        %9889 = vmatprep.mubr.bf16.mxu0 0
        %9890 = vmatmul.mubr.bf16.gmra.mrb[0].mxu0 %v9572
        %v9891 = vpop.f32.mrb[0].mxu0
        %v9892 = vadd.f32 %v9599, %v9891
        %v9893 = vpop.f32.mrb[0].mxu0
        %v9894 = vpop.f32.mrb[0].mxu0
        %v9895 = vadd.f32 %v9599, %v9894
        %v9896 = vpop.f32.mrb[0].mxu0
        %9897 = vmatprep.mubr.bf16.mxu0 0
        %9898 = vmatmul.mubr.bf16.gmra.mrb[0].mxu0 %v9573
        %v9899 = vpop.f32.mrb[0].mxu0
        %v9900 = vadd.f32 %v9599, %v9899
        %v9901 = vpop.f32.mrb[0].mxu0
        %v9902 = vpop.f32.mrb[0].mxu0
        %v9903 = vadd.f32 %v9599, %v9902
        %v9904 = vpop.f32.mrb[0].mxu0
        %9905 = vmatprep.mubr.bf16.mxu0 0
        %9906 = vmatmul.mubr.bf16.gmra.mrb[0].mxu0 %v9574
        %v9907 = vpop.f32.mrb[0].mxu0
        %v9908 = vadd.f32 %v9599, %v9907
        %v9909 = vpop.f32.mrb[0].mxu0
        %v9910 = vpop.f32.mrb[0].mxu0
        %v9911 = vadd.f32 %v9599, %v9910
        %v9912 = vpop.f32.mrb[0].mxu0
        %9913 = vmatprep.mubr.bf16.mxu0 0
        %9914 = vmatmul.mubr.bf16.gmra.mrb[0].mxu0 %v9575
        %v9915 = vpop.f32.mrb[0].mxu0
        %v9916 = vadd.f32 %v9599, %v9915
        %v9917 = vpop.f32.mrb[0].mxu0
        %v9918 = vpop.f32.mrb[0].mxu0
        %v9919 = vadd.f32 %v9599, %v9918
        %v9920 = vpop.f32.mrb[0].mxu0
        %9921 = vmatprep.mubr.bf16.mxu0 0
        %9922 = vmatmul.mubr.bf16.gmra.mrb[0].mxu0 %v9576
        %v9923 = vpop.f32.mrb[0].mxu0
        %v9924 = vadd.f32 %v9599, %v9923
        %v9925 = vpop.f32.mrb[0].mxu0
        %v9926 = vpop.f32.mrb[0].mxu0
        %v9927 = vadd.f32 %v9599, %v9926
        %v9928 = vpop.f32.mrb[0].mxu0
        %9929 = vmatprep.mubr.bf16.mxu0 0
        %9930 = vmatmul.mubr.bf16.gmra.mrb[0].mxu0 %v9577
        %v9931 = vpop.f32.mrb[0].mxu0
        %v9932 = vadd.f32 %v9599, %v9931
        %v9933 = vpop.f32.mrb[0].mxu0
        %v9934 = vpop.f32.mrb[0].mxu0
        %v9935 = vadd.f32 %v9599, %v9934
        %v9936 = vpop.f32.mrb[0].mxu0
        %9937 = vdwg.mxu0
        %9938 = vst [vmem:[%s286] sm:$0xff] %v9684
        %9939 = vst [vmem:[%s286 + $0x8] sm:$0xff] %v9687
        %9940 = vst [vmem:[%s286 + $0x10] sm:$0xff] %v9692
        %9941 = vst [vmem:[%s286 + $0x18] sm:$0xff] %v9695
        %9942 = vst [vmem:[%s286 + $0x20] sm:$0xff] %v9700
        %9943 = vst [vmem:[%s286 + $0x28] sm:$0xff] %v9703
        %9944 = vst [vmem:[%s286 + $0x30] sm:$0xff] %v9708
        %9945 = vst [vmem:[%s286 + $0x38] sm:$0xff] %v9711
        %9946 = vst [vmem:[%s286 + $0x40] sm:$0xff] %v9716
        %9947 = vst [vmem:[%s286 + $0x48] sm:$0xff] %v9719
        %9948 = vst [vmem:[%s286 + $0x50] sm:$0xff] %v9724
        %9949 = vst [vmem:[%s286 + $0x58] sm:$0xff] %v9727
        %9950 = vst [vmem:[%s286 + $0x60] sm:$0xff] %v9732
        %9951 = vst [vmem:[%s286 + $0x68] sm:$0xff] %v9735
        %9952 = vst [vmem:[%s286 + $0x70] sm:$0xff] %v9740
        %9953 = vst [vmem:[%s286 + $0x78] sm:$0xff] %v9743
        %9954 = vst [vmem:[%s286 + $0x80] sm:$0xff] %v9748
        %9955 = vst [vmem:[%s286 + $0x88] sm:$0xff] %v9751
        %9956 = vst [vmem:[%s286 + $0x90] sm:$0xff] %v9756
        %9957 = vst [vmem:[%s286 + $0x98] sm:$0xff] %v9759
        %9958 = vst [vmem:[%s286 + $0xa0] sm:$0xff] %v9764
        %9959 = vst [vmem:[%s286 + $0xa8] sm:$0xff] %v9767
        %9960 = vst [vmem:[%s286 + $0xb0] sm:$0xff] %v9772
        %9961 = vst [vmem:[%s286 + $0xb8] sm:$0xff] %v9775
        %9962 = vst [vmem:[%s286 + $0xc0] sm:$0xff] %v9780
        %9963 = vst [vmem:[%s286 + $0xc8] sm:$0xff] %v9783
        %9964 = vst [vmem:[%s286 + $0xd0] sm:$0xff] %v9788
        %9965 = vst [vmem:[%s286 + $0xd8] sm:$0xff] %v9791
        %9966 = vst [vmem:[%s286 + $0xe0] sm:$0xff] %v9796
        %9967 = vst [vmem:[%s286 + $0xe8] sm:$0xff] %v9799
        %9968 = vst [vmem:[%s286 + $0xf0] sm:$0xff] %v9804
        %9969 = vst [vmem:[%s286 + $0xf8] sm:$0xff] %v9807
        %9970 = vst [vmem:[%s286 + $0x100] sm:$0xff] %v9812
        %9971 = vst [vmem:[%s286 + $0x108] sm:$0xff] %v9815
        %9972 = vst [vmem:[%s286 + $0x110] sm:$0xff] %v9820
        %9973 = vst [vmem:[%s286 + $0x118] sm:$0xff] %v9823
        %9974 = vst [vmem:[%s286 + $0x120] sm:$0xff] %v9828
        %9975 = vst [vmem:[%s286 + $0x128] sm:$0xff] %v9831
        %9976 = vst [vmem:[%s286 + $0x130] sm:$0xff] %v9836
        %9977 = vst [vmem:[%s286 + $0x138] sm:$0xff] %v9839
        %9978 = vst [vmem:[%s286 + $0x140] sm:$0xff] %v9844
        %9979 = vst [vmem:[%s286 + $0x148] sm:$0xff] %v9847
        %9980 = vst [vmem:[%s286 + $0x150] sm:$0xff] %v9852
        %9981 = vst [vmem:[%s286 + $0x158] sm:$0xff] %v9855
        %9982 = vst [vmem:[%s286 + $0x160] sm:$0xff] %v9860
        %9983 = vst [vmem:[%s286 + $0x168] sm:$0xff] %v9863
        %9984 = vst [vmem:[%s286 + $0x170] sm:$0xff] %v9868
        %9985 = vst [vmem:[%s286 + $0x178] sm:$0xff] %v9871
        %9986 = vst [vmem:[%s286 + $0x180] sm:$0xff] %v9876
        %9987 = vst [vmem:[%s286 + $0x188] sm:$0xff] %v9879
        %9988 = vst [vmem:[%s286 + $0x190] sm:$0xff] %v9884
        %9989 = vst [vmem:[%s286 + $0x198] sm:$0xff] %v9887
        %9990 = vst [vmem:[%s286 + $0x1a0] sm:$0xff] %v9892
        %9991 = vst [vmem:[%s286 + $0x1a8] sm:$0xff] %v9895
        %9992 = vst [vmem:[%s286 + $0x1b0] sm:$0xff] %v9900
        %9993 = vst [vmem:[%s286 + $0x1b8] sm:$0xff] %v9903
        %9994 = vst [vmem:[%s286 + $0x1c0] sm:$0xff] %v9908
        %9995 = vst [vmem:[%s286 + $0x1c8] sm:$0xff] %v9911
        %9996 = vst [vmem:[%s286 + $0x1d0] sm:$0xff] %v9916
        %9997 = vst [vmem:[%s286 + $0x1d8] sm:$0xff] %v9919
        %9998 = vst [vmem:[%s286 + $0x1e0] sm:$0xff] %v9924
        %9999 = vst [vmem:[%s286 + $0x1e8] sm:$0xff] %v9927
        %10000 = vst [vmem:[%s286 + $0x1f0] sm:$0xff] %v9932
        %10001 = vst [vmem:[%s286 + $0x1f8] sm:$0xff] %v9935
        %s10002 = sand.u32 %s142, 1
        %s10003 = scalar_lea.sflag [#allocation4], %s10002
        %s10004 = sand.u32 %s142, 1
        %s10005 = smul.addr %s10004, 512
        %s10006 = scalar_lea.vmem [#allocation10], %s10005
        // Predicated region
        $region57: #{tpu_custom_call.1} parent=39 // pred_check
          %p10007 = pneg %p152
        $region58: #{tpu_custom_call.1} parent=39 // pred_check_branch
          %10009 = sbr.rel (%p10007) target = $region60
        $region59: #{tpu_custom_call.1} parent=39 // pred_region
          %s10010 = smul.u32 64, %s24
          %s10012 = ssub.s32 8192, 8192
          %10013 = vsyncadd %s10003, %s10012
          %s10014 = smul.addr %s10010, 128
          %s10015 = scalar_lea.hbm %s5, %s10014
          %s10016 = sshll.u32 %s10006, 4
          %s10017 = int_to_ptr.vmem [resolvable:$true] %s10016
          %10022 = dma.vmem_to_hbm [thread:$0]  %s10017, 8192, %s10015, %s10003, 128, 128, 8
        $region60: #{tpu_custom_call.1} parent=39 // pred_fallthru
          _
      $region40: #{tpu_custom_call.1} parent=5 // pred_fallthru
        _
      %p10023 = scmp.le.s32.totalorder 2, %s19
      // Predicated region
      $region61: #{tpu_custom_call.1} parent=5 // pred_check
        %p10024 = pneg %p10023
      $region62: #{tpu_custom_call.1} parent=5 // pred_check_branch
        %10026 = sbr.rel (%p10024) target = $region64
      $region63: #{tpu_custom_call.1} parent=5 // pred_region
        %s10027 = ssub.s32 %s19, 2
        // Predicated region
        $region65: #{tpu_custom_call.1} parent=63 // pred_check
          %p10028 = pneg %p158
        $region66: #{tpu_custom_call.1} parent=63 // pred_check_branch
          %10030 = sbr.rel (%p10028) target = $region68
        $region67: #{tpu_custom_call.1} parent=63 // pred_region
          %s10031 = sand.u32 %s143, 1
          %s10032 = scalar_lea.sflag [#allocation4], %s10031
          %s10033 = sand.u32 %s143, 1
          %s10034 = smul.addr %s10033, 512
          %s10035 = scalar_lea.vmem [#allocation10], %s10034
          %10036 = dma.done %s10032, 8192
        $region68: #{tpu_custom_call.1} parent=63 // pred_fallthru
          _
      $region64: #{tpu_custom_call.1} parent=5 // pred_fallthru
        _
    $region6: #{tpu_custom_call.1} parent=1 // loop_footer
      %s23 = sadd.s32 1, %s19
    $region7: #{tpu_custom_call.1} parent=1 // loop_footer_branch
      %18 = sbr.rel target = $region3
    $region8: #{tpu_custom_call.1} parent=1 // loop_exit
      _
    %10037 = vsyncpa [#allocation3], 1
    %s10038 = scalar_lea.sflag [#allocation3], 1
    %10039 = vsyncpa %s10038, 1
    %10040 = vsyncpa [#allocation6], 1
    %10041 = vsyncpa [#allocation9], 1
    %10042 = vsyncpa [#allocation4], 1
    %s10043 = scalar_lea.sflag [#allocation4], 1
    %10044 = vsyncpa %s10043, 1

</llo_original>
